<compile_context>
chip_gen: v7x
topology: tpu7x:2x2x1
jax: 0.10.0
libtpu: 0.0.40
codegen_flags: <defaults>
</compile_context>

<pallas_src>
import math

import jax
import jax.numpy as jnp
from jax.experimental import pallas as pl
from jax.experimental.pallas import tpu as pltpu


_BN_EPS = 1e-5
_LANE = 128


def _round_up(x, m):
    return ((x + m - 1) // m) * m


def _default_tiling():
    """(batch_tile, tensorcores_per_chip) picked per TPU generation."""
    kind = ""
    try:
        kind = jax.devices()[0].device_kind.lower()
    except Exception:
        pass
    if "v5e" in kind or "v5 lite" in kind or "v5lite" in kind:
        return 256, 1            # v5e: 16 MiB scoped VMEM default -> small tile
    if "v7" in kind:
        return 1024, 2           # v7x: 2 TensorCores / chip, 64 MiB physical VMEM
    return 1024, 1               # v6e / default: plenty of VMEM headroom


def _choose_batch_tile(B, batch_tile, n_cores):
    """Batch tile: >=16 rows (bf16 sublane pack), multiple of 256 when large,
    and small enough that a big batch splits across all TensorCores."""
    need = _round_up(max(B, 1), 16)
    tb = min(batch_tile, need)
    if n_cores > 1 and need > n_cores * 256:
        tb = min(tb, _round_up(pl.cdiv(need, n_cores), 256))
    return max(tb, 16)


def _mlp_kernel(x_ref,
                w1_ref, b1_ref,
                w2_ref, b2_ref,
                w3_ref, b3_ref,
                w4_ref, b4_ref,
                o_ref):
    # In-kernel f32 -> bf16 cast of the x tile (VPU work, hidden under the MXU).
    x = x_ref[...].astype(w1_ref.dtype)

    # Layer 1: Linear (BN folded) + ReLU.  bf16 operands, f32 accumulation.
    h = jnp.dot(x, w1_ref[...], preferred_element_type=jnp.float32)
    h = jnp.maximum(h + b1_ref[...], 0.0)

    # Layer 2
    h = jnp.dot(h.astype(w2_ref.dtype), w2_ref[...],
                preferred_element_type=jnp.float32)
    h = jnp.maximum(h + b2_ref[...], 0.0)

    # Layer 3
    h = jnp.dot(h.astype(w3_ref.dtype), w3_ref[...],
                preferred_element_type=jnp.float32)
    h = jnp.maximum(h + b3_ref[...], 0.0)

    # Layer 4 (lane-padded output width -> unmasked stores)
    out = jnp.dot(h.astype(w4_ref.dtype), w4_ref[...],
                  preferred_element_type=jnp.float32)
    o_ref[...] = (out + b4_ref[...]).astype(o_ref.dtype)


def one_layer_classifier_forward(x, params, *, batch_tile=None):
    """x: (B, F) float32. params: folded/padded params from prepare_params.
    Returns (B, class_nums) float32."""
    B, F = x.shape
    C = params["class_nums"]
    Cp = params["w4"].shape[1]          # lane-padded class width (multiple of 128)
    assert params["w1"].shape[0] == F, "feat_dim mismatch between x and params"

    default_tile, n_cores = _default_tiling()
    if batch_tile is None:
        batch_tile = default_tile
    batch_tile = _round_up(max(int(batch_tile), 16), 16)

    TB = _choose_batch_tile(B, batch_tile, n_cores)
    B_pad = _round_up(B, TB)

    xk = x
    if B_pad != B:
        xk = jnp.pad(xk, ((0, B_pad - B), (0, 0)))

    args = (xk,
            params["w1"], params["b1"],
            params["w2"], params["b2"],
            params["w3"], params["b3"],
            params["w4"], params["b4"])

    flops = int(2 * B_pad * (F * 1024 + 1024 * 1024 + 1024 * 512 + 512 * Cp))
    bytes_accessed = int(
        B_pad * F * 4                                                   # x tiles
        + sum(int(a.size) * a.dtype.itemsize for a in args[1:])         # weights / biases
        + B_pad * Cp * 4)                                               # output

    def build_call(weight_pipeline_mode):
        def resident_spec(a):
            shape = a.shape
            kwargs = {}
            if weight_pipeline_mode is not None:
                kwargs["pipeline_mode"] = weight_pipeline_mode
            # Constant index_map: stays VMEM-resident, no re-fetch across steps.
            return pl.BlockSpec(shape, lambda i: (0,) * len(shape), **kwargs)

        in_specs = [pl.BlockSpec((TB, F), lambda i: (i, 0))]
        in_specs += [resident_spec(a) for a in args[1:]]
        out_spec = pl.BlockSpec((TB, Cp), lambda i: (i, 0))

        return pl.pallas_call(
            _mlp_kernel,
            out_shape=jax.ShapeDtypeStruct((B_pad, Cp), jnp.float32),
            grid_spec=pltpu.PrefetchScalarGridSpec(
                num_scalar_prefetch=0,
                grid=(B_pad // TB,),
                in_specs=in_specs,
                out_specs=out_spec,
            ),
            compiler_params=pltpu.CompilerParams(
                dimension_semantics=("parallel",),
            ),
            cost_estimate=pl.CostEstimate(
                flops=flops, transcendentals=0, bytes_accessed=bytes_accessed),
        )

    out = None
    # Prefer single-buffered invariant weights (halves their VMEM footprint);
    # fall back to default double buffering if this jax/Mosaic rejects it.
    for w_mode in (pl.Buffered(1), None):
        try:
            out = build_call(w_mode)(*args)
            out = jax.block_until_ready(out)
            break
        except Exception:
            if w_mode is None:
                raise

    return out[:B, :C]


def init_raw_params(key, feat_dim=512, class_nums=2, dtype=jnp.float32):
    """PyTorch-like init: Linear U(+-1/sqrt(fan_in)); BN stats randomized a bit
    so the folding path is actually exercised."""
    dims = [(feat_dim, 1024), (1024, 1024), (1024, 512), (512, class_nums)]
    raw = {}
    for idx, (fan_in, fan_out) in enumerate(dims, start=1):
        key, kw, kb, kg, kbt, km, kv = jax.random.split(key, 7)
        bound = 1.0 / math.sqrt(fan_in)
        # stored as (in, out) = W.T so the kernel computes h @ W_t (== x @ W.T + b)
        raw[f"w{idx}"] = jax.random.uniform(kw, (fan_in, fan_out), dtype, -bound, bound)
        raw[f"b{idx}"] = jax.random.uniform(kb, (fan_out,), dtype, -bound, bound)
        if idx < 4:
            raw[f"gamma{idx}"] = jax.random.uniform(kg, (fan_out,), dtype, 0.5, 1.5)
            raw[f"beta{idx}"] = 0.1 * jax.random.normal(kbt, (fan_out,), dtype)
            raw[f"mean{idx}"] = 0.1 * jax.random.normal(km, (fan_out,), dtype)
            raw[f"var{idx}"] = jax.random.uniform(kv, (fan_out,), dtype, 0.5, 1.5)
    return raw


def prepare_params(raw, class_nums, weight_dtype=jnp.bfloat16):
    """Fold inference-mode BN into the Linear layers, pad the last layer to a
    lane-dense width, and cast weights to bf16 (biases stay f32)."""
    params = {"class_nums": class_nums}
    for idx in range(1, 5):
        w = raw[f"w{idx}"]
        b = raw[f"b{idx}"]
        if idx < 4:
            scale = raw[f"gamma{idx}"] / jnp.sqrt(raw[f"var{idx}"] + _BN_EPS)
            shift = raw[f"beta{idx}"] - raw[f"mean{idx}"] * scale
            w = w * scale[None, :]
            b = b * scale + shift
        else:
            cp = _round_up(class_nums, _LANE)
            w = jnp.pad(w, ((0, 0), (0, cp - class_nums)))
            b = jnp.pad(b, ((0, cp - class_nums),))
        params[f"w{idx}"] = w.astype(weight_dtype)
        params[f"b{idx}"] = b.astype(jnp.float32).reshape(1, -1)
    return params


def reference_forward_folded(x, params):
    """Pure-JAX reference with the *same* folded bf16 weights / f32 accumulation."""
    wdt = params["w1"].dtype
    h = x
    for idx in range(1, 4):
        h = jnp.dot(h.astype(wdt), params[f"w{idx}"],
                    preferred_element_type=jnp.float32) + params[f"b{idx}"]
        h = jnp.maximum(h, 0.0)
    out = jnp.dot(h.astype(wdt), params["w4"],
                  preferred_element_type=jnp.float32) + params["b4"]
    return out[:, :params["class_nums"]]


def reference_forward_raw(x, raw, class_nums):
    """Full-f32 reference on the unfolded PyTorch-style params (sanity check)."""
    h = x
    for idx in range(1, 4):
        h = h @ raw[f"w{idx}"] + raw[f"b{idx}"]
        scale = raw[f"gamma{idx}"] / jnp.sqrt(raw[f"var{idx}"] + _BN_EPS)
        shift = raw[f"beta{idx}"] - raw[f"mean{idx}"] * scale
        h = jnp.maximum(h * scale + shift, 0.0)
    return h @ raw["w4"] + raw["b4"]


if __name__ == "__main__":
    key = jax.random.PRNGKey(0)
    key, kx, kx2, kp = jax.random.split(key, 4)

    # Small shapes: batch=8, feat_dim=64, class_nums=2
    B, F, C = 8, 64, 2
    x = jax.random.normal(kx, (B, F), jnp.float32)

    raw = init_raw_params(kp, feat_dim=F, class_nums=C)
    params = prepare_params(raw, class_nums=C)

    out = one_layer_classifier_forward(x, params)
    out = jax.block_until_ready(out)
    assert out.shape == (B, C)

    # Exact-semantics check (same bf16 weights, f32 accumulation).
    ref = reference_forward_folded(x, params)
    assert jnp.allclose(out, ref, atol=1e-3, rtol=1e-3), "mismatch vs folded reference"

    # Loose check vs the full-f32 unfolded reference (validates BN folding; bf16
    # weights account for the tolerance).
    ref_f32 = reference_forward_raw(x, raw, C)
    assert jnp.allclose(out, ref_f32, atol=5e-2, rtol=5e-2), "mismatch vs f32 reference"

    # Multi-step grid path: ragged batch (40 -> pad 48) with a forced 16-row tile
    # exercises resident weights across several grid steps + batch padding/slicing.
    B2 = 40
    x2 = jax.random.normal(kx2, (B2, F), jnp.float32)
    out2 = jax.block_until_ready(
        one_layer_classifier_forward(x2, params, batch_tile=16))
    ref2 = reference_forward_folded(x2, params)
    assert out2.shape == (B2, C)
    assert jnp.allclose(out2, ref2, atol=1e-3, rtol=1e-3), "multi-step grid mismatch"

    print("KERNEL_OK")
</pallas_src>

<mosaic_0001>
module attributes {stable_mosaic.version = 11 : i64} {
  func.func @_mlp_kernel(%arg0: i32, %arg1: memref<16x64xf32, #tpu.memory_space<vmem>>, %arg2: memref<64x1024xbf16, #tpu.memory_space<vmem>>, %arg3: memref<1x1024xf32, #tpu.memory_space<vmem>>, %arg4: memref<1024x1024xbf16, #tpu.memory_space<vmem>>, %arg5: memref<1x1024xf32, #tpu.memory_space<vmem>>, %arg6: memref<1024x512xbf16, #tpu.memory_space<vmem>>, %arg7: memref<1x512xf32, #tpu.memory_space<vmem>>, %arg8: memref<512x128xbf16, #tpu.memory_space<vmem>>, %arg9: memref<1x128xf32, #tpu.memory_space<vmem>>, %arg10: memref<16x128xf32, #tpu.memory_space<vmem>>) attributes {dimension_semantics = [#tpu.dimension_semantics<parallel>], iteration_bounds = array<i64: 1>, scalar_prefetch = 0 : i64, scratch_operands = 0 : i64, tpu.core_type = #tpu.core_type<tc>, window_params = [{transform_indices = @transform_0, window_bounds = array<i64: 16, 64>}, {pipeline_mode = #tpu.pipeline_mode<synchronous>, transform_indices = @transform_1, window_bounds = array<i64: 64, 1024>}, {pipeline_mode = #tpu.pipeline_mode<synchronous>, transform_indices = @transform_2, window_bounds = array<i64: 1, 1024>}, {pipeline_mode = #tpu.pipeline_mode<synchronous>, transform_indices = @transform_3, window_bounds = array<i64: 1024, 1024>}, {pipeline_mode = #tpu.pipeline_mode<synchronous>, transform_indices = @transform_4, window_bounds = array<i64: 1, 1024>}, {pipeline_mode = #tpu.pipeline_mode<synchronous>, transform_indices = @transform_5, window_bounds = array<i64: 1024, 512>}, {pipeline_mode = #tpu.pipeline_mode<synchronous>, transform_indices = @transform_6, window_bounds = array<i64: 1, 512>}, {pipeline_mode = #tpu.pipeline_mode<synchronous>, transform_indices = @transform_7, window_bounds = array<i64: 512, 128>}, {pipeline_mode = #tpu.pipeline_mode<synchronous>, transform_indices = @transform_8, window_bounds = array<i64: 1, 128>}, {transform_indices = @transform_9, window_bounds = array<i64: 16, 128>}]} {
    %c0 = arith.constant 0 : index
    %c0_0 = arith.constant 0 : index
    %0 = vector.load %arg1[%c0, %c0_0] : memref<16x64xf32, #tpu.memory_space<vmem>>, vector<16x64xf32>
    %1 = arith.truncf %0 : vector<16x64xf32> to vector<16x64xbf16>
    %c0_1 = arith.constant 0 : index
    %c0_2 = arith.constant 0 : index
    %2 = vector.load %arg2[%c0_1, %c0_2] : memref<64x1024xbf16, #tpu.memory_space<vmem>>, vector<64x1024xbf16>
    %cst = arith.constant dense<0.000000e+00> : vector<16x1024xf32>
    %3 = tpu.matmul %1, %2, %cst {dimension_numbers = #tpu.dot_dimension_numbers<[1], [0], [0], [1], [0, 0, 1, 1], [], []>} : vector<16x64xbf16>, vector<64x1024xbf16>, vector<16x1024xf32> -> vector<16x1024xf32>
    %c0_3 = arith.constant 0 : index
    %c0_4 = arith.constant 0 : index
    %4 = vector.load %arg3[%c0_3, %c0_4] : memref<1x1024xf32, #tpu.memory_space<vmem>>, vector<1x1024xf32>
    %5 = vector.broadcast %4 : vector<1x1024xf32> to vector<16x1024xf32>
    %6 = arith.addf %3, %5 : vector<16x1024xf32>
    %cst_5 = arith.constant 0.000000e+00 : f32
    %7 = vector.broadcast %cst_5 : f32 to vector<16x1024xf32>
    %8 = arith.maximumf %6, %7 : vector<16x1024xf32>
    %9 = arith.truncf %8 : vector<16x1024xf32> to vector<16x1024xbf16>
    %c0_6 = arith.constant 0 : index
    %c0_7 = arith.constant 0 : index
    %10 = vector.load %arg4[%c0_6, %c0_7] : memref<1024x1024xbf16, #tpu.memory_space<vmem>>, vector<1024x1024xbf16>
    %cst_8 = arith.constant dense<0.000000e+00> : vector<16x1024xf32>
    %11 = tpu.matmul %9, %10, %cst_8 {dimension_numbers = #tpu.dot_dimension_numbers<[1], [0], [0], [1], [0, 0, 1, 1], [], []>} : vector<16x1024xbf16>, vector<1024x1024xbf16>, vector<16x1024xf32> -> vector<16x1024xf32>
    %c0_9 = arith.constant 0 : index
    %c0_10 = arith.constant 0 : index
    %12 = vector.load %arg5[%c0_9, %c0_10] : memref<1x1024xf32, #tpu.memory_space<vmem>>, vector<1x1024xf32>
    %13 = vector.broadcast %12 : vector<1x1024xf32> to vector<16x1024xf32>
    %14 = arith.addf %11, %13 : vector<16x1024xf32>
    %cst_11 = arith.constant 0.000000e+00 : f32
    %15 = vector.broadcast %cst_11 : f32 to vector<16x1024xf32>
    %16 = arith.maximumf %14, %15 : vector<16x1024xf32>
    %17 = arith.truncf %16 : vector<16x1024xf32> to vector<16x1024xbf16>
    %c0_12 = arith.constant 0 : index
    %c0_13 = arith.constant 0 : index
    %18 = vector.load %arg6[%c0_12, %c0_13] : memref<1024x512xbf16, #tpu.memory_space<vmem>>, vector<1024x512xbf16>
    %cst_14 = arith.constant dense<0.000000e+00> : vector<16x512xf32>
    %19 = tpu.matmul %17, %18, %cst_14 {dimension_numbers = #tpu.dot_dimension_numbers<[1], [0], [0], [1], [0, 0, 1, 1], [], []>} : vector<16x1024xbf16>, vector<1024x512xbf16>, vector<16x512xf32> -> vector<16x512xf32>
    %c0_15 = arith.constant 0 : index
    %c0_16 = arith.constant 0 : index
    %20 = vector.load %arg7[%c0_15, %c0_16] : memref<1x512xf32, #tpu.memory_space<vmem>>, vector<1x512xf32>
    %21 = vector.broadcast %20 : vector<1x512xf32> to vector<16x512xf32>
    %22 = arith.addf %19, %21 : vector<16x512xf32>
    %cst_17 = arith.constant 0.000000e+00 : f32
    %23 = vector.broadcast %cst_17 : f32 to vector<16x512xf32>
    %24 = arith.maximumf %22, %23 : vector<16x512xf32>
    %25 = arith.truncf %24 : vector<16x512xf32> to vector<16x512xbf16>
    %c0_18 = arith.constant 0 : index
    %c0_19 = arith.constant 0 : index
    %26 = vector.load %arg8[%c0_18, %c0_19] : memref<512x128xbf16, #tpu.memory_space<vmem>>, vector<512x128xbf16>
    %cst_20 = arith.constant dense<0.000000e+00> : vector<16x128xf32>
    %27 = tpu.matmul %25, %26, %cst_20 {dimension_numbers = #tpu.dot_dimension_numbers<[1], [0], [0], [1], [0, 0, 1, 1], [], []>} : vector<16x512xbf16>, vector<512x128xbf16>, vector<16x128xf32> -> vector<16x128xf32>
    %c0_21 = arith.constant 0 : index
    %c0_22 = arith.constant 0 : index
    %28 = vector.load %arg9[%c0_21, %c0_22] : memref<1x128xf32, #tpu.memory_space<vmem>>, vector<1x128xf32>
    %29 = vector.broadcast %28 : vector<1x128xf32> to vector<16x128xf32>
    %30 = arith.addf %27, %29 : vector<16x128xf32>
    %c0_23 = arith.constant 0 : index
    %c0_24 = arith.constant 0 : index
    %31 = vector.load %arg10[%c0_23, %c0_24] : memref<16x128xf32, #tpu.memory_space<vmem>>, vector<16x128xf32>
    tpu.vector_store %arg10[%c0_23, %c0_24], %30 {strides = array<i32>} : memref<16x128xf32, #tpu.memory_space<vmem>>, vector<16x128xf32>,
    return
  }
  func.func @transform_0(%arg0: i32) -> (i32, i32) {
    %c0_i32 = arith.constant 0 : i32
    %c0_i32_0 = arith.constant 0 : i32
    return %arg0, %c0_i32 : i32, i32
  }
  func.func @transform_1(%arg0: i32) -> (i32, i32) {
    %c0_i32 = arith.constant 0 : i32
    %c0_i32_0 = arith.constant 0 : i32
    %c0_i32_1 = arith.constant 0 : i32
    return %c0_i32, %c0_i32_0 : i32, i32
  }
  func.func @transform_2(%arg0: i32) -> (i32, i32) {
    %c0_i32 = arith.constant 0 : i32
    %c0_i32_0 = arith.constant 0 : i32
    %c0_i32_1 = arith.constant 0 : i32
    return %c0_i32, %c0_i32_0 : i32, i32
  }
  func.func @transform_3(%arg0: i32) -> (i32, i32) {
    %c0_i32 = arith.constant 0 : i32
    %c0_i32_0 = arith.constant 0 : i32
    %c0_i32_1 = arith.constant 0 : i32
    return %c0_i32, %c0_i32_0 : i32, i32
  }
  func.func @transform_4(%arg0: i32) -> (i32, i32) {
    %c0_i32 = arith.constant 0 : i32
    %c0_i32_0 = arith.constant 0 : i32
    %c0_i32_1 = arith.constant 0 : i32
    return %c0_i32, %c0_i32_0 : i32, i32
  }
  func.func @transform_5(%arg0: i32) -> (i32, i32) {
    %c0_i32 = arith.constant 0 : i32
    %c0_i32_0 = arith.constant 0 : i32
    %c0_i32_1 = arith.constant 0 : i32
    return %c0_i32, %c0_i32_0 : i32, i32
  }
  func.func @transform_6(%arg0: i32) -> (i32, i32) {
    %c0_i32 = arith.constant 0 : i32
    %c0_i32_0 = arith.constant 0 : i32
    %c0_i32_1 = arith.constant 0 : i32
    return %c0_i32, %c0_i32_0 : i32, i32
  }
  func.func @transform_7(%arg0: i32) -> (i32, i32) {
    %c0_i32 = arith.constant 0 : i32
    %c0_i32_0 = arith.constant 0 : i32
    %c0_i32_1 = arith.constant 0 : i32
    return %c0_i32, %c0_i32_0 : i32, i32
  }
  func.func @transform_8(%arg0: i32) -> (i32, i32) {
    %c0_i32 = arith.constant 0 : i32
    %c0_i32_0 = arith.constant 0 : i32
    %c0_i32_1 = arith.constant 0 : i32
    return %c0_i32, %c0_i32_0 : i32, i32
  }
  func.func @transform_9(%arg0: i32) -> (i32, i32) {
    %c0_i32 = arith.constant 0 : i32
    %c0_i32_0 = arith.constant 0 : i32
    return %arg0, %c0_i32 : i32, i32
  }
}

module attributes {stable_mosaic.version = 11 : i64} {
  func.func @_mlp_kernel(%arg0: i32, %arg1: memref<16x64xf32, #tpu.memory_space<vmem>>, %arg2: memref<64x1024xbf16, #tpu.memory_space<vmem>>, %arg3: memref<1x1024xf32, #tpu.memory_space<vmem>>, %arg4: memref<1024x1024xbf16, #tpu.memory_space<vmem>>, %arg5: memref<1x1024xf32, #tpu.memory_space<vmem>>, %arg6: memref<1024x512xbf16, #tpu.memory_space<vmem>>, %arg7: memref<1x512xf32, #tpu.memory_space<vmem>>, %arg8: memref<512x128xbf16, #tpu.memory_space<vmem>>, %arg9: memref<1x128xf32, #tpu.memory_space<vmem>>, %arg10: memref<16x128xf32, #tpu.memory_space<vmem>>) attributes {dimension_semantics = [#tpu.dimension_semantics<parallel>], iteration_bounds = array<i64: 1>, scalar_prefetch = 0 : i64, scratch_operands = 0 : i64, tpu.core_type = #tpu.core_type<tc>, window_params = [{transform_indices = @transform_0, window_bounds = array<i64: 16, 64>}, {pipeline_mode = #tpu.pipeline_mode<synchronous>, transform_indices = @transform_1, window_bounds = array<i64: 64, 1024>}, {pipeline_mode = #tpu.pipeline_mode<synchronous>, transform_indices = @transform_2, window_bounds = array<i64: 1, 1024>}, {pipeline_mode = #tpu.pipeline_mode<synchronous>, transform_indices = @transform_3, window_bounds = array<i64: 1024, 1024>}, {pipeline_mode = #tpu.pipeline_mode<synchronous>, transform_indices = @transform_4, window_bounds = array<i64: 1, 1024>}, {pipeline_mode = #tpu.pipeline_mode<synchronous>, transform_indices = @transform_5, window_bounds = array<i64: 1024, 512>}, {pipeline_mode = #tpu.pipeline_mode<synchronous>, transform_indices = @transform_6, window_bounds = array<i64: 1, 512>}, {pipeline_mode = #tpu.pipeline_mode<synchronous>, transform_indices = @transform_7, window_bounds = array<i64: 512, 128>}, {pipeline_mode = #tpu.pipeline_mode<synchronous>, transform_indices = @transform_8, window_bounds = array<i64: 1, 128>}, {transform_indices = @transform_9, window_bounds = array<i64: 16, 128>}]} {
    %c0 = arith.constant 0 : index
    %c0_0 = arith.constant 0 : index
    %0 = vector.load %arg1[%c0, %c0_0] : memref<16x64xf32, #tpu.memory_space<vmem>>, vector<16x64xf32>
    %1 = arith.truncf %0 : vector<16x64xf32> to vector<16x64xbf16>
    %c0_1 = arith.constant 0 : index
    %c0_2 = arith.constant 0 : index
    %2 = vector.load %arg2[%c0_1, %c0_2] : memref<64x1024xbf16, #tpu.memory_space<vmem>>, vector<64x1024xbf16>
    %cst = arith.constant dense<0.000000e+00> : vector<16x1024xf32>
    %3 = tpu.matmul %1, %2, %cst {dimension_numbers = #tpu.dot_dimension_numbers<[1], [0], [0], [1], [0, 0, 1, 1], [], []>} : vector<16x64xbf16>, vector<64x1024xbf16>, vector<16x1024xf32> -> vector<16x1024xf32>
    %c0_3 = arith.constant 0 : index
    %c0_4 = arith.constant 0 : index
    %4 = vector.load %arg3[%c0_3, %c0_4] : memref<1x1024xf32, #tpu.memory_space<vmem>>, vector<1x1024xf32>
    %5 = vector.broadcast %4 : vector<1x1024xf32> to vector<16x1024xf32>
    %6 = arith.addf %3, %5 : vector<16x1024xf32>
    %cst_5 = arith.constant 0.000000e+00 : f32
    %7 = vector.broadcast %cst_5 : f32 to vector<16x1024xf32>
    %8 = arith.maximumf %6, %7 : vector<16x1024xf32>
    %9 = arith.truncf %8 : vector<16x1024xf32> to vector<16x1024xbf16>
    %c0_6 = arith.constant 0 : index
    %c0_7 = arith.constant 0 : index
    %10 = vector.load %arg4[%c0_6, %c0_7] : memref<1024x1024xbf16, #tpu.memory_space<vmem>>, vector<1024x1024xbf16>
    %cst_8 = arith.constant dense<0.000000e+00> : vector<16x1024xf32>
    %11 = tpu.matmul %9, %10, %cst_8 {dimension_numbers = #tpu.dot_dimension_numbers<[1], [0], [0], [1], [0, 0, 1, 1], [], []>} : vector<16x1024xbf16>, vector<1024x1024xbf16>, vector<16x1024xf32> -> vector<16x1024xf32>
    %c0_9 = arith.constant 0 : index
    %c0_10 = arith.constant 0 : index
    %12 = vector.load %arg5[%c0_9, %c0_10] : memref<1x1024xf32, #tpu.memory_space<vmem>>, vector<1x1024xf32>
    %13 = vector.broadcast %12 : vector<1x1024xf32> to vector<16x1024xf32>
    %14 = arith.addf %11, %13 : vector<16x1024xf32>
    %cst_11 = arith.constant 0.000000e+00 : f32
    %15 = vector.broadcast %cst_11 : f32 to vector<16x1024xf32>
    %16 = arith.maximumf %14, %15 : vector<16x1024xf32>
    %17 = arith.truncf %16 : vector<16x1024xf32> to vector<16x1024xbf16>
    %c0_12 = arith.constant 0 : index
    %c0_13 = arith.constant 0 : index
    %18 = vector.load %arg6[%c0_12, %c0_13] : memref<1024x512xbf16, #tpu.memory_space<vmem>>, vector<1024x512xbf16>
    %cst_14 = arith.constant dense<0.000000e+00> : vector<16x512xf32>
    %19 = tpu.matmul %17, %18, %cst_14 {dimension_numbers = #tpu.dot_dimension_numbers<[1], [0], [0], [1], [0, 0, 1, 1], [], []>} : vector<16x1024xbf16>, vector<1024x512xbf16>, vector<16x512xf32> -> vector<16x512xf32>
    %c0_15 = arith.constant 0 : index
    %c0_16 = arith.constant 0 : index
    %20 = vector.load %arg7[%c0_15, %c0_16] : memref<1x512xf32, #tpu.memory_space<vmem>>, vector<1x512xf32>
    %21 = vector.broadcast %20 : vector<1x512xf32> to vector<16x512xf32>
    %22 = arith.addf %19, %21 : vector<16x512xf32>
    %cst_17 = arith.constant 0.000000e+00 : f32
    %23 = vector.broadcast %cst_17 : f32 to vector<16x512xf32>
    %24 = arith.maximumf %22, %23 : vector<16x512xf32>
    %25 = arith.truncf %24 : vector<16x512xf32> to vector<16x512xbf16>
    %c0_18 = arith.constant 0 : index
    %c0_19 = arith.constant 0 : index
    %26 = vector.load %arg8[%c0_18, %c0_19] : memref<512x128xbf16, #tpu.memory_space<vmem>>, vector<512x128xbf16>
    %cst_20 = arith.constant dense<0.000000e+00> : vector<16x128xf32>
    %27 = tpu.matmul %25, %26, %cst_20 {dimension_numbers = #tpu.dot_dimension_numbers<[1], [0], [0], [1], [0, 0, 1, 1], [], []>} : vector<16x512xbf16>, vector<512x128xbf16>, vector<16x128xf32> -> vector<16x128xf32>
    %c0_21 = arith.constant 0 : index
    %c0_22 = arith.constant 0 : index
    %28 = vector.load %arg9[%c0_21, %c0_22] : memref<1x128xf32, #tpu.memory_space<vmem>>, vector<1x128xf32>
    %29 = vector.broadcast %28 : vector<1x128xf32> to vector<16x128xf32>
    %30 = arith.addf %27, %29 : vector<16x128xf32>
    %c0_23 = arith.constant 0 : index
    %c0_24 = arith.constant 0 : index
    %31 = vector.load %arg10[%c0_23, %c0_24] : memref<16x128xf32, #tpu.memory_space<vmem>>, vector<16x128xf32>
    tpu.vector_store %arg10[%c0_23, %c0_24], %30 {strides = array<i32>} : memref<16x128xf32, #tpu.memory_space<vmem>>, vector<16x128xf32>,
    return
  }
  func.func @transform_0(%arg0: i32) -> (i32, i32) {
    %c0_i32 = arith.constant 0 : i32
    %c0_i32_0 = arith.constant 0 : i32
    return %arg0, %c0_i32 : i32, i32
  }
  func.func @transform_1(%arg0: i32) -> (i32, i32) {
    %c0_i32 = arith.constant 0 : i32
    %c0_i32_0 = arith.constant 0 : i32
    %c0_i32_1 = arith.constant 0 : i32
    return %c0_i32, %c0_i32_0 : i32, i32
  }
  func.func @transform_2(%arg0: i32) -> (i32, i32) {
    %c0_i32 = arith.constant 0 : i32
    %c0_i32_0 = arith.constant 0 : i32
    %c0_i32_1 = arith.constant 0 : i32
    return %c0_i32, %c0_i32_0 : i32, i32
  }
  func.func @transform_3(%arg0: i32) -> (i32, i32) {
    %c0_i32 = arith.constant 0 : i32
    %c0_i32_0 = arith.constant 0 : i32
    %c0_i32_1 = arith.constant 0 : i32
    return %c0_i32, %c0_i32_0 : i32, i32
  }
  func.func @transform_4(%arg0: i32) -> (i32, i32) {
    %c0_i32 = arith.constant 0 : i32
    %c0_i32_0 = arith.constant 0 : i32
    %c0_i32_1 = arith.constant 0 : i32
    return %c0_i32, %c0_i32_0 : i32, i32
  }
  func.func @transform_5(%arg0: i32) -> (i32, i32) {
    %c0_i32 = arith.constant 0 : i32
    %c0_i32_0 = arith.constant 0 : i32
    %c0_i32_1 = arith.constant 0 : i32
    return %c0_i32, %c0_i32_0 : i32, i32
  }
  func.func @transform_6(%arg0: i32) -> (i32, i32) {
    %c0_i32 = arith.constant 0 : i32
    %c0_i32_0 = arith.constant 0 : i32
    %c0_i32_1 = arith.constant 0 : i32
    return %c0_i32, %c0_i32_0 : i32, i32
  }
  func.func @transform_7(%arg0: i32) -> (i32, i32) {
    %c0_i32 = arith.constant 0 : i32
    %c0_i32_0 = arith.constant 0 : i32
    %c0_i32_1 = arith.constant 0 : i32
    return %c0_i32, %c0_i32_0 : i32, i32
  }
  func.func @transform_8(%arg0: i32) -> (i32, i32) {
    %c0_i32 = arith.constant 0 : i32
    %c0_i32_0 = arith.constant 0 : i32
    %c0_i32_1 = arith.constant 0 : i32
    return %c0_i32, %c0_i32_0 : i32, i32
  }
  func.func @transform_9(%arg0: i32) -> (i32, i32) {
    %c0_i32 = arith.constant 0 : i32
    %c0_i32_0 = arith.constant 0 : i32
    return %arg0, %c0_i32 : i32, i32
  }
}

</mosaic_0001>

<llo_original>
// kernel: tpu_custom_call.1
$region0: #{tpu_custom_call.1}
  #allocation0 [shape = 'u32[]', space=smem, size = 0x4, offset = 0x4, fixed_abs, tag = 'smem constant byte address 0x4 - core index']
  #allocation1 [shape = 'u32[144,128]{1,0:T(1,128)}', space=vmem, size = 0x12000, scoped, tag = 'internal scratch']
  %s0 = inlined_call_operand.hbm [shape: f32[16,64], index: 0, kind: input, shape index: {}]
  %s1 = inlined_call_operand.hbm [shape: bf16[64,1024], index: 1, kind: input, shape index: {}]
  %s2 = inlined_call_operand.hbm [shape: f32[1,1024], index: 2, kind: input, shape index: {}]
  %s3 = inlined_call_operand.hbm [shape: bf16[1024,1024], index: 3, kind: input, shape index: {}]
  %s4 = inlined_call_operand.hbm [shape: f32[1,1024], index: 4, kind: input, shape index: {}]
  %s5 = inlined_call_operand.hbm [shape: bf16[1024,512], index: 5, kind: input, shape index: {}]
  %s6 = inlined_call_operand.hbm [shape: f32[1,512], index: 6, kind: input, shape index: {}]
  %s7 = inlined_call_operand.hbm [shape: bf16[512,128], index: 7, kind: input, shape index: {}]
  %s8 = inlined_call_operand.hbm [shape: f32[1,128], index: 8, kind: input, shape index: {}]
  %s9 = inlined_call_operand.hbm [shape: f32[16,128], index: 9, kind: output, shape index: {}]
  %s10 = sld [smem:[#allocation0]]
  $region82: #{tpu_custom_call.1} parent=0
    _
  %s12 = ssub.s32 1, %s10
  %s13 = scalar_select 0, %s12, %s10
  $region1: #{tpu_custom_call.1} parent=0
    #allocation2 [shape = 'u8[8192]{0}', space=vmem, size = 0x2000, scoped, tag = 'input window, operand 0, single buffered']
    #allocation3 [shape = 's32[1]{0}', space=sflag, size = 0x4, scoped, tag = 'scoped memory for tpu_custom_call.1']
    #allocation4 [shape = 's32[1]{0}', space=sflag, size = 0x4, scoped, tag = 'scoped memory for tpu_custom_call.1']
    #allocation5 [shape = 'u8[131072]{0}', space=vmem, size = 0x20000, scoped, tag = 'input window, operand 1, single buffered']
    #allocation6 [shape = 's32[1]{0}', space=sflag, size = 0x4, scoped, tag = 'scoped memory for tpu_custom_call.1']
    #allocation7 [shape = 'u8[4096]{0}', space=vmem, size = 0x1000, scoped, tag = 'input window, operand 2, single buffered']
    #allocation8 [shape = 'u8[2097152]{0}', space=vmem, size = 0x200000, scoped, tag = 'input window, operand 3, single buffered']
    #allocation9 [shape = 's32[1]{0}', space=sflag, size = 0x4, scoped, tag = 'scoped memory for tpu_custom_call.1']
    #allocation10 [shape = 'u8[4096]{0}', space=vmem, size = 0x1000, scoped, tag = 'input window, operand 4, single buffered']
    #allocation11 [shape = 'u8[1048576]{0}', space=vmem, size = 0x100000, scoped, tag = 'input window, operand 5, single buffered']
    #allocation12 [shape = 's32[1]{0}', space=sflag, size = 0x4, scoped, tag = 'scoped memory for tpu_custom_call.1']
    #allocation13 [shape = 'u8[2048]{0}', space=vmem, size = 0x800, scoped, tag = 'input window, operand 6, single buffered']
    #allocation14 [shape = 'u8[131072]{0}', space=vmem, size = 0x20000, scoped, tag = 'input window, operand 7, single buffered']
    #allocation15 [shape = 's32[1]{0}', space=sflag, size = 0x4, scoped, tag = 'scoped memory for tpu_custom_call.1']
    #allocation16 [shape = 'u8[512]{0}', space=vmem, size = 0x400, scoped, tag = 'input window, operand 8, single buffered']
    #allocation17 [shape = 'u8[8192]{0}', space=vmem, size = 0x2000, scoped, tag = 'output window, operand 0, single buffered']
    %14 = vsyncpa [#allocation3], 0
    %15 = vsyncpa [#allocation6], 0
    %16 = vsyncpa [#allocation9], 0
    %17 = vsyncpa [#allocation12], 0
    %18 = vsyncpa [#allocation15], 0
    %19 = vsyncpa [#allocation4], 0
    // Predicated region
    $region2: #{tpu_custom_call.1} parent=1 // pred_check
      _
    $region3: #{tpu_custom_call.1} parent=1 // pred_check_branch
      %21 = sbr.rel (0) target = $region5
    $region4: #{tpu_custom_call.1} parent=1 // pred_region
      %s23 = ssub.s32 256, 256
      %24 = vsyncadd [#allocation3], %s23
      %s25 = sshll.u32 [#allocation2], 4
      %s26 = int_to_ptr.vmem [resolvable:$true] %s25
      %31 = dma.hbm_to_vmem [thread:$0]  %s0, 256, %s26, [#allocation3], 128, 128, 8
    $region5: #{tpu_custom_call.1} parent=1 // pred_fallthru
      _
    // Predicated region
    $region6: #{tpu_custom_call.1} parent=1 // pred_check
      _
    $region7: #{tpu_custom_call.1} parent=1 // pred_check_branch
      %33 = sbr.rel (0) target = $region9
    $region8: #{tpu_custom_call.1} parent=1 // pred_region
      %s35 = ssub.s32 4096, 4096
      %36 = vsyncadd [#allocation6], %s35
      %s37 = sshll.u32 [#allocation5], 4
      %s38 = int_to_ptr.vmem [resolvable:$true] %s37
      %43 = dma.hbm_to_vmem [thread:$0]  %s1, 4096, %s38, [#allocation6], 512, 512, 32
    $region9: #{tpu_custom_call.1} parent=1 // pred_fallthru
      _
    // Predicated region
    $region10: #{tpu_custom_call.1} parent=1 // pred_check
      _
    $region11: #{tpu_custom_call.1} parent=1 // pred_check_branch
      %45 = sbr.rel (0) target = $region13
    $region12: #{tpu_custom_call.1} parent=1 // pred_region
      %s47 = ssub.s32 128, 128
      %48 = vsyncadd [#allocation6], %s47
      %s50 = sshll.u32 [#allocation7], 4
      %s51 = int_to_ptr.vmem [resolvable:$true] %s50
      %53 = dma.hbm_to_vmem [thread:$0]  %s2, 128, %s51, [#allocation6]
    $region13: #{tpu_custom_call.1} parent=1 // pred_fallthru
      _
    // Predicated region
    $region14: #{tpu_custom_call.1} parent=1 // pred_check
      _
    $region15: #{tpu_custom_call.1} parent=1 // pred_check_branch
      %55 = sbr.rel (0) target = $region17
    $region16: #{tpu_custom_call.1} parent=1 // pred_region
      %s57 = ssub.s32 65536, 65536
      %58 = vsyncadd [#allocation9], %s57
      %s59 = sshll.u32 [#allocation8], 4
      %s60 = int_to_ptr.vmem [resolvable:$true] %s59
      %65 = dma.hbm_to_vmem [thread:$0]  %s3, 65536, %s60, [#allocation9], 512, 512, 32
    $region17: #{tpu_custom_call.1} parent=1 // pred_fallthru
      _
    // Predicated region
    $region18: #{tpu_custom_call.1} parent=1 // pred_check
      _
    $region19: #{tpu_custom_call.1} parent=1 // pred_check_branch
      %67 = sbr.rel (0) target = $region21
    $region20: #{tpu_custom_call.1} parent=1 // pred_region
      %s69 = ssub.s32 128, 128
      %70 = vsyncadd [#allocation9], %s69
      %s72 = sshll.u32 [#allocation10], 4
      %s73 = int_to_ptr.vmem [resolvable:$true] %s72
      %75 = dma.hbm_to_vmem [thread:$0]  %s4, 128, %s73, [#allocation9]
    $region21: #{tpu_custom_call.1} parent=1 // pred_fallthru
      _
    // Predicated region
    $region22: #{tpu_custom_call.1} parent=1 // pred_check
      _
    $region23: #{tpu_custom_call.1} parent=1 // pred_check_branch
      %77 = sbr.rel (0) target = $region25
    $region24: #{tpu_custom_call.1} parent=1 // pred_region
      %s79 = ssub.s32 32768, 32768
      %80 = vsyncadd [#allocation12], %s79
      %s81 = sshll.u32 [#allocation11], 4
      %s82 = int_to_ptr.vmem [resolvable:$true] %s81
      %87 = dma.hbm_to_vmem [thread:$0]  %s5, 32768, %s82, [#allocation12], 256, 256, 16
    $region25: #{tpu_custom_call.1} parent=1 // pred_fallthru
      _
    // Predicated region
    $region26: #{tpu_custom_call.1} parent=1 // pred_check
      _
    $region27: #{tpu_custom_call.1} parent=1 // pred_check_branch
      %89 = sbr.rel (0) target = $region29
    $region28: #{tpu_custom_call.1} parent=1 // pred_region
      %s91 = ssub.s32 64, 64
      %92 = vsyncadd [#allocation12], %s91
      %s94 = sshll.u32 [#allocation13], 4
      %s95 = int_to_ptr.vmem [resolvable:$true] %s94
      %97 = dma.hbm_to_vmem [thread:$0]  %s6, 64, %s95, [#allocation12]
    $region29: #{tpu_custom_call.1} parent=1 // pred_fallthru
      _
    // Predicated region
    $region30: #{tpu_custom_call.1} parent=1 // pred_check
      _
    $region31: #{tpu_custom_call.1} parent=1 // pred_check_branch
      %99 = sbr.rel (0) target = $region33
    $region32: #{tpu_custom_call.1} parent=1 // pred_region
      %s101 = ssub.s32 4096, 4096
      %102 = vsyncadd [#allocation15], %s101
      %s103 = sshll.u32 [#allocation14], 4
      %s104 = int_to_ptr.vmem [resolvable:$true] %s103
      %109 = dma.hbm_to_vmem [thread:$0]  %s7, 4096, %s104, [#allocation15], 64, 64, 4
    $region33: #{tpu_custom_call.1} parent=1 // pred_fallthru
      _
    // Predicated region
    $region34: #{tpu_custom_call.1} parent=1 // pred_check
      _
    $region35: #{tpu_custom_call.1} parent=1 // pred_check_branch
      %111 = sbr.rel (0) target = $region37
    $region36: #{tpu_custom_call.1} parent=1 // pred_region
      %s113 = ssub.s32 16, 16
      %114 = vsyncadd [#allocation15], %s113
      %s116 = sshll.u32 [#allocation16], 4
      %s117 = int_to_ptr.vmem [resolvable:$true] %s116
      %119 = dma.hbm_to_vmem [thread:$0]  %s8, 16, %s117, [#allocation15]
    $region37: #{tpu_custom_call.1} parent=1 // pred_fallthru
      _
    // Predicated region
    $region38: #{tpu_custom_call.1} parent=1 // pred_check
      _
    $region39: #{tpu_custom_call.1} parent=1 // pred_check_branch
      %121 = sbr.rel (0) target = $region41
    $region40: #{tpu_custom_call.1} parent=1 // pred_region
      %122 = dma.done [#allocation3], 256
    $region41: #{tpu_custom_call.1} parent=1 // pred_fallthru
      _
    // Predicated region
    $region42: #{tpu_custom_call.1} parent=1 // pred_check
      _
    $region43: #{tpu_custom_call.1} parent=1 // pred_check_branch
      %124 = sbr.rel (0) target = $region45
    $region44: #{tpu_custom_call.1} parent=1 // pred_region
      %125 = dma.done [#allocation6], 4096
    $region45: #{tpu_custom_call.1} parent=1 // pred_fallthru
      _
    // Predicated region
    $region46: #{tpu_custom_call.1} parent=1 // pred_check
      _
    $region47: #{tpu_custom_call.1} parent=1 // pred_check_branch
      %127 = sbr.rel (0) target = $region49
    $region48: #{tpu_custom_call.1} parent=1 // pred_region
      %128 = dma.done [#allocation6], 128
    $region49: #{tpu_custom_call.1} parent=1 // pred_fallthru
      _
    // Predicated region
    $region50: #{tpu_custom_call.1} parent=1 // pred_check
      _
    $region51: #{tpu_custom_call.1} parent=1 // pred_check_branch
      %130 = sbr.rel (0) target = $region53
    $region52: #{tpu_custom_call.1} parent=1 // pred_region
      %131 = dma.done [#allocation9], 65536
    $region53: #{tpu_custom_call.1} parent=1 // pred_fallthru
      _
    // Predicated region
    $region54: #{tpu_custom_call.1} parent=1 // pred_check
      _
    $region55: #{tpu_custom_call.1} parent=1 // pred_check_branch
      %133 = sbr.rel (0) target = $region57
    $region56: #{tpu_custom_call.1} parent=1 // pred_region
      %134 = dma.done [#allocation9], 128
    $region57: #{tpu_custom_call.1} parent=1 // pred_fallthru
      _
    // Predicated region
    $region58: #{tpu_custom_call.1} parent=1 // pred_check
      _
    $region59: #{tpu_custom_call.1} parent=1 // pred_check_branch
      %136 = sbr.rel (0) target = $region61
    $region60: #{tpu_custom_call.1} parent=1 // pred_region
      %137 = dma.done [#allocation12], 32768
    $region61: #{tpu_custom_call.1} parent=1 // pred_fallthru
      _
    // Predicated region
    $region62: #{tpu_custom_call.1} parent=1 // pred_check
      _
    $region63: #{tpu_custom_call.1} parent=1 // pred_check_branch
      %139 = sbr.rel (0) target = $region65
    $region64: #{tpu_custom_call.1} parent=1 // pred_region
      %140 = dma.done [#allocation12], 64
    $region65: #{tpu_custom_call.1} parent=1 // pred_fallthru
      _
    // Predicated region
    $region66: #{tpu_custom_call.1} parent=1 // pred_check
      _
    $region67: #{tpu_custom_call.1} parent=1 // pred_check_branch
      %142 = sbr.rel (0) target = $region69
    $region68: #{tpu_custom_call.1} parent=1 // pred_region
      %143 = dma.done [#allocation15], 4096
    $region69: #{tpu_custom_call.1} parent=1 // pred_fallthru
      _
    // Predicated region
    $region70: #{tpu_custom_call.1} parent=1 // pred_check
      _
    $region71: #{tpu_custom_call.1} parent=1 // pred_check_branch
      %145 = sbr.rel (0) target = $region73
    $region72: #{tpu_custom_call.1} parent=1 // pred_region
      %146 = dma.done [#allocation15], 16
    $region73: #{tpu_custom_call.1} parent=1 // pred_fallthru
      _
    %v148 = vld [vmem:[#allocation2] sm:$0xff]
    %v149 = vld [vmem:[#allocation2 + $0x8] sm:$0xff]
    %v150 = vpack.c.bf16 %v149, %v148
    %v151 = vld [vmem:[#allocation5] sm:$0xff]
    %v152 = vld [vmem:[#allocation5 + $0x8] sm:$0xff]
    %v153 = vld [vmem:[#allocation5 + $0x10] sm:$0xff]
    %v154 = vld [vmem:[#allocation5 + $0x18] sm:$0xff]
    %v155 = vld [vmem:[#allocation5 + $0x20] sm:$0xff]
    %v156 = vld [vmem:[#allocation5 + $0x28] sm:$0xff]
    %v157 = vld [vmem:[#allocation5 + $0x30] sm:$0xff]
    %v158 = vld [vmem:[#allocation5 + $0x38] sm:$0xff]
    %v159 = vld [vmem:[#allocation5 + $0x40] sm:$0xff]
    %v160 = vld [vmem:[#allocation5 + $0x48] sm:$0xff]
    %v161 = vld [vmem:[#allocation5 + $0x50] sm:$0xff]
    %v162 = vld [vmem:[#allocation5 + $0x58] sm:$0xff]
    %v163 = vld [vmem:[#allocation5 + $0x60] sm:$0xff]
    %v164 = vld [vmem:[#allocation5 + $0x68] sm:$0xff]
    %v165 = vld [vmem:[#allocation5 + $0x70] sm:$0xff]
    %v166 = vld [vmem:[#allocation5 + $0x78] sm:$0xff]
    %v167 = vld [vmem:[#allocation5 + $0x80] sm:$0xff]
    %v168 = vld [vmem:[#allocation5 + $0x88] sm:$0xff]
    %v169 = vld [vmem:[#allocation5 + $0x90] sm:$0xff]
    %v170 = vld [vmem:[#allocation5 + $0x98] sm:$0xff]
    %v171 = vld [vmem:[#allocation5 + $0xa0] sm:$0xff]
    %v172 = vld [vmem:[#allocation5 + $0xa8] sm:$0xff]
    %v173 = vld [vmem:[#allocation5 + $0xb0] sm:$0xff]
    %v174 = vld [vmem:[#allocation5 + $0xb8] sm:$0xff]
    %v175 = vld [vmem:[#allocation5 + $0xc0] sm:$0xff]
    %v176 = vld [vmem:[#allocation5 + $0xc8] sm:$0xff]
    %v177 = vld [vmem:[#allocation5 + $0xd0] sm:$0xff]
    %v178 = vld [vmem:[#allocation5 + $0xd8] sm:$0xff]
    %v179 = vld [vmem:[#allocation5 + $0xe0] sm:$0xff]
    %v180 = vld [vmem:[#allocation5 + $0xe8] sm:$0xff]
    %v181 = vld [vmem:[#allocation5 + $0xf0] sm:$0xff]
    %v182 = vld [vmem:[#allocation5 + $0xf8] sm:$0xff]
    %v183 = vld [vmem:[#allocation7] sm:$0xff]
    %v185 = vlaneseq
    %v186 = vshrl.u32 %v185, 7
    %v187 = vsub.s32 0, %v186
    %v188 = vrot.slane %v183, %v187
    %v189 = vlaneseq
    %v190 = vshrl.u32 %v189, 7
    %v191 = vsub.s32 1, %v190
    %v192 = vrot.slane %v183, %v191
    %v193 = vlaneseq
    %v194 = vshrl.u32 %v193, 7
    %v195 = vsub.s32 2, %v194
    %v196 = vrot.slane %v183, %v195
    %v197 = vlaneseq
    %v198 = vshrl.u32 %v197, 7
    %v199 = vsub.s32 3, %v198
    %v200 = vrot.slane %v183, %v199
    %v201 = vlaneseq
    %v202 = vshrl.u32 %v201, 7
    %v203 = vsub.s32 4, %v202
    %v204 = vrot.slane %v183, %v203
    %v205 = vlaneseq
    %v206 = vshrl.u32 %v205, 7
    %v207 = vsub.s32 5, %v206
    %v208 = vrot.slane %v183, %v207
    %v209 = vlaneseq
    %v210 = vshrl.u32 %v209, 7
    %v211 = vsub.s32 6, %v210
    %v212 = vrot.slane %v183, %v211
    %v213 = vlaneseq
    %v214 = vshrl.u32 %v213, 7
    %v215 = vsub.s32 7, %v214
    %v216 = vrot.slane %v183, %v215
    %v257 = vunpack.c.l.b16 %v151
    %v258 = vunpack.c.h.b16 %v151
    %v259 = vunpack.c.l.b16 %v152
    %v260 = vunpack.c.h.b16 %v152
    %v261 = vunpack.c.l.b16 %v153
    %v262 = vunpack.c.h.b16 %v153
    %v263 = vunpack.c.l.b16 %v154
    %v264 = vunpack.c.h.b16 %v154
    %v265 = vunpack.c.l.b16 %v155
    %v266 = vunpack.c.h.b16 %v155
    %v267 = vunpack.c.l.b16 %v156
    %v268 = vunpack.c.h.b16 %v156
    %v269 = vunpack.c.l.b16 %v157
    %v270 = vunpack.c.h.b16 %v157
    %v271 = vunpack.c.l.b16 %v158
    %v272 = vunpack.c.h.b16 %v158
    %v273 = vunpack.c.l.b16 %v159
    %v274 = vunpack.c.h.b16 %v159
    %v275 = vunpack.c.l.b16 %v160
    %v276 = vunpack.c.h.b16 %v160
    %v277 = vunpack.c.l.b16 %v161
    %v278 = vunpack.c.h.b16 %v161
    %v279 = vunpack.c.l.b16 %v162
    %v280 = vunpack.c.h.b16 %v162
    %v281 = vunpack.c.l.b16 %v163
    %v282 = vunpack.c.h.b16 %v163
    %v283 = vunpack.c.l.b16 %v164
    %v284 = vunpack.c.h.b16 %v164
    %v285 = vunpack.c.l.b16 %v165
    %v286 = vunpack.c.h.b16 %v165
    %v287 = vunpack.c.l.b16 %v166
    %v288 = vunpack.c.h.b16 %v166
    %v289 = vunpack.c.l.b16 %v167
    %v290 = vunpack.c.h.b16 %v167
    %v291 = vunpack.c.l.b16 %v168
    %v292 = vunpack.c.h.b16 %v168
    %v293 = vunpack.c.l.b16 %v169
    %v294 = vunpack.c.h.b16 %v169
    %v295 = vunpack.c.l.b16 %v170
    %v296 = vunpack.c.h.b16 %v170
    %v297 = vunpack.c.l.b16 %v171
    %v298 = vunpack.c.h.b16 %v171
    %v299 = vunpack.c.l.b16 %v172
    %v300 = vunpack.c.h.b16 %v172
    %v301 = vunpack.c.l.b16 %v173
    %v302 = vunpack.c.h.b16 %v173
    %v303 = vunpack.c.l.b16 %v174
    %v304 = vunpack.c.h.b16 %v174
    %v305 = vunpack.c.l.b16 %v175
    %v306 = vunpack.c.h.b16 %v175
    %v307 = vunpack.c.l.b16 %v176
    %v308 = vunpack.c.h.b16 %v176
    %v309 = vunpack.c.l.b16 %v177
    %v310 = vunpack.c.h.b16 %v177
    %v311 = vunpack.c.l.b16 %v178
    %v312 = vunpack.c.h.b16 %v178
    %v313 = vunpack.c.l.b16 %v179
    %v314 = vunpack.c.h.b16 %v179
    %v315 = vunpack.c.l.b16 %v180
    %v316 = vunpack.c.h.b16 %v180
    %v317 = vunpack.c.l.b16 %v181
    %v318 = vunpack.c.h.b16 %v181
    %v319 = vunpack.c.l.b16 %v182
    %v320 = vunpack.c.h.b16 %v182
    %v321 = vpack.c.b16 %v265, %v257
    %v322 = vpack.c.b16 %v266, %v258
    %v323 = vpack.c.b16 %v267, %v259
    %v324 = vpack.c.b16 %v268, %v260
    %v325 = vpack.c.b16 %v269, %v261
    %v326 = vpack.c.b16 %v270, %v262
    %v327 = vpack.c.b16 %v271, %v263
    %v328 = vpack.c.b16 %v272, %v264
    %v329 = vpack.c.b16 %v281, %v273
    %v330 = vpack.c.b16 %v282, %v274
    %v331 = vpack.c.b16 %v283, %v275
    %v332 = vpack.c.b16 %v284, %v276
    %v333 = vpack.c.b16 %v285, %v277
    %v334 = vpack.c.b16 %v286, %v278
    %v335 = vpack.c.b16 %v287, %v279
    %v336 = vpack.c.b16 %v288, %v280
    %v337 = vpack.c.b16 %v297, %v289
    %v338 = vpack.c.b16 %v298, %v290
    %v339 = vpack.c.b16 %v299, %v291
    %v340 = vpack.c.b16 %v300, %v292
    %v341 = vpack.c.b16 %v301, %v293
    %v342 = vpack.c.b16 %v302, %v294
    %v343 = vpack.c.b16 %v303, %v295
    %v344 = vpack.c.b16 %v304, %v296
    %v345 = vpack.c.b16 %v313, %v305
    %v346 = vpack.c.b16 %v314, %v306
    %v347 = vpack.c.b16 %v315, %v307
    %v348 = vpack.c.b16 %v316, %v308
    %v349 = vpack.c.b16 %v317, %v309
    %v350 = vpack.c.b16 %v318, %v310
    %v351 = vpack.c.b16 %v319, %v311
    %v352 = vpack.c.b16 %v320, %v312
    %vm385 = vcmask 523264
    %v387 = vsel %vm385, %v150, 0
    %389 = vmatprep.subr.bf16.mxu0 %v322
    %390 = vmatpush1.bf16.msra.mxu0 %v321
    %391 = vmatprep.subr.bf16.mxu0 %v330
    %392 = vmatpush1.bf16.msra.mxu0 %v329
    %393 = vmatprep.subr.bf16.mxu0 %v338
    %394 = vmatpush1.bf16.msra.mxu0 %v337
    %395 = vmatprep.subr.bf16.mxu0 %v346
    %396 = vmatpush1.bf16.msra.mxu0 %v345
    %397 = vmatprep.subr.bf16.mxu0 0
    %398 = vmatpush1.bf16.msra.mxu0 0
    %399 = vmatprep.subr.bf16.mxu0 0
    %400 = vmatpush1.bf16.msra.mxu0 0
    %401 = vmatprep.subr.bf16.mxu0 0
    %402 = vmatpush1.bf16.msra.mxu0 0
    %403 = vmatprep.subr.bf16.mxu0 0
    %404 = vmatpush1.bf16.msra.mxu0 0
    %405 = vmatprep.subr.bf16.mxu0 0
    %406 = vmatpush1.bf16.msra.mxu0 0
    %407 = vmatprep.subr.bf16.mxu0 0
    %408 = vmatpush1.bf16.msra.mxu0 0
    %409 = vmatprep.subr.bf16.mxu0 0
    %410 = vmatpush1.bf16.msra.mxu0 0
    %411 = vmatprep.subr.bf16.mxu0 0
    %412 = vmatpush1.bf16.msra.mxu0 0
    %413 = vmatprep.subr.bf16.mxu0 0
    %414 = vmatpush1.bf16.msra.mxu0 0
    %415 = vmatprep.subr.bf16.mxu0 0
    %416 = vmatpush1.bf16.msra.mxu0 0
    %417 = vmatprep.subr.bf16.mxu0 0
    %418 = vmatpush1.bf16.msra.mxu0 0
    %419 = vmatprep.subr.bf16.mxu0 0
    %420 = vmatpush1.bf16.msra.mxu0 0
    %421 = vmatprep.mubr.bf16.mxu0 0
    %422 = vmatmul.mubr.bf16.gmra.mrb[0].mxu0 %v387
    %v423 = vpop.f32.mrb[0].mxu0
    %v424 = vadd.f32 %v188, %v423
    %v425 = vpop.f32.mrb[0].mxu0
    %v426 = vadd.f32 %v192, %v425
    %v427 = vpop.f32.mrb[0].mxu0
    %v428 = vadd.f32 %v188, %v427
    %v429 = vpop.f32.mrb[0].mxu0
    %v430 = vadd.f32 %v192, %v429
    %431 = vdwg.mxu0
    %432 = vmatprep.subr.bf16.mxu0 %v324
    %433 = vmatpush1.bf16.msra.mxu0 %v323
    %434 = vmatprep.subr.bf16.mxu0 %v332
    %435 = vmatpush1.bf16.msra.mxu0 %v331
    %436 = vmatprep.subr.bf16.mxu0 %v340
    %437 = vmatpush1.bf16.msra.mxu0 %v339
    %438 = vmatprep.subr.bf16.mxu0 %v348
    %439 = vmatpush1.bf16.msra.mxu0 %v347
    %440 = vmatprep.subr.bf16.mxu0 0
    %441 = vmatpush1.bf16.msra.mxu0 0
    %442 = vmatprep.subr.bf16.mxu0 0
    %443 = vmatpush1.bf16.msra.mxu0 0
    %444 = vmatprep.subr.bf16.mxu0 0
    %445 = vmatpush1.bf16.msra.mxu0 0
    %446 = vmatprep.subr.bf16.mxu0 0
    %447 = vmatpush1.bf16.msra.mxu0 0
    %448 = vmatprep.subr.bf16.mxu0 0
    %449 = vmatpush1.bf16.msra.mxu0 0
    %450 = vmatprep.subr.bf16.mxu0 0
    %451 = vmatpush1.bf16.msra.mxu0 0
    %452 = vmatprep.subr.bf16.mxu0 0
    %453 = vmatpush1.bf16.msra.mxu0 0
    %454 = vmatprep.subr.bf16.mxu0 0
    %455 = vmatpush1.bf16.msra.mxu0 0
    %456 = vmatprep.subr.bf16.mxu0 0
    %457 = vmatpush1.bf16.msra.mxu0 0
    %458 = vmatprep.subr.bf16.mxu0 0
    %459 = vmatpush1.bf16.msra.mxu0 0
    %460 = vmatprep.subr.bf16.mxu0 0
    %461 = vmatpush1.bf16.msra.mxu0 0
    %462 = vmatprep.subr.bf16.mxu0 0
    %463 = vmatpush1.bf16.msra.mxu0 0
    %464 = vmatprep.mubr.bf16.mxu0 0
    %465 = vmatmul.mubr.bf16.gmra.mrb[0].mxu0 %v387
    %v466 = vpop.f32.mrb[0].mxu0
    %v467 = vadd.f32 %v196, %v466
    %v468 = vpop.f32.mrb[0].mxu0
    %v469 = vadd.f32 %v200, %v468
    %v470 = vpop.f32.mrb[0].mxu0
    %v471 = vadd.f32 %v196, %v470
    %v472 = vpop.f32.mrb[0].mxu0
    %v473 = vadd.f32 %v200, %v472
    %474 = vdwg.mxu0
    %475 = vmatprep.subr.bf16.mxu0 %v326
    %476 = vmatpush1.bf16.msra.mxu0 %v325
    %477 = vmatprep.subr.bf16.mxu0 %v334
    %478 = vmatpush1.bf16.msra.mxu0 %v333
    %479 = vmatprep.subr.bf16.mxu0 %v342
    %480 = vmatpush1.bf16.msra.mxu0 %v341
    %481 = vmatprep.subr.bf16.mxu0 %v350
    %482 = vmatpush1.bf16.msra.mxu0 %v349
    %483 = vmatprep.subr.bf16.mxu0 0
    %484 = vmatpush1.bf16.msra.mxu0 0
    %485 = vmatprep.subr.bf16.mxu0 0
    %486 = vmatpush1.bf16.msra.mxu0 0
    %487 = vmatprep.subr.bf16.mxu0 0
    %488 = vmatpush1.bf16.msra.mxu0 0
    %489 = vmatprep.subr.bf16.mxu0 0
    %490 = vmatpush1.bf16.msra.mxu0 0
    %491 = vmatprep.subr.bf16.mxu0 0
    %492 = vmatpush1.bf16.msra.mxu0 0
    %493 = vmatprep.subr.bf16.mxu0 0
    %494 = vmatpush1.bf16.msra.mxu0 0
    %495 = vmatprep.subr.bf16.mxu0 0
    %496 = vmatpush1.bf16.msra.mxu0 0
    %497 = vmatprep.subr.bf16.mxu0 0
    %498 = vmatpush1.bf16.msra.mxu0 0
    %499 = vmatprep.subr.bf16.mxu0 0
    %500 = vmatpush1.bf16.msra.mxu0 0
    %501 = vmatprep.subr.bf16.mxu0 0
    %502 = vmatpush1.bf16.msra.mxu0 0
    %503 = vmatprep.subr.bf16.mxu0 0
    %504 = vmatpush1.bf16.msra.mxu0 0
    %505 = vmatprep.subr.bf16.mxu0 0
    %506 = vmatpush1.bf16.msra.mxu0 0
    %507 = vmatprep.mubr.bf16.mxu0 0
    %508 = vmatmul.mubr.bf16.gmra.mrb[0].mxu0 %v387
    %v509 = vpop.f32.mrb[0].mxu0
    %v510 = vadd.f32 %v204, %v509
    %v511 = vpop.f32.mrb[0].mxu0
    %v512 = vadd.f32 %v208, %v511
    %v513 = vpop.f32.mrb[0].mxu0
    %v514 = vadd.f32 %v204, %v513
    %v515 = vpop.f32.mrb[0].mxu0
    %v516 = vadd.f32 %v208, %v515
    %517 = vdwg.mxu0
    %518 = vmatprep.subr.bf16.mxu0 %v328
    %519 = vmatpush1.bf16.msra.mxu0 %v327
    %520 = vmatprep.subr.bf16.mxu0 %v336
    %521 = vmatpush1.bf16.msra.mxu0 %v335
    %522 = vmatprep.subr.bf16.mxu0 %v344
    %523 = vmatpush1.bf16.msra.mxu0 %v343
    %524 = vmatprep.subr.bf16.mxu0 %v352
    %525 = vmatpush1.bf16.msra.mxu0 %v351
    %526 = vmatprep.subr.bf16.mxu0 0
    %527 = vmatpush1.bf16.msra.mxu0 0
    %528 = vmatprep.subr.bf16.mxu0 0
    %529 = vmatpush1.bf16.msra.mxu0 0
    %530 = vmatprep.subr.bf16.mxu0 0
    %531 = vmatpush1.bf16.msra.mxu0 0
    %532 = vmatprep.subr.bf16.mxu0 0
    %533 = vmatpush1.bf16.msra.mxu0 0
    %534 = vmatprep.subr.bf16.mxu0 0
    %535 = vmatpush1.bf16.msra.mxu0 0
    %536 = vmatprep.subr.bf16.mxu0 0
    %537 = vmatpush1.bf16.msra.mxu0 0
    %538 = vmatprep.subr.bf16.mxu0 0
    %539 = vmatpush1.bf16.msra.mxu0 0
    %540 = vmatprep.subr.bf16.mxu0 0
    %541 = vmatpush1.bf16.msra.mxu0 0
    %542 = vmatprep.subr.bf16.mxu0 0
    %543 = vmatpush1.bf16.msra.mxu0 0
    %544 = vmatprep.subr.bf16.mxu0 0
    %545 = vmatpush1.bf16.msra.mxu0 0
    %546 = vmatprep.subr.bf16.mxu0 0
    %547 = vmatpush1.bf16.msra.mxu0 0
    %548 = vmatprep.subr.bf16.mxu0 0
    %549 = vmatpush1.bf16.msra.mxu0 0
    %550 = vmatprep.mubr.bf16.mxu0 0
    %551 = vmatmul.mubr.bf16.gmra.mrb[0].mxu0 %v387
    %v552 = vpop.f32.mrb[0].mxu0
    %v553 = vadd.f32 %v212, %v552
    %v554 = vpop.f32.mrb[0].mxu0
    %v555 = vadd.f32 %v216, %v554
    %v556 = vpop.f32.mrb[0].mxu0
    %v557 = vadd.f32 %v212, %v556
    %v558 = vpop.f32.mrb[0].mxu0
    %v559 = vadd.f32 %v216, %v558
    %560 = vdwg.mxu0
    %v561 = vmax.f32 %v424, 0.0
    %v562 = vmax.f32 %v426, 0.0
    %v563 = vmax.f32 %v467, 0.0
    %v564 = vmax.f32 %v469, 0.0
    %v565 = vmax.f32 %v510, 0.0
    %v566 = vmax.f32 %v512, 0.0
    %v567 = vmax.f32 %v553, 0.0
    %v568 = vmax.f32 %v555, 0.0
    %v569 = vmax.f32 %v428, 0.0
    %v570 = vmax.f32 %v430, 0.0
    %v571 = vmax.f32 %v471, 0.0
    %v572 = vmax.f32 %v473, 0.0
    %v573 = vmax.f32 %v514, 0.0
    %v574 = vmax.f32 %v516, 0.0
    %v575 = vmax.f32 %v557, 0.0
    %v576 = vmax.f32 %v559, 0.0
    %v577 = vpack.c.bf16 %v569, %v561
    %v578 = vpack.c.bf16 %v570, %v562
    %v579 = vpack.c.bf16 %v571, %v563
    %v580 = vpack.c.bf16 %v572, %v564
    %v581 = vpack.c.bf16 %v573, %v565
    %v582 = vpack.c.bf16 %v574, %v566
    %v583 = vpack.c.bf16 %v575, %v567
    %v584 = vpack.c.bf16 %v576, %v568
    %v585 = vld [vmem:[#allocation8] sm:$0xff]
    %v586 = vld [vmem:[#allocation8 + $0x8] sm:$0xff]
    %v587 = vld [vmem:[#allocation8 + $0x10] sm:$0xff]
    %v588 = vld [vmem:[#allocation8 + $0x18] sm:$0xff]
    %v589 = vld [vmem:[#allocation8 + $0x20] sm:$0xff]
    %v590 = vld [vmem:[#allocation8 + $0x28] sm:$0xff]
    %v591 = vld [vmem:[#allocation8 + $0x30] sm:$0xff]
    %v592 = vld [vmem:[#allocation8 + $0x38] sm:$0xff]
    %v593 = vld [vmem:[#allocation8 + $0x40] sm:$0xff]
    %v594 = vld [vmem:[#allocation8 + $0x48] sm:$0xff]
    %v595 = vld [vmem:[#allocation8 + $0x50] sm:$0xff]
    %v596 = vld [vmem:[#allocation8 + $0x58] sm:$0xff]
    %v597 = vld [vmem:[#allocation8 + $0x60] sm:$0xff]
    %v598 = vld [vmem:[#allocation8 + $0x68] sm:$0xff]
    %v599 = vld [vmem:[#allocation8 + $0x70] sm:$0xff]
    %v600 = vld [vmem:[#allocation8 + $0x78] sm:$0xff]
    %v601 = vld [vmem:[#allocation8 + $0x80] sm:$0xff]
    %v602 = vld [vmem:[#allocation8 + $0x88] sm:$0xff]
    %v603 = vld [vmem:[#allocation8 + $0x90] sm:$0xff]
    %v604 = vld [vmem:[#allocation8 + $0x98] sm:$0xff]
    %v605 = vld [vmem:[#allocation8 + $0xa0] sm:$0xff]
    %v606 = vld [vmem:[#allocation8 + $0xa8] sm:$0xff]
    %v607 = vld [vmem:[#allocation8 + $0xb0] sm:$0xff]
    %v608 = vld [vmem:[#allocation8 + $0xb8] sm:$0xff]
    %v609 = vld [vmem:[#allocation8 + $0xc0] sm:$0xff]
    %v610 = vld [vmem:[#allocation8 + $0xc8] sm:$0xff]
    %v611 = vld [vmem:[#allocation8 + $0xd0] sm:$0xff]
    %v612 = vld [vmem:[#allocation8 + $0xd8] sm:$0xff]
    %v613 = vld [vmem:[#allocation8 + $0xe0] sm:$0xff]
    %v614 = vld [vmem:[#allocation8 + $0xe8] sm:$0xff]
    %v615 = vld [vmem:[#allocation8 + $0xf0] sm:$0xff]
    %v616 = vld [vmem:[#allocation8 + $0xf8] sm:$0xff]
    %v617 = vld [vmem:[#allocation8 + $0x100] sm:$0xff]
    %v618 = vld [vmem:[#allocation8 + $0x108] sm:$0xff]
    %v619 = vld [vmem:[#allocation8 + $0x110] sm:$0xff]
    %v620 = vld [vmem:[#allocation8 + $0x118] sm:$0xff]
    %v621 = vld [vmem:[#allocation8 + $0x120] sm:$0xff]
    %v622 = vld [vmem:[#allocation8 + $0x128] sm:$0xff]
    %v623 = vld [vmem:[#allocation8 + $0x130] sm:$0xff]
    %v624 = vld [vmem:[#allocation8 + $0x138] sm:$0xff]
    %v625 = vld [vmem:[#allocation8 + $0x140] sm:$0xff]
    %v626 = vld [vmem:[#allocation8 + $0x148] sm:$0xff]
    %v627 = vld [vmem:[#allocation8 + $0x150] sm:$0xff]
    %v628 = vld [vmem:[#allocation8 + $0x158] sm:$0xff]
    %v629 = vld [vmem:[#allocation8 + $0x160] sm:$0xff]
    %v630 = vld [vmem:[#allocation8 + $0x168] sm:$0xff]
    %v631 = vld [vmem:[#allocation8 + $0x170] sm:$0xff]
    %v632 = vld [vmem:[#allocation8 + $0x178] sm:$0xff]
    %v633 = vld [vmem:[#allocation8 + $0x180] sm:$0xff]
    %v634 = vld [vmem:[#allocation8 + $0x188] sm:$0xff]
    %v635 = vld [vmem:[#allocation8 + $0x190] sm:$0xff]
    %v636 = vld [vmem:[#allocation8 + $0x198] sm:$0xff]
    %v637 = vld [vmem:[#allocation8 + $0x1a0] sm:$0xff]
    %v638 = vld [vmem:[#allocation8 + $0x1a8] sm:$0xff]
    %v639 = vld [vmem:[#allocation8 + $0x1b0] sm:$0xff]
    %v640 = vld [vmem:[#allocation8 + $0x1b8] sm:$0xff]
    %v641 = vld [vmem:[#allocation8 + $0x1c0] sm:$0xff]
    %v642 = vld [vmem:[#allocation8 + $0x1c8] sm:$0xff]
    %v643 = vld [vmem:[#allocation8 + $0x1d0] sm:$0xff]
    %v644 = vld [vmem:[#allocation8 + $0x1d8] sm:$0xff]
    %v645 = vld [vmem:[#allocation8 + $0x1e0] sm:$0xff]
    %v646 = vld [vmem:[#allocation8 + $0x1e8] sm:$0xff]
    %v647 = vld [vmem:[#allocation8 + $0x1f0] sm:$0xff]
    %v648 = vld [vmem:[#allocation8 + $0x1f8] sm:$0xff]
    %v649 = vld [vmem:[#allocation8 + $0x200] sm:$0xff]
    %v650 = vld [vmem:[#allocation8 + $0x208] sm:$0xff]
    %v651 = vld [vmem:[#allocation8 + $0x210] sm:$0xff]
    %v652 = vld [vmem:[#allocation8 + $0x218] sm:$0xff]
    %v653 = vld [vmem:[#allocation8 + $0x220] sm:$0xff]
    %v654 = vld [vmem:[#allocation8 + $0x228] sm:$0xff]
    %v655 = vld [vmem:[#allocation8 + $0x230] sm:$0xff]
    %v656 = vld [vmem:[#allocation8 + $0x238] sm:$0xff]
    %v657 = vld [vmem:[#allocation8 + $0x240] sm:$0xff]
    %v658 = vld [vmem:[#allocation8 + $0x248] sm:$0xff]
    %v659 = vld [vmem:[#allocation8 + $0x250] sm:$0xff]
    %v660 = vld [vmem:[#allocation8 + $0x258] sm:$0xff]
    %v661 = vld [vmem:[#allocation8 + $0x260] sm:$0xff]
    %v662 = vld [vmem:[#allocation8 + $0x268] sm:$0xff]
    %v663 = vld [vmem:[#allocation8 + $0x270] sm:$0xff]
    %v664 = vld [vmem:[#allocation8 + $0x278] sm:$0xff]
    %v665 = vld [vmem:[#allocation8 + $0x280] sm:$0xff]
    %v666 = vld [vmem:[#allocation8 + $0x288] sm:$0xff]
    %v667 = vld [vmem:[#allocation8 + $0x290] sm:$0xff]
    %v668 = vld [vmem:[#allocation8 + $0x298] sm:$0xff]
    %v669 = vld [vmem:[#allocation8 + $0x2a0] sm:$0xff]
    %v670 = vld [vmem:[#allocation8 + $0x2a8] sm:$0xff]
    %v671 = vld [vmem:[#allocation8 + $0x2b0] sm:$0xff]
    %v672 = vld [vmem:[#allocation8 + $0x2b8] sm:$0xff]
    %v673 = vld [vmem:[#allocation8 + $0x2c0] sm:$0xff]
    %v674 = vld [vmem:[#allocation8 + $0x2c8] sm:$0xff]
    %v675 = vld [vmem:[#allocation8 + $0x2d0] sm:$0xff]
    %v676 = vld [vmem:[#allocation8 + $0x2d8] sm:$0xff]
    %v677 = vld [vmem:[#allocation8 + $0x2e0] sm:$0xff]
    %v678 = vld [vmem:[#allocation8 + $0x2e8] sm:$0xff]
    %v679 = vld [vmem:[#allocation8 + $0x2f0] sm:$0xff]
    %v680 = vld [vmem:[#allocation8 + $0x2f8] sm:$0xff]
    %v681 = vld [vmem:[#allocation8 + $0x300] sm:$0xff]
    %v682 = vld [vmem:[#allocation8 + $0x308] sm:$0xff]
    %v683 = vld [vmem:[#allocation8 + $0x310] sm:$0xff]
    %v684 = vld [vmem:[#allocation8 + $0x318] sm:$0xff]
    %v685 = vld [vmem:[#allocation8 + $0x320] sm:$0xff]
    %v686 = vld [vmem:[#allocation8 + $0x328] sm:$0xff]
    %v687 = vld [vmem:[#allocation8 + $0x330] sm:$0xff]
    %v688 = vld [vmem:[#allocation8 + $0x338] sm:$0xff]
    %v689 = vld [vmem:[#allocation8 + $0x340] sm:$0xff]
    %v690 = vld [vmem:[#allocation8 + $0x348] sm:$0xff]
    %v691 = vld [vmem:[#allocation8 + $0x350] sm:$0xff]
    %v692 = vld [vmem:[#allocation8 + $0x358] sm:$0xff]
    %v693 = vld [vmem:[#allocation8 + $0x360] sm:$0xff]
    %v694 = vld [vmem:[#allocation8 + $0x368] sm:$0xff]
    %v695 = vld [vmem:[#allocation8 + $0x370] sm:$0xff]
    %v696 = vld [vmem:[#allocation8 + $0x378] sm:$0xff]
    %v697 = vld [vmem:[#allocation8 + $0x380] sm:$0xff]
    %v698 = vld [vmem:[#allocation8 + $0x388] sm:$0xff]
    %v699 = vld [vmem:[#allocation8 + $0x390] sm:$0xff]
    %v700 = vld [vmem:[#allocation8 + $0x398] sm:$0xff]
    %v701 = vld [vmem:[#allocation8 + $0x3a0] sm:$0xff]
    %v702 = vld [vmem:[#allocation8 + $0x3a8] sm:$0xff]
    %v703 = vld [vmem:[#allocation8 + $0x3b0] sm:$0xff]
    %v704 = vld [vmem:[#allocation8 + $0x3b8] sm:$0xff]
    %v705 = vld [vmem:[#allocation8 + $0x3c0] sm:$0xff]
    %v706 = vld [vmem:[#allocation8 + $0x3c8] sm:$0xff]
    %v707 = vld [vmem:[#allocation8 + $0x3d0] sm:$0xff]
    %v708 = vld [vmem:[#allocation8 + $0x3d8] sm:$0xff]
    %v709 = vld [vmem:[#allocation8 + $0x3e0] sm:$0xff]
    %v710 = vld [vmem:[#allocation8 + $0x3e8] sm:$0xff]
    %v711 = vld [vmem:[#allocation8 + $0x3f0] sm:$0xff]
    %v712 = vld [vmem:[#allocation8 + $0x3f8] sm:$0xff]
    %v713 = vld [vmem:[#allocation8 + $0x400] sm:$0xff]
    %v714 = vld [vmem:[#allocation8 + $0x408] sm:$0xff]
    %v715 = vld [vmem:[#allocation8 + $0x410] sm:$0xff]
    %v716 = vld [vmem:[#allocation8 + $0x418] sm:$0xff]
    %v717 = vld [vmem:[#allocation8 + $0x420] sm:$0xff]
    %v718 = vld [vmem:[#allocation8 + $0x428] sm:$0xff]
    %v719 = vld [vmem:[#allocation8 + $0x430] sm:$0xff]
    %v720 = vld [vmem:[#allocation8 + $0x438] sm:$0xff]
    %v721 = vld [vmem:[#allocation8 + $0x440] sm:$0xff]
    %v722 = vld [vmem:[#allocation8 + $0x448] sm:$0xff]
    %v723 = vld [vmem:[#allocation8 + $0x450] sm:$0xff]
    %v724 = vld [vmem:[#allocation8 + $0x458] sm:$0xff]
    %v725 = vld [vmem:[#allocation8 + $0x460] sm:$0xff]
    %v726 = vld [vmem:[#allocation8 + $0x468] sm:$0xff]
    %v727 = vld [vmem:[#allocation8 + $0x470] sm:$0xff]
    %v728 = vld [vmem:[#allocation8 + $0x478] sm:$0xff]
    %v729 = vld [vmem:[#allocation8 + $0x480] sm:$0xff]
    %v730 = vld [vmem:[#allocation8 + $0x488] sm:$0xff]
    %v731 = vld [vmem:[#allocation8 + $0x490] sm:$0xff]
    %v732 = vld [vmem:[#allocation8 + $0x498] sm:$0xff]
    %v733 = vld [vmem:[#allocation8 + $0x4a0] sm:$0xff]
    %v734 = vld [vmem:[#allocation8 + $0x4a8] sm:$0xff]
    %v735 = vld [vmem:[#allocation8 + $0x4b0] sm:$0xff]
    %v736 = vld [vmem:[#allocation8 + $0x4b8] sm:$0xff]
    %v737 = vld [vmem:[#allocation8 + $0x4c0] sm:$0xff]
    %v738 = vld [vmem:[#allocation8 + $0x4c8] sm:$0xff]
    %v739 = vld [vmem:[#allocation8 + $0x4d0] sm:$0xff]
    %v740 = vld [vmem:[#allocation8 + $0x4d8] sm:$0xff]
    %v741 = vld [vmem:[#allocation8 + $0x4e0] sm:$0xff]
    %v742 = vld [vmem:[#allocation8 + $0x4e8] sm:$0xff]
    %v743 = vld [vmem:[#allocation8 + $0x4f0] sm:$0xff]
    %v744 = vld [vmem:[#allocation8 + $0x4f8] sm:$0xff]
    %v745 = vld [vmem:[#allocation8 + $0x500] sm:$0xff]
    %v746 = vld [vmem:[#allocation8 + $0x508] sm:$0xff]
    %v747 = vld [vmem:[#allocation8 + $0x510] sm:$0xff]
    %v748 = vld [vmem:[#allocation8 + $0x518] sm:$0xff]
    %v749 = vld [vmem:[#allocation8 + $0x520] sm:$0xff]
    %v750 = vld [vmem:[#allocation8 + $0x528] sm:$0xff]
    %v751 = vld [vmem:[#allocation8 + $0x530] sm:$0xff]
    %v752 = vld [vmem:[#allocation8 + $0x538] sm:$0xff]
    %v753 = vld [vmem:[#allocation8 + $0x540] sm:$0xff]
    %v754 = vld [vmem:[#allocation8 + $0x548] sm:$0xff]
    %v755 = vld [vmem:[#allocation8 + $0x550] sm:$0xff]
    %v756 = vld [vmem:[#allocation8 + $0x558] sm:$0xff]
    %v757 = vld [vmem:[#allocation8 + $0x560] sm:$0xff]
    %v758 = vld [vmem:[#allocation8 + $0x568] sm:$0xff]
    %v759 = vld [vmem:[#allocation8 + $0x570] sm:$0xff]
    %v760 = vld [vmem:[#allocation8 + $0x578] sm:$0xff]
    %v761 = vld [vmem:[#allocation8 + $0x580] sm:$0xff]
    %v762 = vld [vmem:[#allocation8 + $0x588] sm:$0xff]
    %v763 = vld [vmem:[#allocation8 + $0x590] sm:$0xff]
    %v764 = vld [vmem:[#allocation8 + $0x598] sm:$0xff]
    %v765 = vld [vmem:[#allocation8 + $0x5a0] sm:$0xff]
    %v766 = vld [vmem:[#allocation8 + $0x5a8] sm:$0xff]
    %v767 = vld [vmem:[#allocation8 + $0x5b0] sm:$0xff]
    %v768 = vld [vmem:[#allocation8 + $0x5b8] sm:$0xff]
    %v769 = vld [vmem:[#allocation8 + $0x5c0] sm:$0xff]
    %v770 = vld [vmem:[#allocation8 + $0x5c8] sm:$0xff]
    %v771 = vld [vmem:[#allocation8 + $0x5d0] sm:$0xff]
    %v772 = vld [vmem:[#allocation8 + $0x5d8] sm:$0xff]
    %v773 = vld [vmem:[#allocation8 + $0x5e0] sm:$0xff]
    %v774 = vld [vmem:[#allocation8 + $0x5e8] sm:$0xff]
    %v775 = vld [vmem:[#allocation8 + $0x5f0] sm:$0xff]
    %v776 = vld [vmem:[#allocation8 + $0x5f8] sm:$0xff]
    %v777 = vld [vmem:[#allocation8 + $0x600] sm:$0xff]
    %v778 = vld [vmem:[#allocation8 + $0x608] sm:$0xff]
    %v779 = vld [vmem:[#allocation8 + $0x610] sm:$0xff]
    %v780 = vld [vmem:[#allocation8 + $0x618] sm:$0xff]
    %v781 = vld [vmem:[#allocation8 + $0x620] sm:$0xff]
    %v782 = vld [vmem:[#allocation8 + $0x628] sm:$0xff]
    %v783 = vld [vmem:[#allocation8 + $0x630] sm:$0xff]
    %v784 = vld [vmem:[#allocation8 + $0x638] sm:$0xff]
    %v785 = vld [vmem:[#allocation8 + $0x640] sm:$0xff]
    %v786 = vld [vmem:[#allocation8 + $0x648] sm:$0xff]
    %v787 = vld [vmem:[#allocation8 + $0x650] sm:$0xff]
    %v788 = vld [vmem:[#allocation8 + $0x658] sm:$0xff]
    %v789 = vld [vmem:[#allocation8 + $0x660] sm:$0xff]
    %v790 = vld [vmem:[#allocation8 + $0x668] sm:$0xff]
    %v791 = vld [vmem:[#allocation8 + $0x670] sm:$0xff]
    %v792 = vld [vmem:[#allocation8 + $0x678] sm:$0xff]
    %v793 = vld [vmem:[#allocation8 + $0x680] sm:$0xff]
    %v794 = vld [vmem:[#allocation8 + $0x688] sm:$0xff]
    %v795 = vld [vmem:[#allocation8 + $0x690] sm:$0xff]
    %v796 = vld [vmem:[#allocation8 + $0x698] sm:$0xff]
    %v797 = vld [vmem:[#allocation8 + $0x6a0] sm:$0xff]
    %v798 = vld [vmem:[#allocation8 + $0x6a8] sm:$0xff]
    %v799 = vld [vmem:[#allocation8 + $0x6b0] sm:$0xff]
    %v800 = vld [vmem:[#allocation8 + $0x6b8] sm:$0xff]
    %v801 = vld [vmem:[#allocation8 + $0x6c0] sm:$0xff]
    %v802 = vld [vmem:[#allocation8 + $0x6c8] sm:$0xff]
    %v803 = vld [vmem:[#allocation8 + $0x6d0] sm:$0xff]
    %v804 = vld [vmem:[#allocation8 + $0x6d8] sm:$0xff]
    %v805 = vld [vmem:[#allocation8 + $0x6e0] sm:$0xff]
    %v806 = vld [vmem:[#allocation8 + $0x6e8] sm:$0xff]
    %v807 = vld [vmem:[#allocation8 + $0x6f0] sm:$0xff]
    %v808 = vld [vmem:[#allocation8 + $0x6f8] sm:$0xff]
    %v809 = vld [vmem:[#allocation8 + $0x700] sm:$0xff]
    %v810 = vld [vmem:[#allocation8 + $0x708] sm:$0xff]
    %v811 = vld [vmem:[#allocation8 + $0x710] sm:$0xff]
    %v812 = vld [vmem:[#allocation8 + $0x718] sm:$0xff]
    %v813 = vld [vmem:[#allocation8 + $0x720] sm:$0xff]
    %v814 = vld [vmem:[#allocation8 + $0x728] sm:$0xff]
    %v815 = vld [vmem:[#allocation8 + $0x730] sm:$0xff]
    %v816 = vld [vmem:[#allocation8 + $0x738] sm:$0xff]
    %v817 = vld [vmem:[#allocation8 + $0x740] sm:$0xff]
    %v818 = vld [vmem:[#allocation8 + $0x748] sm:$0xff]
    %v819 = vld [vmem:[#allocation8 + $0x750] sm:$0xff]
    %v820 = vld [vmem:[#allocation8 + $0x758] sm:$0xff]
    %v821 = vld [vmem:[#allocation8 + $0x760] sm:$0xff]
    %v822 = vld [vmem:[#allocation8 + $0x768] sm:$0xff]
    %v823 = vld [vmem:[#allocation8 + $0x770] sm:$0xff]
    %v824 = vld [vmem:[#allocation8 + $0x778] sm:$0xff]
    %v825 = vld [vmem:[#allocation8 + $0x780] sm:$0xff]
    %v826 = vld [vmem:[#allocation8 + $0x788] sm:$0xff]
    %v827 = vld [vmem:[#allocation8 + $0x790] sm:$0xff]
    %v828 = vld [vmem:[#allocation8 + $0x798] sm:$0xff]
    %v829 = vld [vmem:[#allocation8 + $0x7a0] sm:$0xff]
    %v830 = vld [vmem:[#allocation8 + $0x7a8] sm:$0xff]
    %v831 = vld [vmem:[#allocation8 + $0x7b0] sm:$0xff]
    %v832 = vld [vmem:[#allocation8 + $0x7b8] sm:$0xff]
    %v833 = vld [vmem:[#allocation8 + $0x7c0] sm:$0xff]
    %v834 = vld [vmem:[#allocation8 + $0x7c8] sm:$0xff]
    %v835 = vld [vmem:[#allocation8 + $0x7d0] sm:$0xff]
    %v836 = vld [vmem:[#allocation8 + $0x7d8] sm:$0xff]
    %v837 = vld [vmem:[#allocation8 + $0x7e0] sm:$0xff]
    %v838 = vld [vmem:[#allocation8 + $0x7e8] sm:$0xff]
    %v839 = vld [vmem:[#allocation8 + $0x7f0] sm:$0xff]
    %v840 = vld [vmem:[#allocation8 + $0x7f8] sm:$0xff]
    %v841 = vld [vmem:[#allocation8 + $0x800] sm:$0xff]
    %v842 = vld [vmem:[#allocation8 + $0x808] sm:$0xff]
    %v843 = vld [vmem:[#allocation8 + $0x810] sm:$0xff]
    %v844 = vld [vmem:[#allocation8 + $0x818] sm:$0xff]
    %v845 = vld [vmem:[#allocation8 + $0x820] sm:$0xff]
    %v846 = vld [vmem:[#allocation8 + $0x828] sm:$0xff]
    %v847 = vld [vmem:[#allocation8 + $0x830] sm:$0xff]
    %v848 = vld [vmem:[#allocation8 + $0x838] sm:$0xff]
    %v849 = vld [vmem:[#allocation8 + $0x840] sm:$0xff]
    %v850 = vld [vmem:[#allocation8 + $0x848] sm:$0xff]
    %v851 = vld [vmem:[#allocation8 + $0x850] sm:$0xff]
    %v852 = vld [vmem:[#allocation8 + $0x858] sm:$0xff]
    %v853 = vld [vmem:[#allocation8 + $0x860] sm:$0xff]
    %v854 = vld [vmem:[#allocation8 + $0x868] sm:$0xff]
    %v855 = vld [vmem:[#allocation8 + $0x870] sm:$0xff]
    %v856 = vld [vmem:[#allocation8 + $0x878] sm:$0xff]
    %v857 = vld [vmem:[#allocation8 + $0x880] sm:$0xff]
    %v858 = vld [vmem:[#allocation8 + $0x888] sm:$0xff]
    %v859 = vld [vmem:[#allocation8 + $0x890] sm:$0xff]
    %v860 = vld [vmem:[#allocation8 + $0x898] sm:$0xff]
    %v861 = vld [vmem:[#allocation8 + $0x8a0] sm:$0xff]
    %v862 = vld [vmem:[#allocation8 + $0x8a8] sm:$0xff]
    %v863 = vld [vmem:[#allocation8 + $0x8b0] sm:$0xff]
    %v864 = vld [vmem:[#allocation8 + $0x8b8] sm:$0xff]
    %v865 = vld [vmem:[#allocation8 + $0x8c0] sm:$0xff]
    %v866 = vld [vmem:[#allocation8 + $0x8c8] sm:$0xff]
    %v867 = vld [vmem:[#allocation8 + $0x8d0] sm:$0xff]
    %v868 = vld [vmem:[#allocation8 + $0x8d8] sm:$0xff]
    %v869 = vld [vmem:[#allocation8 + $0x8e0] sm:$0xff]
    %v870 = vld [vmem:[#allocation8 + $0x8e8] sm:$0xff]
    %v871 = vld [vmem:[#allocation8 + $0x8f0] sm:$0xff]
    %v872 = vld [vmem:[#allocation8 + $0x8f8] sm:$0xff]
    %v873 = vld [vmem:[#allocation8 + $0x900] sm:$0xff]
    %v874 = vld [vmem:[#allocation8 + $0x908] sm:$0xff]
    %v875 = vld [vmem:[#allocation8 + $0x910] sm:$0xff]
    %v876 = vld [vmem:[#allocation8 + $0x918] sm:$0xff]
    %v877 = vld [vmem:[#allocation8 + $0x920] sm:$0xff]
    %v878 = vld [vmem:[#allocation8 + $0x928] sm:$0xff]
    %v879 = vld [vmem:[#allocation8 + $0x930] sm:$0xff]
    %v880 = vld [vmem:[#allocation8 + $0x938] sm:$0xff]
    %v881 = vld [vmem:[#allocation8 + $0x940] sm:$0xff]
    %v882 = vld [vmem:[#allocation8 + $0x948] sm:$0xff]
    %v883 = vld [vmem:[#allocation8 + $0x950] sm:$0xff]
    %v884 = vld [vmem:[#allocation8 + $0x958] sm:$0xff]
    %v885 = vld [vmem:[#allocation8 + $0x960] sm:$0xff]
    %v886 = vld [vmem:[#allocation8 + $0x968] sm:$0xff]
    %v887 = vld [vmem:[#allocation8 + $0x970] sm:$0xff]
    %v888 = vld [vmem:[#allocation8 + $0x978] sm:$0xff]
    %v889 = vld [vmem:[#allocation8 + $0x980] sm:$0xff]
    %v890 = vld [vmem:[#allocation8 + $0x988] sm:$0xff]
    %v891 = vld [vmem:[#allocation8 + $0x990] sm:$0xff]
    %v892 = vld [vmem:[#allocation8 + $0x998] sm:$0xff]
    %v893 = vld [vmem:[#allocation8 + $0x9a0] sm:$0xff]
    %v894 = vld [vmem:[#allocation8 + $0x9a8] sm:$0xff]
    %v895 = vld [vmem:[#allocation8 + $0x9b0] sm:$0xff]
    %v896 = vld [vmem:[#allocation8 + $0x9b8] sm:$0xff]
    %v897 = vld [vmem:[#allocation8 + $0x9c0] sm:$0xff]
    %v898 = vld [vmem:[#allocation8 + $0x9c8] sm:$0xff]
    %v899 = vld [vmem:[#allocation8 + $0x9d0] sm:$0xff]
    %v900 = vld [vmem:[#allocation8 + $0x9d8] sm:$0xff]
    %v901 = vld [vmem:[#allocation8 + $0x9e0] sm:$0xff]
    %v902 = vld [vmem:[#allocation8 + $0x9e8] sm:$0xff]
    %v903 = vld [vmem:[#allocation8 + $0x9f0] sm:$0xff]
    %v904 = vld [vmem:[#allocation8 + $0x9f8] sm:$0xff]
    %v905 = vld [vmem:[#allocation8 + $0xa00] sm:$0xff]
    %v906 = vld [vmem:[#allocation8 + $0xa08] sm:$0xff]
    %v907 = vld [vmem:[#allocation8 + $0xa10] sm:$0xff]
    %v908 = vld [vmem:[#allocation8 + $0xa18] sm:$0xff]
    %v909 = vld [vmem:[#allocation8 + $0xa20] sm:$0xff]
    %v910 = vld [vmem:[#allocation8 + $0xa28] sm:$0xff]
    %v911 = vld [vmem:[#allocation8 + $0xa30] sm:$0xff]
    %v912 = vld [vmem:[#allocation8 + $0xa38] sm:$0xff]
    %v913 = vld [vmem:[#allocation8 + $0xa40] sm:$0xff]
    %v914 = vld [vmem:[#allocation8 + $0xa48] sm:$0xff]
    %v915 = vld [vmem:[#allocation8 + $0xa50] sm:$0xff]
    %v916 = vld [vmem:[#allocation8 + $0xa58] sm:$0xff]
    %v917 = vld [vmem:[#allocation8 + $0xa60] sm:$0xff]
    %v918 = vld [vmem:[#allocation8 + $0xa68] sm:$0xff]
    %v919 = vld [vmem:[#allocation8 + $0xa70] sm:$0xff]
    %v920 = vld [vmem:[#allocation8 + $0xa78] sm:$0xff]
    %v921 = vld [vmem:[#allocation8 + $0xa80] sm:$0xff]
    %v922 = vld [vmem:[#allocation8 + $0xa88] sm:$0xff]
    %v923 = vld [vmem:[#allocation8 + $0xa90] sm:$0xff]
    %v924 = vld [vmem:[#allocation8 + $0xa98] sm:$0xff]
    %v925 = vld [vmem:[#allocation8 + $0xaa0] sm:$0xff]
    %v926 = vld [vmem:[#allocation8 + $0xaa8] sm:$0xff]
    %v927 = vld [vmem:[#allocation8 + $0xab0] sm:$0xff]
    %v928 = vld [vmem:[#allocation8 + $0xab8] sm:$0xff]
    %v929 = vld [vmem:[#allocation8 + $0xac0] sm:$0xff]
    %v930 = vld [vmem:[#allocation8 + $0xac8] sm:$0xff]
    %v931 = vld [vmem:[#allocation8 + $0xad0] sm:$0xff]
    %v932 = vld [vmem:[#allocation8 + $0xad8] sm:$0xff]
    %v933 = vld [vmem:[#allocation8 + $0xae0] sm:$0xff]
    %v934 = vld [vmem:[#allocation8 + $0xae8] sm:$0xff]
    %v935 = vld [vmem:[#allocation8 + $0xaf0] sm:$0xff]
    %v936 = vld [vmem:[#allocation8 + $0xaf8] sm:$0xff]
    %v937 = vld [vmem:[#allocation8 + $0xb00] sm:$0xff]
    %v938 = vld [vmem:[#allocation8 + $0xb08] sm:$0xff]
    %v939 = vld [vmem:[#allocation8 + $0xb10] sm:$0xff]
    %v940 = vld [vmem:[#allocation8 + $0xb18] sm:$0xff]
    %v941 = vld [vmem:[#allocation8 + $0xb20] sm:$0xff]
    %v942 = vld [vmem:[#allocation8 + $0xb28] sm:$0xff]
    %v943 = vld [vmem:[#allocation8 + $0xb30] sm:$0xff]
    %v944 = vld [vmem:[#allocation8 + $0xb38] sm:$0xff]
    %v945 = vld [vmem:[#allocation8 + $0xb40] sm:$0xff]
    %v946 = vld [vmem:[#allocation8 + $0xb48] sm:$0xff]
    %v947 = vld [vmem:[#allocation8 + $0xb50] sm:$0xff]
    %v948 = vld [vmem:[#allocation8 + $0xb58] sm:$0xff]
    %v949 = vld [vmem:[#allocation8 + $0xb60] sm:$0xff]
    %v950 = vld [vmem:[#allocation8 + $0xb68] sm:$0xff]
    %v951 = vld [vmem:[#allocation8 + $0xb70] sm:$0xff]
    %v952 = vld [vmem:[#allocation8 + $0xb78] sm:$0xff]
    %v953 = vld [vmem:[#allocation8 + $0xb80] sm:$0xff]
    %v954 = vld [vmem:[#allocation8 + $0xb88] sm:$0xff]
    %v955 = vld [vmem:[#allocation8 + $0xb90] sm:$0xff]
    %v956 = vld [vmem:[#allocation8 + $0xb98] sm:$0xff]
    %v957 = vld [vmem:[#allocation8 + $0xba0] sm:$0xff]
    %v958 = vld [vmem:[#allocation8 + $0xba8] sm:$0xff]
    %v959 = vld [vmem:[#allocation8 + $0xbb0] sm:$0xff]
    %v960 = vld [vmem:[#allocation8 + $0xbb8] sm:$0xff]
    %v961 = vld [vmem:[#allocation8 + $0xbc0] sm:$0xff]
    %v962 = vld [vmem:[#allocation8 + $0xbc8] sm:$0xff]
    %v963 = vld [vmem:[#allocation8 + $0xbd0] sm:$0xff]
    %v964 = vld [vmem:[#allocation8 + $0xbd8] sm:$0xff]
    %v965 = vld [vmem:[#allocation8 + $0xbe0] sm:$0xff]
    %v966 = vld [vmem:[#allocation8 + $0xbe8] sm:$0xff]
    %v967 = vld [vmem:[#allocation8 + $0xbf0] sm:$0xff]
    %v968 = vld [vmem:[#allocation8 + $0xbf8] sm:$0xff]
    %v969 = vld [vmem:[#allocation8 + $0xc00] sm:$0xff]
    %v970 = vld [vmem:[#allocation8 + $0xc08] sm:$0xff]
    %v971 = vld [vmem:[#allocation8 + $0xc10] sm:$0xff]
    %v972 = vld [vmem:[#allocation8 + $0xc18] sm:$0xff]
    %v973 = vld [vmem:[#allocation8 + $0xc20] sm:$0xff]
    %v974 = vld [vmem:[#allocation8 + $0xc28] sm:$0xff]
    %v975 = vld [vmem:[#allocation8 + $0xc30] sm:$0xff]
    %v976 = vld [vmem:[#allocation8 + $0xc38] sm:$0xff]
    %v977 = vld [vmem:[#allocation8 + $0xc40] sm:$0xff]
    %v978 = vld [vmem:[#allocation8 + $0xc48] sm:$0xff]
    %v979 = vld [vmem:[#allocation8 + $0xc50] sm:$0xff]
    %v980 = vld [vmem:[#allocation8 + $0xc58] sm:$0xff]
    %v981 = vld [vmem:[#allocation8 + $0xc60] sm:$0xff]
    %v982 = vld [vmem:[#allocation8 + $0xc68] sm:$0xff]
    %v983 = vld [vmem:[#allocation8 + $0xc70] sm:$0xff]
    %v984 = vld [vmem:[#allocation8 + $0xc78] sm:$0xff]
    %v985 = vld [vmem:[#allocation8 + $0xc80] sm:$0xff]
    %v986 = vld [vmem:[#allocation8 + $0xc88] sm:$0xff]
    %v987 = vld [vmem:[#allocation8 + $0xc90] sm:$0xff]
    %v988 = vld [vmem:[#allocation8 + $0xc98] sm:$0xff]
    %v989 = vld [vmem:[#allocation8 + $0xca0] sm:$0xff]
    %v990 = vld [vmem:[#allocation8 + $0xca8] sm:$0xff]
    %v991 = vld [vmem:[#allocation8 + $0xcb0] sm:$0xff]
    %v992 = vld [vmem:[#allocation8 + $0xcb8] sm:$0xff]
    %v993 = vld [vmem:[#allocation8 + $0xcc0] sm:$0xff]
    %v994 = vld [vmem:[#allocation8 + $0xcc8] sm:$0xff]
    %v995 = vld [vmem:[#allocation8 + $0xcd0] sm:$0xff]
    %v996 = vld [vmem:[#allocation8 + $0xcd8] sm:$0xff]
    %v997 = vld [vmem:[#allocation8 + $0xce0] sm:$0xff]
    %v998 = vld [vmem:[#allocation8 + $0xce8] sm:$0xff]
    %v999 = vld [vmem:[#allocation8 + $0xcf0] sm:$0xff]
    %v1000 = vld [vmem:[#allocation8 + $0xcf8] sm:$0xff]
    %v1001 = vld [vmem:[#allocation8 + $0xd00] sm:$0xff]
    %v1002 = vld [vmem:[#allocation8 + $0xd08] sm:$0xff]
    %v1003 = vld [vmem:[#allocation8 + $0xd10] sm:$0xff]
    %v1004 = vld [vmem:[#allocation8 + $0xd18] sm:$0xff]
    %v1005 = vld [vmem:[#allocation8 + $0xd20] sm:$0xff]
    %v1006 = vld [vmem:[#allocation8 + $0xd28] sm:$0xff]
    %v1007 = vld [vmem:[#allocation8 + $0xd30] sm:$0xff]
    %v1008 = vld [vmem:[#allocation8 + $0xd38] sm:$0xff]
    %v1009 = vld [vmem:[#allocation8 + $0xd40] sm:$0xff]
    %v1010 = vld [vmem:[#allocation8 + $0xd48] sm:$0xff]
    %v1011 = vld [vmem:[#allocation8 + $0xd50] sm:$0xff]
    %v1012 = vld [vmem:[#allocation8 + $0xd58] sm:$0xff]
    %v1013 = vld [vmem:[#allocation8 + $0xd60] sm:$0xff]
    %v1014 = vld [vmem:[#allocation8 + $0xd68] sm:$0xff]
    %v1015 = vld [vmem:[#allocation8 + $0xd70] sm:$0xff]
    %v1016 = vld [vmem:[#allocation8 + $0xd78] sm:$0xff]
    %v1017 = vld [vmem:[#allocation8 + $0xd80] sm:$0xff]
    %v1018 = vld [vmem:[#allocation8 + $0xd88] sm:$0xff]
    %v1019 = vld [vmem:[#allocation8 + $0xd90] sm:$0xff]
    %v1020 = vld [vmem:[#allocation8 + $0xd98] sm:$0xff]
    %v1021 = vld [vmem:[#allocation8 + $0xda0] sm:$0xff]
    %v1022 = vld [vmem:[#allocation8 + $0xda8] sm:$0xff]
    %v1023 = vld [vmem:[#allocation8 + $0xdb0] sm:$0xff]
    %v1024 = vld [vmem:[#allocation8 + $0xdb8] sm:$0xff]
    %v1025 = vld [vmem:[#allocation8 + $0xdc0] sm:$0xff]
    %v1026 = vld [vmem:[#allocation8 + $0xdc8] sm:$0xff]
    %v1027 = vld [vmem:[#allocation8 + $0xdd0] sm:$0xff]
    %v1028 = vld [vmem:[#allocation8 + $0xdd8] sm:$0xff]
    %v1029 = vld [vmem:[#allocation8 + $0xde0] sm:$0xff]
    %v1030 = vld [vmem:[#allocation8 + $0xde8] sm:$0xff]
    %v1031 = vld [vmem:[#allocation8 + $0xdf0] sm:$0xff]
    %v1032 = vld [vmem:[#allocation8 + $0xdf8] sm:$0xff]
    %v1033 = vld [vmem:[#allocation8 + $0xe00] sm:$0xff]
    %v1034 = vld [vmem:[#allocation8 + $0xe08] sm:$0xff]
    %v1035 = vld [vmem:[#allocation8 + $0xe10] sm:$0xff]
    %v1036 = vld [vmem:[#allocation8 + $0xe18] sm:$0xff]
    %v1037 = vld [vmem:[#allocation8 + $0xe20] sm:$0xff]
    %v1038 = vld [vmem:[#allocation8 + $0xe28] sm:$0xff]
    %v1039 = vld [vmem:[#allocation8 + $0xe30] sm:$0xff]
    %v1040 = vld [vmem:[#allocation8 + $0xe38] sm:$0xff]
    %v1041 = vld [vmem:[#allocation8 + $0xe40] sm:$0xff]
    %v1042 = vld [vmem:[#allocation8 + $0xe48] sm:$0xff]
    %v1043 = vld [vmem:[#allocation8 + $0xe50] sm:$0xff]
    %v1044 = vld [vmem:[#allocation8 + $0xe58] sm:$0xff]
    %v1045 = vld [vmem:[#allocation8 + $0xe60] sm:$0xff]
    %v1046 = vld [vmem:[#allocation8 + $0xe68] sm:$0xff]
    %v1047 = vld [vmem:[#allocation8 + $0xe70] sm:$0xff]
    %v1048 = vld [vmem:[#allocation8 + $0xe78] sm:$0xff]
    %v1049 = vld [vmem:[#allocation8 + $0xe80] sm:$0xff]
    %v1050 = vld [vmem:[#allocation8 + $0xe88] sm:$0xff]
    %v1051 = vld [vmem:[#allocation8 + $0xe90] sm:$0xff]
    %v1052 = vld [vmem:[#allocation8 + $0xe98] sm:$0xff]
    %v1053 = vld [vmem:[#allocation8 + $0xea0] sm:$0xff]
    %v1054 = vld [vmem:[#allocation8 + $0xea8] sm:$0xff]
    %v1055 = vld [vmem:[#allocation8 + $0xeb0] sm:$0xff]
    %v1056 = vld [vmem:[#allocation8 + $0xeb8] sm:$0xff]
    %v1057 = vld [vmem:[#allocation8 + $0xec0] sm:$0xff]
    %v1058 = vld [vmem:[#allocation8 + $0xec8] sm:$0xff]
    %v1059 = vld [vmem:[#allocation8 + $0xed0] sm:$0xff]
    %v1060 = vld [vmem:[#allocation8 + $0xed8] sm:$0xff]
    %v1061 = vld [vmem:[#allocation8 + $0xee0] sm:$0xff]
    %v1062 = vld [vmem:[#allocation8 + $0xee8] sm:$0xff]
    %v1063 = vld [vmem:[#allocation8 + $0xef0] sm:$0xff]
    %v1064 = vld [vmem:[#allocation8 + $0xef8] sm:$0xff]
    %v1065 = vld [vmem:[#allocation8 + $0xf00] sm:$0xff]
    %v1066 = vld [vmem:[#allocation8 + $0xf08] sm:$0xff]
    %v1067 = vld [vmem:[#allocation8 + $0xf10] sm:$0xff]
    %v1068 = vld [vmem:[#allocation8 + $0xf18] sm:$0xff]
    %v1069 = vld [vmem:[#allocation8 + $0xf20] sm:$0xff]
    %v1070 = vld [vmem:[#allocation8 + $0xf28] sm:$0xff]
    %v1071 = vld [vmem:[#allocation8 + $0xf30] sm:$0xff]
    %v1072 = vld [vmem:[#allocation8 + $0xf38] sm:$0xff]
    %v1073 = vld [vmem:[#allocation8 + $0xf40] sm:$0xff]
    %v1074 = vld [vmem:[#allocation8 + $0xf48] sm:$0xff]
    %v1075 = vld [vmem:[#allocation8 + $0xf50] sm:$0xff]
    %v1076 = vld [vmem:[#allocation8 + $0xf58] sm:$0xff]
    %v1077 = vld [vmem:[#allocation8 + $0xf60] sm:$0xff]
    %v1078 = vld [vmem:[#allocation8 + $0xf68] sm:$0xff]
    %v1079 = vld [vmem:[#allocation8 + $0xf70] sm:$0xff]
    %v1080 = vld [vmem:[#allocation8 + $0xf78] sm:$0xff]
    %v1081 = vld [vmem:[#allocation8 + $0xf80] sm:$0xff]
    %v1082 = vld [vmem:[#allocation8 + $0xf88] sm:$0xff]
    %v1083 = vld [vmem:[#allocation8 + $0xf90] sm:$0xff]
    %v1084 = vld [vmem:[#allocation8 + $0xf98] sm:$0xff]
    %v1085 = vld [vmem:[#allocation8 + $0xfa0] sm:$0xff]
    %v1086 = vld [vmem:[#allocation8 + $0xfa8] sm:$0xff]
    %v1087 = vld [vmem:[#allocation8 + $0xfb0] sm:$0xff]
    %v1088 = vld [vmem:[#allocation8 + $0xfb8] sm:$0xff]
    %v1089 = vld [vmem:[#allocation8 + $0xfc0] sm:$0xff]
    %v1090 = vld [vmem:[#allocation8 + $0xfc8] sm:$0xff]
    %v1091 = vld [vmem:[#allocation8 + $0xfd0] sm:$0xff]
    %v1092 = vld [vmem:[#allocation8 + $0xfd8] sm:$0xff]
    %v1093 = vld [vmem:[#allocation8 + $0xfe0] sm:$0xff]
    %v1094 = vld [vmem:[#allocation8 + $0xfe8] sm:$0xff]
    %v1095 = vld [vmem:[#allocation8 + $0xff0] sm:$0xff]
    %v1096 = vld [vmem:[#allocation8 + $0xff8] sm:$0xff]
    %v1097 = vld [vmem:[#allocation10] sm:$0xff]
    %v1099 = vlaneseq
    %v1100 = vshrl.u32 %v1099, 7
    %v1101 = vsub.s32 0, %v1100
    %v1102 = vrot.slane %v1097, %v1101
    %v1103 = vlaneseq
    %v1104 = vshrl.u32 %v1103, 7
    %v1105 = vsub.s32 1, %v1104
    %v1106 = vrot.slane %v1097, %v1105
    %v1107 = vlaneseq
    %v1108 = vshrl.u32 %v1107, 7
    %v1109 = vsub.s32 2, %v1108
    %v1110 = vrot.slane %v1097, %v1109
    %v1111 = vlaneseq
    %v1112 = vshrl.u32 %v1111, 7
    %v1113 = vsub.s32 3, %v1112
    %v1114 = vrot.slane %v1097, %v1113
    %v1115 = vlaneseq
    %v1116 = vshrl.u32 %v1115, 7
    %v1117 = vsub.s32 4, %v1116
    %v1118 = vrot.slane %v1097, %v1117
    %v1119 = vlaneseq
    %v1120 = vshrl.u32 %v1119, 7
    %v1121 = vsub.s32 5, %v1120
    %v1122 = vrot.slane %v1097, %v1121
    %v1123 = vlaneseq
    %v1124 = vshrl.u32 %v1123, 7
    %v1125 = vsub.s32 6, %v1124
    %v1126 = vrot.slane %v1097, %v1125
    %v1127 = vlaneseq
    %v1128 = vshrl.u32 %v1127, 7
    %v1129 = vsub.s32 7, %v1128
    %v1130 = vrot.slane %v1097, %v1129
    %v1651 = vunpack.c.l.b16 %v585
    %v1652 = vunpack.c.h.b16 %v585
    %v1653 = vunpack.c.l.b16 %v586
    %v1654 = vunpack.c.h.b16 %v586
    %v1655 = vunpack.c.l.b16 %v587
    %v1656 = vunpack.c.h.b16 %v587
    %v1657 = vunpack.c.l.b16 %v588
    %v1658 = vunpack.c.h.b16 %v588
    %v1659 = vunpack.c.l.b16 %v589
    %v1660 = vunpack.c.h.b16 %v589
    %v1661 = vunpack.c.l.b16 %v590
    %v1662 = vunpack.c.h.b16 %v590
    %v1663 = vunpack.c.l.b16 %v591
    %v1664 = vunpack.c.h.b16 %v591
    %v1665 = vunpack.c.l.b16 %v592
    %v1666 = vunpack.c.h.b16 %v592
    %v1667 = vunpack.c.l.b16 %v593
    %v1668 = vunpack.c.h.b16 %v593
    %v1669 = vunpack.c.l.b16 %v594
    %v1670 = vunpack.c.h.b16 %v594
    %v1671 = vunpack.c.l.b16 %v595
    %v1672 = vunpack.c.h.b16 %v595
    %v1673 = vunpack.c.l.b16 %v596
    %v1674 = vunpack.c.h.b16 %v596
    %v1675 = vunpack.c.l.b16 %v597
    %v1676 = vunpack.c.h.b16 %v597
    %v1677 = vunpack.c.l.b16 %v598
    %v1678 = vunpack.c.h.b16 %v598
    %v1679 = vunpack.c.l.b16 %v599
    %v1680 = vunpack.c.h.b16 %v599
    %v1681 = vunpack.c.l.b16 %v600
    %v1682 = vunpack.c.h.b16 %v600
    %v1683 = vunpack.c.l.b16 %v601
    %v1684 = vunpack.c.h.b16 %v601
    %v1685 = vunpack.c.l.b16 %v602
    %v1686 = vunpack.c.h.b16 %v602
    %v1687 = vunpack.c.l.b16 %v603
    %v1688 = vunpack.c.h.b16 %v603
    %v1689 = vunpack.c.l.b16 %v604
    %v1690 = vunpack.c.h.b16 %v604
    %v1691 = vunpack.c.l.b16 %v605
    %v1692 = vunpack.c.h.b16 %v605
    %v1693 = vunpack.c.l.b16 %v606
    %v1694 = vunpack.c.h.b16 %v606
    %v1695 = vunpack.c.l.b16 %v607
    %v1696 = vunpack.c.h.b16 %v607
    %v1697 = vunpack.c.l.b16 %v608
    %v1698 = vunpack.c.h.b16 %v608
    %v1699 = vunpack.c.l.b16 %v609
    %v1700 = vunpack.c.h.b16 %v609
    %v1701 = vunpack.c.l.b16 %v610
    %v1702 = vunpack.c.h.b16 %v610
    %v1703 = vunpack.c.l.b16 %v611
    %v1704 = vunpack.c.h.b16 %v611
    %v1705 = vunpack.c.l.b16 %v612
    %v1706 = vunpack.c.h.b16 %v612
    %v1707 = vunpack.c.l.b16 %v613
    %v1708 = vunpack.c.h.b16 %v613
    %v1709 = vunpack.c.l.b16 %v614
    %v1710 = vunpack.c.h.b16 %v614
    %v1711 = vunpack.c.l.b16 %v615
    %v1712 = vunpack.c.h.b16 %v615
    %v1713 = vunpack.c.l.b16 %v616
    %v1714 = vunpack.c.h.b16 %v616
    %v1715 = vunpack.c.l.b16 %v617
    %v1716 = vunpack.c.h.b16 %v617
    %v1717 = vunpack.c.l.b16 %v618
    %v1718 = vunpack.c.h.b16 %v618
    %v1719 = vunpack.c.l.b16 %v619
    %v1720 = vunpack.c.h.b16 %v619
    %v1721 = vunpack.c.l.b16 %v620
    %v1722 = vunpack.c.h.b16 %v620
    %v1723 = vunpack.c.l.b16 %v621
    %v1724 = vunpack.c.h.b16 %v621
    %v1725 = vunpack.c.l.b16 %v622
    %v1726 = vunpack.c.h.b16 %v622
    %v1727 = vunpack.c.l.b16 %v623
    %v1728 = vunpack.c.h.b16 %v623
    %v1729 = vunpack.c.l.b16 %v624
    %v1730 = vunpack.c.h.b16 %v624
    %v1731 = vunpack.c.l.b16 %v625
    %v1732 = vunpack.c.h.b16 %v625
    %v1733 = vunpack.c.l.b16 %v626
    %v1734 = vunpack.c.h.b16 %v626
    %v1735 = vunpack.c.l.b16 %v627
    %v1736 = vunpack.c.h.b16 %v627
    %v1737 = vunpack.c.l.b16 %v628
    %v1738 = vunpack.c.h.b16 %v628
    %v1739 = vunpack.c.l.b16 %v629
    %v1740 = vunpack.c.h.b16 %v629
    %v1741 = vunpack.c.l.b16 %v630
    %v1742 = vunpack.c.h.b16 %v630
    %v1743 = vunpack.c.l.b16 %v631
    %v1744 = vunpack.c.h.b16 %v631
    %v1745 = vunpack.c.l.b16 %v632
    %v1746 = vunpack.c.h.b16 %v632
    %v1747 = vunpack.c.l.b16 %v633
    %v1748 = vunpack.c.h.b16 %v633
    %v1749 = vunpack.c.l.b16 %v634
    %v1750 = vunpack.c.h.b16 %v634
    %v1751 = vunpack.c.l.b16 %v635
    %v1752 = vunpack.c.h.b16 %v635
    %v1753 = vunpack.c.l.b16 %v636
    %v1754 = vunpack.c.h.b16 %v636
    %v1755 = vunpack.c.l.b16 %v637
    %v1756 = vunpack.c.h.b16 %v637
    %v1757 = vunpack.c.l.b16 %v638
    %v1758 = vunpack.c.h.b16 %v638
    %v1759 = vunpack.c.l.b16 %v639
    %v1760 = vunpack.c.h.b16 %v639
    %v1761 = vunpack.c.l.b16 %v640
    %v1762 = vunpack.c.h.b16 %v640
    %v1763 = vunpack.c.l.b16 %v641
    %v1764 = vunpack.c.h.b16 %v641
    %v1765 = vunpack.c.l.b16 %v642
    %v1766 = vunpack.c.h.b16 %v642
    %v1767 = vunpack.c.l.b16 %v643
    %v1768 = vunpack.c.h.b16 %v643
    %v1769 = vunpack.c.l.b16 %v644
    %v1770 = vunpack.c.h.b16 %v644
    %v1771 = vunpack.c.l.b16 %v645
    %v1772 = vunpack.c.h.b16 %v645
    %v1773 = vunpack.c.l.b16 %v646
    %v1774 = vunpack.c.h.b16 %v646
    %v1775 = vunpack.c.l.b16 %v647
    %v1776 = vunpack.c.h.b16 %v647
    %v1777 = vunpack.c.l.b16 %v648
    %v1778 = vunpack.c.h.b16 %v648
    %v1779 = vunpack.c.l.b16 %v649
    %v1780 = vunpack.c.h.b16 %v649
    %v1781 = vunpack.c.l.b16 %v650
    %v1782 = vunpack.c.h.b16 %v650
    %v1783 = vunpack.c.l.b16 %v651
    %v1784 = vunpack.c.h.b16 %v651
    %v1785 = vunpack.c.l.b16 %v652
    %v1786 = vunpack.c.h.b16 %v652
    %v1787 = vunpack.c.l.b16 %v653
    %v1788 = vunpack.c.h.b16 %v653
    %v1789 = vunpack.c.l.b16 %v654
    %v1790 = vunpack.c.h.b16 %v654
    %v1791 = vunpack.c.l.b16 %v655
    %v1792 = vunpack.c.h.b16 %v655
    %v1793 = vunpack.c.l.b16 %v656
    %v1794 = vunpack.c.h.b16 %v656
    %v1795 = vunpack.c.l.b16 %v657
    %v1796 = vunpack.c.h.b16 %v657
    %v1797 = vunpack.c.l.b16 %v658
    %v1798 = vunpack.c.h.b16 %v658
    %v1799 = vunpack.c.l.b16 %v659
    %v1800 = vunpack.c.h.b16 %v659
    %v1801 = vunpack.c.l.b16 %v660
    %v1802 = vunpack.c.h.b16 %v660
    %v1803 = vunpack.c.l.b16 %v661
    %v1804 = vunpack.c.h.b16 %v661
    %v1805 = vunpack.c.l.b16 %v662
    %v1806 = vunpack.c.h.b16 %v662
    %v1807 = vunpack.c.l.b16 %v663
    %v1808 = vunpack.c.h.b16 %v663
    %v1809 = vunpack.c.l.b16 %v664
    %v1810 = vunpack.c.h.b16 %v664
    %v1811 = vunpack.c.l.b16 %v665
    %v1812 = vunpack.c.h.b16 %v665
    %v1813 = vunpack.c.l.b16 %v666
    %v1814 = vunpack.c.h.b16 %v666
    %v1815 = vunpack.c.l.b16 %v667
    %v1816 = vunpack.c.h.b16 %v667
    %v1817 = vunpack.c.l.b16 %v668
    %v1818 = vunpack.c.h.b16 %v668
    %v1819 = vunpack.c.l.b16 %v669
    %v1820 = vunpack.c.h.b16 %v669
    %v1821 = vunpack.c.l.b16 %v670
    %v1822 = vunpack.c.h.b16 %v670
    %v1823 = vunpack.c.l.b16 %v671
    %v1824 = vunpack.c.h.b16 %v671
    %v1825 = vunpack.c.l.b16 %v672
    %v1826 = vunpack.c.h.b16 %v672
    %v1827 = vunpack.c.l.b16 %v673
    %v1828 = vunpack.c.h.b16 %v673
    %v1829 = vunpack.c.l.b16 %v674
    %v1830 = vunpack.c.h.b16 %v674
    %v1831 = vunpack.c.l.b16 %v675
    %v1832 = vunpack.c.h.b16 %v675
    %v1833 = vunpack.c.l.b16 %v676
    %v1834 = vunpack.c.h.b16 %v676
    %v1835 = vunpack.c.l.b16 %v677
    %v1836 = vunpack.c.h.b16 %v677
    %v1837 = vunpack.c.l.b16 %v678
    %v1838 = vunpack.c.h.b16 %v678
    %v1839 = vunpack.c.l.b16 %v679
    %v1840 = vunpack.c.h.b16 %v679
    %v1841 = vunpack.c.l.b16 %v680
    %v1842 = vunpack.c.h.b16 %v680
    %v1843 = vunpack.c.l.b16 %v681
    %v1844 = vunpack.c.h.b16 %v681
    %v1845 = vunpack.c.l.b16 %v682
    %v1846 = vunpack.c.h.b16 %v682
    %v1847 = vunpack.c.l.b16 %v683
    %v1848 = vunpack.c.h.b16 %v683
    %v1849 = vunpack.c.l.b16 %v684
    %v1850 = vunpack.c.h.b16 %v684
    %v1851 = vunpack.c.l.b16 %v685
    %v1852 = vunpack.c.h.b16 %v685
    %v1853 = vunpack.c.l.b16 %v686
    %v1854 = vunpack.c.h.b16 %v686
    %v1855 = vunpack.c.l.b16 %v687
    %v1856 = vunpack.c.h.b16 %v687
    %v1857 = vunpack.c.l.b16 %v688
    %v1858 = vunpack.c.h.b16 %v688
    %v1859 = vunpack.c.l.b16 %v689
    %v1860 = vunpack.c.h.b16 %v689
    %v1861 = vunpack.c.l.b16 %v690
    %v1862 = vunpack.c.h.b16 %v690
    %v1863 = vunpack.c.l.b16 %v691
    %v1864 = vunpack.c.h.b16 %v691
    %v1865 = vunpack.c.l.b16 %v692
    %v1866 = vunpack.c.h.b16 %v692
    %v1867 = vunpack.c.l.b16 %v693
    %v1868 = vunpack.c.h.b16 %v693
    %v1869 = vunpack.c.l.b16 %v694
    %v1870 = vunpack.c.h.b16 %v694
    %v1871 = vunpack.c.l.b16 %v695
    %v1872 = vunpack.c.h.b16 %v695
    %v1873 = vunpack.c.l.b16 %v696
    %v1874 = vunpack.c.h.b16 %v696
    %v1875 = vunpack.c.l.b16 %v697
    %v1876 = vunpack.c.h.b16 %v697
    %v1877 = vunpack.c.l.b16 %v698
    %v1878 = vunpack.c.h.b16 %v698
    %v1879 = vunpack.c.l.b16 %v699
    %v1880 = vunpack.c.h.b16 %v699
    %v1881 = vunpack.c.l.b16 %v700
    %v1882 = vunpack.c.h.b16 %v700
    %v1883 = vunpack.c.l.b16 %v701
    %v1884 = vunpack.c.h.b16 %v701
    %v1885 = vunpack.c.l.b16 %v702
    %v1886 = vunpack.c.h.b16 %v702
    %v1887 = vunpack.c.l.b16 %v703
    %v1888 = vunpack.c.h.b16 %v703
    %v1889 = vunpack.c.l.b16 %v704
    %v1890 = vunpack.c.h.b16 %v704
    %v1891 = vunpack.c.l.b16 %v705
    %v1892 = vunpack.c.h.b16 %v705
    %v1893 = vunpack.c.l.b16 %v706
    %v1894 = vunpack.c.h.b16 %v706
    %v1895 = vunpack.c.l.b16 %v707
    %v1896 = vunpack.c.h.b16 %v707
    %v1897 = vunpack.c.l.b16 %v708
    %v1898 = vunpack.c.h.b16 %v708
    %v1899 = vunpack.c.l.b16 %v709
    %v1900 = vunpack.c.h.b16 %v709
    %v1901 = vunpack.c.l.b16 %v710
    %v1902 = vunpack.c.h.b16 %v710
    %v1903 = vunpack.c.l.b16 %v711
    %v1904 = vunpack.c.h.b16 %v711
    %v1905 = vunpack.c.l.b16 %v712
    %v1906 = vunpack.c.h.b16 %v712
    %v1907 = vunpack.c.l.b16 %v713
    %v1908 = vunpack.c.h.b16 %v713
    %v1909 = vunpack.c.l.b16 %v714
    %v1910 = vunpack.c.h.b16 %v714
    %v1911 = vunpack.c.l.b16 %v715
    %v1912 = vunpack.c.h.b16 %v715
    %v1913 = vunpack.c.l.b16 %v716
    %v1914 = vunpack.c.h.b16 %v716
    %v1915 = vunpack.c.l.b16 %v717
    %v1916 = vunpack.c.h.b16 %v717
    %v1917 = vunpack.c.l.b16 %v718
    %v1918 = vunpack.c.h.b16 %v718
    %v1919 = vunpack.c.l.b16 %v719
    %v1920 = vunpack.c.h.b16 %v719
    %v1921 = vunpack.c.l.b16 %v720
    %v1922 = vunpack.c.h.b16 %v720
    %v1923 = vunpack.c.l.b16 %v721
    %v1924 = vunpack.c.h.b16 %v721
    %v1925 = vunpack.c.l.b16 %v722
    %v1926 = vunpack.c.h.b16 %v722
    %v1927 = vunpack.c.l.b16 %v723
    %v1928 = vunpack.c.h.b16 %v723
    %v1929 = vunpack.c.l.b16 %v724
    %v1930 = vunpack.c.h.b16 %v724
    %v1931 = vunpack.c.l.b16 %v725
    %v1932 = vunpack.c.h.b16 %v725
    %v1933 = vunpack.c.l.b16 %v726
    %v1934 = vunpack.c.h.b16 %v726
    %v1935 = vunpack.c.l.b16 %v727
    %v1936 = vunpack.c.h.b16 %v727
    %v1937 = vunpack.c.l.b16 %v728
    %v1938 = vunpack.c.h.b16 %v728
    %v1939 = vunpack.c.l.b16 %v729
    %v1940 = vunpack.c.h.b16 %v729
    %v1941 = vunpack.c.l.b16 %v730
    %v1942 = vunpack.c.h.b16 %v730
    %v1943 = vunpack.c.l.b16 %v731
    %v1944 = vunpack.c.h.b16 %v731
    %v1945 = vunpack.c.l.b16 %v732
    %v1946 = vunpack.c.h.b16 %v732
    %v1947 = vunpack.c.l.b16 %v733
    %v1948 = vunpack.c.h.b16 %v733
    %v1949 = vunpack.c.l.b16 %v734
    %v1950 = vunpack.c.h.b16 %v734
    %v1951 = vunpack.c.l.b16 %v735
    %v1952 = vunpack.c.h.b16 %v735
    %v1953 = vunpack.c.l.b16 %v736
    %v1954 = vunpack.c.h.b16 %v736
    %v1955 = vunpack.c.l.b16 %v737
    %v1956 = vunpack.c.h.b16 %v737
    %v1957 = vunpack.c.l.b16 %v738
    %v1958 = vunpack.c.h.b16 %v738
    %v1959 = vunpack.c.l.b16 %v739
    %v1960 = vunpack.c.h.b16 %v739
    %v1961 = vunpack.c.l.b16 %v740
    %v1962 = vunpack.c.h.b16 %v740
    %v1963 = vunpack.c.l.b16 %v741
    %v1964 = vunpack.c.h.b16 %v741
    %v1965 = vunpack.c.l.b16 %v742
    %v1966 = vunpack.c.h.b16 %v742
    %v1967 = vunpack.c.l.b16 %v743
    %v1968 = vunpack.c.h.b16 %v743
    %v1969 = vunpack.c.l.b16 %v744
    %v1970 = vunpack.c.h.b16 %v744
    %v1971 = vunpack.c.l.b16 %v745
    %v1972 = vunpack.c.h.b16 %v745
    %v1973 = vunpack.c.l.b16 %v746
    %v1974 = vunpack.c.h.b16 %v746
    %v1975 = vunpack.c.l.b16 %v747
    %v1976 = vunpack.c.h.b16 %v747
    %v1977 = vunpack.c.l.b16 %v748
    %v1978 = vunpack.c.h.b16 %v748
    %v1979 = vunpack.c.l.b16 %v749
    %v1980 = vunpack.c.h.b16 %v749
    %v1981 = vunpack.c.l.b16 %v750
    %v1982 = vunpack.c.h.b16 %v750
    %v1983 = vunpack.c.l.b16 %v751
    %v1984 = vunpack.c.h.b16 %v751
    %v1985 = vunpack.c.l.b16 %v752
    %v1986 = vunpack.c.h.b16 %v752
    %v1987 = vunpack.c.l.b16 %v753
    %v1988 = vunpack.c.h.b16 %v753
    %v1989 = vunpack.c.l.b16 %v754
    %v1990 = vunpack.c.h.b16 %v754
    %v1991 = vunpack.c.l.b16 %v755
    %v1992 = vunpack.c.h.b16 %v755
    %v1993 = vunpack.c.l.b16 %v756
    %v1994 = vunpack.c.h.b16 %v756
    %v1995 = vunpack.c.l.b16 %v757
    %v1996 = vunpack.c.h.b16 %v757
    %v1997 = vunpack.c.l.b16 %v758
    %v1998 = vunpack.c.h.b16 %v758
    %v1999 = vunpack.c.l.b16 %v759
    %v2000 = vunpack.c.h.b16 %v759
    %v2001 = vunpack.c.l.b16 %v760
    %v2002 = vunpack.c.h.b16 %v760
    %v2003 = vunpack.c.l.b16 %v761
    %v2004 = vunpack.c.h.b16 %v761
    %v2005 = vunpack.c.l.b16 %v762
    %v2006 = vunpack.c.h.b16 %v762
    %v2007 = vunpack.c.l.b16 %v763
    %v2008 = vunpack.c.h.b16 %v763
    %v2009 = vunpack.c.l.b16 %v764
    %v2010 = vunpack.c.h.b16 %v764
    %v2011 = vunpack.c.l.b16 %v765
    %v2012 = vunpack.c.h.b16 %v765
    %v2013 = vunpack.c.l.b16 %v766
    %v2014 = vunpack.c.h.b16 %v766
    %v2015 = vunpack.c.l.b16 %v767
    %v2016 = vunpack.c.h.b16 %v767
    %v2017 = vunpack.c.l.b16 %v768
    %v2018 = vunpack.c.h.b16 %v768
    %v2019 = vunpack.c.l.b16 %v769
    %v2020 = vunpack.c.h.b16 %v769
    %v2021 = vunpack.c.l.b16 %v770
    %v2022 = vunpack.c.h.b16 %v770
    %v2023 = vunpack.c.l.b16 %v771
    %v2024 = vunpack.c.h.b16 %v771
    %v2025 = vunpack.c.l.b16 %v772
    %v2026 = vunpack.c.h.b16 %v772
    %v2027 = vunpack.c.l.b16 %v773
    %v2028 = vunpack.c.h.b16 %v773
    %v2029 = vunpack.c.l.b16 %v774
    %v2030 = vunpack.c.h.b16 %v774
    %v2031 = vunpack.c.l.b16 %v775
    %v2032 = vunpack.c.h.b16 %v775
    %v2033 = vunpack.c.l.b16 %v776
    %v2034 = vunpack.c.h.b16 %v776
    %v2035 = vunpack.c.l.b16 %v777
    %v2036 = vunpack.c.h.b16 %v777
    %v2037 = vunpack.c.l.b16 %v778
    %v2038 = vunpack.c.h.b16 %v778
    %v2039 = vunpack.c.l.b16 %v779
    %v2040 = vunpack.c.h.b16 %v779
    %v2041 = vunpack.c.l.b16 %v780
    %v2042 = vunpack.c.h.b16 %v780
    %v2043 = vunpack.c.l.b16 %v781
    %v2044 = vunpack.c.h.b16 %v781
    %v2045 = vunpack.c.l.b16 %v782
    %v2046 = vunpack.c.h.b16 %v782
    %v2047 = vunpack.c.l.b16 %v783
    %v2048 = vunpack.c.h.b16 %v783
    %v2049 = vunpack.c.l.b16 %v784
    %v2050 = vunpack.c.h.b16 %v784
    %v2051 = vunpack.c.l.b16 %v785
    %v2052 = vunpack.c.h.b16 %v785
    %v2053 = vunpack.c.l.b16 %v786
    %v2054 = vunpack.c.h.b16 %v786
    %v2055 = vunpack.c.l.b16 %v787
    %v2056 = vunpack.c.h.b16 %v787
    %v2057 = vunpack.c.l.b16 %v788
    %v2058 = vunpack.c.h.b16 %v788
    %v2059 = vunpack.c.l.b16 %v789
    %v2060 = vunpack.c.h.b16 %v789
    %v2061 = vunpack.c.l.b16 %v790
    %v2062 = vunpack.c.h.b16 %v790
    %v2063 = vunpack.c.l.b16 %v791
    %v2064 = vunpack.c.h.b16 %v791
    %v2065 = vunpack.c.l.b16 %v792
    %v2066 = vunpack.c.h.b16 %v792
    %v2067 = vunpack.c.l.b16 %v793
    %v2068 = vunpack.c.h.b16 %v793
    %v2069 = vunpack.c.l.b16 %v794
    %v2070 = vunpack.c.h.b16 %v794
    %v2071 = vunpack.c.l.b16 %v795
    %v2072 = vunpack.c.h.b16 %v795
    %v2073 = vunpack.c.l.b16 %v796
    %v2074 = vunpack.c.h.b16 %v796
    %v2075 = vunpack.c.l.b16 %v797
    %v2076 = vunpack.c.h.b16 %v797
    %v2077 = vunpack.c.l.b16 %v798
    %v2078 = vunpack.c.h.b16 %v798
    %v2079 = vunpack.c.l.b16 %v799
    %v2080 = vunpack.c.h.b16 %v799
    %v2081 = vunpack.c.l.b16 %v800
    %v2082 = vunpack.c.h.b16 %v800
    %v2083 = vunpack.c.l.b16 %v801
    %v2084 = vunpack.c.h.b16 %v801
    %v2085 = vunpack.c.l.b16 %v802
    %v2086 = vunpack.c.h.b16 %v802
    %v2087 = vunpack.c.l.b16 %v803
    %v2088 = vunpack.c.h.b16 %v803
    %v2089 = vunpack.c.l.b16 %v804
    %v2090 = vunpack.c.h.b16 %v804
    %v2091 = vunpack.c.l.b16 %v805
    %v2092 = vunpack.c.h.b16 %v805
    %v2093 = vunpack.c.l.b16 %v806
    %v2094 = vunpack.c.h.b16 %v806
    %v2095 = vunpack.c.l.b16 %v807
    %v2096 = vunpack.c.h.b16 %v807
    %v2097 = vunpack.c.l.b16 %v808
    %v2098 = vunpack.c.h.b16 %v808
    %v2099 = vunpack.c.l.b16 %v809
    %v2100 = vunpack.c.h.b16 %v809
    %v2101 = vunpack.c.l.b16 %v810
    %v2102 = vunpack.c.h.b16 %v810
    %v2103 = vunpack.c.l.b16 %v811
    %v2104 = vunpack.c.h.b16 %v811
    %v2105 = vunpack.c.l.b16 %v812
    %v2106 = vunpack.c.h.b16 %v812
    %v2107 = vunpack.c.l.b16 %v813
    %v2108 = vunpack.c.h.b16 %v813
    %v2109 = vunpack.c.l.b16 %v814
    %v2110 = vunpack.c.h.b16 %v814
    %v2111 = vunpack.c.l.b16 %v815
    %v2112 = vunpack.c.h.b16 %v815
    %v2113 = vunpack.c.l.b16 %v816
    %v2114 = vunpack.c.h.b16 %v816
    %v2115 = vunpack.c.l.b16 %v817
    %v2116 = vunpack.c.h.b16 %v817
    %v2117 = vunpack.c.l.b16 %v818
    %v2118 = vunpack.c.h.b16 %v818
    %v2119 = vunpack.c.l.b16 %v819
    %v2120 = vunpack.c.h.b16 %v819
    %v2121 = vunpack.c.l.b16 %v820
    %v2122 = vunpack.c.h.b16 %v820
    %v2123 = vunpack.c.l.b16 %v821
    %v2124 = vunpack.c.h.b16 %v821
    %v2125 = vunpack.c.l.b16 %v822
    %v2126 = vunpack.c.h.b16 %v822
    %v2127 = vunpack.c.l.b16 %v823
    %v2128 = vunpack.c.h.b16 %v823
    %v2129 = vunpack.c.l.b16 %v824
    %v2130 = vunpack.c.h.b16 %v824
    %v2131 = vunpack.c.l.b16 %v825
    %v2132 = vunpack.c.h.b16 %v825
    %v2133 = vunpack.c.l.b16 %v826
    %v2134 = vunpack.c.h.b16 %v826
    %v2135 = vunpack.c.l.b16 %v827
    %v2136 = vunpack.c.h.b16 %v827
    %v2137 = vunpack.c.l.b16 %v828
    %v2138 = vunpack.c.h.b16 %v828
    %v2139 = vunpack.c.l.b16 %v829
    %v2140 = vunpack.c.h.b16 %v829
    %v2141 = vunpack.c.l.b16 %v830
    %v2142 = vunpack.c.h.b16 %v830
    %v2143 = vunpack.c.l.b16 %v831
    %v2144 = vunpack.c.h.b16 %v831
    %v2145 = vunpack.c.l.b16 %v832
    %v2146 = vunpack.c.h.b16 %v832
    %v2147 = vunpack.c.l.b16 %v833
    %v2148 = vunpack.c.h.b16 %v833
    %v2149 = vunpack.c.l.b16 %v834
    %v2150 = vunpack.c.h.b16 %v834
    %v2151 = vunpack.c.l.b16 %v835
    %v2152 = vunpack.c.h.b16 %v835
    %v2153 = vunpack.c.l.b16 %v836
    %v2154 = vunpack.c.h.b16 %v836
    %v2155 = vunpack.c.l.b16 %v837
    %v2156 = vunpack.c.h.b16 %v837
    %v2157 = vunpack.c.l.b16 %v838
    %v2158 = vunpack.c.h.b16 %v838
    %v2159 = vunpack.c.l.b16 %v839
    %v2160 = vunpack.c.h.b16 %v839
    %v2161 = vunpack.c.l.b16 %v840
    %v2162 = vunpack.c.h.b16 %v840
    %v2163 = vunpack.c.l.b16 %v841
    %v2164 = vunpack.c.h.b16 %v841
    %v2165 = vunpack.c.l.b16 %v842
    %v2166 = vunpack.c.h.b16 %v842
    %v2167 = vunpack.c.l.b16 %v843
    %v2168 = vunpack.c.h.b16 %v843
    %v2169 = vunpack.c.l.b16 %v844
    %v2170 = vunpack.c.h.b16 %v844
    %v2171 = vunpack.c.l.b16 %v845
    %v2172 = vunpack.c.h.b16 %v845
    %v2173 = vunpack.c.l.b16 %v846
    %v2174 = vunpack.c.h.b16 %v846
    %v2175 = vunpack.c.l.b16 %v847
    %v2176 = vunpack.c.h.b16 %v847
    %v2177 = vunpack.c.l.b16 %v848
    %v2178 = vunpack.c.h.b16 %v848
    %v2179 = vunpack.c.l.b16 %v849
    %v2180 = vunpack.c.h.b16 %v849
    %v2181 = vunpack.c.l.b16 %v850
    %v2182 = vunpack.c.h.b16 %v850
    %v2183 = vunpack.c.l.b16 %v851
    %v2184 = vunpack.c.h.b16 %v851
    %v2185 = vunpack.c.l.b16 %v852
    %v2186 = vunpack.c.h.b16 %v852
    %v2187 = vunpack.c.l.b16 %v853
    %v2188 = vunpack.c.h.b16 %v853
    %v2189 = vunpack.c.l.b16 %v854
    %v2190 = vunpack.c.h.b16 %v854
    %v2191 = vunpack.c.l.b16 %v855
    %v2192 = vunpack.c.h.b16 %v855
    %v2193 = vunpack.c.l.b16 %v856
    %v2194 = vunpack.c.h.b16 %v856
    %v2195 = vunpack.c.l.b16 %v857
    %v2196 = vunpack.c.h.b16 %v857
    %v2197 = vunpack.c.l.b16 %v858
    %v2198 = vunpack.c.h.b16 %v858
    %v2199 = vunpack.c.l.b16 %v859
    %v2200 = vunpack.c.h.b16 %v859
    %v2201 = vunpack.c.l.b16 %v860
    %v2202 = vunpack.c.h.b16 %v860
    %v2203 = vunpack.c.l.b16 %v861
    %v2204 = vunpack.c.h.b16 %v861
    %v2205 = vunpack.c.l.b16 %v862
    %v2206 = vunpack.c.h.b16 %v862
    %v2207 = vunpack.c.l.b16 %v863
    %v2208 = vunpack.c.h.b16 %v863
    %v2209 = vunpack.c.l.b16 %v864
    %v2210 = vunpack.c.h.b16 %v864
    %v2211 = vunpack.c.l.b16 %v865
    %v2212 = vunpack.c.h.b16 %v865
    %v2213 = vunpack.c.l.b16 %v866
    %v2214 = vunpack.c.h.b16 %v866
    %v2215 = vunpack.c.l.b16 %v867
    %v2216 = vunpack.c.h.b16 %v867
    %v2217 = vunpack.c.l.b16 %v868
    %v2218 = vunpack.c.h.b16 %v868
    %v2219 = vunpack.c.l.b16 %v869
    %v2220 = vunpack.c.h.b16 %v869
    %v2221 = vunpack.c.l.b16 %v870
    %v2222 = vunpack.c.h.b16 %v870
    %v2223 = vunpack.c.l.b16 %v871
    %v2224 = vunpack.c.h.b16 %v871
    %v2225 = vunpack.c.l.b16 %v872
    %v2226 = vunpack.c.h.b16 %v872
    %v2227 = vunpack.c.l.b16 %v873
    %v2228 = vunpack.c.h.b16 %v873
    %v2229 = vunpack.c.l.b16 %v874
    %v2230 = vunpack.c.h.b16 %v874
    %v2231 = vunpack.c.l.b16 %v875
    %v2232 = vunpack.c.h.b16 %v875
    %v2233 = vunpack.c.l.b16 %v876
    %v2234 = vunpack.c.h.b16 %v876
    %v2235 = vunpack.c.l.b16 %v877
    %v2236 = vunpack.c.h.b16 %v877
    %v2237 = vunpack.c.l.b16 %v878
    %v2238 = vunpack.c.h.b16 %v878
    %v2239 = vunpack.c.l.b16 %v879
    %v2240 = vunpack.c.h.b16 %v879
    %v2241 = vunpack.c.l.b16 %v880
    %v2242 = vunpack.c.h.b16 %v880
    %v2243 = vunpack.c.l.b16 %v881
    %v2244 = vunpack.c.h.b16 %v881
    %v2245 = vunpack.c.l.b16 %v882
    %v2246 = vunpack.c.h.b16 %v882
    %v2247 = vunpack.c.l.b16 %v883
    %v2248 = vunpack.c.h.b16 %v883
    %v2249 = vunpack.c.l.b16 %v884
    %v2250 = vunpack.c.h.b16 %v884
    %v2251 = vunpack.c.l.b16 %v885
    %v2252 = vunpack.c.h.b16 %v885
    %v2253 = vunpack.c.l.b16 %v886
    %v2254 = vunpack.c.h.b16 %v886
    %v2255 = vunpack.c.l.b16 %v887
    %v2256 = vunpack.c.h.b16 %v887
    %v2257 = vunpack.c.l.b16 %v888
    %v2258 = vunpack.c.h.b16 %v888
    %v2259 = vunpack.c.l.b16 %v889
    %v2260 = vunpack.c.h.b16 %v889
    %v2261 = vunpack.c.l.b16 %v890
    %v2262 = vunpack.c.h.b16 %v890
    %v2263 = vunpack.c.l.b16 %v891
    %v2264 = vunpack.c.h.b16 %v891
    %v2265 = vunpack.c.l.b16 %v892
    %v2266 = vunpack.c.h.b16 %v892
    %v2267 = vunpack.c.l.b16 %v893
    %v2268 = vunpack.c.h.b16 %v893
    %v2269 = vunpack.c.l.b16 %v894
    %v2270 = vunpack.c.h.b16 %v894
    %v2271 = vunpack.c.l.b16 %v895
    %v2272 = vunpack.c.h.b16 %v895
    %v2273 = vunpack.c.l.b16 %v896
    %v2274 = vunpack.c.h.b16 %v896
    %v2275 = vunpack.c.l.b16 %v897
    %v2276 = vunpack.c.h.b16 %v897
    %v2277 = vunpack.c.l.b16 %v898
    %v2278 = vunpack.c.h.b16 %v898
    %v2279 = vunpack.c.l.b16 %v899
    %v2280 = vunpack.c.h.b16 %v899
    %v2281 = vunpack.c.l.b16 %v900
    %v2282 = vunpack.c.h.b16 %v900
    %v2283 = vunpack.c.l.b16 %v901
    %v2284 = vunpack.c.h.b16 %v901
    %v2285 = vunpack.c.l.b16 %v902
    %v2286 = vunpack.c.h.b16 %v902
    %v2287 = vunpack.c.l.b16 %v903
    %v2288 = vunpack.c.h.b16 %v903
    %v2289 = vunpack.c.l.b16 %v904
    %v2290 = vunpack.c.h.b16 %v904
    %v2291 = vunpack.c.l.b16 %v905
    %v2292 = vunpack.c.h.b16 %v905
    %v2293 = vunpack.c.l.b16 %v906
    %v2294 = vunpack.c.h.b16 %v906
    %v2295 = vunpack.c.l.b16 %v907
    %v2296 = vunpack.c.h.b16 %v907
    %v2297 = vunpack.c.l.b16 %v908
    %v2298 = vunpack.c.h.b16 %v908
    %v2299 = vunpack.c.l.b16 %v909
    %v2300 = vunpack.c.h.b16 %v909
    %v2301 = vunpack.c.l.b16 %v910
    %v2302 = vunpack.c.h.b16 %v910
    %v2303 = vunpack.c.l.b16 %v911
    %v2304 = vunpack.c.h.b16 %v911
    %v2305 = vunpack.c.l.b16 %v912
    %v2306 = vunpack.c.h.b16 %v912
    %v2307 = vunpack.c.l.b16 %v913
    %v2308 = vunpack.c.h.b16 %v913
    %v2309 = vunpack.c.l.b16 %v914
    %v2310 = vunpack.c.h.b16 %v914
    %v2311 = vunpack.c.l.b16 %v915
    %v2312 = vunpack.c.h.b16 %v915
    %v2313 = vunpack.c.l.b16 %v916
    %v2314 = vunpack.c.h.b16 %v916
    %v2315 = vunpack.c.l.b16 %v917
    %v2316 = vunpack.c.h.b16 %v917
    %v2317 = vunpack.c.l.b16 %v918
    %v2318 = vunpack.c.h.b16 %v918
    %v2319 = vunpack.c.l.b16 %v919
    %v2320 = vunpack.c.h.b16 %v919
    %v2321 = vunpack.c.l.b16 %v920
    %v2322 = vunpack.c.h.b16 %v920
    %v2323 = vunpack.c.l.b16 %v921
    %v2324 = vunpack.c.h.b16 %v921
    %v2325 = vunpack.c.l.b16 %v922
    %v2326 = vunpack.c.h.b16 %v922
    %v2327 = vunpack.c.l.b16 %v923
    %v2328 = vunpack.c.h.b16 %v923
    %v2329 = vunpack.c.l.b16 %v924
    %v2330 = vunpack.c.h.b16 %v924
    %v2331 = vunpack.c.l.b16 %v925
    %v2332 = vunpack.c.h.b16 %v925
    %v2333 = vunpack.c.l.b16 %v926
    %v2334 = vunpack.c.h.b16 %v926
    %v2335 = vunpack.c.l.b16 %v927
    %v2336 = vunpack.c.h.b16 %v927
    %v2337 = vunpack.c.l.b16 %v928
    %v2338 = vunpack.c.h.b16 %v928
    %v2339 = vunpack.c.l.b16 %v929
    %v2340 = vunpack.c.h.b16 %v929
    %v2341 = vunpack.c.l.b16 %v930
    %v2342 = vunpack.c.h.b16 %v930
    %v2343 = vunpack.c.l.b16 %v931
    %v2344 = vunpack.c.h.b16 %v931
    %v2345 = vunpack.c.l.b16 %v932
    %v2346 = vunpack.c.h.b16 %v932
    %v2347 = vunpack.c.l.b16 %v933
    %v2348 = vunpack.c.h.b16 %v933
    %v2349 = vunpack.c.l.b16 %v934
    %v2350 = vunpack.c.h.b16 %v934
    %v2351 = vunpack.c.l.b16 %v935
    %v2352 = vunpack.c.h.b16 %v935
    %v2353 = vunpack.c.l.b16 %v936
    %v2354 = vunpack.c.h.b16 %v936
    %v2355 = vunpack.c.l.b16 %v937
    %v2356 = vunpack.c.h.b16 %v937
    %v2357 = vunpack.c.l.b16 %v938
    %v2358 = vunpack.c.h.b16 %v938
    %v2359 = vunpack.c.l.b16 %v939
    %v2360 = vunpack.c.h.b16 %v939
    %v2361 = vunpack.c.l.b16 %v940
    %v2362 = vunpack.c.h.b16 %v940
    %v2363 = vunpack.c.l.b16 %v941
    %v2364 = vunpack.c.h.b16 %v941
    %v2365 = vunpack.c.l.b16 %v942
    %v2366 = vunpack.c.h.b16 %v942
    %v2367 = vunpack.c.l.b16 %v943
    %v2368 = vunpack.c.h.b16 %v943
    %v2369 = vunpack.c.l.b16 %v944
    %v2370 = vunpack.c.h.b16 %v944
    %v2371 = vunpack.c.l.b16 %v945
    %v2372 = vunpack.c.h.b16 %v945
    %v2373 = vunpack.c.l.b16 %v946
    %v2374 = vunpack.c.h.b16 %v946
    %v2375 = vunpack.c.l.b16 %v947
    %v2376 = vunpack.c.h.b16 %v947
    %v2377 = vunpack.c.l.b16 %v948
    %v2378 = vunpack.c.h.b16 %v948
    %v2379 = vunpack.c.l.b16 %v949
    %v2380 = vunpack.c.h.b16 %v949
    %v2381 = vunpack.c.l.b16 %v950
    %v2382 = vunpack.c.h.b16 %v950
    %v2383 = vunpack.c.l.b16 %v951
    %v2384 = vunpack.c.h.b16 %v951
    %v2385 = vunpack.c.l.b16 %v952
    %v2386 = vunpack.c.h.b16 %v952
    %v2387 = vunpack.c.l.b16 %v953
    %v2388 = vunpack.c.h.b16 %v953
    %v2389 = vunpack.c.l.b16 %v954
    %v2390 = vunpack.c.h.b16 %v954
    %v2391 = vunpack.c.l.b16 %v955
    %v2392 = vunpack.c.h.b16 %v955
    %v2393 = vunpack.c.l.b16 %v956
    %v2394 = vunpack.c.h.b16 %v956
    %v2395 = vunpack.c.l.b16 %v957
    %v2396 = vunpack.c.h.b16 %v957
    %v2397 = vunpack.c.l.b16 %v958
    %v2398 = vunpack.c.h.b16 %v958
    %v2399 = vunpack.c.l.b16 %v959
    %v2400 = vunpack.c.h.b16 %v959
    %v2401 = vunpack.c.l.b16 %v960
    %v2402 = vunpack.c.h.b16 %v960
    %v2403 = vunpack.c.l.b16 %v961
    %v2404 = vunpack.c.h.b16 %v961
    %v2405 = vunpack.c.l.b16 %v962
    %v2406 = vunpack.c.h.b16 %v962
    %v2407 = vunpack.c.l.b16 %v963
    %v2408 = vunpack.c.h.b16 %v963
    %v2409 = vunpack.c.l.b16 %v964
    %v2410 = vunpack.c.h.b16 %v964
    %v2411 = vunpack.c.l.b16 %v965
    %v2412 = vunpack.c.h.b16 %v965
    %v2413 = vunpack.c.l.b16 %v966
    %v2414 = vunpack.c.h.b16 %v966
    %v2415 = vunpack.c.l.b16 %v967
    %v2416 = vunpack.c.h.b16 %v967
    %v2417 = vunpack.c.l.b16 %v968
    %v2418 = vunpack.c.h.b16 %v968
    %v2419 = vunpack.c.l.b16 %v969
    %v2420 = vunpack.c.h.b16 %v969
    %v2421 = vunpack.c.l.b16 %v970
    %v2422 = vunpack.c.h.b16 %v970
    %v2423 = vunpack.c.l.b16 %v971
    %v2424 = vunpack.c.h.b16 %v971
    %v2425 = vunpack.c.l.b16 %v972
    %v2426 = vunpack.c.h.b16 %v972
    %v2427 = vunpack.c.l.b16 %v973
    %v2428 = vunpack.c.h.b16 %v973
    %v2429 = vunpack.c.l.b16 %v974
    %v2430 = vunpack.c.h.b16 %v974
    %v2431 = vunpack.c.l.b16 %v975
    %v2432 = vunpack.c.h.b16 %v975
    %v2433 = vunpack.c.l.b16 %v976
    %v2434 = vunpack.c.h.b16 %v976
    %v2435 = vunpack.c.l.b16 %v977
    %v2436 = vunpack.c.h.b16 %v977
    %v2437 = vunpack.c.l.b16 %v978
    %v2438 = vunpack.c.h.b16 %v978
    %v2439 = vunpack.c.l.b16 %v979
    %v2440 = vunpack.c.h.b16 %v979
    %v2441 = vunpack.c.l.b16 %v980
    %v2442 = vunpack.c.h.b16 %v980
    %v2443 = vunpack.c.l.b16 %v981
    %v2444 = vunpack.c.h.b16 %v981
    %v2445 = vunpack.c.l.b16 %v982
    %v2446 = vunpack.c.h.b16 %v982
    %v2447 = vunpack.c.l.b16 %v983
    %v2448 = vunpack.c.h.b16 %v983
    %v2449 = vunpack.c.l.b16 %v984
    %v2450 = vunpack.c.h.b16 %v984
    %v2451 = vunpack.c.l.b16 %v985
    %v2452 = vunpack.c.h.b16 %v985
    %v2453 = vunpack.c.l.b16 %v986
    %v2454 = vunpack.c.h.b16 %v986
    %v2455 = vunpack.c.l.b16 %v987
    %v2456 = vunpack.c.h.b16 %v987
    %v2457 = vunpack.c.l.b16 %v988
    %v2458 = vunpack.c.h.b16 %v988
    %v2459 = vunpack.c.l.b16 %v989
    %v2460 = vunpack.c.h.b16 %v989
    %v2461 = vunpack.c.l.b16 %v990
    %v2462 = vunpack.c.h.b16 %v990
    %v2463 = vunpack.c.l.b16 %v991
    %v2464 = vunpack.c.h.b16 %v991
    %v2465 = vunpack.c.l.b16 %v992
    %v2466 = vunpack.c.h.b16 %v992
    %v2467 = vunpack.c.l.b16 %v993
    %v2468 = vunpack.c.h.b16 %v993
    %v2469 = vunpack.c.l.b16 %v994
    %v2470 = vunpack.c.h.b16 %v994
    %v2471 = vunpack.c.l.b16 %v995
    %v2472 = vunpack.c.h.b16 %v995
    %v2473 = vunpack.c.l.b16 %v996
    %v2474 = vunpack.c.h.b16 %v996
    %v2475 = vunpack.c.l.b16 %v997
    %v2476 = vunpack.c.h.b16 %v997
    %v2477 = vunpack.c.l.b16 %v998
    %v2478 = vunpack.c.h.b16 %v998
    %v2479 = vunpack.c.l.b16 %v999
    %v2480 = vunpack.c.h.b16 %v999
    %v2481 = vunpack.c.l.b16 %v1000
    %v2482 = vunpack.c.h.b16 %v1000
    %v2483 = vunpack.c.l.b16 %v1001
    %v2484 = vunpack.c.h.b16 %v1001
    %v2485 = vunpack.c.l.b16 %v1002
    %v2486 = vunpack.c.h.b16 %v1002
    %v2487 = vunpack.c.l.b16 %v1003
    %v2488 = vunpack.c.h.b16 %v1003
    %v2489 = vunpack.c.l.b16 %v1004
    %v2490 = vunpack.c.h.b16 %v1004
    %v2491 = vunpack.c.l.b16 %v1005
    %v2492 = vunpack.c.h.b16 %v1005
    %v2493 = vunpack.c.l.b16 %v1006
    %v2494 = vunpack.c.h.b16 %v1006
    %v2495 = vunpack.c.l.b16 %v1007
    %v2496 = vunpack.c.h.b16 %v1007
    %v2497 = vunpack.c.l.b16 %v1008
    %v2498 = vunpack.c.h.b16 %v1008
    %v2499 = vunpack.c.l.b16 %v1009
    %v2500 = vunpack.c.h.b16 %v1009
    %v2501 = vunpack.c.l.b16 %v1010
    %v2502 = vunpack.c.h.b16 %v1010
    %v2503 = vunpack.c.l.b16 %v1011
    %v2504 = vunpack.c.h.b16 %v1011
    %v2505 = vunpack.c.l.b16 %v1012
    %v2506 = vunpack.c.h.b16 %v1012
    %v2507 = vunpack.c.l.b16 %v1013
    %v2508 = vunpack.c.h.b16 %v1013
    %v2509 = vunpack.c.l.b16 %v1014
    %v2510 = vunpack.c.h.b16 %v1014
    %v2511 = vunpack.c.l.b16 %v1015
    %v2512 = vunpack.c.h.b16 %v1015
    %v2513 = vunpack.c.l.b16 %v1016
    %v2514 = vunpack.c.h.b16 %v1016
    %v2515 = vunpack.c.l.b16 %v1017
    %v2516 = vunpack.c.h.b16 %v1017
    %v2517 = vunpack.c.l.b16 %v1018
    %v2518 = vunpack.c.h.b16 %v1018
    %v2519 = vunpack.c.l.b16 %v1019
    %v2520 = vunpack.c.h.b16 %v1019
    %v2521 = vunpack.c.l.b16 %v1020
    %v2522 = vunpack.c.h.b16 %v1020
    %v2523 = vunpack.c.l.b16 %v1021
    %v2524 = vunpack.c.h.b16 %v1021
    %v2525 = vunpack.c.l.b16 %v1022
    %v2526 = vunpack.c.h.b16 %v1022
    %v2527 = vunpack.c.l.b16 %v1023
    %v2528 = vunpack.c.h.b16 %v1023
    %v2529 = vunpack.c.l.b16 %v1024
    %v2530 = vunpack.c.h.b16 %v1024
    %v2531 = vunpack.c.l.b16 %v1025
    %v2532 = vunpack.c.h.b16 %v1025
    %v2533 = vunpack.c.l.b16 %v1026
    %v2534 = vunpack.c.h.b16 %v1026
    %v2535 = vunpack.c.l.b16 %v1027
    %v2536 = vunpack.c.h.b16 %v1027
    %v2537 = vunpack.c.l.b16 %v1028
    %v2538 = vunpack.c.h.b16 %v1028
    %v2539 = vunpack.c.l.b16 %v1029
    %v2540 = vunpack.c.h.b16 %v1029
    %v2541 = vunpack.c.l.b16 %v1030
    %v2542 = vunpack.c.h.b16 %v1030
    %v2543 = vunpack.c.l.b16 %v1031
    %v2544 = vunpack.c.h.b16 %v1031
    %v2545 = vunpack.c.l.b16 %v1032
    %v2546 = vunpack.c.h.b16 %v1032
    %v2547 = vunpack.c.l.b16 %v1033
    %v2548 = vunpack.c.h.b16 %v1033
    %v2549 = vunpack.c.l.b16 %v1034
    %v2550 = vunpack.c.h.b16 %v1034
    %v2551 = vunpack.c.l.b16 %v1035
    %v2552 = vunpack.c.h.b16 %v1035
    %v2553 = vunpack.c.l.b16 %v1036
    %v2554 = vunpack.c.h.b16 %v1036
    %v2555 = vunpack.c.l.b16 %v1037
    %v2556 = vunpack.c.h.b16 %v1037
    %v2557 = vunpack.c.l.b16 %v1038
    %v2558 = vunpack.c.h.b16 %v1038
    %v2559 = vunpack.c.l.b16 %v1039
    %v2560 = vunpack.c.h.b16 %v1039
    %v2561 = vunpack.c.l.b16 %v1040
    %v2562 = vunpack.c.h.b16 %v1040
    %v2563 = vunpack.c.l.b16 %v1041
    %v2564 = vunpack.c.h.b16 %v1041
    %v2565 = vunpack.c.l.b16 %v1042
    %v2566 = vunpack.c.h.b16 %v1042
    %v2567 = vunpack.c.l.b16 %v1043
    %v2568 = vunpack.c.h.b16 %v1043
    %v2569 = vunpack.c.l.b16 %v1044
    %v2570 = vunpack.c.h.b16 %v1044
    %v2571 = vunpack.c.l.b16 %v1045
    %v2572 = vunpack.c.h.b16 %v1045
    %v2573 = vunpack.c.l.b16 %v1046
    %v2574 = vunpack.c.h.b16 %v1046
    %v2575 = vunpack.c.l.b16 %v1047
    %v2576 = vunpack.c.h.b16 %v1047
    %v2577 = vunpack.c.l.b16 %v1048
    %v2578 = vunpack.c.h.b16 %v1048
    %v2579 = vunpack.c.l.b16 %v1049
    %v2580 = vunpack.c.h.b16 %v1049
    %v2581 = vunpack.c.l.b16 %v1050
    %v2582 = vunpack.c.h.b16 %v1050
    %v2583 = vunpack.c.l.b16 %v1051
    %v2584 = vunpack.c.h.b16 %v1051
    %v2585 = vunpack.c.l.b16 %v1052
    %v2586 = vunpack.c.h.b16 %v1052
    %v2587 = vunpack.c.l.b16 %v1053
    %v2588 = vunpack.c.h.b16 %v1053
    %v2589 = vunpack.c.l.b16 %v1054
    %v2590 = vunpack.c.h.b16 %v1054
    %v2591 = vunpack.c.l.b16 %v1055
    %v2592 = vunpack.c.h.b16 %v1055
    %v2593 = vunpack.c.l.b16 %v1056
    %v2594 = vunpack.c.h.b16 %v1056
    %v2595 = vunpack.c.l.b16 %v1057
    %v2596 = vunpack.c.h.b16 %v1057
    %v2597 = vunpack.c.l.b16 %v1058
    %v2598 = vunpack.c.h.b16 %v1058
    %v2599 = vunpack.c.l.b16 %v1059
    %v2600 = vunpack.c.h.b16 %v1059
    %v2601 = vunpack.c.l.b16 %v1060
    %v2602 = vunpack.c.h.b16 %v1060
    %v2603 = vunpack.c.l.b16 %v1061
    %v2604 = vunpack.c.h.b16 %v1061
    %v2605 = vunpack.c.l.b16 %v1062
    %v2606 = vunpack.c.h.b16 %v1062
    %v2607 = vunpack.c.l.b16 %v1063
    %v2608 = vunpack.c.h.b16 %v1063
    %v2609 = vunpack.c.l.b16 %v1064
    %v2610 = vunpack.c.h.b16 %v1064
    %v2611 = vunpack.c.l.b16 %v1065
    %v2612 = vunpack.c.h.b16 %v1065
    %v2613 = vunpack.c.l.b16 %v1066
    %v2614 = vunpack.c.h.b16 %v1066
    %v2615 = vunpack.c.l.b16 %v1067
    %v2616 = vunpack.c.h.b16 %v1067
    %v2617 = vunpack.c.l.b16 %v1068
    %v2618 = vunpack.c.h.b16 %v1068
    %v2619 = vunpack.c.l.b16 %v1069
    %v2620 = vunpack.c.h.b16 %v1069
    %v2621 = vunpack.c.l.b16 %v1070
    %v2622 = vunpack.c.h.b16 %v1070
    %v2623 = vunpack.c.l.b16 %v1071
    %v2624 = vunpack.c.h.b16 %v1071
    %v2625 = vunpack.c.l.b16 %v1072
    %v2626 = vunpack.c.h.b16 %v1072
    %v2627 = vunpack.c.l.b16 %v1073
    %v2628 = vunpack.c.h.b16 %v1073
    %v2629 = vunpack.c.l.b16 %v1074
    %v2630 = vunpack.c.h.b16 %v1074
    %v2631 = vunpack.c.l.b16 %v1075
    %v2632 = vunpack.c.h.b16 %v1075
    %v2633 = vunpack.c.l.b16 %v1076
    %v2634 = vunpack.c.h.b16 %v1076
    %v2635 = vunpack.c.l.b16 %v1077
    %v2636 = vunpack.c.h.b16 %v1077
    %v2637 = vunpack.c.l.b16 %v1078
    %v2638 = vunpack.c.h.b16 %v1078
    %v2639 = vunpack.c.l.b16 %v1079
    %v2640 = vunpack.c.h.b16 %v1079
    %v2641 = vunpack.c.l.b16 %v1080
    %v2642 = vunpack.c.h.b16 %v1080
    %v2643 = vunpack.c.l.b16 %v1081
    %v2644 = vunpack.c.h.b16 %v1081
    %v2645 = vunpack.c.l.b16 %v1082
    %v2646 = vunpack.c.h.b16 %v1082
    %v2647 = vunpack.c.l.b16 %v1083
    %v2648 = vunpack.c.h.b16 %v1083
    %v2649 = vunpack.c.l.b16 %v1084
    %v2650 = vunpack.c.h.b16 %v1084
    %v2651 = vunpack.c.l.b16 %v1085
    %v2652 = vunpack.c.h.b16 %v1085
    %v2653 = vunpack.c.l.b16 %v1086
    %v2654 = vunpack.c.h.b16 %v1086
    %v2655 = vunpack.c.l.b16 %v1087
    %v2656 = vunpack.c.h.b16 %v1087
    %v2657 = vunpack.c.l.b16 %v1088
    %v2658 = vunpack.c.h.b16 %v1088
    %v2659 = vunpack.c.l.b16 %v1089
    %v2660 = vunpack.c.h.b16 %v1089
    %v2661 = vunpack.c.l.b16 %v1090
    %v2662 = vunpack.c.h.b16 %v1090
    %v2663 = vunpack.c.l.b16 %v1091
    %v2664 = vunpack.c.h.b16 %v1091
    %v2665 = vunpack.c.l.b16 %v1092
    %v2666 = vunpack.c.h.b16 %v1092
    %v2667 = vunpack.c.l.b16 %v1093
    %v2668 = vunpack.c.h.b16 %v1093
    %v2669 = vunpack.c.l.b16 %v1094
    %v2670 = vunpack.c.h.b16 %v1094
    %v2671 = vunpack.c.l.b16 %v1095
    %v2672 = vunpack.c.h.b16 %v1095
    %v2673 = vunpack.c.l.b16 %v1096
    %v2674 = vunpack.c.h.b16 %v1096
    %v2675 = vpack.c.b16 %v1659, %v1651
    %v2676 = vpack.c.b16 %v1660, %v1652
    %v2677 = vpack.c.b16 %v1661, %v1653
    %v2678 = vpack.c.b16 %v1662, %v1654
    %v2679 = vpack.c.b16 %v1663, %v1655
    %v2680 = vpack.c.b16 %v1664, %v1656
    %v2681 = vpack.c.b16 %v1665, %v1657
    %v2682 = vpack.c.b16 %v1666, %v1658
    %v2683 = vpack.c.b16 %v1675, %v1667
    %v2684 = vpack.c.b16 %v1676, %v1668
    %v2685 = vpack.c.b16 %v1677, %v1669
    %v2686 = vpack.c.b16 %v1678, %v1670
    %v2687 = vpack.c.b16 %v1679, %v1671
    %v2688 = vpack.c.b16 %v1680, %v1672
    %v2689 = vpack.c.b16 %v1681, %v1673
    %v2690 = vpack.c.b16 %v1682, %v1674
    %v2691 = vpack.c.b16 %v1691, %v1683
    %v2692 = vpack.c.b16 %v1692, %v1684
    %v2693 = vpack.c.b16 %v1693, %v1685
    %v2694 = vpack.c.b16 %v1694, %v1686
    %v2695 = vpack.c.b16 %v1695, %v1687
    %v2696 = vpack.c.b16 %v1696, %v1688
    %v2697 = vpack.c.b16 %v1697, %v1689
    %v2698 = vpack.c.b16 %v1698, %v1690
    %v2699 = vpack.c.b16 %v1707, %v1699
    %v2700 = vpack.c.b16 %v1708, %v1700
    %v2701 = vpack.c.b16 %v1709, %v1701
    %v2702 = vpack.c.b16 %v1710, %v1702
    %v2703 = vpack.c.b16 %v1711, %v1703
    %v2704 = vpack.c.b16 %v1712, %v1704
    %v2705 = vpack.c.b16 %v1713, %v1705
    %v2706 = vpack.c.b16 %v1714, %v1706
    %v2707 = vpack.c.b16 %v1723, %v1715
    %v2708 = vpack.c.b16 %v1724, %v1716
    %v2709 = vpack.c.b16 %v1725, %v1717
    %v2710 = vpack.c.b16 %v1726, %v1718
    %v2711 = vpack.c.b16 %v1727, %v1719
    %v2712 = vpack.c.b16 %v1728, %v1720
    %v2713 = vpack.c.b16 %v1729, %v1721
    %v2714 = vpack.c.b16 %v1730, %v1722
    %v2715 = vpack.c.b16 %v1739, %v1731
    %v2716 = vpack.c.b16 %v1740, %v1732
    %v2717 = vpack.c.b16 %v1741, %v1733
    %v2718 = vpack.c.b16 %v1742, %v1734
    %v2719 = vpack.c.b16 %v1743, %v1735
    %v2720 = vpack.c.b16 %v1744, %v1736
    %v2721 = vpack.c.b16 %v1745, %v1737
    %v2722 = vpack.c.b16 %v1746, %v1738
    %v2723 = vpack.c.b16 %v1755, %v1747
    %v2724 = vpack.c.b16 %v1756, %v1748
    %v2725 = vpack.c.b16 %v1757, %v1749
    %v2726 = vpack.c.b16 %v1758, %v1750
    %v2727 = vpack.c.b16 %v1759, %v1751
    %v2728 = vpack.c.b16 %v1760, %v1752
    %v2729 = vpack.c.b16 %v1761, %v1753
    %v2730 = vpack.c.b16 %v1762, %v1754
    %v2731 = vpack.c.b16 %v1771, %v1763
    %v2732 = vpack.c.b16 %v1772, %v1764
    %v2733 = vpack.c.b16 %v1773, %v1765
    %v2734 = vpack.c.b16 %v1774, %v1766
    %v2735 = vpack.c.b16 %v1775, %v1767
    %v2736 = vpack.c.b16 %v1776, %v1768
    %v2737 = vpack.c.b16 %v1777, %v1769
    %v2738 = vpack.c.b16 %v1778, %v1770
    %v2739 = vpack.c.b16 %v1787, %v1779
    %v2740 = vpack.c.b16 %v1788, %v1780
    %v2741 = vpack.c.b16 %v1789, %v1781
    %v2742 = vpack.c.b16 %v1790, %v1782
    %v2743 = vpack.c.b16 %v1791, %v1783
    %v2744 = vpack.c.b16 %v1792, %v1784
    %v2745 = vpack.c.b16 %v1793, %v1785
    %v2746 = vpack.c.b16 %v1794, %v1786
    %v2747 = vpack.c.b16 %v1803, %v1795
    %v2748 = vpack.c.b16 %v1804, %v1796
    %v2749 = vpack.c.b16 %v1805, %v1797
    %v2750 = vpack.c.b16 %v1806, %v1798
    %v2751 = vpack.c.b16 %v1807, %v1799
    %v2752 = vpack.c.b16 %v1808, %v1800
    %v2753 = vpack.c.b16 %v1809, %v1801
    %v2754 = vpack.c.b16 %v1810, %v1802
    %v2755 = vpack.c.b16 %v1819, %v1811
    %v2756 = vpack.c.b16 %v1820, %v1812
    %v2757 = vpack.c.b16 %v1821, %v1813
    %v2758 = vpack.c.b16 %v1822, %v1814
    %v2759 = vpack.c.b16 %v1823, %v1815
    %v2760 = vpack.c.b16 %v1824, %v1816
    %v2761 = vpack.c.b16 %v1825, %v1817
    %v2762 = vpack.c.b16 %v1826, %v1818
    %v2763 = vpack.c.b16 %v1835, %v1827
    %v2764 = vpack.c.b16 %v1836, %v1828
    %v2765 = vpack.c.b16 %v1837, %v1829
    %v2766 = vpack.c.b16 %v1838, %v1830
    %v2767 = vpack.c.b16 %v1839, %v1831
    %v2768 = vpack.c.b16 %v1840, %v1832
    %v2769 = vpack.c.b16 %v1841, %v1833
    %v2770 = vpack.c.b16 %v1842, %v1834
    %v2771 = vpack.c.b16 %v1851, %v1843
    %v2772 = vpack.c.b16 %v1852, %v1844
    %v2773 = vpack.c.b16 %v1853, %v1845
    %v2774 = vpack.c.b16 %v1854, %v1846
    %v2775 = vpack.c.b16 %v1855, %v1847
    %v2776 = vpack.c.b16 %v1856, %v1848
    %v2777 = vpack.c.b16 %v1857, %v1849
    %v2778 = vpack.c.b16 %v1858, %v1850
    %v2779 = vpack.c.b16 %v1867, %v1859
    %v2780 = vpack.c.b16 %v1868, %v1860
    %v2781 = vpack.c.b16 %v1869, %v1861
    %v2782 = vpack.c.b16 %v1870, %v1862
    %v2783 = vpack.c.b16 %v1871, %v1863
    %v2784 = vpack.c.b16 %v1872, %v1864
    %v2785 = vpack.c.b16 %v1873, %v1865
    %v2786 = vpack.c.b16 %v1874, %v1866
    %v2787 = vpack.c.b16 %v1883, %v1875
    %v2788 = vpack.c.b16 %v1884, %v1876
    %v2789 = vpack.c.b16 %v1885, %v1877
    %v2790 = vpack.c.b16 %v1886, %v1878
    %v2791 = vpack.c.b16 %v1887, %v1879
    %v2792 = vpack.c.b16 %v1888, %v1880
    %v2793 = vpack.c.b16 %v1889, %v1881
    %v2794 = vpack.c.b16 %v1890, %v1882
    %v2795 = vpack.c.b16 %v1899, %v1891
    %v2796 = vpack.c.b16 %v1900, %v1892
    %v2797 = vpack.c.b16 %v1901, %v1893
    %v2798 = vpack.c.b16 %v1902, %v1894
    %v2799 = vpack.c.b16 %v1903, %v1895
    %v2800 = vpack.c.b16 %v1904, %v1896
    %v2801 = vpack.c.b16 %v1905, %v1897
    %v2802 = vpack.c.b16 %v1906, %v1898
    %v2803 = vpack.c.b16 %v1915, %v1907
    %v2804 = vpack.c.b16 %v1916, %v1908
    %v2805 = vpack.c.b16 %v1917, %v1909
    %v2806 = vpack.c.b16 %v1918, %v1910
    %v2807 = vpack.c.b16 %v1919, %v1911
    %v2808 = vpack.c.b16 %v1920, %v1912
    %v2809 = vpack.c.b16 %v1921, %v1913
    %v2810 = vpack.c.b16 %v1922, %v1914
    %v2811 = vpack.c.b16 %v1931, %v1923
    %v2812 = vpack.c.b16 %v1932, %v1924
    %v2813 = vpack.c.b16 %v1933, %v1925
    %v2814 = vpack.c.b16 %v1934, %v1926
    %v2815 = vpack.c.b16 %v1935, %v1927
    %v2816 = vpack.c.b16 %v1936, %v1928
    %v2817 = vpack.c.b16 %v1937, %v1929
    %v2818 = vpack.c.b16 %v1938, %v1930
    %v2819 = vpack.c.b16 %v1947, %v1939
    %v2820 = vpack.c.b16 %v1948, %v1940
    %v2821 = vpack.c.b16 %v1949, %v1941
    %v2822 = vpack.c.b16 %v1950, %v1942
    %v2823 = vpack.c.b16 %v1951, %v1943
    %v2824 = vpack.c.b16 %v1952, %v1944
    %v2825 = vpack.c.b16 %v1953, %v1945
    %v2826 = vpack.c.b16 %v1954, %v1946
    %v2827 = vpack.c.b16 %v1963, %v1955
    %v2828 = vpack.c.b16 %v1964, %v1956
    %v2829 = vpack.c.b16 %v1965, %v1957
    %v2830 = vpack.c.b16 %v1966, %v1958
    %v2831 = vpack.c.b16 %v1967, %v1959
    %v2832 = vpack.c.b16 %v1968, %v1960
    %v2833 = vpack.c.b16 %v1969, %v1961
    %v2834 = vpack.c.b16 %v1970, %v1962
    %v2835 = vpack.c.b16 %v1979, %v1971
    %v2836 = vpack.c.b16 %v1980, %v1972
    %v2837 = vpack.c.b16 %v1981, %v1973
    %v2838 = vpack.c.b16 %v1982, %v1974
    %v2839 = vpack.c.b16 %v1983, %v1975
    %v2840 = vpack.c.b16 %v1984, %v1976
    %v2841 = vpack.c.b16 %v1985, %v1977
    %v2842 = vpack.c.b16 %v1986, %v1978
    %v2843 = vpack.c.b16 %v1995, %v1987
    %v2844 = vpack.c.b16 %v1996, %v1988
    %v2845 = vpack.c.b16 %v1997, %v1989
    %v2846 = vpack.c.b16 %v1998, %v1990
    %v2847 = vpack.c.b16 %v1999, %v1991
    %v2848 = vpack.c.b16 %v2000, %v1992
    %v2849 = vpack.c.b16 %v2001, %v1993
    %v2850 = vpack.c.b16 %v2002, %v1994
    %v2851 = vpack.c.b16 %v2011, %v2003
    %v2852 = vpack.c.b16 %v2012, %v2004
    %v2853 = vpack.c.b16 %v2013, %v2005
    %v2854 = vpack.c.b16 %v2014, %v2006
    %v2855 = vpack.c.b16 %v2015, %v2007
    %v2856 = vpack.c.b16 %v2016, %v2008
    %v2857 = vpack.c.b16 %v2017, %v2009
    %v2858 = vpack.c.b16 %v2018, %v2010
    %v2859 = vpack.c.b16 %v2027, %v2019
    %v2860 = vpack.c.b16 %v2028, %v2020
    %v2861 = vpack.c.b16 %v2029, %v2021
    %v2862 = vpack.c.b16 %v2030, %v2022
    %v2863 = vpack.c.b16 %v2031, %v2023
    %v2864 = vpack.c.b16 %v2032, %v2024
    %v2865 = vpack.c.b16 %v2033, %v2025
    %v2866 = vpack.c.b16 %v2034, %v2026
    %v2867 = vpack.c.b16 %v2043, %v2035
    %v2868 = vpack.c.b16 %v2044, %v2036
    %v2869 = vpack.c.b16 %v2045, %v2037
    %v2870 = vpack.c.b16 %v2046, %v2038
    %v2871 = vpack.c.b16 %v2047, %v2039
    %v2872 = vpack.c.b16 %v2048, %v2040
    %v2873 = vpack.c.b16 %v2049, %v2041
    %v2874 = vpack.c.b16 %v2050, %v2042
    %v2875 = vpack.c.b16 %v2059, %v2051
    %v2876 = vpack.c.b16 %v2060, %v2052
    %v2877 = vpack.c.b16 %v2061, %v2053
    %v2878 = vpack.c.b16 %v2062, %v2054
    %v2879 = vpack.c.b16 %v2063, %v2055
    %v2880 = vpack.c.b16 %v2064, %v2056
    %v2881 = vpack.c.b16 %v2065, %v2057
    %v2882 = vpack.c.b16 %v2066, %v2058
    %v2883 = vpack.c.b16 %v2075, %v2067
    %v2884 = vpack.c.b16 %v2076, %v2068
    %v2885 = vpack.c.b16 %v2077, %v2069
    %v2886 = vpack.c.b16 %v2078, %v2070
    %v2887 = vpack.c.b16 %v2079, %v2071
    %v2888 = vpack.c.b16 %v2080, %v2072
    %v2889 = vpack.c.b16 %v2081, %v2073
    %v2890 = vpack.c.b16 %v2082, %v2074
    %v2891 = vpack.c.b16 %v2091, %v2083
    %v2892 = vpack.c.b16 %v2092, %v2084
    %v2893 = vpack.c.b16 %v2093, %v2085
    %v2894 = vpack.c.b16 %v2094, %v2086
    %v2895 = vpack.c.b16 %v2095, %v2087
    %v2896 = vpack.c.b16 %v2096, %v2088
    %v2897 = vpack.c.b16 %v2097, %v2089
    %v2898 = vpack.c.b16 %v2098, %v2090
    %v2899 = vpack.c.b16 %v2107, %v2099
    %v2900 = vpack.c.b16 %v2108, %v2100
    %v2901 = vpack.c.b16 %v2109, %v2101
    %v2902 = vpack.c.b16 %v2110, %v2102
    %v2903 = vpack.c.b16 %v2111, %v2103
    %v2904 = vpack.c.b16 %v2112, %v2104
    %v2905 = vpack.c.b16 %v2113, %v2105
    %v2906 = vpack.c.b16 %v2114, %v2106
    %v2907 = vpack.c.b16 %v2123, %v2115
    %v2908 = vpack.c.b16 %v2124, %v2116
    %v2909 = vpack.c.b16 %v2125, %v2117
    %v2910 = vpack.c.b16 %v2126, %v2118
    %v2911 = vpack.c.b16 %v2127, %v2119
    %v2912 = vpack.c.b16 %v2128, %v2120
    %v2913 = vpack.c.b16 %v2129, %v2121
    %v2914 = vpack.c.b16 %v2130, %v2122
    %v2915 = vpack.c.b16 %v2139, %v2131
    %v2916 = vpack.c.b16 %v2140, %v2132
    %v2917 = vpack.c.b16 %v2141, %v2133
    %v2918 = vpack.c.b16 %v2142, %v2134
    %v2919 = vpack.c.b16 %v2143, %v2135
    %v2920 = vpack.c.b16 %v2144, %v2136
    %v2921 = vpack.c.b16 %v2145, %v2137
    %v2922 = vpack.c.b16 %v2146, %v2138
    %v2923 = vpack.c.b16 %v2155, %v2147
    %v2924 = vpack.c.b16 %v2156, %v2148
    %v2925 = vpack.c.b16 %v2157, %v2149
    %v2926 = vpack.c.b16 %v2158, %v2150
    %v2927 = vpack.c.b16 %v2159, %v2151
    %v2928 = vpack.c.b16 %v2160, %v2152
    %v2929 = vpack.c.b16 %v2161, %v2153
    %v2930 = vpack.c.b16 %v2162, %v2154
    %v2931 = vpack.c.b16 %v2171, %v2163
    %v2932 = vpack.c.b16 %v2172, %v2164
    %v2933 = vpack.c.b16 %v2173, %v2165
    %v2934 = vpack.c.b16 %v2174, %v2166
    %v2935 = vpack.c.b16 %v2175, %v2167
    %v2936 = vpack.c.b16 %v2176, %v2168
    %v2937 = vpack.c.b16 %v2177, %v2169
    %v2938 = vpack.c.b16 %v2178, %v2170
    %v2939 = vpack.c.b16 %v2187, %v2179
    %v2940 = vpack.c.b16 %v2188, %v2180
    %v2941 = vpack.c.b16 %v2189, %v2181
    %v2942 = vpack.c.b16 %v2190, %v2182
    %v2943 = vpack.c.b16 %v2191, %v2183
    %v2944 = vpack.c.b16 %v2192, %v2184
    %v2945 = vpack.c.b16 %v2193, %v2185
    %v2946 = vpack.c.b16 %v2194, %v2186
    %v2947 = vpack.c.b16 %v2203, %v2195
    %v2948 = vpack.c.b16 %v2204, %v2196
    %v2949 = vpack.c.b16 %v2205, %v2197
    %v2950 = vpack.c.b16 %v2206, %v2198
    %v2951 = vpack.c.b16 %v2207, %v2199
    %v2952 = vpack.c.b16 %v2208, %v2200
    %v2953 = vpack.c.b16 %v2209, %v2201
    %v2954 = vpack.c.b16 %v2210, %v2202
    %v2955 = vpack.c.b16 %v2219, %v2211
    %v2956 = vpack.c.b16 %v2220, %v2212
    %v2957 = vpack.c.b16 %v2221, %v2213
    %v2958 = vpack.c.b16 %v2222, %v2214
    %v2959 = vpack.c.b16 %v2223, %v2215
    %v2960 = vpack.c.b16 %v2224, %v2216
    %v2961 = vpack.c.b16 %v2225, %v2217
    %v2962 = vpack.c.b16 %v2226, %v2218
    %v2963 = vpack.c.b16 %v2235, %v2227
    %v2964 = vpack.c.b16 %v2236, %v2228
    %v2965 = vpack.c.b16 %v2237, %v2229
    %v2966 = vpack.c.b16 %v2238, %v2230
    %v2967 = vpack.c.b16 %v2239, %v2231
    %v2968 = vpack.c.b16 %v2240, %v2232
    %v2969 = vpack.c.b16 %v2241, %v2233
    %v2970 = vpack.c.b16 %v2242, %v2234
    %v2971 = vpack.c.b16 %v2251, %v2243
    %v2972 = vpack.c.b16 %v2252, %v2244
    %v2973 = vpack.c.b16 %v2253, %v2245
    %v2974 = vpack.c.b16 %v2254, %v2246
    %v2975 = vpack.c.b16 %v2255, %v2247
    %v2976 = vpack.c.b16 %v2256, %v2248
    %v2977 = vpack.c.b16 %v2257, %v2249
    %v2978 = vpack.c.b16 %v2258, %v2250
    %v2979 = vpack.c.b16 %v2267, %v2259
    %v2980 = vpack.c.b16 %v2268, %v2260
    %v2981 = vpack.c.b16 %v2269, %v2261
    %v2982 = vpack.c.b16 %v2270, %v2262
    %v2983 = vpack.c.b16 %v2271, %v2263
    %v2984 = vpack.c.b16 %v2272, %v2264
    %v2985 = vpack.c.b16 %v2273, %v2265
    %v2986 = vpack.c.b16 %v2274, %v2266
    %v2987 = vpack.c.b16 %v2283, %v2275
    %v2988 = vpack.c.b16 %v2284, %v2276
    %v2989 = vpack.c.b16 %v2285, %v2277
    %v2990 = vpack.c.b16 %v2286, %v2278
    %v2991 = vpack.c.b16 %v2287, %v2279
    %v2992 = vpack.c.b16 %v2288, %v2280
    %v2993 = vpack.c.b16 %v2289, %v2281
    %v2994 = vpack.c.b16 %v2290, %v2282
    %v2995 = vpack.c.b16 %v2299, %v2291
    %v2996 = vpack.c.b16 %v2300, %v2292
    %v2997 = vpack.c.b16 %v2301, %v2293
    %v2998 = vpack.c.b16 %v2302, %v2294
    %v2999 = vpack.c.b16 %v2303, %v2295
    %v3000 = vpack.c.b16 %v2304, %v2296
    %v3001 = vpack.c.b16 %v2305, %v2297
    %v3002 = vpack.c.b16 %v2306, %v2298
    %v3003 = vpack.c.b16 %v2315, %v2307
    %v3004 = vpack.c.b16 %v2316, %v2308
    %v3005 = vpack.c.b16 %v2317, %v2309
    %v3006 = vpack.c.b16 %v2318, %v2310
    %v3007 = vpack.c.b16 %v2319, %v2311
    %v3008 = vpack.c.b16 %v2320, %v2312
    %v3009 = vpack.c.b16 %v2321, %v2313
    %v3010 = vpack.c.b16 %v2322, %v2314
    %v3011 = vpack.c.b16 %v2331, %v2323
    %v3012 = vpack.c.b16 %v2332, %v2324
    %v3013 = vpack.c.b16 %v2333, %v2325
    %v3014 = vpack.c.b16 %v2334, %v2326
    %v3015 = vpack.c.b16 %v2335, %v2327
    %v3016 = vpack.c.b16 %v2336, %v2328
    %v3017 = vpack.c.b16 %v2337, %v2329
    %v3018 = vpack.c.b16 %v2338, %v2330
    %v3019 = vpack.c.b16 %v2347, %v2339
    %v3020 = vpack.c.b16 %v2348, %v2340
    %v3021 = vpack.c.b16 %v2349, %v2341
    %v3022 = vpack.c.b16 %v2350, %v2342
    %v3023 = vpack.c.b16 %v2351, %v2343
    %v3024 = vpack.c.b16 %v2352, %v2344
    %v3025 = vpack.c.b16 %v2353, %v2345
    %v3026 = vpack.c.b16 %v2354, %v2346
    %v3027 = vpack.c.b16 %v2363, %v2355
    %v3028 = vpack.c.b16 %v2364, %v2356
    %v3029 = vpack.c.b16 %v2365, %v2357
    %v3030 = vpack.c.b16 %v2366, %v2358
    %v3031 = vpack.c.b16 %v2367, %v2359
    %v3032 = vpack.c.b16 %v2368, %v2360
    %v3033 = vpack.c.b16 %v2369, %v2361
    %v3034 = vpack.c.b16 %v2370, %v2362
    %v3035 = vpack.c.b16 %v2379, %v2371
    %v3036 = vpack.c.b16 %v2380, %v2372
    %v3037 = vpack.c.b16 %v2381, %v2373
    %v3038 = vpack.c.b16 %v2382, %v2374
    %v3039 = vpack.c.b16 %v2383, %v2375
    %v3040 = vpack.c.b16 %v2384, %v2376
    %v3041 = vpack.c.b16 %v2385, %v2377
    %v3042 = vpack.c.b16 %v2386, %v2378
    %v3043 = vpack.c.b16 %v2395, %v2387
    %v3044 = vpack.c.b16 %v2396, %v2388
    %v3045 = vpack.c.b16 %v2397, %v2389
    %v3046 = vpack.c.b16 %v2398, %v2390
    %v3047 = vpack.c.b16 %v2399, %v2391
    %v3048 = vpack.c.b16 %v2400, %v2392
    %v3049 = vpack.c.b16 %v2401, %v2393
    %v3050 = vpack.c.b16 %v2402, %v2394
    %v3051 = vpack.c.b16 %v2411, %v2403
    %v3052 = vpack.c.b16 %v2412, %v2404
    %v3053 = vpack.c.b16 %v2413, %v2405
    %v3054 = vpack.c.b16 %v2414, %v2406
    %v3055 = vpack.c.b16 %v2415, %v2407
    %v3056 = vpack.c.b16 %v2416, %v2408
    %v3057 = vpack.c.b16 %v2417, %v2409
    %v3058 = vpack.c.b16 %v2418, %v2410
    %v3059 = vpack.c.b16 %v2427, %v2419
    %v3060 = vpack.c.b16 %v2428, %v2420
    %v3061 = vpack.c.b16 %v2429, %v2421
    %v3062 = vpack.c.b16 %v2430, %v2422
    %v3063 = vpack.c.b16 %v2431, %v2423
    %v3064 = vpack.c.b16 %v2432, %v2424
    %v3065 = vpack.c.b16 %v2433, %v2425
    %v3066 = vpack.c.b16 %v2434, %v2426
    %v3067 = vpack.c.b16 %v2443, %v2435
    %v3068 = vpack.c.b16 %v2444, %v2436
    %v3069 = vpack.c.b16 %v2445, %v2437
    %v3070 = vpack.c.b16 %v2446, %v2438
    %v3071 = vpack.c.b16 %v2447, %v2439
    %v3072 = vpack.c.b16 %v2448, %v2440
    %v3073 = vpack.c.b16 %v2449, %v2441
    %v3074 = vpack.c.b16 %v2450, %v2442
    %v3075 = vpack.c.b16 %v2459, %v2451
    %v3076 = vpack.c.b16 %v2460, %v2452
    %v3077 = vpack.c.b16 %v2461, %v2453
    %v3078 = vpack.c.b16 %v2462, %v2454
    %v3079 = vpack.c.b16 %v2463, %v2455
    %v3080 = vpack.c.b16 %v2464, %v2456
    %v3081 = vpack.c.b16 %v2465, %v2457
    %v3082 = vpack.c.b16 %v2466, %v2458
    %v3083 = vpack.c.b16 %v2475, %v2467
    %v3084 = vpack.c.b16 %v2476, %v2468
    %v3085 = vpack.c.b16 %v2477, %v2469
    %v3086 = vpack.c.b16 %v2478, %v2470
    %v3087 = vpack.c.b16 %v2479, %v2471
    %v3088 = vpack.c.b16 %v2480, %v2472
    %v3089 = vpack.c.b16 %v2481, %v2473
    %v3090 = vpack.c.b16 %v2482, %v2474
    %v3091 = vpack.c.b16 %v2491, %v2483
    %v3092 = vpack.c.b16 %v2492, %v2484
    %v3093 = vpack.c.b16 %v2493, %v2485
    %v3094 = vpack.c.b16 %v2494, %v2486
    %v3095 = vpack.c.b16 %v2495, %v2487
    %v3096 = vpack.c.b16 %v2496, %v2488
    %v3097 = vpack.c.b16 %v2497, %v2489
    %v3098 = vpack.c.b16 %v2498, %v2490
    %v3099 = vpack.c.b16 %v2507, %v2499
    %v3100 = vpack.c.b16 %v2508, %v2500
    %v3101 = vpack.c.b16 %v2509, %v2501
    %v3102 = vpack.c.b16 %v2510, %v2502
    %v3103 = vpack.c.b16 %v2511, %v2503
    %v3104 = vpack.c.b16 %v2512, %v2504
    %v3105 = vpack.c.b16 %v2513, %v2505
    %v3106 = vpack.c.b16 %v2514, %v2506
    %v3107 = vpack.c.b16 %v2523, %v2515
    %v3108 = vpack.c.b16 %v2524, %v2516
    %v3109 = vpack.c.b16 %v2525, %v2517
    %v3110 = vpack.c.b16 %v2526, %v2518
    %v3111 = vpack.c.b16 %v2527, %v2519
    %v3112 = vpack.c.b16 %v2528, %v2520
    %v3113 = vpack.c.b16 %v2529, %v2521
    %v3114 = vpack.c.b16 %v2530, %v2522
    %v3115 = vpack.c.b16 %v2539, %v2531
    %v3116 = vpack.c.b16 %v2540, %v2532
    %v3117 = vpack.c.b16 %v2541, %v2533
    %v3118 = vpack.c.b16 %v2542, %v2534
    %v3119 = vpack.c.b16 %v2543, %v2535
    %v3120 = vpack.c.b16 %v2544, %v2536
    %v3121 = vpack.c.b16 %v2545, %v2537
    %v3122 = vpack.c.b16 %v2546, %v2538
    %v3123 = vpack.c.b16 %v2555, %v2547
    %v3124 = vpack.c.b16 %v2556, %v2548
    %v3125 = vpack.c.b16 %v2557, %v2549
    %v3126 = vpack.c.b16 %v2558, %v2550
    %v3127 = vpack.c.b16 %v2559, %v2551
    %v3128 = vpack.c.b16 %v2560, %v2552
    %v3129 = vpack.c.b16 %v2561, %v2553
    %v3130 = vpack.c.b16 %v2562, %v2554
    %v3131 = vpack.c.b16 %v2571, %v2563
    %v3132 = vpack.c.b16 %v2572, %v2564
    %v3133 = vpack.c.b16 %v2573, %v2565
    %v3134 = vpack.c.b16 %v2574, %v2566
    %v3135 = vpack.c.b16 %v2575, %v2567
    %v3136 = vpack.c.b16 %v2576, %v2568
    %v3137 = vpack.c.b16 %v2577, %v2569
    %v3138 = vpack.c.b16 %v2578, %v2570
    %v3139 = vpack.c.b16 %v2587, %v2579
    %v3140 = vpack.c.b16 %v2588, %v2580
    %v3141 = vpack.c.b16 %v2589, %v2581
    %v3142 = vpack.c.b16 %v2590, %v2582
    %v3143 = vpack.c.b16 %v2591, %v2583
    %v3144 = vpack.c.b16 %v2592, %v2584
    %v3145 = vpack.c.b16 %v2593, %v2585
    %v3146 = vpack.c.b16 %v2594, %v2586
    %v3147 = vpack.c.b16 %v2603, %v2595
    %v3148 = vpack.c.b16 %v2604, %v2596
    %v3149 = vpack.c.b16 %v2605, %v2597
    %v3150 = vpack.c.b16 %v2606, %v2598
    %v3151 = vpack.c.b16 %v2607, %v2599
    %v3152 = vpack.c.b16 %v2608, %v2600
    %v3153 = vpack.c.b16 %v2609, %v2601
    %v3154 = vpack.c.b16 %v2610, %v2602
    %v3155 = vpack.c.b16 %v2619, %v2611
    %v3156 = vpack.c.b16 %v2620, %v2612
    %v3157 = vpack.c.b16 %v2621, %v2613
    %v3158 = vpack.c.b16 %v2622, %v2614
    %v3159 = vpack.c.b16 %v2623, %v2615
    %v3160 = vpack.c.b16 %v2624, %v2616
    %v3161 = vpack.c.b16 %v2625, %v2617
    %v3162 = vpack.c.b16 %v2626, %v2618
    %v3163 = vpack.c.b16 %v2635, %v2627
    %v3164 = vpack.c.b16 %v2636, %v2628
    %v3165 = vpack.c.b16 %v2637, %v2629
    %v3166 = vpack.c.b16 %v2638, %v2630
    %v3167 = vpack.c.b16 %v2639, %v2631
    %v3168 = vpack.c.b16 %v2640, %v2632
    %v3169 = vpack.c.b16 %v2641, %v2633
    %v3170 = vpack.c.b16 %v2642, %v2634
    %v3171 = vpack.c.b16 %v2651, %v2643
    %v3172 = vpack.c.b16 %v2652, %v2644
    %v3173 = vpack.c.b16 %v2653, %v2645
    %v3174 = vpack.c.b16 %v2654, %v2646
    %v3175 = vpack.c.b16 %v2655, %v2647
    %v3176 = vpack.c.b16 %v2656, %v2648
    %v3177 = vpack.c.b16 %v2657, %v2649
    %v3178 = vpack.c.b16 %v2658, %v2650
    %v3179 = vpack.c.b16 %v2667, %v2659
    %v3180 = vpack.c.b16 %v2668, %v2660
    %v3181 = vpack.c.b16 %v2669, %v2661
    %v3182 = vpack.c.b16 %v2670, %v2662
    %v3183 = vpack.c.b16 %v2671, %v2663
    %v3184 = vpack.c.b16 %v2672, %v2664
    %v3185 = vpack.c.b16 %v2673, %v2665
    %v3186 = vpack.c.b16 %v2674, %v2666
    %3699 = vmatprep.subr.bf16.mxu0 %v2676
    %3700 = vmatpush1.bf16.msra.mxu0 %v2675
    %3701 = vmatprep.subr.bf16.mxu0 %v2684
    %3702 = vmatpush1.bf16.msra.mxu0 %v2683
    %3703 = vmatprep.subr.bf16.mxu0 %v2692
    %3704 = vmatpush1.bf16.msra.mxu0 %v2691
    %3705 = vmatprep.subr.bf16.mxu0 %v2700
    %3706 = vmatpush1.bf16.msra.mxu0 %v2699
    %3707 = vmatprep.subr.bf16.mxu0 %v2708
    %3708 = vmatpush1.bf16.msra.mxu0 %v2707
    %3709 = vmatprep.subr.bf16.mxu0 %v2716
    %3710 = vmatpush1.bf16.msra.mxu0 %v2715
    %3711 = vmatprep.subr.bf16.mxu0 %v2724
    %3712 = vmatpush1.bf16.msra.mxu0 %v2723
    %3713 = vmatprep.subr.bf16.mxu0 %v2732
    %3714 = vmatpush1.bf16.msra.mxu0 %v2731
    %3715 = vmatprep.subr.bf16.mxu0 %v2740
    %3716 = vmatpush1.bf16.msra.mxu0 %v2739
    %3717 = vmatprep.subr.bf16.mxu0 %v2748
    %3718 = vmatpush1.bf16.msra.mxu0 %v2747
    %3719 = vmatprep.subr.bf16.mxu0 %v2756
    %3720 = vmatpush1.bf16.msra.mxu0 %v2755
    %3721 = vmatprep.subr.bf16.mxu0 %v2764
    %3722 = vmatpush1.bf16.msra.mxu0 %v2763
    %3723 = vmatprep.subr.bf16.mxu0 %v2772
    %3724 = vmatpush1.bf16.msra.mxu0 %v2771
    %3725 = vmatprep.subr.bf16.mxu0 %v2780
    %3726 = vmatpush1.bf16.msra.mxu0 %v2779
    %3727 = vmatprep.subr.bf16.mxu0 %v2788
    %3728 = vmatpush1.bf16.msra.mxu0 %v2787
    %3729 = vmatprep.subr.bf16.mxu0 %v2796
    %3730 = vmatpush1.bf16.msra.mxu0 %v2795
    %3731 = vmatprep.mubr.bf16.mxu0 %v578
    %3732 = vmatmul.mubr.bf16.gmra.mrb[0].mxu0 %v577
    %v3733 = vpop.f32.mrb[0].mxu0
    %v3734 = vadd.f32 %v1102, %v3733
    %v3735 = vpop.f32.mrb[0].mxu0
    %v3736 = vadd.f32 %v1106, %v3735
    %v3737 = vpop.f32.mrb[0].mxu0
    %v3738 = vadd.f32 %v1102, %v3737
    %v3739 = vpop.f32.mrb[0].mxu0
    %v3740 = vadd.f32 %v1106, %v3739
    %3741 = vdwg.mxu0
    %3742 = vmatprep.subr.bf16.mxu0 %v2804
    %3743 = vmatpush1.bf16.msra.mxu0 %v2803
    %3744 = vmatprep.subr.bf16.mxu0 %v2812
    %3745 = vmatpush1.bf16.msra.mxu0 %v2811
    %3746 = vmatprep.subr.bf16.mxu0 %v2820
    %3747 = vmatpush1.bf16.msra.mxu0 %v2819
    %3748 = vmatprep.subr.bf16.mxu0 %v2828
    %3749 = vmatpush1.bf16.msra.mxu0 %v2827
    %3750 = vmatprep.subr.bf16.mxu0 %v2836
    %3751 = vmatpush1.bf16.msra.mxu0 %v2835
    %3752 = vmatprep.subr.bf16.mxu0 %v2844
    %3753 = vmatpush1.bf16.msra.mxu0 %v2843
    %3754 = vmatprep.subr.bf16.mxu0 %v2852
    %3755 = vmatpush1.bf16.msra.mxu0 %v2851
    %3756 = vmatprep.subr.bf16.mxu0 %v2860
    %3757 = vmatpush1.bf16.msra.mxu0 %v2859
    %3758 = vmatprep.subr.bf16.mxu0 %v2868
    %3759 = vmatpush1.bf16.msra.mxu0 %v2867
    %3760 = vmatprep.subr.bf16.mxu0 %v2876
    %3761 = vmatpush1.bf16.msra.mxu0 %v2875
    %3762 = vmatprep.subr.bf16.mxu0 %v2884
    %3763 = vmatpush1.bf16.msra.mxu0 %v2883
    %3764 = vmatprep.subr.bf16.mxu0 %v2892
    %3765 = vmatpush1.bf16.msra.mxu0 %v2891
    %3766 = vmatprep.subr.bf16.mxu0 %v2900
    %3767 = vmatpush1.bf16.msra.mxu0 %v2899
    %3768 = vmatprep.subr.bf16.mxu0 %v2908
    %3769 = vmatpush1.bf16.msra.mxu0 %v2907
    %3770 = vmatprep.subr.bf16.mxu0 %v2916
    %3771 = vmatpush1.bf16.msra.mxu0 %v2915
    %3772 = vmatprep.subr.bf16.mxu0 %v2924
    %3773 = vmatpush1.bf16.msra.mxu0 %v2923
    %3774 = vmatprep.mubr.bf16.mxu0 %v580
    %3775 = vmatmul.mubr.bf16.gmra.mrb[0].mxu0 %v579
    %v3776 = vpop.f32.mrb[0].mxu0
    %v3777 = vadd.f32 %v3734, %v3776
    %v3778 = vpop.f32.mrb[0].mxu0
    %v3779 = vadd.f32 %v3736, %v3778
    %v3780 = vpop.f32.mrb[0].mxu0
    %v3781 = vadd.f32 %v3738, %v3780
    %v3782 = vpop.f32.mrb[0].mxu0
    %v3783 = vadd.f32 %v3740, %v3782
    %3784 = vdwg.mxu0
    %3785 = vmatprep.subr.bf16.mxu0 %v2932
    %3786 = vmatpush1.bf16.msra.mxu0 %v2931
    %3787 = vmatprep.subr.bf16.mxu0 %v2940
    %3788 = vmatpush1.bf16.msra.mxu0 %v2939
    %3789 = vmatprep.subr.bf16.mxu0 %v2948
    %3790 = vmatpush1.bf16.msra.mxu0 %v2947
    %3791 = vmatprep.subr.bf16.mxu0 %v2956
    %3792 = vmatpush1.bf16.msra.mxu0 %v2955
    %3793 = vmatprep.subr.bf16.mxu0 %v2964
    %3794 = vmatpush1.bf16.msra.mxu0 %v2963
    %3795 = vmatprep.subr.bf16.mxu0 %v2972
    %3796 = vmatpush1.bf16.msra.mxu0 %v2971
    %3797 = vmatprep.subr.bf16.mxu0 %v2980
    %3798 = vmatpush1.bf16.msra.mxu0 %v2979
    %3799 = vmatprep.subr.bf16.mxu0 %v2988
    %3800 = vmatpush1.bf16.msra.mxu0 %v2987
    %3801 = vmatprep.subr.bf16.mxu0 %v2996
    %3802 = vmatpush1.bf16.msra.mxu0 %v2995
    %3803 = vmatprep.subr.bf16.mxu0 %v3004
    %3804 = vmatpush1.bf16.msra.mxu0 %v3003
    %3805 = vmatprep.subr.bf16.mxu0 %v3012
    %3806 = vmatpush1.bf16.msra.mxu0 %v3011
    %3807 = vmatprep.subr.bf16.mxu0 %v3020
    %3808 = vmatpush1.bf16.msra.mxu0 %v3019
    %3809 = vmatprep.subr.bf16.mxu0 %v3028
    %3810 = vmatpush1.bf16.msra.mxu0 %v3027
    %3811 = vmatprep.subr.bf16.mxu0 %v3036
    %3812 = vmatpush1.bf16.msra.mxu0 %v3035
    %3813 = vmatprep.subr.bf16.mxu0 %v3044
    %3814 = vmatpush1.bf16.msra.mxu0 %v3043
    %3815 = vmatprep.subr.bf16.mxu0 %v3052
    %3816 = vmatpush1.bf16.msra.mxu0 %v3051
    %3817 = vmatprep.mubr.bf16.mxu0 %v582
    %3818 = vmatmul.mubr.bf16.gmra.mrb[0].mxu0 %v581
    %v3819 = vpop.f32.mrb[0].mxu0
    %v3820 = vadd.f32 %v3777, %v3819
    %v3821 = vpop.f32.mrb[0].mxu0
    %v3822 = vadd.f32 %v3779, %v3821
    %v3823 = vpop.f32.mrb[0].mxu0
    %v3824 = vadd.f32 %v3781, %v3823
    %v3825 = vpop.f32.mrb[0].mxu0
    %v3826 = vadd.f32 %v3783, %v3825
    %3827 = vdwg.mxu0
    %3828 = vmatprep.subr.bf16.mxu0 %v3060
    %3829 = vmatpush1.bf16.msra.mxu0 %v3059
    %3830 = vmatprep.subr.bf16.mxu0 %v3068
    %3831 = vmatpush1.bf16.msra.mxu0 %v3067
    %3832 = vmatprep.subr.bf16.mxu0 %v3076
    %3833 = vmatpush1.bf16.msra.mxu0 %v3075
    %3834 = vmatprep.subr.bf16.mxu0 %v3084
    %3835 = vmatpush1.bf16.msra.mxu0 %v3083
    %3836 = vmatprep.subr.bf16.mxu0 %v3092
    %3837 = vmatpush1.bf16.msra.mxu0 %v3091
    %3838 = vmatprep.subr.bf16.mxu0 %v3100
    %3839 = vmatpush1.bf16.msra.mxu0 %v3099
    %3840 = vmatprep.subr.bf16.mxu0 %v3108
    %3841 = vmatpush1.bf16.msra.mxu0 %v3107
    %3842 = vmatprep.subr.bf16.mxu0 %v3116
    %3843 = vmatpush1.bf16.msra.mxu0 %v3115
    %3844 = vmatprep.subr.bf16.mxu0 %v3124
    %3845 = vmatpush1.bf16.msra.mxu0 %v3123
    %3846 = vmatprep.subr.bf16.mxu0 %v3132
    %3847 = vmatpush1.bf16.msra.mxu0 %v3131
    %3848 = vmatprep.subr.bf16.mxu0 %v3140
    %3849 = vmatpush1.bf16.msra.mxu0 %v3139
    %3850 = vmatprep.subr.bf16.mxu0 %v3148
    %3851 = vmatpush1.bf16.msra.mxu0 %v3147
    %3852 = vmatprep.subr.bf16.mxu0 %v3156
    %3853 = vmatpush1.bf16.msra.mxu0 %v3155
    %3854 = vmatprep.subr.bf16.mxu0 %v3164
    %3855 = vmatpush1.bf16.msra.mxu0 %v3163
    %3856 = vmatprep.subr.bf16.mxu0 %v3172
    %3857 = vmatpush1.bf16.msra.mxu0 %v3171
    %3858 = vmatprep.subr.bf16.mxu0 %v3180
    %3859 = vmatpush1.bf16.msra.mxu0 %v3179
    %3860 = vmatprep.mubr.bf16.mxu0 %v584
    %3861 = vmatmul.mubr.bf16.gmra.mrb[0].mxu0 %v583
    %v3862 = vpop.f32.mrb[0].mxu0
    %v3863 = vadd.f32 %v3820, %v3862
    %v3864 = vpop.f32.mrb[0].mxu0
    %v3865 = vadd.f32 %v3822, %v3864
    %v3866 = vpop.f32.mrb[0].mxu0
    %v3867 = vadd.f32 %v3824, %v3866
    %v3868 = vpop.f32.mrb[0].mxu0
    %v3869 = vadd.f32 %v3826, %v3868
    %3870 = vdwg.mxu0
    %3871 = vmatprep.subr.bf16.mxu0 %v2678
    %3872 = vmatpush1.bf16.msra.mxu0 %v2677
    %3873 = vmatprep.subr.bf16.mxu0 %v2686
    %3874 = vmatpush1.bf16.msra.mxu0 %v2685
    %3875 = vmatprep.subr.bf16.mxu0 %v2694
    %3876 = vmatpush1.bf16.msra.mxu0 %v2693
    %3877 = vmatprep.subr.bf16.mxu0 %v2702
    %3878 = vmatpush1.bf16.msra.mxu0 %v2701
    %3879 = vmatprep.subr.bf16.mxu0 %v2710
    %3880 = vmatpush1.bf16.msra.mxu0 %v2709
    %3881 = vmatprep.subr.bf16.mxu0 %v2718
    %3882 = vmatpush1.bf16.msra.mxu0 %v2717
    %3883 = vmatprep.subr.bf16.mxu0 %v2726
    %3884 = vmatpush1.bf16.msra.mxu0 %v2725
    %3885 = vmatprep.subr.bf16.mxu0 %v2734
    %3886 = vmatpush1.bf16.msra.mxu0 %v2733
    %3887 = vmatprep.subr.bf16.mxu0 %v2742
    %3888 = vmatpush1.bf16.msra.mxu0 %v2741
    %3889 = vmatprep.subr.bf16.mxu0 %v2750
    %3890 = vmatpush1.bf16.msra.mxu0 %v2749
    %3891 = vmatprep.subr.bf16.mxu0 %v2758
    %3892 = vmatpush1.bf16.msra.mxu0 %v2757
    %3893 = vmatprep.subr.bf16.mxu0 %v2766
    %3894 = vmatpush1.bf16.msra.mxu0 %v2765
    %3895 = vmatprep.subr.bf16.mxu0 %v2774
    %3896 = vmatpush1.bf16.msra.mxu0 %v2773
    %3897 = vmatprep.subr.bf16.mxu0 %v2782
    %3898 = vmatpush1.bf16.msra.mxu0 %v2781
    %3899 = vmatprep.subr.bf16.mxu0 %v2790
    %3900 = vmatpush1.bf16.msra.mxu0 %v2789
    %3901 = vmatprep.subr.bf16.mxu0 %v2798
    %3902 = vmatpush1.bf16.msra.mxu0 %v2797
    %3903 = vmatprep.mubr.bf16.mxu0 %v578
    %3904 = vmatmul.mubr.bf16.gmra.mrb[0].mxu0 %v577
    %v3905 = vpop.f32.mrb[0].mxu0
    %v3906 = vadd.f32 %v1110, %v3905
    %v3907 = vpop.f32.mrb[0].mxu0
    %v3908 = vadd.f32 %v1114, %v3907
    %v3909 = vpop.f32.mrb[0].mxu0
    %v3910 = vadd.f32 %v1110, %v3909
    %v3911 = vpop.f32.mrb[0].mxu0
    %v3912 = vadd.f32 %v1114, %v3911
    %3913 = vdwg.mxu0
    %3914 = vmatprep.subr.bf16.mxu0 %v2806
    %3915 = vmatpush1.bf16.msra.mxu0 %v2805
    %3916 = vmatprep.subr.bf16.mxu0 %v2814
    %3917 = vmatpush1.bf16.msra.mxu0 %v2813
    %3918 = vmatprep.subr.bf16.mxu0 %v2822
    %3919 = vmatpush1.bf16.msra.mxu0 %v2821
    %3920 = vmatprep.subr.bf16.mxu0 %v2830
    %3921 = vmatpush1.bf16.msra.mxu0 %v2829
    %3922 = vmatprep.subr.bf16.mxu0 %v2838
    %3923 = vmatpush1.bf16.msra.mxu0 %v2837
    %3924 = vmatprep.subr.bf16.mxu0 %v2846
    %3925 = vmatpush1.bf16.msra.mxu0 %v2845
    %3926 = vmatprep.subr.bf16.mxu0 %v2854
    %3927 = vmatpush1.bf16.msra.mxu0 %v2853
    %3928 = vmatprep.subr.bf16.mxu0 %v2862
    %3929 = vmatpush1.bf16.msra.mxu0 %v2861
    %3930 = vmatprep.subr.bf16.mxu0 %v2870
    %3931 = vmatpush1.bf16.msra.mxu0 %v2869
    %3932 = vmatprep.subr.bf16.mxu0 %v2878
    %3933 = vmatpush1.bf16.msra.mxu0 %v2877
    %3934 = vmatprep.subr.bf16.mxu0 %v2886
    %3935 = vmatpush1.bf16.msra.mxu0 %v2885
    %3936 = vmatprep.subr.bf16.mxu0 %v2894
    %3937 = vmatpush1.bf16.msra.mxu0 %v2893
    %3938 = vmatprep.subr.bf16.mxu0 %v2902
    %3939 = vmatpush1.bf16.msra.mxu0 %v2901
    %3940 = vmatprep.subr.bf16.mxu0 %v2910
    %3941 = vmatpush1.bf16.msra.mxu0 %v2909
    %3942 = vmatprep.subr.bf16.mxu0 %v2918
    %3943 = vmatpush1.bf16.msra.mxu0 %v2917
    %3944 = vmatprep.subr.bf16.mxu0 %v2926
    %3945 = vmatpush1.bf16.msra.mxu0 %v2925
    %3946 = vmatprep.mubr.bf16.mxu0 %v580
    %3947 = vmatmul.mubr.bf16.gmra.mrb[0].mxu0 %v579
    %v3948 = vpop.f32.mrb[0].mxu0
    %v3949 = vadd.f32 %v3906, %v3948
    %v3950 = vpop.f32.mrb[0].mxu0
    %v3951 = vadd.f32 %v3908, %v3950
    %v3952 = vpop.f32.mrb[0].mxu0
    %v3953 = vadd.f32 %v3910, %v3952
    %v3954 = vpop.f32.mrb[0].mxu0
    %v3955 = vadd.f32 %v3912, %v3954
    %3956 = vdwg.mxu0
    %3957 = vmatprep.subr.bf16.mxu0 %v2934
    %3958 = vmatpush1.bf16.msra.mxu0 %v2933
    %3959 = vmatprep.subr.bf16.mxu0 %v2942
    %3960 = vmatpush1.bf16.msra.mxu0 %v2941
    %3961 = vmatprep.subr.bf16.mxu0 %v2950
    %3962 = vmatpush1.bf16.msra.mxu0 %v2949
    %3963 = vmatprep.subr.bf16.mxu0 %v2958
    %3964 = vmatpush1.bf16.msra.mxu0 %v2957
    %3965 = vmatprep.subr.bf16.mxu0 %v2966
    %3966 = vmatpush1.bf16.msra.mxu0 %v2965
    %3967 = vmatprep.subr.bf16.mxu0 %v2974
    %3968 = vmatpush1.bf16.msra.mxu0 %v2973
    %3969 = vmatprep.subr.bf16.mxu0 %v2982
    %3970 = vmatpush1.bf16.msra.mxu0 %v2981
    %3971 = vmatprep.subr.bf16.mxu0 %v2990
    %3972 = vmatpush1.bf16.msra.mxu0 %v2989
    %3973 = vmatprep.subr.bf16.mxu0 %v2998
    %3974 = vmatpush1.bf16.msra.mxu0 %v2997
    %3975 = vmatprep.subr.bf16.mxu0 %v3006
    %3976 = vmatpush1.bf16.msra.mxu0 %v3005
    %3977 = vmatprep.subr.bf16.mxu0 %v3014
    %3978 = vmatpush1.bf16.msra.mxu0 %v3013
    %3979 = vmatprep.subr.bf16.mxu0 %v3022
    %3980 = vmatpush1.bf16.msra.mxu0 %v3021
    %3981 = vmatprep.subr.bf16.mxu0 %v3030
    %3982 = vmatpush1.bf16.msra.mxu0 %v3029
    %3983 = vmatprep.subr.bf16.mxu0 %v3038
    %3984 = vmatpush1.bf16.msra.mxu0 %v3037
    %3985 = vmatprep.subr.bf16.mxu0 %v3046
    %3986 = vmatpush1.bf16.msra.mxu0 %v3045
    %3987 = vmatprep.subr.bf16.mxu0 %v3054
    %3988 = vmatpush1.bf16.msra.mxu0 %v3053
    %3989 = vmatprep.mubr.bf16.mxu0 %v582
    %3990 = vmatmul.mubr.bf16.gmra.mrb[0].mxu0 %v581
    %v3991 = vpop.f32.mrb[0].mxu0
    %v3992 = vadd.f32 %v3949, %v3991
    %v3993 = vpop.f32.mrb[0].mxu0
    %v3994 = vadd.f32 %v3951, %v3993
    %v3995 = vpop.f32.mrb[0].mxu0
    %v3996 = vadd.f32 %v3953, %v3995
    %v3997 = vpop.f32.mrb[0].mxu0
    %v3998 = vadd.f32 %v3955, %v3997
    %3999 = vdwg.mxu0
    %4000 = vmatprep.subr.bf16.mxu0 %v3062
    %4001 = vmatpush1.bf16.msra.mxu0 %v3061
    %4002 = vmatprep.subr.bf16.mxu0 %v3070
    %4003 = vmatpush1.bf16.msra.mxu0 %v3069
    %4004 = vmatprep.subr.bf16.mxu0 %v3078
    %4005 = vmatpush1.bf16.msra.mxu0 %v3077
    %4006 = vmatprep.subr.bf16.mxu0 %v3086
    %4007 = vmatpush1.bf16.msra.mxu0 %v3085
    %4008 = vmatprep.subr.bf16.mxu0 %v3094
    %4009 = vmatpush1.bf16.msra.mxu0 %v3093
    %4010 = vmatprep.subr.bf16.mxu0 %v3102
    %4011 = vmatpush1.bf16.msra.mxu0 %v3101
    %4012 = vmatprep.subr.bf16.mxu0 %v3110
    %4013 = vmatpush1.bf16.msra.mxu0 %v3109
    %4014 = vmatprep.subr.bf16.mxu0 %v3118
    %4015 = vmatpush1.bf16.msra.mxu0 %v3117
    %4016 = vmatprep.subr.bf16.mxu0 %v3126
    %4017 = vmatpush1.bf16.msra.mxu0 %v3125
    %4018 = vmatprep.subr.bf16.mxu0 %v3134
    %4019 = vmatpush1.bf16.msra.mxu0 %v3133
    %4020 = vmatprep.subr.bf16.mxu0 %v3142
    %4021 = vmatpush1.bf16.msra.mxu0 %v3141
    %4022 = vmatprep.subr.bf16.mxu0 %v3150
    %4023 = vmatpush1.bf16.msra.mxu0 %v3149
    %4024 = vmatprep.subr.bf16.mxu0 %v3158
    %4025 = vmatpush1.bf16.msra.mxu0 %v3157
    %4026 = vmatprep.subr.bf16.mxu0 %v3166
    %4027 = vmatpush1.bf16.msra.mxu0 %v3165
    %4028 = vmatprep.subr.bf16.mxu0 %v3174
    %4029 = vmatpush1.bf16.msra.mxu0 %v3173
    %4030 = vmatprep.subr.bf16.mxu0 %v3182
    %4031 = vmatpush1.bf16.msra.mxu0 %v3181
    %4032 = vmatprep.mubr.bf16.mxu0 %v584
    %4033 = vmatmul.mubr.bf16.gmra.mrb[0].mxu0 %v583
    %v4034 = vpop.f32.mrb[0].mxu0
    %v4035 = vadd.f32 %v3992, %v4034
    %v4036 = vpop.f32.mrb[0].mxu0
    %v4037 = vadd.f32 %v3994, %v4036
    %v4038 = vpop.f32.mrb[0].mxu0
    %v4039 = vadd.f32 %v3996, %v4038
    %v4040 = vpop.f32.mrb[0].mxu0
    %v4041 = vadd.f32 %v3998, %v4040
    %4042 = vdwg.mxu0
    %4043 = vmatprep.subr.bf16.mxu0 %v2680
    %4044 = vmatpush1.bf16.msra.mxu0 %v2679
    %4045 = vmatprep.subr.bf16.mxu0 %v2688
    %4046 = vmatpush1.bf16.msra.mxu0 %v2687
    %4047 = vmatprep.subr.bf16.mxu0 %v2696
    %4048 = vmatpush1.bf16.msra.mxu0 %v2695
    %4049 = vmatprep.subr.bf16.mxu0 %v2704
    %4050 = vmatpush1.bf16.msra.mxu0 %v2703
    %4051 = vmatprep.subr.bf16.mxu0 %v2712
    %4052 = vmatpush1.bf16.msra.mxu0 %v2711
    %4053 = vmatprep.subr.bf16.mxu0 %v2720
    %4054 = vmatpush1.bf16.msra.mxu0 %v2719
    %4055 = vmatprep.subr.bf16.mxu0 %v2728
    %4056 = vmatpush1.bf16.msra.mxu0 %v2727
    %4057 = vmatprep.subr.bf16.mxu0 %v2736
    %4058 = vmatpush1.bf16.msra.mxu0 %v2735
    %4059 = vmatprep.subr.bf16.mxu0 %v2744
    %4060 = vmatpush1.bf16.msra.mxu0 %v2743
    %4061 = vmatprep.subr.bf16.mxu0 %v2752
    %4062 = vmatpush1.bf16.msra.mxu0 %v2751
    %4063 = vmatprep.subr.bf16.mxu0 %v2760
    %4064 = vmatpush1.bf16.msra.mxu0 %v2759
    %4065 = vmatprep.subr.bf16.mxu0 %v2768
    %4066 = vmatpush1.bf16.msra.mxu0 %v2767
    %4067 = vmatprep.subr.bf16.mxu0 %v2776
    %4068 = vmatpush1.bf16.msra.mxu0 %v2775
    %4069 = vmatprep.subr.bf16.mxu0 %v2784
    %4070 = vmatpush1.bf16.msra.mxu0 %v2783
    %4071 = vmatprep.subr.bf16.mxu0 %v2792
    %4072 = vmatpush1.bf16.msra.mxu0 %v2791
    %4073 = vmatprep.subr.bf16.mxu0 %v2800
    %4074 = vmatpush1.bf16.msra.mxu0 %v2799
    %4075 = vmatprep.mubr.bf16.mxu0 %v578
    %4076 = vmatmul.mubr.bf16.gmra.mrb[0].mxu0 %v577
    %v4077 = vpop.f32.mrb[0].mxu0
    %v4078 = vadd.f32 %v1118, %v4077
    %v4079 = vpop.f32.mrb[0].mxu0
    %v4080 = vadd.f32 %v1122, %v4079
    %v4081 = vpop.f32.mrb[0].mxu0
    %v4082 = vadd.f32 %v1118, %v4081
    %v4083 = vpop.f32.mrb[0].mxu0
    %v4084 = vadd.f32 %v1122, %v4083
    %4085 = vdwg.mxu0
    %4086 = vmatprep.subr.bf16.mxu0 %v2808
    %4087 = vmatpush1.bf16.msra.mxu0 %v2807
    %4088 = vmatprep.subr.bf16.mxu0 %v2816
    %4089 = vmatpush1.bf16.msra.mxu0 %v2815
    %4090 = vmatprep.subr.bf16.mxu0 %v2824
    %4091 = vmatpush1.bf16.msra.mxu0 %v2823
    %4092 = vmatprep.subr.bf16.mxu0 %v2832
    %4093 = vmatpush1.bf16.msra.mxu0 %v2831
    %4094 = vmatprep.subr.bf16.mxu0 %v2840
    %4095 = vmatpush1.bf16.msra.mxu0 %v2839
    %4096 = vmatprep.subr.bf16.mxu0 %v2848
    %4097 = vmatpush1.bf16.msra.mxu0 %v2847
    %4098 = vmatprep.subr.bf16.mxu0 %v2856
    %4099 = vmatpush1.bf16.msra.mxu0 %v2855
    %4100 = vmatprep.subr.bf16.mxu0 %v2864
    %4101 = vmatpush1.bf16.msra.mxu0 %v2863
    %4102 = vmatprep.subr.bf16.mxu0 %v2872
    %4103 = vmatpush1.bf16.msra.mxu0 %v2871
    %4104 = vmatprep.subr.bf16.mxu0 %v2880
    %4105 = vmatpush1.bf16.msra.mxu0 %v2879
    %4106 = vmatprep.subr.bf16.mxu0 %v2888
    %4107 = vmatpush1.bf16.msra.mxu0 %v2887
    %4108 = vmatprep.subr.bf16.mxu0 %v2896
    %4109 = vmatpush1.bf16.msra.mxu0 %v2895
    %4110 = vmatprep.subr.bf16.mxu0 %v2904
    %4111 = vmatpush1.bf16.msra.mxu0 %v2903
    %4112 = vmatprep.subr.bf16.mxu0 %v2912
    %4113 = vmatpush1.bf16.msra.mxu0 %v2911
    %4114 = vmatprep.subr.bf16.mxu0 %v2920
    %4115 = vmatpush1.bf16.msra.mxu0 %v2919
    %4116 = vmatprep.subr.bf16.mxu0 %v2928
    %4117 = vmatpush1.bf16.msra.mxu0 %v2927
    %4118 = vmatprep.mubr.bf16.mxu0 %v580
    %4119 = vmatmul.mubr.bf16.gmra.mrb[0].mxu0 %v579
    %v4120 = vpop.f32.mrb[0].mxu0
    %v4121 = vadd.f32 %v4078, %v4120
    %v4122 = vpop.f32.mrb[0].mxu0
    %v4123 = vadd.f32 %v4080, %v4122
    %v4124 = vpop.f32.mrb[0].mxu0
    %v4125 = vadd.f32 %v4082, %v4124
    %v4126 = vpop.f32.mrb[0].mxu0
    %v4127 = vadd.f32 %v4084, %v4126
    %4128 = vdwg.mxu0
    %4129 = vmatprep.subr.bf16.mxu0 %v2936
    %4130 = vmatpush1.bf16.msra.mxu0 %v2935
    %4131 = vmatprep.subr.bf16.mxu0 %v2944
    %4132 = vmatpush1.bf16.msra.mxu0 %v2943
    %4133 = vmatprep.subr.bf16.mxu0 %v2952
    %4134 = vmatpush1.bf16.msra.mxu0 %v2951
    %4135 = vmatprep.subr.bf16.mxu0 %v2960
    %4136 = vmatpush1.bf16.msra.mxu0 %v2959
    %4137 = vmatprep.subr.bf16.mxu0 %v2968
    %4138 = vmatpush1.bf16.msra.mxu0 %v2967
    %4139 = vmatprep.subr.bf16.mxu0 %v2976
    %4140 = vmatpush1.bf16.msra.mxu0 %v2975
    %4141 = vmatprep.subr.bf16.mxu0 %v2984
    %4142 = vmatpush1.bf16.msra.mxu0 %v2983
    %4143 = vmatprep.subr.bf16.mxu0 %v2992
    %4144 = vmatpush1.bf16.msra.mxu0 %v2991
    %4145 = vmatprep.subr.bf16.mxu0 %v3000
    %4146 = vmatpush1.bf16.msra.mxu0 %v2999
    %4147 = vmatprep.subr.bf16.mxu0 %v3008
    %4148 = vmatpush1.bf16.msra.mxu0 %v3007
    %4149 = vmatprep.subr.bf16.mxu0 %v3016
    %4150 = vmatpush1.bf16.msra.mxu0 %v3015
    %4151 = vmatprep.subr.bf16.mxu0 %v3024
    %4152 = vmatpush1.bf16.msra.mxu0 %v3023
    %4153 = vmatprep.subr.bf16.mxu0 %v3032
    %4154 = vmatpush1.bf16.msra.mxu0 %v3031
    %4155 = vmatprep.subr.bf16.mxu0 %v3040
    %4156 = vmatpush1.bf16.msra.mxu0 %v3039
    %4157 = vmatprep.subr.bf16.mxu0 %v3048
    %4158 = vmatpush1.bf16.msra.mxu0 %v3047
    %4159 = vmatprep.subr.bf16.mxu0 %v3056
    %4160 = vmatpush1.bf16.msra.mxu0 %v3055
    %4161 = vmatprep.mubr.bf16.mxu0 %v582
    %4162 = vmatmul.mubr.bf16.gmra.mrb[0].mxu0 %v581
    %v4163 = vpop.f32.mrb[0].mxu0
    %v4164 = vadd.f32 %v4121, %v4163
    %v4165 = vpop.f32.mrb[0].mxu0
    %v4166 = vadd.f32 %v4123, %v4165
    %v4167 = vpop.f32.mrb[0].mxu0
    %v4168 = vadd.f32 %v4125, %v4167
    %v4169 = vpop.f32.mrb[0].mxu0
    %v4170 = vadd.f32 %v4127, %v4169
    %4171 = vdwg.mxu0
    %4172 = vmatprep.subr.bf16.mxu0 %v3064
    %4173 = vmatpush1.bf16.msra.mxu0 %v3063
    %4174 = vmatprep.subr.bf16.mxu0 %v3072
    %4175 = vmatpush1.bf16.msra.mxu0 %v3071
    %4176 = vmatprep.subr.bf16.mxu0 %v3080
    %4177 = vmatpush1.bf16.msra.mxu0 %v3079
    %4178 = vmatprep.subr.bf16.mxu0 %v3088
    %4179 = vmatpush1.bf16.msra.mxu0 %v3087
    %4180 = vmatprep.subr.bf16.mxu0 %v3096
    %4181 = vmatpush1.bf16.msra.mxu0 %v3095
    %4182 = vmatprep.subr.bf16.mxu0 %v3104
    %4183 = vmatpush1.bf16.msra.mxu0 %v3103
    %4184 = vmatprep.subr.bf16.mxu0 %v3112
    %4185 = vmatpush1.bf16.msra.mxu0 %v3111
    %4186 = vmatprep.subr.bf16.mxu0 %v3120
    %4187 = vmatpush1.bf16.msra.mxu0 %v3119
    %4188 = vmatprep.subr.bf16.mxu0 %v3128
    %4189 = vmatpush1.bf16.msra.mxu0 %v3127
    %4190 = vmatprep.subr.bf16.mxu0 %v3136
    %4191 = vmatpush1.bf16.msra.mxu0 %v3135
    %4192 = vmatprep.subr.bf16.mxu0 %v3144
    %4193 = vmatpush1.bf16.msra.mxu0 %v3143
    %4194 = vmatprep.subr.bf16.mxu0 %v3152
    %4195 = vmatpush1.bf16.msra.mxu0 %v3151
    %4196 = vmatprep.subr.bf16.mxu0 %v3160
    %4197 = vmatpush1.bf16.msra.mxu0 %v3159
    %4198 = vmatprep.subr.bf16.mxu0 %v3168
    %4199 = vmatpush1.bf16.msra.mxu0 %v3167
    %4200 = vmatprep.subr.bf16.mxu0 %v3176
    %4201 = vmatpush1.bf16.msra.mxu0 %v3175
    %4202 = vmatprep.subr.bf16.mxu0 %v3184
    %4203 = vmatpush1.bf16.msra.mxu0 %v3183
    %4204 = vmatprep.mubr.bf16.mxu0 %v584
    %4205 = vmatmul.mubr.bf16.gmra.mrb[0].mxu0 %v583
    %v4206 = vpop.f32.mrb[0].mxu0
    %v4207 = vadd.f32 %v4164, %v4206
    %v4208 = vpop.f32.mrb[0].mxu0
    %v4209 = vadd.f32 %v4166, %v4208
    %v4210 = vpop.f32.mrb[0].mxu0
    %v4211 = vadd.f32 %v4168, %v4210
    %v4212 = vpop.f32.mrb[0].mxu0
    %v4213 = vadd.f32 %v4170, %v4212
    %4214 = vdwg.mxu0
    %4215 = vmatprep.subr.bf16.mxu0 %v2682
    %4216 = vmatpush1.bf16.msra.mxu0 %v2681
    %4217 = vmatprep.subr.bf16.mxu0 %v2690
    %4218 = vmatpush1.bf16.msra.mxu0 %v2689
    %4219 = vmatprep.subr.bf16.mxu0 %v2698
    %4220 = vmatpush1.bf16.msra.mxu0 %v2697
    %4221 = vmatprep.subr.bf16.mxu0 %v2706
    %4222 = vmatpush1.bf16.msra.mxu0 %v2705
    %4223 = vmatprep.subr.bf16.mxu0 %v2714
    %4224 = vmatpush1.bf16.msra.mxu0 %v2713
    %4225 = vmatprep.subr.bf16.mxu0 %v2722
    %4226 = vmatpush1.bf16.msra.mxu0 %v2721
    %4227 = vmatprep.subr.bf16.mxu0 %v2730
    %4228 = vmatpush1.bf16.msra.mxu0 %v2729
    %4229 = vmatprep.subr.bf16.mxu0 %v2738
    %4230 = vmatpush1.bf16.msra.mxu0 %v2737
    %4231 = vmatprep.subr.bf16.mxu0 %v2746
    %4232 = vmatpush1.bf16.msra.mxu0 %v2745
    %4233 = vmatprep.subr.bf16.mxu0 %v2754
    %4234 = vmatpush1.bf16.msra.mxu0 %v2753
    %4235 = vmatprep.subr.bf16.mxu0 %v2762
    %4236 = vmatpush1.bf16.msra.mxu0 %v2761
    %4237 = vmatprep.subr.bf16.mxu0 %v2770
    %4238 = vmatpush1.bf16.msra.mxu0 %v2769
    %4239 = vmatprep.subr.bf16.mxu0 %v2778
    %4240 = vmatpush1.bf16.msra.mxu0 %v2777
    %4241 = vmatprep.subr.bf16.mxu0 %v2786
    %4242 = vmatpush1.bf16.msra.mxu0 %v2785
    %4243 = vmatprep.subr.bf16.mxu0 %v2794
    %4244 = vmatpush1.bf16.msra.mxu0 %v2793
    %4245 = vmatprep.subr.bf16.mxu0 %v2802
    %4246 = vmatpush1.bf16.msra.mxu0 %v2801
    %4247 = vmatprep.mubr.bf16.mxu0 %v578
    %4248 = vmatmul.mubr.bf16.gmra.mrb[0].mxu0 %v577
    %v4249 = vpop.f32.mrb[0].mxu0
    %v4250 = vadd.f32 %v1126, %v4249
    %v4251 = vpop.f32.mrb[0].mxu0
    %v4252 = vadd.f32 %v1130, %v4251
    %v4253 = vpop.f32.mrb[0].mxu0
    %v4254 = vadd.f32 %v1126, %v4253
    %v4255 = vpop.f32.mrb[0].mxu0
    %v4256 = vadd.f32 %v1130, %v4255
    %4257 = vdwg.mxu0
    %4258 = vmatprep.subr.bf16.mxu0 %v2810
    %4259 = vmatpush1.bf16.msra.mxu0 %v2809
    %4260 = vmatprep.subr.bf16.mxu0 %v2818
    %4261 = vmatpush1.bf16.msra.mxu0 %v2817
    %4262 = vmatprep.subr.bf16.mxu0 %v2826
    %4263 = vmatpush1.bf16.msra.mxu0 %v2825
    %4264 = vmatprep.subr.bf16.mxu0 %v2834
    %4265 = vmatpush1.bf16.msra.mxu0 %v2833
    %4266 = vmatprep.subr.bf16.mxu0 %v2842
    %4267 = vmatpush1.bf16.msra.mxu0 %v2841
    %4268 = vmatprep.subr.bf16.mxu0 %v2850
    %4269 = vmatpush1.bf16.msra.mxu0 %v2849
    %4270 = vmatprep.subr.bf16.mxu0 %v2858
    %4271 = vmatpush1.bf16.msra.mxu0 %v2857
    %4272 = vmatprep.subr.bf16.mxu0 %v2866
    %4273 = vmatpush1.bf16.msra.mxu0 %v2865
    %4274 = vmatprep.subr.bf16.mxu0 %v2874
    %4275 = vmatpush1.bf16.msra.mxu0 %v2873
    %4276 = vmatprep.subr.bf16.mxu0 %v2882
    %4277 = vmatpush1.bf16.msra.mxu0 %v2881
    %4278 = vmatprep.subr.bf16.mxu0 %v2890
    %4279 = vmatpush1.bf16.msra.mxu0 %v2889
    %4280 = vmatprep.subr.bf16.mxu0 %v2898
    %4281 = vmatpush1.bf16.msra.mxu0 %v2897
    %4282 = vmatprep.subr.bf16.mxu0 %v2906
    %4283 = vmatpush1.bf16.msra.mxu0 %v2905
    %4284 = vmatprep.subr.bf16.mxu0 %v2914
    %4285 = vmatpush1.bf16.msra.mxu0 %v2913
    %4286 = vmatprep.subr.bf16.mxu0 %v2922
    %4287 = vmatpush1.bf16.msra.mxu0 %v2921
    %4288 = vmatprep.subr.bf16.mxu0 %v2930
    %4289 = vmatpush1.bf16.msra.mxu0 %v2929
    %4290 = vmatprep.mubr.bf16.mxu0 %v580
    %4291 = vmatmul.mubr.bf16.gmra.mrb[0].mxu0 %v579
    %v4292 = vpop.f32.mrb[0].mxu0
    %v4293 = vadd.f32 %v4250, %v4292
    %v4294 = vpop.f32.mrb[0].mxu0
    %v4295 = vadd.f32 %v4252, %v4294
    %v4296 = vpop.f32.mrb[0].mxu0
    %v4297 = vadd.f32 %v4254, %v4296
    %v4298 = vpop.f32.mrb[0].mxu0
    %v4299 = vadd.f32 %v4256, %v4298
    %4300 = vdwg.mxu0
    %4301 = vmatprep.subr.bf16.mxu0 %v2938
    %4302 = vmatpush1.bf16.msra.mxu0 %v2937
    %4303 = vmatprep.subr.bf16.mxu0 %v2946
    %4304 = vmatpush1.bf16.msra.mxu0 %v2945
    %4305 = vmatprep.subr.bf16.mxu0 %v2954
    %4306 = vmatpush1.bf16.msra.mxu0 %v2953
    %4307 = vmatprep.subr.bf16.mxu0 %v2962
    %4308 = vmatpush1.bf16.msra.mxu0 %v2961
    %4309 = vmatprep.subr.bf16.mxu0 %v2970
    %4310 = vmatpush1.bf16.msra.mxu0 %v2969
    %4311 = vmatprep.subr.bf16.mxu0 %v2978
    %4312 = vmatpush1.bf16.msra.mxu0 %v2977
    %4313 = vmatprep.subr.bf16.mxu0 %v2986
    %4314 = vmatpush1.bf16.msra.mxu0 %v2985
    %4315 = vmatprep.subr.bf16.mxu0 %v2994
    %4316 = vmatpush1.bf16.msra.mxu0 %v2993
    %4317 = vmatprep.subr.bf16.mxu0 %v3002
    %4318 = vmatpush1.bf16.msra.mxu0 %v3001
    %4319 = vmatprep.subr.bf16.mxu0 %v3010
    %4320 = vmatpush1.bf16.msra.mxu0 %v3009
    %4321 = vmatprep.subr.bf16.mxu0 %v3018
    %4322 = vmatpush1.bf16.msra.mxu0 %v3017
    %4323 = vmatprep.subr.bf16.mxu0 %v3026
    %4324 = vmatpush1.bf16.msra.mxu0 %v3025
    %4325 = vmatprep.subr.bf16.mxu0 %v3034
    %4326 = vmatpush1.bf16.msra.mxu0 %v3033
    %4327 = vmatprep.subr.bf16.mxu0 %v3042
    %4328 = vmatpush1.bf16.msra.mxu0 %v3041
    %4329 = vmatprep.subr.bf16.mxu0 %v3050
    %4330 = vmatpush1.bf16.msra.mxu0 %v3049
    %4331 = vmatprep.subr.bf16.mxu0 %v3058
    %4332 = vmatpush1.bf16.msra.mxu0 %v3057
    %4333 = vmatprep.mubr.bf16.mxu0 %v582
    %4334 = vmatmul.mubr.bf16.gmra.mrb[0].mxu0 %v581
    %v4335 = vpop.f32.mrb[0].mxu0
    %v4336 = vadd.f32 %v4293, %v4335
    %v4337 = vpop.f32.mrb[0].mxu0
    %v4338 = vadd.f32 %v4295, %v4337
    %v4339 = vpop.f32.mrb[0].mxu0
    %v4340 = vadd.f32 %v4297, %v4339
    %v4341 = vpop.f32.mrb[0].mxu0
    %v4342 = vadd.f32 %v4299, %v4341
    %4343 = vdwg.mxu0
    %4344 = vmatprep.subr.bf16.mxu0 %v3066
    %4345 = vmatpush1.bf16.msra.mxu0 %v3065
    %4346 = vmatprep.subr.bf16.mxu0 %v3074
    %4347 = vmatpush1.bf16.msra.mxu0 %v3073
    %4348 = vmatprep.subr.bf16.mxu0 %v3082
    %4349 = vmatpush1.bf16.msra.mxu0 %v3081
    %4350 = vmatprep.subr.bf16.mxu0 %v3090
    %4351 = vmatpush1.bf16.msra.mxu0 %v3089
    %4352 = vmatprep.subr.bf16.mxu0 %v3098
    %4353 = vmatpush1.bf16.msra.mxu0 %v3097
    %4354 = vmatprep.subr.bf16.mxu0 %v3106
    %4355 = vmatpush1.bf16.msra.mxu0 %v3105
    %4356 = vmatprep.subr.bf16.mxu0 %v3114
    %4357 = vmatpush1.bf16.msra.mxu0 %v3113
    %4358 = vmatprep.subr.bf16.mxu0 %v3122
    %4359 = vmatpush1.bf16.msra.mxu0 %v3121
    %4360 = vmatprep.subr.bf16.mxu0 %v3130
    %4361 = vmatpush1.bf16.msra.mxu0 %v3129
    %4362 = vmatprep.subr.bf16.mxu0 %v3138
    %4363 = vmatpush1.bf16.msra.mxu0 %v3137
    %4364 = vmatprep.subr.bf16.mxu0 %v3146
    %4365 = vmatpush1.bf16.msra.mxu0 %v3145
    %4366 = vmatprep.subr.bf16.mxu0 %v3154
    %4367 = vmatpush1.bf16.msra.mxu0 %v3153
    %4368 = vmatprep.subr.bf16.mxu0 %v3162
    %4369 = vmatpush1.bf16.msra.mxu0 %v3161
    %4370 = vmatprep.subr.bf16.mxu0 %v3170
    %4371 = vmatpush1.bf16.msra.mxu0 %v3169
    %4372 = vmatprep.subr.bf16.mxu0 %v3178
    %4373 = vmatpush1.bf16.msra.mxu0 %v3177
    %4374 = vmatprep.subr.bf16.mxu0 %v3186
    %4375 = vmatpush1.bf16.msra.mxu0 %v3185
    %4376 = vmatprep.mubr.bf16.mxu0 %v584
    %4377 = vmatmul.mubr.bf16.gmra.mrb[0].mxu0 %v583
    %v4378 = vpop.f32.mrb[0].mxu0
    %v4379 = vadd.f32 %v4336, %v4378
    %v4380 = vpop.f32.mrb[0].mxu0
    %v4381 = vadd.f32 %v4338, %v4380
    %v4382 = vpop.f32.mrb[0].mxu0
    %v4383 = vadd.f32 %v4340, %v4382
    %v4384 = vpop.f32.mrb[0].mxu0
    %v4385 = vadd.f32 %v4342, %v4384
    %4386 = vdwg.mxu0
    %v4387 = vmax.f32 %v3863, 0.0
    %v4388 = vmax.f32 %v3865, 0.0
    %v4389 = vmax.f32 %v4035, 0.0
    %v4390 = vmax.f32 %v4037, 0.0
    %v4391 = vmax.f32 %v4207, 0.0
    %v4392 = vmax.f32 %v4209, 0.0
    %v4393 = vmax.f32 %v4379, 0.0
    %v4394 = vmax.f32 %v4381, 0.0
    %v4395 = vmax.f32 %v3867, 0.0
    %v4396 = vmax.f32 %v3869, 0.0
    %v4397 = vmax.f32 %v4039, 0.0
    %v4398 = vmax.f32 %v4041, 0.0
    %v4399 = vmax.f32 %v4211, 0.0
    %v4400 = vmax.f32 %v4213, 0.0
    %v4401 = vmax.f32 %v4383, 0.0
    %v4402 = vmax.f32 %v4385, 0.0
    %v4403 = vpack.c.bf16 %v4395, %v4387
    %v4404 = vpack.c.bf16 %v4396, %v4388
    %v4405 = vpack.c.bf16 %v4397, %v4389
    %v4406 = vpack.c.bf16 %v4398, %v4390
    %v4407 = vpack.c.bf16 %v4399, %v4391
    %v4408 = vpack.c.bf16 %v4400, %v4392
    %v4409 = vpack.c.bf16 %v4401, %v4393
    %v4410 = vpack.c.bf16 %v4402, %v4394
    %v4411 = vld [vmem:[#allocation11] sm:$0xff]
    %v4412 = vld [vmem:[#allocation11 + $0x8] sm:$0xff]
    %v4413 = vld [vmem:[#allocation11 + $0x10] sm:$0xff]
    %v4414 = vld [vmem:[#allocation11 + $0x18] sm:$0xff]
    %v4415 = vld [vmem:[#allocation11 + $0x20] sm:$0xff]
    %v4416 = vld [vmem:[#allocation11 + $0x28] sm:$0xff]
    %v4417 = vld [vmem:[#allocation11 + $0x30] sm:$0xff]
    %v4418 = vld [vmem:[#allocation11 + $0x38] sm:$0xff]
    %v4419 = vld [vmem:[#allocation11 + $0x40] sm:$0xff]
    %v4420 = vld [vmem:[#allocation11 + $0x48] sm:$0xff]
    %v4421 = vld [vmem:[#allocation11 + $0x50] sm:$0xff]
    %v4422 = vld [vmem:[#allocation11 + $0x58] sm:$0xff]
    %v4423 = vld [vmem:[#allocation11 + $0x60] sm:$0xff]
    %v4424 = vld [vmem:[#allocation11 + $0x68] sm:$0xff]
    %v4425 = vld [vmem:[#allocation11 + $0x70] sm:$0xff]
    %v4426 = vld [vmem:[#allocation11 + $0x78] sm:$0xff]
    %v4427 = vld [vmem:[#allocation11 + $0x80] sm:$0xff]
    %v4428 = vld [vmem:[#allocation11 + $0x88] sm:$0xff]
    %v4429 = vld [vmem:[#allocation11 + $0x90] sm:$0xff]
    %v4430 = vld [vmem:[#allocation11 + $0x98] sm:$0xff]
    %v4431 = vld [vmem:[#allocation11 + $0xa0] sm:$0xff]
    %v4432 = vld [vmem:[#allocation11 + $0xa8] sm:$0xff]
    %v4433 = vld [vmem:[#allocation11 + $0xb0] sm:$0xff]
    %v4434 = vld [vmem:[#allocation11 + $0xb8] sm:$0xff]
    %v4435 = vld [vmem:[#allocation11 + $0xc0] sm:$0xff]
    %v4436 = vld [vmem:[#allocation11 + $0xc8] sm:$0xff]
    %v4437 = vld [vmem:[#allocation11 + $0xd0] sm:$0xff]
    %v4438 = vld [vmem:[#allocation11 + $0xd8] sm:$0xff]
    %v4439 = vld [vmem:[#allocation11 + $0xe0] sm:$0xff]
    %v4440 = vld [vmem:[#allocation11 + $0xe8] sm:$0xff]
    %v4441 = vld [vmem:[#allocation11 + $0xf0] sm:$0xff]
    %v4442 = vld [vmem:[#allocation11 + $0xf8] sm:$0xff]
    %v4443 = vld [vmem:[#allocation11 + $0x100] sm:$0xff]
    %v4444 = vld [vmem:[#allocation11 + $0x108] sm:$0xff]
    %v4445 = vld [vmem:[#allocation11 + $0x110] sm:$0xff]
    %v4446 = vld [vmem:[#allocation11 + $0x118] sm:$0xff]
    %v4447 = vld [vmem:[#allocation11 + $0x120] sm:$0xff]
    %v4448 = vld [vmem:[#allocation11 + $0x128] sm:$0xff]
    %v4449 = vld [vmem:[#allocation11 + $0x130] sm:$0xff]
    %v4450 = vld [vmem:[#allocation11 + $0x138] sm:$0xff]
    %v4451 = vld [vmem:[#allocation11 + $0x140] sm:$0xff]
    %v4452 = vld [vmem:[#allocation11 + $0x148] sm:$0xff]
    %v4453 = vld [vmem:[#allocation11 + $0x150] sm:$0xff]
    %v4454 = vld [vmem:[#allocation11 + $0x158] sm:$0xff]
    %v4455 = vld [vmem:[#allocation11 + $0x160] sm:$0xff]
    %v4456 = vld [vmem:[#allocation11 + $0x168] sm:$0xff]
    %v4457 = vld [vmem:[#allocation11 + $0x170] sm:$0xff]
    %v4458 = vld [vmem:[#allocation11 + $0x178] sm:$0xff]
    %v4459 = vld [vmem:[#allocation11 + $0x180] sm:$0xff]
    %v4460 = vld [vmem:[#allocation11 + $0x188] sm:$0xff]
    %v4461 = vld [vmem:[#allocation11 + $0x190] sm:$0xff]
    %v4462 = vld [vmem:[#allocation11 + $0x198] sm:$0xff]
    %v4463 = vld [vmem:[#allocation11 + $0x1a0] sm:$0xff]
    %v4464 = vld [vmem:[#allocation11 + $0x1a8] sm:$0xff]
    %v4465 = vld [vmem:[#allocation11 + $0x1b0] sm:$0xff]
    %v4466 = vld [vmem:[#allocation11 + $0x1b8] sm:$0xff]
    %v4467 = vld [vmem:[#allocation11 + $0x1c0] sm:$0xff]
    %v4468 = vld [vmem:[#allocation11 + $0x1c8] sm:$0xff]
    %v4469 = vld [vmem:[#allocation11 + $0x1d0] sm:$0xff]
    %v4470 = vld [vmem:[#allocation11 + $0x1d8] sm:$0xff]
    %v4471 = vld [vmem:[#allocation11 + $0x1e0] sm:$0xff]
    %v4472 = vld [vmem:[#allocation11 + $0x1e8] sm:$0xff]
    %v4473 = vld [vmem:[#allocation11 + $0x1f0] sm:$0xff]
    %v4474 = vld [vmem:[#allocation11 + $0x1f8] sm:$0xff]
    %v4475 = vld [vmem:[#allocation11 + $0x200] sm:$0xff]
    %v4476 = vld [vmem:[#allocation11 + $0x208] sm:$0xff]
    %v4477 = vld [vmem:[#allocation11 + $0x210] sm:$0xff]
    %v4478 = vld [vmem:[#allocation11 + $0x218] sm:$0xff]
    %v4479 = vld [vmem:[#allocation11 + $0x220] sm:$0xff]
    %v4480 = vld [vmem:[#allocation11 + $0x228] sm:$0xff]
    %v4481 = vld [vmem:[#allocation11 + $0x230] sm:$0xff]
    %v4482 = vld [vmem:[#allocation11 + $0x238] sm:$0xff]
    %v4483 = vld [vmem:[#allocation11 + $0x240] sm:$0xff]
    %v4484 = vld [vmem:[#allocation11 + $0x248] sm:$0xff]
    %v4485 = vld [vmem:[#allocation11 + $0x250] sm:$0xff]
    %v4486 = vld [vmem:[#allocation11 + $0x258] sm:$0xff]
    %v4487 = vld [vmem:[#allocation11 + $0x260] sm:$0xff]
    %v4488 = vld [vmem:[#allocation11 + $0x268] sm:$0xff]
    %v4489 = vld [vmem:[#allocation11 + $0x270] sm:$0xff]
    %v4490 = vld [vmem:[#allocation11 + $0x278] sm:$0xff]
    %v4491 = vld [vmem:[#allocation11 + $0x280] sm:$0xff]
    %v4492 = vld [vmem:[#allocation11 + $0x288] sm:$0xff]
    %v4493 = vld [vmem:[#allocation11 + $0x290] sm:$0xff]
    %v4494 = vld [vmem:[#allocation11 + $0x298] sm:$0xff]
    %v4495 = vld [vmem:[#allocation11 + $0x2a0] sm:$0xff]
    %v4496 = vld [vmem:[#allocation11 + $0x2a8] sm:$0xff]
    %v4497 = vld [vmem:[#allocation11 + $0x2b0] sm:$0xff]
    %v4498 = vld [vmem:[#allocation11 + $0x2b8] sm:$0xff]
    %v4499 = vld [vmem:[#allocation11 + $0x2c0] sm:$0xff]
    %v4500 = vld [vmem:[#allocation11 + $0x2c8] sm:$0xff]
    %v4501 = vld [vmem:[#allocation11 + $0x2d0] sm:$0xff]
    %v4502 = vld [vmem:[#allocation11 + $0x2d8] sm:$0xff]
    %v4503 = vld [vmem:[#allocation11 + $0x2e0] sm:$0xff]
    %v4504 = vld [vmem:[#allocation11 + $0x2e8] sm:$0xff]
    %v4505 = vld [vmem:[#allocation11 + $0x2f0] sm:$0xff]
    %v4506 = vld [vmem:[#allocation11 + $0x2f8] sm:$0xff]
    %v4507 = vld [vmem:[#allocation11 + $0x300] sm:$0xff]
    %v4508 = vld [vmem:[#allocation11 + $0x308] sm:$0xff]
    %v4509 = vld [vmem:[#allocation11 + $0x310] sm:$0xff]
    %v4510 = vld [vmem:[#allocation11 + $0x318] sm:$0xff]
    %v4511 = vld [vmem:[#allocation11 + $0x320] sm:$0xff]
    %v4512 = vld [vmem:[#allocation11 + $0x328] sm:$0xff]
    %v4513 = vld [vmem:[#allocation11 + $0x330] sm:$0xff]
    %v4514 = vld [vmem:[#allocation11 + $0x338] sm:$0xff]
    %v4515 = vld [vmem:[#allocation11 + $0x340] sm:$0xff]
    %v4516 = vld [vmem:[#allocation11 + $0x348] sm:$0xff]
    %v4517 = vld [vmem:[#allocation11 + $0x350] sm:$0xff]
    %v4518 = vld [vmem:[#allocation11 + $0x358] sm:$0xff]
    %v4519 = vld [vmem:[#allocation11 + $0x360] sm:$0xff]
    %v4520 = vld [vmem:[#allocation11 + $0x368] sm:$0xff]
    %v4521 = vld [vmem:[#allocation11 + $0x370] sm:$0xff]
    %v4522 = vld [vmem:[#allocation11 + $0x378] sm:$0xff]
    %v4523 = vld [vmem:[#allocation11 + $0x380] sm:$0xff]
    %v4524 = vld [vmem:[#allocation11 + $0x388] sm:$0xff]
    %v4525 = vld [vmem:[#allocation11 + $0x390] sm:$0xff]
    %v4526 = vld [vmem:[#allocation11 + $0x398] sm:$0xff]
    %v4527 = vld [vmem:[#allocation11 + $0x3a0] sm:$0xff]
    %v4528 = vld [vmem:[#allocation11 + $0x3a8] sm:$0xff]
    %v4529 = vld [vmem:[#allocation11 + $0x3b0] sm:$0xff]
    %v4530 = vld [vmem:[#allocation11 + $0x3b8] sm:$0xff]
    %v4531 = vld [vmem:[#allocation11 + $0x3c0] sm:$0xff]
    %v4532 = vld [vmem:[#allocation11 + $0x3c8] sm:$0xff]
    %v4533 = vld [vmem:[#allocation11 + $0x3d0] sm:$0xff]
    %v4534 = vld [vmem:[#allocation11 + $0x3d8] sm:$0xff]
    %v4535 = vld [vmem:[#allocation11 + $0x3e0] sm:$0xff]
    %v4536 = vld [vmem:[#allocation11 + $0x3e8] sm:$0xff]
    %v4537 = vld [vmem:[#allocation11 + $0x3f0] sm:$0xff]
    %v4538 = vld [vmem:[#allocation11 + $0x3f8] sm:$0xff]
    %v4539 = vld [vmem:[#allocation11 + $0x400] sm:$0xff]
    %v4540 = vld [vmem:[#allocation11 + $0x408] sm:$0xff]
    %v4541 = vld [vmem:[#allocation11 + $0x410] sm:$0xff]
    %v4542 = vld [vmem:[#allocation11 + $0x418] sm:$0xff]
    %v4543 = vld [vmem:[#allocation11 + $0x420] sm:$0xff]
    %v4544 = vld [vmem:[#allocation11 + $0x428] sm:$0xff]
    %v4545 = vld [vmem:[#allocation11 + $0x430] sm:$0xff]
    %v4546 = vld [vmem:[#allocation11 + $0x438] sm:$0xff]
    %v4547 = vld [vmem:[#allocation11 + $0x440] sm:$0xff]
    %v4548 = vld [vmem:[#allocation11 + $0x448] sm:$0xff]
    %v4549 = vld [vmem:[#allocation11 + $0x450] sm:$0xff]
    %v4550 = vld [vmem:[#allocation11 + $0x458] sm:$0xff]
    %v4551 = vld [vmem:[#allocation11 + $0x460] sm:$0xff]
    %v4552 = vld [vmem:[#allocation11 + $0x468] sm:$0xff]
    %v4553 = vld [vmem:[#allocation11 + $0x470] sm:$0xff]
    %v4554 = vld [vmem:[#allocation11 + $0x478] sm:$0xff]
    %v4555 = vld [vmem:[#allocation11 + $0x480] sm:$0xff]
    %v4556 = vld [vmem:[#allocation11 + $0x488] sm:$0xff]
    %v4557 = vld [vmem:[#allocation11 + $0x490] sm:$0xff]
    %v4558 = vld [vmem:[#allocation11 + $0x498] sm:$0xff]
    %v4559 = vld [vmem:[#allocation11 + $0x4a0] sm:$0xff]
    %v4560 = vld [vmem:[#allocation11 + $0x4a8] sm:$0xff]
    %v4561 = vld [vmem:[#allocation11 + $0x4b0] sm:$0xff]
    %v4562 = vld [vmem:[#allocation11 + $0x4b8] sm:$0xff]
    %v4563 = vld [vmem:[#allocation11 + $0x4c0] sm:$0xff]
    %v4564 = vld [vmem:[#allocation11 + $0x4c8] sm:$0xff]
    %v4565 = vld [vmem:[#allocation11 + $0x4d0] sm:$0xff]
    %v4566 = vld [vmem:[#allocation11 + $0x4d8] sm:$0xff]
    %v4567 = vld [vmem:[#allocation11 + $0x4e0] sm:$0xff]
    %v4568 = vld [vmem:[#allocation11 + $0x4e8] sm:$0xff]
    %v4569 = vld [vmem:[#allocation11 + $0x4f0] sm:$0xff]
    %v4570 = vld [vmem:[#allocation11 + $0x4f8] sm:$0xff]
    %v4571 = vld [vmem:[#allocation11 + $0x500] sm:$0xff]
    %v4572 = vld [vmem:[#allocation11 + $0x508] sm:$0xff]
    %v4573 = vld [vmem:[#allocation11 + $0x510] sm:$0xff]
    %v4574 = vld [vmem:[#allocation11 + $0x518] sm:$0xff]
    %v4575 = vld [vmem:[#allocation11 + $0x520] sm:$0xff]
    %v4576 = vld [vmem:[#allocation11 + $0x528] sm:$0xff]
    %v4577 = vld [vmem:[#allocation11 + $0x530] sm:$0xff]
    %v4578 = vld [vmem:[#allocation11 + $0x538] sm:$0xff]
    %v4579 = vld [vmem:[#allocation11 + $0x540] sm:$0xff]
    %v4580 = vld [vmem:[#allocation11 + $0x548] sm:$0xff]
    %v4581 = vld [vmem:[#allocation11 + $0x550] sm:$0xff]
    %v4582 = vld [vmem:[#allocation11 + $0x558] sm:$0xff]
    %v4583 = vld [vmem:[#allocation11 + $0x560] sm:$0xff]
    %v4584 = vld [vmem:[#allocation11 + $0x568] sm:$0xff]
    %v4585 = vld [vmem:[#allocation11 + $0x570] sm:$0xff]
    %v4586 = vld [vmem:[#allocation11 + $0x578] sm:$0xff]
    %v4587 = vld [vmem:[#allocation11 + $0x580] sm:$0xff]
    %v4588 = vld [vmem:[#allocation11 + $0x588] sm:$0xff]
    %v4589 = vld [vmem:[#allocation11 + $0x590] sm:$0xff]
    %v4590 = vld [vmem:[#allocation11 + $0x598] sm:$0xff]
    %v4591 = vld [vmem:[#allocation11 + $0x5a0] sm:$0xff]
    %v4592 = vld [vmem:[#allocation11 + $0x5a8] sm:$0xff]
    %v4593 = vld [vmem:[#allocation11 + $0x5b0] sm:$0xff]
    %v4594 = vld [vmem:[#allocation11 + $0x5b8] sm:$0xff]
    %v4595 = vld [vmem:[#allocation11 + $0x5c0] sm:$0xff]
    %v4596 = vld [vmem:[#allocation11 + $0x5c8] sm:$0xff]
    %v4597 = vld [vmem:[#allocation11 + $0x5d0] sm:$0xff]
    %v4598 = vld [vmem:[#allocation11 + $0x5d8] sm:$0xff]
    %v4599 = vld [vmem:[#allocation11 + $0x5e0] sm:$0xff]
    %v4600 = vld [vmem:[#allocation11 + $0x5e8] sm:$0xff]
    %v4601 = vld [vmem:[#allocation11 + $0x5f0] sm:$0xff]
    %v4602 = vld [vmem:[#allocation11 + $0x5f8] sm:$0xff]
    %v4603 = vld [vmem:[#allocation11 + $0x600] sm:$0xff]
    %v4604 = vld [vmem:[#allocation11 + $0x608] sm:$0xff]
    %v4605 = vld [vmem:[#allocation11 + $0x610] sm:$0xff]
    %v4606 = vld [vmem:[#allocation11 + $0x618] sm:$0xff]
    %v4607 = vld [vmem:[#allocation11 + $0x620] sm:$0xff]
    %v4608 = vld [vmem:[#allocation11 + $0x628] sm:$0xff]
    %v4609 = vld [vmem:[#allocation11 + $0x630] sm:$0xff]
    %v4610 = vld [vmem:[#allocation11 + $0x638] sm:$0xff]
    %v4611 = vld [vmem:[#allocation11 + $0x640] sm:$0xff]
    %v4612 = vld [vmem:[#allocation11 + $0x648] sm:$0xff]
    %v4613 = vld [vmem:[#allocation11 + $0x650] sm:$0xff]
    %v4614 = vld [vmem:[#allocation11 + $0x658] sm:$0xff]
    %v4615 = vld [vmem:[#allocation11 + $0x660] sm:$0xff]
    %v4616 = vld [vmem:[#allocation11 + $0x668] sm:$0xff]
    %v4617 = vld [vmem:[#allocation11 + $0x670] sm:$0xff]
    %v4618 = vld [vmem:[#allocation11 + $0x678] sm:$0xff]
    %v4619 = vld [vmem:[#allocation11 + $0x680] sm:$0xff]
    %v4620 = vld [vmem:[#allocation11 + $0x688] sm:$0xff]
    %v4621 = vld [vmem:[#allocation11 + $0x690] sm:$0xff]
    %v4622 = vld [vmem:[#allocation11 + $0x698] sm:$0xff]
    %v4623 = vld [vmem:[#allocation11 + $0x6a0] sm:$0xff]
    %v4624 = vld [vmem:[#allocation11 + $0x6a8] sm:$0xff]
    %v4625 = vld [vmem:[#allocation11 + $0x6b0] sm:$0xff]
    %v4626 = vld [vmem:[#allocation11 + $0x6b8] sm:$0xff]
    %v4627 = vld [vmem:[#allocation11 + $0x6c0] sm:$0xff]
    %v4628 = vld [vmem:[#allocation11 + $0x6c8] sm:$0xff]
    %v4629 = vld [vmem:[#allocation11 + $0x6d0] sm:$0xff]
    %v4630 = vld [vmem:[#allocation11 + $0x6d8] sm:$0xff]
    %v4631 = vld [vmem:[#allocation11 + $0x6e0] sm:$0xff]
    %v4632 = vld [vmem:[#allocation11 + $0x6e8] sm:$0xff]
    %v4633 = vld [vmem:[#allocation11 + $0x6f0] sm:$0xff]
    %v4634 = vld [vmem:[#allocation11 + $0x6f8] sm:$0xff]
    %v4635 = vld [vmem:[#allocation11 + $0x700] sm:$0xff]
    %v4636 = vld [vmem:[#allocation11 + $0x708] sm:$0xff]
    %v4637 = vld [vmem:[#allocation11 + $0x710] sm:$0xff]
    %v4638 = vld [vmem:[#allocation11 + $0x718] sm:$0xff]
    %v4639 = vld [vmem:[#allocation11 + $0x720] sm:$0xff]
    %v4640 = vld [vmem:[#allocation11 + $0x728] sm:$0xff]
    %v4641 = vld [vmem:[#allocation11 + $0x730] sm:$0xff]
    %v4642 = vld [vmem:[#allocation11 + $0x738] sm:$0xff]
    %v4643 = vld [vmem:[#allocation11 + $0x740] sm:$0xff]
    %v4644 = vld [vmem:[#allocation11 + $0x748] sm:$0xff]
    %v4645 = vld [vmem:[#allocation11 + $0x750] sm:$0xff]
    %v4646 = vld [vmem:[#allocation11 + $0x758] sm:$0xff]
    %v4647 = vld [vmem:[#allocation11 + $0x760] sm:$0xff]
    %v4648 = vld [vmem:[#allocation11 + $0x768] sm:$0xff]
    %v4649 = vld [vmem:[#allocation11 + $0x770] sm:$0xff]
    %v4650 = vld [vmem:[#allocation11 + $0x778] sm:$0xff]
    %v4651 = vld [vmem:[#allocation11 + $0x780] sm:$0xff]
    %v4652 = vld [vmem:[#allocation11 + $0x788] sm:$0xff]
    %v4653 = vld [vmem:[#allocation11 + $0x790] sm:$0xff]
    %v4654 = vld [vmem:[#allocation11 + $0x798] sm:$0xff]
    %v4655 = vld [vmem:[#allocation11 + $0x7a0] sm:$0xff]
    %v4656 = vld [vmem:[#allocation11 + $0x7a8] sm:$0xff]
    %v4657 = vld [vmem:[#allocation11 + $0x7b0] sm:$0xff]
    %v4658 = vld [vmem:[#allocation11 + $0x7b8] sm:$0xff]
    %v4659 = vld [vmem:[#allocation11 + $0x7c0] sm:$0xff]
    %v4660 = vld [vmem:[#allocation11 + $0x7c8] sm:$0xff]
    %v4661 = vld [vmem:[#allocation11 + $0x7d0] sm:$0xff]
    %v4662 = vld [vmem:[#allocation11 + $0x7d8] sm:$0xff]
    %v4663 = vld [vmem:[#allocation11 + $0x7e0] sm:$0xff]
    %v4664 = vld [vmem:[#allocation11 + $0x7e8] sm:$0xff]
    %v4665 = vld [vmem:[#allocation11 + $0x7f0] sm:$0xff]
    %v4666 = vld [vmem:[#allocation11 + $0x7f8] sm:$0xff]
    %v4667 = vld [vmem:[#allocation13] sm:$0xf]
    %v4669 = vlaneseq
    %v4670 = vshrl.u32 %v4669, 7
    %v4671 = vsub.s32 0, %v4670
    %v4672 = vrot.slane %v4667, %v4671
    %v4673 = vlaneseq
    %v4674 = vshrl.u32 %v4673, 7
    %v4675 = vsub.s32 1, %v4674
    %v4676 = vrot.slane %v4667, %v4675
    %v4677 = vlaneseq
    %v4678 = vshrl.u32 %v4677, 7
    %v4679 = vsub.s32 2, %v4678
    %v4680 = vrot.slane %v4667, %v4679
    %v4681 = vlaneseq
    %v4682 = vshrl.u32 %v4681, 7
    %v4683 = vsub.s32 3, %v4682
    %v4684 = vrot.slane %v4667, %v4683
    %v4945 = vunpack.c.l.b16 %v4411
    %v4946 = vunpack.c.h.b16 %v4411
    %v4947 = vunpack.c.l.b16 %v4412
    %v4948 = vunpack.c.h.b16 %v4412
    %v4949 = vunpack.c.l.b16 %v4413
    %v4950 = vunpack.c.h.b16 %v4413
    %v4951 = vunpack.c.l.b16 %v4414
    %v4952 = vunpack.c.h.b16 %v4414
    %v4953 = vunpack.c.l.b16 %v4415
    %v4954 = vunpack.c.h.b16 %v4415
    %v4955 = vunpack.c.l.b16 %v4416
    %v4956 = vunpack.c.h.b16 %v4416
    %v4957 = vunpack.c.l.b16 %v4417
    %v4958 = vunpack.c.h.b16 %v4417
    %v4959 = vunpack.c.l.b16 %v4418
    %v4960 = vunpack.c.h.b16 %v4418
    %v4961 = vunpack.c.l.b16 %v4419
    %v4962 = vunpack.c.h.b16 %v4419
    %v4963 = vunpack.c.l.b16 %v4420
    %v4964 = vunpack.c.h.b16 %v4420
    %v4965 = vunpack.c.l.b16 %v4421
    %v4966 = vunpack.c.h.b16 %v4421
    %v4967 = vunpack.c.l.b16 %v4422
    %v4968 = vunpack.c.h.b16 %v4422
    %v4969 = vunpack.c.l.b16 %v4423
    %v4970 = vunpack.c.h.b16 %v4423
    %v4971 = vunpack.c.l.b16 %v4424
    %v4972 = vunpack.c.h.b16 %v4424
    %v4973 = vunpack.c.l.b16 %v4425
    %v4974 = vunpack.c.h.b16 %v4425
    %v4975 = vunpack.c.l.b16 %v4426
    %v4976 = vunpack.c.h.b16 %v4426
    %v4977 = vunpack.c.l.b16 %v4427
    %v4978 = vunpack.c.h.b16 %v4427
    %v4979 = vunpack.c.l.b16 %v4428
    %v4980 = vunpack.c.h.b16 %v4428
    %v4981 = vunpack.c.l.b16 %v4429
    %v4982 = vunpack.c.h.b16 %v4429
    %v4983 = vunpack.c.l.b16 %v4430
    %v4984 = vunpack.c.h.b16 %v4430
    %v4985 = vunpack.c.l.b16 %v4431
    %v4986 = vunpack.c.h.b16 %v4431
    %v4987 = vunpack.c.l.b16 %v4432
    %v4988 = vunpack.c.h.b16 %v4432
    %v4989 = vunpack.c.l.b16 %v4433
    %v4990 = vunpack.c.h.b16 %v4433
    %v4991 = vunpack.c.l.b16 %v4434
    %v4992 = vunpack.c.h.b16 %v4434
    %v4993 = vunpack.c.l.b16 %v4435
    %v4994 = vunpack.c.h.b16 %v4435
    %v4995 = vunpack.c.l.b16 %v4436
    %v4996 = vunpack.c.h.b16 %v4436
    %v4997 = vunpack.c.l.b16 %v4437
    %v4998 = vunpack.c.h.b16 %v4437
    %v4999 = vunpack.c.l.b16 %v4438
    %v5000 = vunpack.c.h.b16 %v4438
    %v5001 = vunpack.c.l.b16 %v4439
    %v5002 = vunpack.c.h.b16 %v4439
    %v5003 = vunpack.c.l.b16 %v4440
    %v5004 = vunpack.c.h.b16 %v4440
    %v5005 = vunpack.c.l.b16 %v4441
    %v5006 = vunpack.c.h.b16 %v4441
    %v5007 = vunpack.c.l.b16 %v4442
    %v5008 = vunpack.c.h.b16 %v4442
    %v5009 = vunpack.c.l.b16 %v4443
    %v5010 = vunpack.c.h.b16 %v4443
    %v5011 = vunpack.c.l.b16 %v4444
    %v5012 = vunpack.c.h.b16 %v4444
    %v5013 = vunpack.c.l.b16 %v4445
    %v5014 = vunpack.c.h.b16 %v4445
    %v5015 = vunpack.c.l.b16 %v4446
    %v5016 = vunpack.c.h.b16 %v4446
    %v5017 = vunpack.c.l.b16 %v4447
    %v5018 = vunpack.c.h.b16 %v4447
    %v5019 = vunpack.c.l.b16 %v4448
    %v5020 = vunpack.c.h.b16 %v4448
    %v5021 = vunpack.c.l.b16 %v4449
    %v5022 = vunpack.c.h.b16 %v4449
    %v5023 = vunpack.c.l.b16 %v4450
    %v5024 = vunpack.c.h.b16 %v4450
    %v5025 = vunpack.c.l.b16 %v4451
    %v5026 = vunpack.c.h.b16 %v4451
    %v5027 = vunpack.c.l.b16 %v4452
    %v5028 = vunpack.c.h.b16 %v4452
    %v5029 = vunpack.c.l.b16 %v4453
    %v5030 = vunpack.c.h.b16 %v4453
    %v5031 = vunpack.c.l.b16 %v4454
    %v5032 = vunpack.c.h.b16 %v4454
    %v5033 = vunpack.c.l.b16 %v4455
    %v5034 = vunpack.c.h.b16 %v4455
    %v5035 = vunpack.c.l.b16 %v4456
    %v5036 = vunpack.c.h.b16 %v4456
    %v5037 = vunpack.c.l.b16 %v4457
    %v5038 = vunpack.c.h.b16 %v4457
    %v5039 = vunpack.c.l.b16 %v4458
    %v5040 = vunpack.c.h.b16 %v4458
    %v5041 = vunpack.c.l.b16 %v4459
    %v5042 = vunpack.c.h.b16 %v4459
    %v5043 = vunpack.c.l.b16 %v4460
    %v5044 = vunpack.c.h.b16 %v4460
    %v5045 = vunpack.c.l.b16 %v4461
    %v5046 = vunpack.c.h.b16 %v4461
    %v5047 = vunpack.c.l.b16 %v4462
    %v5048 = vunpack.c.h.b16 %v4462
    %v5049 = vunpack.c.l.b16 %v4463
    %v5050 = vunpack.c.h.b16 %v4463
    %v5051 = vunpack.c.l.b16 %v4464
    %v5052 = vunpack.c.h.b16 %v4464
    %v5053 = vunpack.c.l.b16 %v4465
    %v5054 = vunpack.c.h.b16 %v4465
    %v5055 = vunpack.c.l.b16 %v4466
    %v5056 = vunpack.c.h.b16 %v4466
    %v5057 = vunpack.c.l.b16 %v4467
    %v5058 = vunpack.c.h.b16 %v4467
    %v5059 = vunpack.c.l.b16 %v4468
    %v5060 = vunpack.c.h.b16 %v4468
    %v5061 = vunpack.c.l.b16 %v4469
    %v5062 = vunpack.c.h.b16 %v4469
    %v5063 = vunpack.c.l.b16 %v4470
    %v5064 = vunpack.c.h.b16 %v4470
    %v5065 = vunpack.c.l.b16 %v4471
    %v5066 = vunpack.c.h.b16 %v4471
    %v5067 = vunpack.c.l.b16 %v4472
    %v5068 = vunpack.c.h.b16 %v4472
    %v5069 = vunpack.c.l.b16 %v4473
    %v5070 = vunpack.c.h.b16 %v4473
    %v5071 = vunpack.c.l.b16 %v4474
    %v5072 = vunpack.c.h.b16 %v4474
    %v5073 = vunpack.c.l.b16 %v4475
    %v5074 = vunpack.c.h.b16 %v4475
    %v5075 = vunpack.c.l.b16 %v4476
    %v5076 = vunpack.c.h.b16 %v4476
    %v5077 = vunpack.c.l.b16 %v4477
    %v5078 = vunpack.c.h.b16 %v4477
    %v5079 = vunpack.c.l.b16 %v4478
    %v5080 = vunpack.c.h.b16 %v4478
    %v5081 = vunpack.c.l.b16 %v4479
    %v5082 = vunpack.c.h.b16 %v4479
    %v5083 = vunpack.c.l.b16 %v4480
    %v5084 = vunpack.c.h.b16 %v4480
    %v5085 = vunpack.c.l.b16 %v4481
    %v5086 = vunpack.c.h.b16 %v4481
    %v5087 = vunpack.c.l.b16 %v4482
    %v5088 = vunpack.c.h.b16 %v4482
    %v5089 = vunpack.c.l.b16 %v4483
    %v5090 = vunpack.c.h.b16 %v4483
    %v5091 = vunpack.c.l.b16 %v4484
    %v5092 = vunpack.c.h.b16 %v4484
    %v5093 = vunpack.c.l.b16 %v4485
    %v5094 = vunpack.c.h.b16 %v4485
    %v5095 = vunpack.c.l.b16 %v4486
    %v5096 = vunpack.c.h.b16 %v4486
    %v5097 = vunpack.c.l.b16 %v4487
    %v5098 = vunpack.c.h.b16 %v4487
    %v5099 = vunpack.c.l.b16 %v4488
    %v5100 = vunpack.c.h.b16 %v4488
    %v5101 = vunpack.c.l.b16 %v4489
    %v5102 = vunpack.c.h.b16 %v4489
    %v5103 = vunpack.c.l.b16 %v4490
    %v5104 = vunpack.c.h.b16 %v4490
    %v5105 = vunpack.c.l.b16 %v4491
    %v5106 = vunpack.c.h.b16 %v4491
    %v5107 = vunpack.c.l.b16 %v4492
    %v5108 = vunpack.c.h.b16 %v4492
    %v5109 = vunpack.c.l.b16 %v4493
    %v5110 = vunpack.c.h.b16 %v4493
    %v5111 = vunpack.c.l.b16 %v4494
    %v5112 = vunpack.c.h.b16 %v4494
    %v5113 = vunpack.c.l.b16 %v4495
    %v5114 = vunpack.c.h.b16 %v4495
    %v5115 = vunpack.c.l.b16 %v4496
    %v5116 = vunpack.c.h.b16 %v4496
    %v5117 = vunpack.c.l.b16 %v4497
    %v5118 = vunpack.c.h.b16 %v4497
    %v5119 = vunpack.c.l.b16 %v4498
    %v5120 = vunpack.c.h.b16 %v4498
    %v5121 = vunpack.c.l.b16 %v4499
    %v5122 = vunpack.c.h.b16 %v4499
    %v5123 = vunpack.c.l.b16 %v4500
    %v5124 = vunpack.c.h.b16 %v4500
    %v5125 = vunpack.c.l.b16 %v4501
    %v5126 = vunpack.c.h.b16 %v4501
    %v5127 = vunpack.c.l.b16 %v4502
    %v5128 = vunpack.c.h.b16 %v4502
    %v5129 = vunpack.c.l.b16 %v4503
    %v5130 = vunpack.c.h.b16 %v4503
    %v5131 = vunpack.c.l.b16 %v4504
    %v5132 = vunpack.c.h.b16 %v4504
    %v5133 = vunpack.c.l.b16 %v4505
    %v5134 = vunpack.c.h.b16 %v4505
    %v5135 = vunpack.c.l.b16 %v4506
    %v5136 = vunpack.c.h.b16 %v4506
    %v5137 = vunpack.c.l.b16 %v4507
    %v5138 = vunpack.c.h.b16 %v4507
    %v5139 = vunpack.c.l.b16 %v4508
    %v5140 = vunpack.c.h.b16 %v4508
    %v5141 = vunpack.c.l.b16 %v4509
    %v5142 = vunpack.c.h.b16 %v4509
    %v5143 = vunpack.c.l.b16 %v4510
    %v5144 = vunpack.c.h.b16 %v4510
    %v5145 = vunpack.c.l.b16 %v4511
    %v5146 = vunpack.c.h.b16 %v4511
    %v5147 = vunpack.c.l.b16 %v4512
    %v5148 = vunpack.c.h.b16 %v4512
    %v5149 = vunpack.c.l.b16 %v4513
    %v5150 = vunpack.c.h.b16 %v4513
    %v5151 = vunpack.c.l.b16 %v4514
    %v5152 = vunpack.c.h.b16 %v4514
    %v5153 = vunpack.c.l.b16 %v4515
    %v5154 = vunpack.c.h.b16 %v4515
    %v5155 = vunpack.c.l.b16 %v4516
    %v5156 = vunpack.c.h.b16 %v4516
    %v5157 = vunpack.c.l.b16 %v4517
    %v5158 = vunpack.c.h.b16 %v4517
    %v5159 = vunpack.c.l.b16 %v4518
    %v5160 = vunpack.c.h.b16 %v4518
    %v5161 = vunpack.c.l.b16 %v4519
    %v5162 = vunpack.c.h.b16 %v4519
    %v5163 = vunpack.c.l.b16 %v4520
    %v5164 = vunpack.c.h.b16 %v4520
    %v5165 = vunpack.c.l.b16 %v4521
    %v5166 = vunpack.c.h.b16 %v4521
    %v5167 = vunpack.c.l.b16 %v4522
    %v5168 = vunpack.c.h.b16 %v4522
    %v5169 = vunpack.c.l.b16 %v4523
    %v5170 = vunpack.c.h.b16 %v4523
    %v5171 = vunpack.c.l.b16 %v4524
    %v5172 = vunpack.c.h.b16 %v4524
    %v5173 = vunpack.c.l.b16 %v4525
    %v5174 = vunpack.c.h.b16 %v4525
    %v5175 = vunpack.c.l.b16 %v4526
    %v5176 = vunpack.c.h.b16 %v4526
    %v5177 = vunpack.c.l.b16 %v4527
    %v5178 = vunpack.c.h.b16 %v4527
    %v5179 = vunpack.c.l.b16 %v4528
    %v5180 = vunpack.c.h.b16 %v4528
    %v5181 = vunpack.c.l.b16 %v4529
    %v5182 = vunpack.c.h.b16 %v4529
    %v5183 = vunpack.c.l.b16 %v4530
    %v5184 = vunpack.c.h.b16 %v4530
    %v5185 = vunpack.c.l.b16 %v4531
    %v5186 = vunpack.c.h.b16 %v4531
    %v5187 = vunpack.c.l.b16 %v4532
    %v5188 = vunpack.c.h.b16 %v4532
    %v5189 = vunpack.c.l.b16 %v4533
    %v5190 = vunpack.c.h.b16 %v4533
    %v5191 = vunpack.c.l.b16 %v4534
    %v5192 = vunpack.c.h.b16 %v4534
    %v5193 = vunpack.c.l.b16 %v4535
    %v5194 = vunpack.c.h.b16 %v4535
    %v5195 = vunpack.c.l.b16 %v4536
    %v5196 = vunpack.c.h.b16 %v4536
    %v5197 = vunpack.c.l.b16 %v4537
    %v5198 = vunpack.c.h.b16 %v4537
    %v5199 = vunpack.c.l.b16 %v4538
    %v5200 = vunpack.c.h.b16 %v4538
    %v5201 = vunpack.c.l.b16 %v4539
    %v5202 = vunpack.c.h.b16 %v4539
    %v5203 = vunpack.c.l.b16 %v4540
    %v5204 = vunpack.c.h.b16 %v4540
    %v5205 = vunpack.c.l.b16 %v4541
    %v5206 = vunpack.c.h.b16 %v4541
    %v5207 = vunpack.c.l.b16 %v4542
    %v5208 = vunpack.c.h.b16 %v4542
    %v5209 = vunpack.c.l.b16 %v4543
    %v5210 = vunpack.c.h.b16 %v4543
    %v5211 = vunpack.c.l.b16 %v4544
    %v5212 = vunpack.c.h.b16 %v4544
    %v5213 = vunpack.c.l.b16 %v4545
    %v5214 = vunpack.c.h.b16 %v4545
    %v5215 = vunpack.c.l.b16 %v4546
    %v5216 = vunpack.c.h.b16 %v4546
    %v5217 = vunpack.c.l.b16 %v4547
    %v5218 = vunpack.c.h.b16 %v4547
    %v5219 = vunpack.c.l.b16 %v4548
    %v5220 = vunpack.c.h.b16 %v4548
    %v5221 = vunpack.c.l.b16 %v4549
    %v5222 = vunpack.c.h.b16 %v4549
    %v5223 = vunpack.c.l.b16 %v4550
    %v5224 = vunpack.c.h.b16 %v4550
    %v5225 = vunpack.c.l.b16 %v4551
    %v5226 = vunpack.c.h.b16 %v4551
    %v5227 = vunpack.c.l.b16 %v4552
    %v5228 = vunpack.c.h.b16 %v4552
    %v5229 = vunpack.c.l.b16 %v4553
    %v5230 = vunpack.c.h.b16 %v4553
    %v5231 = vunpack.c.l.b16 %v4554
    %v5232 = vunpack.c.h.b16 %v4554
    %v5233 = vunpack.c.l.b16 %v4555
    %v5234 = vunpack.c.h.b16 %v4555
    %v5235 = vunpack.c.l.b16 %v4556
    %v5236 = vunpack.c.h.b16 %v4556
    %v5237 = vunpack.c.l.b16 %v4557
    %v5238 = vunpack.c.h.b16 %v4557
    %v5239 = vunpack.c.l.b16 %v4558
    %v5240 = vunpack.c.h.b16 %v4558
    %v5241 = vunpack.c.l.b16 %v4559
    %v5242 = vunpack.c.h.b16 %v4559
    %v5243 = vunpack.c.l.b16 %v4560
    %v5244 = vunpack.c.h.b16 %v4560
    %v5245 = vunpack.c.l.b16 %v4561
    %v5246 = vunpack.c.h.b16 %v4561
    %v5247 = vunpack.c.l.b16 %v4562
    %v5248 = vunpack.c.h.b16 %v4562
    %v5249 = vunpack.c.l.b16 %v4563
    %v5250 = vunpack.c.h.b16 %v4563
    %v5251 = vunpack.c.l.b16 %v4564
    %v5252 = vunpack.c.h.b16 %v4564
    %v5253 = vunpack.c.l.b16 %v4565
    %v5254 = vunpack.c.h.b16 %v4565
    %v5255 = vunpack.c.l.b16 %v4566
    %v5256 = vunpack.c.h.b16 %v4566
    %v5257 = vunpack.c.l.b16 %v4567
    %v5258 = vunpack.c.h.b16 %v4567
    %v5259 = vunpack.c.l.b16 %v4568
    %v5260 = vunpack.c.h.b16 %v4568
    %v5261 = vunpack.c.l.b16 %v4569
    %v5262 = vunpack.c.h.b16 %v4569
    %v5263 = vunpack.c.l.b16 %v4570
    %v5264 = vunpack.c.h.b16 %v4570
    %v5265 = vunpack.c.l.b16 %v4571
    %v5266 = vunpack.c.h.b16 %v4571
    %v5267 = vunpack.c.l.b16 %v4572
    %v5268 = vunpack.c.h.b16 %v4572
    %v5269 = vunpack.c.l.b16 %v4573
    %v5270 = vunpack.c.h.b16 %v4573
    %v5271 = vunpack.c.l.b16 %v4574
    %v5272 = vunpack.c.h.b16 %v4574
    %v5273 = vunpack.c.l.b16 %v4575
    %v5274 = vunpack.c.h.b16 %v4575
    %v5275 = vunpack.c.l.b16 %v4576
    %v5276 = vunpack.c.h.b16 %v4576
    %v5277 = vunpack.c.l.b16 %v4577
    %v5278 = vunpack.c.h.b16 %v4577
    %v5279 = vunpack.c.l.b16 %v4578
    %v5280 = vunpack.c.h.b16 %v4578
    %v5281 = vunpack.c.l.b16 %v4579
    %v5282 = vunpack.c.h.b16 %v4579
    %v5283 = vunpack.c.l.b16 %v4580
    %v5284 = vunpack.c.h.b16 %v4580
    %v5285 = vunpack.c.l.b16 %v4581
    %v5286 = vunpack.c.h.b16 %v4581
    %v5287 = vunpack.c.l.b16 %v4582
    %v5288 = vunpack.c.h.b16 %v4582
    %v5289 = vunpack.c.l.b16 %v4583
    %v5290 = vunpack.c.h.b16 %v4583
    %v5291 = vunpack.c.l.b16 %v4584
    %v5292 = vunpack.c.h.b16 %v4584
    %v5293 = vunpack.c.l.b16 %v4585
    %v5294 = vunpack.c.h.b16 %v4585
    %v5295 = vunpack.c.l.b16 %v4586
    %v5296 = vunpack.c.h.b16 %v4586
    %v5297 = vunpack.c.l.b16 %v4587
    %v5298 = vunpack.c.h.b16 %v4587
    %v5299 = vunpack.c.l.b16 %v4588
    %v5300 = vunpack.c.h.b16 %v4588
    %v5301 = vunpack.c.l.b16 %v4589
    %v5302 = vunpack.c.h.b16 %v4589
    %v5303 = vunpack.c.l.b16 %v4590
    %v5304 = vunpack.c.h.b16 %v4590
    %v5305 = vunpack.c.l.b16 %v4591
    %v5306 = vunpack.c.h.b16 %v4591
    %v5307 = vunpack.c.l.b16 %v4592
    %v5308 = vunpack.c.h.b16 %v4592
    %v5309 = vunpack.c.l.b16 %v4593
    %v5310 = vunpack.c.h.b16 %v4593
    %v5311 = vunpack.c.l.b16 %v4594
    %v5312 = vunpack.c.h.b16 %v4594
    %v5313 = vunpack.c.l.b16 %v4595
    %v5314 = vunpack.c.h.b16 %v4595
    %v5315 = vunpack.c.l.b16 %v4596
    %v5316 = vunpack.c.h.b16 %v4596
    %v5317 = vunpack.c.l.b16 %v4597
    %v5318 = vunpack.c.h.b16 %v4597
    %v5319 = vunpack.c.l.b16 %v4598
    %v5320 = vunpack.c.h.b16 %v4598
    %v5321 = vunpack.c.l.b16 %v4599
    %v5322 = vunpack.c.h.b16 %v4599
    %v5323 = vunpack.c.l.b16 %v4600
    %v5324 = vunpack.c.h.b16 %v4600
    %v5325 = vunpack.c.l.b16 %v4601
    %v5326 = vunpack.c.h.b16 %v4601
    %v5327 = vunpack.c.l.b16 %v4602
    %v5328 = vunpack.c.h.b16 %v4602
    %v5329 = vunpack.c.l.b16 %v4603
    %v5330 = vunpack.c.h.b16 %v4603
    %v5331 = vunpack.c.l.b16 %v4604
    %v5332 = vunpack.c.h.b16 %v4604
    %v5333 = vunpack.c.l.b16 %v4605
    %v5334 = vunpack.c.h.b16 %v4605
    %v5335 = vunpack.c.l.b16 %v4606
    %v5336 = vunpack.c.h.b16 %v4606
    %v5337 = vunpack.c.l.b16 %v4607
    %v5338 = vunpack.c.h.b16 %v4607
    %v5339 = vunpack.c.l.b16 %v4608
    %v5340 = vunpack.c.h.b16 %v4608
    %v5341 = vunpack.c.l.b16 %v4609
    %v5342 = vunpack.c.h.b16 %v4609
    %v5343 = vunpack.c.l.b16 %v4610
    %v5344 = vunpack.c.h.b16 %v4610
    %v5345 = vunpack.c.l.b16 %v4611
    %v5346 = vunpack.c.h.b16 %v4611
    %v5347 = vunpack.c.l.b16 %v4612
    %v5348 = vunpack.c.h.b16 %v4612
    %v5349 = vunpack.c.l.b16 %v4613
    %v5350 = vunpack.c.h.b16 %v4613
    %v5351 = vunpack.c.l.b16 %v4614
    %v5352 = vunpack.c.h.b16 %v4614
    %v5353 = vunpack.c.l.b16 %v4615
    %v5354 = vunpack.c.h.b16 %v4615
    %v5355 = vunpack.c.l.b16 %v4616
    %v5356 = vunpack.c.h.b16 %v4616
    %v5357 = vunpack.c.l.b16 %v4617
    %v5358 = vunpack.c.h.b16 %v4617
    %v5359 = vunpack.c.l.b16 %v4618
    %v5360 = vunpack.c.h.b16 %v4618
    %v5361 = vunpack.c.l.b16 %v4619
    %v5362 = vunpack.c.h.b16 %v4619
    %v5363 = vunpack.c.l.b16 %v4620
    %v5364 = vunpack.c.h.b16 %v4620
    %v5365 = vunpack.c.l.b16 %v4621
    %v5366 = vunpack.c.h.b16 %v4621
    %v5367 = vunpack.c.l.b16 %v4622
    %v5368 = vunpack.c.h.b16 %v4622
    %v5369 = vunpack.c.l.b16 %v4623
    %v5370 = vunpack.c.h.b16 %v4623
    %v5371 = vunpack.c.l.b16 %v4624
    %v5372 = vunpack.c.h.b16 %v4624
    %v5373 = vunpack.c.l.b16 %v4625
    %v5374 = vunpack.c.h.b16 %v4625
    %v5375 = vunpack.c.l.b16 %v4626
    %v5376 = vunpack.c.h.b16 %v4626
    %v5377 = vunpack.c.l.b16 %v4627
    %v5378 = vunpack.c.h.b16 %v4627
    %v5379 = vunpack.c.l.b16 %v4628
    %v5380 = vunpack.c.h.b16 %v4628
    %v5381 = vunpack.c.l.b16 %v4629
    %v5382 = vunpack.c.h.b16 %v4629
    %v5383 = vunpack.c.l.b16 %v4630
    %v5384 = vunpack.c.h.b16 %v4630
    %v5385 = vunpack.c.l.b16 %v4631
    %v5386 = vunpack.c.h.b16 %v4631
    %v5387 = vunpack.c.l.b16 %v4632
    %v5388 = vunpack.c.h.b16 %v4632
    %v5389 = vunpack.c.l.b16 %v4633
    %v5390 = vunpack.c.h.b16 %v4633
    %v5391 = vunpack.c.l.b16 %v4634
    %v5392 = vunpack.c.h.b16 %v4634
    %v5393 = vunpack.c.l.b16 %v4635
    %v5394 = vunpack.c.h.b16 %v4635
    %v5395 = vunpack.c.l.b16 %v4636
    %v5396 = vunpack.c.h.b16 %v4636
    %v5397 = vunpack.c.l.b16 %v4637
    %v5398 = vunpack.c.h.b16 %v4637
    %v5399 = vunpack.c.l.b16 %v4638
    %v5400 = vunpack.c.h.b16 %v4638
    %v5401 = vunpack.c.l.b16 %v4639
    %v5402 = vunpack.c.h.b16 %v4639
    %v5403 = vunpack.c.l.b16 %v4640
    %v5404 = vunpack.c.h.b16 %v4640
    %v5405 = vunpack.c.l.b16 %v4641
    %v5406 = vunpack.c.h.b16 %v4641
    %v5407 = vunpack.c.l.b16 %v4642
    %v5408 = vunpack.c.h.b16 %v4642
    %v5409 = vunpack.c.l.b16 %v4643
    %v5410 = vunpack.c.h.b16 %v4643
    %v5411 = vunpack.c.l.b16 %v4644
    %v5412 = vunpack.c.h.b16 %v4644
    %v5413 = vunpack.c.l.b16 %v4645
    %v5414 = vunpack.c.h.b16 %v4645
    %v5415 = vunpack.c.l.b16 %v4646
    %v5416 = vunpack.c.h.b16 %v4646
    %v5417 = vunpack.c.l.b16 %v4647
    %v5418 = vunpack.c.h.b16 %v4647
    %v5419 = vunpack.c.l.b16 %v4648
    %v5420 = vunpack.c.h.b16 %v4648
    %v5421 = vunpack.c.l.b16 %v4649
    %v5422 = vunpack.c.h.b16 %v4649
    %v5423 = vunpack.c.l.b16 %v4650
    %v5424 = vunpack.c.h.b16 %v4650
    %v5425 = vunpack.c.l.b16 %v4651
    %v5426 = vunpack.c.h.b16 %v4651
    %v5427 = vunpack.c.l.b16 %v4652
    %v5428 = vunpack.c.h.b16 %v4652
    %v5429 = vunpack.c.l.b16 %v4653
    %v5430 = vunpack.c.h.b16 %v4653
    %v5431 = vunpack.c.l.b16 %v4654
    %v5432 = vunpack.c.h.b16 %v4654
    %v5433 = vunpack.c.l.b16 %v4655
    %v5434 = vunpack.c.h.b16 %v4655
    %v5435 = vunpack.c.l.b16 %v4656
    %v5436 = vunpack.c.h.b16 %v4656
    %v5437 = vunpack.c.l.b16 %v4657
    %v5438 = vunpack.c.h.b16 %v4657
    %v5439 = vunpack.c.l.b16 %v4658
    %v5440 = vunpack.c.h.b16 %v4658
    %v5441 = vunpack.c.l.b16 %v4659
    %v5442 = vunpack.c.h.b16 %v4659
    %v5443 = vunpack.c.l.b16 %v4660
    %v5444 = vunpack.c.h.b16 %v4660
    %v5445 = vunpack.c.l.b16 %v4661
    %v5446 = vunpack.c.h.b16 %v4661
    %v5447 = vunpack.c.l.b16 %v4662
    %v5448 = vunpack.c.h.b16 %v4662
    %v5449 = vunpack.c.l.b16 %v4663
    %v5450 = vunpack.c.h.b16 %v4663
    %v5451 = vunpack.c.l.b16 %v4664
    %v5452 = vunpack.c.h.b16 %v4664
    %v5453 = vunpack.c.l.b16 %v4665
    %v5454 = vunpack.c.h.b16 %v4665
    %v5455 = vunpack.c.l.b16 %v4666
    %v5456 = vunpack.c.h.b16 %v4666
    %v5457 = vpack.c.b16 %v4949, %v4945
    %v5458 = vpack.c.b16 %v4950, %v4946
    %v5459 = vpack.c.b16 %v4951, %v4947
    %v5460 = vpack.c.b16 %v4952, %v4948
    %v5461 = vpack.c.b16 %v4957, %v4953
    %v5462 = vpack.c.b16 %v4958, %v4954
    %v5463 = vpack.c.b16 %v4959, %v4955
    %v5464 = vpack.c.b16 %v4960, %v4956
    %v5465 = vpack.c.b16 %v4965, %v4961
    %v5466 = vpack.c.b16 %v4966, %v4962
    %v5467 = vpack.c.b16 %v4967, %v4963
    %v5468 = vpack.c.b16 %v4968, %v4964
    %v5469 = vpack.c.b16 %v4973, %v4969
    %v5470 = vpack.c.b16 %v4974, %v4970
    %v5471 = vpack.c.b16 %v4975, %v4971
    %v5472 = vpack.c.b16 %v4976, %v4972
    %v5473 = vpack.c.b16 %v4981, %v4977
    %v5474 = vpack.c.b16 %v4982, %v4978
    %v5475 = vpack.c.b16 %v4983, %v4979
    %v5476 = vpack.c.b16 %v4984, %v4980
    %v5477 = vpack.c.b16 %v4989, %v4985
    %v5478 = vpack.c.b16 %v4990, %v4986
    %v5479 = vpack.c.b16 %v4991, %v4987
    %v5480 = vpack.c.b16 %v4992, %v4988
    %v5481 = vpack.c.b16 %v4997, %v4993
    %v5482 = vpack.c.b16 %v4998, %v4994
    %v5483 = vpack.c.b16 %v4999, %v4995
    %v5484 = vpack.c.b16 %v5000, %v4996
    %v5485 = vpack.c.b16 %v5005, %v5001
    %v5486 = vpack.c.b16 %v5006, %v5002
    %v5487 = vpack.c.b16 %v5007, %v5003
    %v5488 = vpack.c.b16 %v5008, %v5004
    %v5489 = vpack.c.b16 %v5013, %v5009
    %v5490 = vpack.c.b16 %v5014, %v5010
    %v5491 = vpack.c.b16 %v5015, %v5011
    %v5492 = vpack.c.b16 %v5016, %v5012
    %v5493 = vpack.c.b16 %v5021, %v5017
    %v5494 = vpack.c.b16 %v5022, %v5018
    %v5495 = vpack.c.b16 %v5023, %v5019
    %v5496 = vpack.c.b16 %v5024, %v5020
    %v5497 = vpack.c.b16 %v5029, %v5025
    %v5498 = vpack.c.b16 %v5030, %v5026
    %v5499 = vpack.c.b16 %v5031, %v5027
    %v5500 = vpack.c.b16 %v5032, %v5028
    %v5501 = vpack.c.b16 %v5037, %v5033
    %v5502 = vpack.c.b16 %v5038, %v5034
    %v5503 = vpack.c.b16 %v5039, %v5035
    %v5504 = vpack.c.b16 %v5040, %v5036
    %v5505 = vpack.c.b16 %v5045, %v5041
    %v5506 = vpack.c.b16 %v5046, %v5042
    %v5507 = vpack.c.b16 %v5047, %v5043
    %v5508 = vpack.c.b16 %v5048, %v5044
    %v5509 = vpack.c.b16 %v5053, %v5049
    %v5510 = vpack.c.b16 %v5054, %v5050
    %v5511 = vpack.c.b16 %v5055, %v5051
    %v5512 = vpack.c.b16 %v5056, %v5052
    %v5513 = vpack.c.b16 %v5061, %v5057
    %v5514 = vpack.c.b16 %v5062, %v5058
    %v5515 = vpack.c.b16 %v5063, %v5059
    %v5516 = vpack.c.b16 %v5064, %v5060
    %v5517 = vpack.c.b16 %v5069, %v5065
    %v5518 = vpack.c.b16 %v5070, %v5066
    %v5519 = vpack.c.b16 %v5071, %v5067
    %v5520 = vpack.c.b16 %v5072, %v5068
    %v5521 = vpack.c.b16 %v5077, %v5073
    %v5522 = vpack.c.b16 %v5078, %v5074
    %v5523 = vpack.c.b16 %v5079, %v5075
    %v5524 = vpack.c.b16 %v5080, %v5076
    %v5525 = vpack.c.b16 %v5085, %v5081
    %v5526 = vpack.c.b16 %v5086, %v5082
    %v5527 = vpack.c.b16 %v5087, %v5083
    %v5528 = vpack.c.b16 %v5088, %v5084
    %v5529 = vpack.c.b16 %v5093, %v5089
    %v5530 = vpack.c.b16 %v5094, %v5090
    %v5531 = vpack.c.b16 %v5095, %v5091
    %v5532 = vpack.c.b16 %v5096, %v5092
    %v5533 = vpack.c.b16 %v5101, %v5097
    %v5534 = vpack.c.b16 %v5102, %v5098
    %v5535 = vpack.c.b16 %v5103, %v5099
    %v5536 = vpack.c.b16 %v5104, %v5100
    %v5537 = vpack.c.b16 %v5109, %v5105
    %v5538 = vpack.c.b16 %v5110, %v5106
    %v5539 = vpack.c.b16 %v5111, %v5107
    %v5540 = vpack.c.b16 %v5112, %v5108
    %v5541 = vpack.c.b16 %v5117, %v5113
    %v5542 = vpack.c.b16 %v5118, %v5114
    %v5543 = vpack.c.b16 %v5119, %v5115
    %v5544 = vpack.c.b16 %v5120, %v5116
    %v5545 = vpack.c.b16 %v5125, %v5121
    %v5546 = vpack.c.b16 %v5126, %v5122
    %v5547 = vpack.c.b16 %v5127, %v5123
    %v5548 = vpack.c.b16 %v5128, %v5124
    %v5549 = vpack.c.b16 %v5133, %v5129
    %v5550 = vpack.c.b16 %v5134, %v5130
    %v5551 = vpack.c.b16 %v5135, %v5131
    %v5552 = vpack.c.b16 %v5136, %v5132
    %v5553 = vpack.c.b16 %v5141, %v5137
    %v5554 = vpack.c.b16 %v5142, %v5138
    %v5555 = vpack.c.b16 %v5143, %v5139
    %v5556 = vpack.c.b16 %v5144, %v5140
    %v5557 = vpack.c.b16 %v5149, %v5145
    %v5558 = vpack.c.b16 %v5150, %v5146
    %v5559 = vpack.c.b16 %v5151, %v5147
    %v5560 = vpack.c.b16 %v5152, %v5148
    %v5561 = vpack.c.b16 %v5157, %v5153
    %v5562 = vpack.c.b16 %v5158, %v5154
    %v5563 = vpack.c.b16 %v5159, %v5155
    %v5564 = vpack.c.b16 %v5160, %v5156
    %v5565 = vpack.c.b16 %v5165, %v5161
    %v5566 = vpack.c.b16 %v5166, %v5162
    %v5567 = vpack.c.b16 %v5167, %v5163
    %v5568 = vpack.c.b16 %v5168, %v5164
    %v5569 = vpack.c.b16 %v5173, %v5169
    %v5570 = vpack.c.b16 %v5174, %v5170
    %v5571 = vpack.c.b16 %v5175, %v5171
    %v5572 = vpack.c.b16 %v5176, %v5172
    %v5573 = vpack.c.b16 %v5181, %v5177
    %v5574 = vpack.c.b16 %v5182, %v5178
    %v5575 = vpack.c.b16 %v5183, %v5179
    %v5576 = vpack.c.b16 %v5184, %v5180
    %v5577 = vpack.c.b16 %v5189, %v5185
    %v5578 = vpack.c.b16 %v5190, %v5186
    %v5579 = vpack.c.b16 %v5191, %v5187
    %v5580 = vpack.c.b16 %v5192, %v5188
    %v5581 = vpack.c.b16 %v5197, %v5193
    %v5582 = vpack.c.b16 %v5198, %v5194
    %v5583 = vpack.c.b16 %v5199, %v5195
    %v5584 = vpack.c.b16 %v5200, %v5196
    %v5585 = vpack.c.b16 %v5205, %v5201
    %v5586 = vpack.c.b16 %v5206, %v5202
    %v5587 = vpack.c.b16 %v5207, %v5203
    %v5588 = vpack.c.b16 %v5208, %v5204
    %v5589 = vpack.c.b16 %v5213, %v5209
    %v5590 = vpack.c.b16 %v5214, %v5210
    %v5591 = vpack.c.b16 %v5215, %v5211
    %v5592 = vpack.c.b16 %v5216, %v5212
    %v5593 = vpack.c.b16 %v5221, %v5217
    %v5594 = vpack.c.b16 %v5222, %v5218
    %v5595 = vpack.c.b16 %v5223, %v5219
    %v5596 = vpack.c.b16 %v5224, %v5220
    %v5597 = vpack.c.b16 %v5229, %v5225
    %v5598 = vpack.c.b16 %v5230, %v5226
    %v5599 = vpack.c.b16 %v5231, %v5227
    %v5600 = vpack.c.b16 %v5232, %v5228
    %v5601 = vpack.c.b16 %v5237, %v5233
    %v5602 = vpack.c.b16 %v5238, %v5234
    %v5603 = vpack.c.b16 %v5239, %v5235
    %v5604 = vpack.c.b16 %v5240, %v5236
    %v5605 = vpack.c.b16 %v5245, %v5241
    %v5606 = vpack.c.b16 %v5246, %v5242
    %v5607 = vpack.c.b16 %v5247, %v5243
    %v5608 = vpack.c.b16 %v5248, %v5244
    %v5609 = vpack.c.b16 %v5253, %v5249
    %v5610 = vpack.c.b16 %v5254, %v5250
    %v5611 = vpack.c.b16 %v5255, %v5251
    %v5612 = vpack.c.b16 %v5256, %v5252
    %v5613 = vpack.c.b16 %v5261, %v5257
    %v5614 = vpack.c.b16 %v5262, %v5258
    %v5615 = vpack.c.b16 %v5263, %v5259
    %v5616 = vpack.c.b16 %v5264, %v5260
    %v5617 = vpack.c.b16 %v5269, %v5265
    %v5618 = vpack.c.b16 %v5270, %v5266
    %v5619 = vpack.c.b16 %v5271, %v5267
    %v5620 = vpack.c.b16 %v5272, %v5268
    %v5621 = vpack.c.b16 %v5277, %v5273
    %v5622 = vpack.c.b16 %v5278, %v5274
    %v5623 = vpack.c.b16 %v5279, %v5275
    %v5624 = vpack.c.b16 %v5280, %v5276
    %v5625 = vpack.c.b16 %v5285, %v5281
    %v5626 = vpack.c.b16 %v5286, %v5282
    %v5627 = vpack.c.b16 %v5287, %v5283
    %v5628 = vpack.c.b16 %v5288, %v5284
    %v5629 = vpack.c.b16 %v5293, %v5289
    %v5630 = vpack.c.b16 %v5294, %v5290
    %v5631 = vpack.c.b16 %v5295, %v5291
    %v5632 = vpack.c.b16 %v5296, %v5292
    %v5633 = vpack.c.b16 %v5301, %v5297
    %v5634 = vpack.c.b16 %v5302, %v5298
    %v5635 = vpack.c.b16 %v5303, %v5299
    %v5636 = vpack.c.b16 %v5304, %v5300
    %v5637 = vpack.c.b16 %v5309, %v5305
    %v5638 = vpack.c.b16 %v5310, %v5306
    %v5639 = vpack.c.b16 %v5311, %v5307
    %v5640 = vpack.c.b16 %v5312, %v5308
    %v5641 = vpack.c.b16 %v5317, %v5313
    %v5642 = vpack.c.b16 %v5318, %v5314
    %v5643 = vpack.c.b16 %v5319, %v5315
    %v5644 = vpack.c.b16 %v5320, %v5316
    %v5645 = vpack.c.b16 %v5325, %v5321
    %v5646 = vpack.c.b16 %v5326, %v5322
    %v5647 = vpack.c.b16 %v5327, %v5323
    %v5648 = vpack.c.b16 %v5328, %v5324
    %v5649 = vpack.c.b16 %v5333, %v5329
    %v5650 = vpack.c.b16 %v5334, %v5330
    %v5651 = vpack.c.b16 %v5335, %v5331
    %v5652 = vpack.c.b16 %v5336, %v5332
    %v5653 = vpack.c.b16 %v5341, %v5337
    %v5654 = vpack.c.b16 %v5342, %v5338
    %v5655 = vpack.c.b16 %v5343, %v5339
    %v5656 = vpack.c.b16 %v5344, %v5340
    %v5657 = vpack.c.b16 %v5349, %v5345
    %v5658 = vpack.c.b16 %v5350, %v5346
    %v5659 = vpack.c.b16 %v5351, %v5347
    %v5660 = vpack.c.b16 %v5352, %v5348
    %v5661 = vpack.c.b16 %v5357, %v5353
    %v5662 = vpack.c.b16 %v5358, %v5354
    %v5663 = vpack.c.b16 %v5359, %v5355
    %v5664 = vpack.c.b16 %v5360, %v5356
    %v5665 = vpack.c.b16 %v5365, %v5361
    %v5666 = vpack.c.b16 %v5366, %v5362
    %v5667 = vpack.c.b16 %v5367, %v5363
    %v5668 = vpack.c.b16 %v5368, %v5364
    %v5669 = vpack.c.b16 %v5373, %v5369
    %v5670 = vpack.c.b16 %v5374, %v5370
    %v5671 = vpack.c.b16 %v5375, %v5371
    %v5672 = vpack.c.b16 %v5376, %v5372
    %v5673 = vpack.c.b16 %v5381, %v5377
    %v5674 = vpack.c.b16 %v5382, %v5378
    %v5675 = vpack.c.b16 %v5383, %v5379
    %v5676 = vpack.c.b16 %v5384, %v5380
    %v5677 = vpack.c.b16 %v5389, %v5385
    %v5678 = vpack.c.b16 %v5390, %v5386
    %v5679 = vpack.c.b16 %v5391, %v5387
    %v5680 = vpack.c.b16 %v5392, %v5388
    %v5681 = vpack.c.b16 %v5397, %v5393
    %v5682 = vpack.c.b16 %v5398, %v5394
    %v5683 = vpack.c.b16 %v5399, %v5395
    %v5684 = vpack.c.b16 %v5400, %v5396
    %v5685 = vpack.c.b16 %v5405, %v5401
    %v5686 = vpack.c.b16 %v5406, %v5402
    %v5687 = vpack.c.b16 %v5407, %v5403
    %v5688 = vpack.c.b16 %v5408, %v5404
    %v5689 = vpack.c.b16 %v5413, %v5409
    %v5690 = vpack.c.b16 %v5414, %v5410
    %v5691 = vpack.c.b16 %v5415, %v5411
    %v5692 = vpack.c.b16 %v5416, %v5412
    %v5693 = vpack.c.b16 %v5421, %v5417
    %v5694 = vpack.c.b16 %v5422, %v5418
    %v5695 = vpack.c.b16 %v5423, %v5419
    %v5696 = vpack.c.b16 %v5424, %v5420
    %v5697 = vpack.c.b16 %v5429, %v5425
    %v5698 = vpack.c.b16 %v5430, %v5426
    %v5699 = vpack.c.b16 %v5431, %v5427
    %v5700 = vpack.c.b16 %v5432, %v5428
    %v5701 = vpack.c.b16 %v5437, %v5433
    %v5702 = vpack.c.b16 %v5438, %v5434
    %v5703 = vpack.c.b16 %v5439, %v5435
    %v5704 = vpack.c.b16 %v5440, %v5436
    %v5705 = vpack.c.b16 %v5445, %v5441
    %v5706 = vpack.c.b16 %v5446, %v5442
    %v5707 = vpack.c.b16 %v5447, %v5443
    %v5708 = vpack.c.b16 %v5448, %v5444
    %v5709 = vpack.c.b16 %v5453, %v5449
    %v5710 = vpack.c.b16 %v5454, %v5450
    %v5711 = vpack.c.b16 %v5455, %v5451
    %v5712 = vpack.c.b16 %v5456, %v5452
    %5969 = vmatprep.subr.bf16.mxu0 %v5458
    %5970 = vmatpush1.bf16.msra.mxu0 %v5457
    %5971 = vmatprep.subr.bf16.mxu0 %v5462
    %5972 = vmatpush1.bf16.msra.mxu0 %v5461
    %5973 = vmatprep.subr.bf16.mxu0 %v5466
    %5974 = vmatpush1.bf16.msra.mxu0 %v5465
    %5975 = vmatprep.subr.bf16.mxu0 %v5470
    %5976 = vmatpush1.bf16.msra.mxu0 %v5469
    %5977 = vmatprep.subr.bf16.mxu0 %v5474
    %5978 = vmatpush1.bf16.msra.mxu0 %v5473
    %5979 = vmatprep.subr.bf16.mxu0 %v5478
    %5980 = vmatpush1.bf16.msra.mxu0 %v5477
    %5981 = vmatprep.subr.bf16.mxu0 %v5482
    %5982 = vmatpush1.bf16.msra.mxu0 %v5481
    %5983 = vmatprep.subr.bf16.mxu0 %v5486
    %5984 = vmatpush1.bf16.msra.mxu0 %v5485
    %5985 = vmatprep.subr.bf16.mxu0 %v5490
    %5986 = vmatpush1.bf16.msra.mxu0 %v5489
    %5987 = vmatprep.subr.bf16.mxu0 %v5494
    %5988 = vmatpush1.bf16.msra.mxu0 %v5493
    %5989 = vmatprep.subr.bf16.mxu0 %v5498
    %5990 = vmatpush1.bf16.msra.mxu0 %v5497
    %5991 = vmatprep.subr.bf16.mxu0 %v5502
    %5992 = vmatpush1.bf16.msra.mxu0 %v5501
    %5993 = vmatprep.subr.bf16.mxu0 %v5506
    %5994 = vmatpush1.bf16.msra.mxu0 %v5505
    %5995 = vmatprep.subr.bf16.mxu0 %v5510
    %5996 = vmatpush1.bf16.msra.mxu0 %v5509
    %5997 = vmatprep.subr.bf16.mxu0 %v5514
    %5998 = vmatpush1.bf16.msra.mxu0 %v5513
    %5999 = vmatprep.subr.bf16.mxu0 %v5518
    %6000 = vmatpush1.bf16.msra.mxu0 %v5517
    %6001 = vmatprep.mubr.bf16.mxu0 %v4404
    %6002 = vmatmul.mubr.bf16.gmra.mrb[0].mxu0 %v4403
    %v6003 = vpop.f32.mrb[0].mxu0
    %v6004 = vadd.f32 %v4672, %v6003
    %v6005 = vpop.f32.mrb[0].mxu0
    %v6006 = vadd.f32 %v4676, %v6005
    %v6007 = vpop.f32.mrb[0].mxu0
    %v6008 = vadd.f32 %v4672, %v6007
    %v6009 = vpop.f32.mrb[0].mxu0
    %v6010 = vadd.f32 %v4676, %v6009
    %6011 = vdwg.mxu0
    %6012 = vmatprep.subr.bf16.mxu0 %v5522
    %6013 = vmatpush1.bf16.msra.mxu0 %v5521
    %6014 = vmatprep.subr.bf16.mxu0 %v5526
    %6015 = vmatpush1.bf16.msra.mxu0 %v5525
    %6016 = vmatprep.subr.bf16.mxu0 %v5530
    %6017 = vmatpush1.bf16.msra.mxu0 %v5529
    %6018 = vmatprep.subr.bf16.mxu0 %v5534
    %6019 = vmatpush1.bf16.msra.mxu0 %v5533
    %6020 = vmatprep.subr.bf16.mxu0 %v5538
    %6021 = vmatpush1.bf16.msra.mxu0 %v5537
    %6022 = vmatprep.subr.bf16.mxu0 %v5542
    %6023 = vmatpush1.bf16.msra.mxu0 %v5541
    %6024 = vmatprep.subr.bf16.mxu0 %v5546
    %6025 = vmatpush1.bf16.msra.mxu0 %v5545
    %6026 = vmatprep.subr.bf16.mxu0 %v5550
    %6027 = vmatpush1.bf16.msra.mxu0 %v5549
    %6028 = vmatprep.subr.bf16.mxu0 %v5554
    %6029 = vmatpush1.bf16.msra.mxu0 %v5553
    %6030 = vmatprep.subr.bf16.mxu0 %v5558
    %6031 = vmatpush1.bf16.msra.mxu0 %v5557
    %6032 = vmatprep.subr.bf16.mxu0 %v5562
    %6033 = vmatpush1.bf16.msra.mxu0 %v5561
    %6034 = vmatprep.subr.bf16.mxu0 %v5566
    %6035 = vmatpush1.bf16.msra.mxu0 %v5565
    %6036 = vmatprep.subr.bf16.mxu0 %v5570
    %6037 = vmatpush1.bf16.msra.mxu0 %v5569
    %6038 = vmatprep.subr.bf16.mxu0 %v5574
    %6039 = vmatpush1.bf16.msra.mxu0 %v5573
    %6040 = vmatprep.subr.bf16.mxu0 %v5578
    %6041 = vmatpush1.bf16.msra.mxu0 %v5577
    %6042 = vmatprep.subr.bf16.mxu0 %v5582
    %6043 = vmatpush1.bf16.msra.mxu0 %v5581
    %6044 = vmatprep.mubr.bf16.mxu0 %v4406
    %6045 = vmatmul.mubr.bf16.gmra.mrb[0].mxu0 %v4405
    %v6046 = vpop.f32.mrb[0].mxu0
    %v6047 = vadd.f32 %v6004, %v6046
    %v6048 = vpop.f32.mrb[0].mxu0
    %v6049 = vadd.f32 %v6006, %v6048
    %v6050 = vpop.f32.mrb[0].mxu0
    %v6051 = vadd.f32 %v6008, %v6050
    %v6052 = vpop.f32.mrb[0].mxu0
    %v6053 = vadd.f32 %v6010, %v6052
    %6054 = vdwg.mxu0
    %6055 = vmatprep.subr.bf16.mxu0 %v5586
    %6056 = vmatpush1.bf16.msra.mxu0 %v5585
    %6057 = vmatprep.subr.bf16.mxu0 %v5590
    %6058 = vmatpush1.bf16.msra.mxu0 %v5589
    %6059 = vmatprep.subr.bf16.mxu0 %v5594
    %6060 = vmatpush1.bf16.msra.mxu0 %v5593
    %6061 = vmatprep.subr.bf16.mxu0 %v5598
    %6062 = vmatpush1.bf16.msra.mxu0 %v5597
    %6063 = vmatprep.subr.bf16.mxu0 %v5602
    %6064 = vmatpush1.bf16.msra.mxu0 %v5601
    %6065 = vmatprep.subr.bf16.mxu0 %v5606
    %6066 = vmatpush1.bf16.msra.mxu0 %v5605
    %6067 = vmatprep.subr.bf16.mxu0 %v5610
    %6068 = vmatpush1.bf16.msra.mxu0 %v5609
    %6069 = vmatprep.subr.bf16.mxu0 %v5614
    %6070 = vmatpush1.bf16.msra.mxu0 %v5613
    %6071 = vmatprep.subr.bf16.mxu0 %v5618
    %6072 = vmatpush1.bf16.msra.mxu0 %v5617
    %6073 = vmatprep.subr.bf16.mxu0 %v5622
    %6074 = vmatpush1.bf16.msra.mxu0 %v5621
    %6075 = vmatprep.subr.bf16.mxu0 %v5626
    %6076 = vmatpush1.bf16.msra.mxu0 %v5625
    %6077 = vmatprep.subr.bf16.mxu0 %v5630
    %6078 = vmatpush1.bf16.msra.mxu0 %v5629
    %6079 = vmatprep.subr.bf16.mxu0 %v5634
    %6080 = vmatpush1.bf16.msra.mxu0 %v5633
    %6081 = vmatprep.subr.bf16.mxu0 %v5638
    %6082 = vmatpush1.bf16.msra.mxu0 %v5637
    %6083 = vmatprep.subr.bf16.mxu0 %v5642
    %6084 = vmatpush1.bf16.msra.mxu0 %v5641
    %6085 = vmatprep.subr.bf16.mxu0 %v5646
    %6086 = vmatpush1.bf16.msra.mxu0 %v5645
    %6087 = vmatprep.mubr.bf16.mxu0 %v4408
    %6088 = vmatmul.mubr.bf16.gmra.mrb[0].mxu0 %v4407
    %v6089 = vpop.f32.mrb[0].mxu0
    %v6090 = vadd.f32 %v6047, %v6089
    %v6091 = vpop.f32.mrb[0].mxu0
    %v6092 = vadd.f32 %v6049, %v6091
    %v6093 = vpop.f32.mrb[0].mxu0
    %v6094 = vadd.f32 %v6051, %v6093
    %v6095 = vpop.f32.mrb[0].mxu0
    %v6096 = vadd.f32 %v6053, %v6095
    %6097 = vdwg.mxu0
    %6098 = vmatprep.subr.bf16.mxu0 %v5650
    %6099 = vmatpush1.bf16.msra.mxu0 %v5649
    %6100 = vmatprep.subr.bf16.mxu0 %v5654
    %6101 = vmatpush1.bf16.msra.mxu0 %v5653
    %6102 = vmatprep.subr.bf16.mxu0 %v5658
    %6103 = vmatpush1.bf16.msra.mxu0 %v5657
    %6104 = vmatprep.subr.bf16.mxu0 %v5662
    %6105 = vmatpush1.bf16.msra.mxu0 %v5661
    %6106 = vmatprep.subr.bf16.mxu0 %v5666
    %6107 = vmatpush1.bf16.msra.mxu0 %v5665
    %6108 = vmatprep.subr.bf16.mxu0 %v5670
    %6109 = vmatpush1.bf16.msra.mxu0 %v5669
    %6110 = vmatprep.subr.bf16.mxu0 %v5674
    %6111 = vmatpush1.bf16.msra.mxu0 %v5673
    %6112 = vmatprep.subr.bf16.mxu0 %v5678
    %6113 = vmatpush1.bf16.msra.mxu0 %v5677
    %6114 = vmatprep.subr.bf16.mxu0 %v5682
    %6115 = vmatpush1.bf16.msra.mxu0 %v5681
    %6116 = vmatprep.subr.bf16.mxu0 %v5686
    %6117 = vmatpush1.bf16.msra.mxu0 %v5685
    %6118 = vmatprep.subr.bf16.mxu0 %v5690
    %6119 = vmatpush1.bf16.msra.mxu0 %v5689
    %6120 = vmatprep.subr.bf16.mxu0 %v5694
    %6121 = vmatpush1.bf16.msra.mxu0 %v5693
    %6122 = vmatprep.subr.bf16.mxu0 %v5698
    %6123 = vmatpush1.bf16.msra.mxu0 %v5697
    %6124 = vmatprep.subr.bf16.mxu0 %v5702
    %6125 = vmatpush1.bf16.msra.mxu0 %v5701
    %6126 = vmatprep.subr.bf16.mxu0 %v5706
    %6127 = vmatpush1.bf16.msra.mxu0 %v5705
    %6128 = vmatprep.subr.bf16.mxu0 %v5710
    %6129 = vmatpush1.bf16.msra.mxu0 %v5709
    %6130 = vmatprep.mubr.bf16.mxu0 %v4410
    %6131 = vmatmul.mubr.bf16.gmra.mrb[0].mxu0 %v4409
    %v6132 = vpop.f32.mrb[0].mxu0
    %v6133 = vadd.f32 %v6090, %v6132
    %v6134 = vpop.f32.mrb[0].mxu0
    %v6135 = vadd.f32 %v6092, %v6134
    %v6136 = vpop.f32.mrb[0].mxu0
    %v6137 = vadd.f32 %v6094, %v6136
    %v6138 = vpop.f32.mrb[0].mxu0
    %v6139 = vadd.f32 %v6096, %v6138
    %6140 = vdwg.mxu0
    %6141 = vmatprep.subr.bf16.mxu0 %v5460
    %6142 = vmatpush1.bf16.msra.mxu0 %v5459
    %6143 = vmatprep.subr.bf16.mxu0 %v5464
    %6144 = vmatpush1.bf16.msra.mxu0 %v5463
    %6145 = vmatprep.subr.bf16.mxu0 %v5468
    %6146 = vmatpush1.bf16.msra.mxu0 %v5467
    %6147 = vmatprep.subr.bf16.mxu0 %v5472
    %6148 = vmatpush1.bf16.msra.mxu0 %v5471
    %6149 = vmatprep.subr.bf16.mxu0 %v5476
    %6150 = vmatpush1.bf16.msra.mxu0 %v5475
    %6151 = vmatprep.subr.bf16.mxu0 %v5480
    %6152 = vmatpush1.bf16.msra.mxu0 %v5479
    %6153 = vmatprep.subr.bf16.mxu0 %v5484
    %6154 = vmatpush1.bf16.msra.mxu0 %v5483
    %6155 = vmatprep.subr.bf16.mxu0 %v5488
    %6156 = vmatpush1.bf16.msra.mxu0 %v5487
    %6157 = vmatprep.subr.bf16.mxu0 %v5492
    %6158 = vmatpush1.bf16.msra.mxu0 %v5491
    %6159 = vmatprep.subr.bf16.mxu0 %v5496
    %6160 = vmatpush1.bf16.msra.mxu0 %v5495
    %6161 = vmatprep.subr.bf16.mxu0 %v5500
    %6162 = vmatpush1.bf16.msra.mxu0 %v5499
    %6163 = vmatprep.subr.bf16.mxu0 %v5504
    %6164 = vmatpush1.bf16.msra.mxu0 %v5503
    %6165 = vmatprep.subr.bf16.mxu0 %v5508
    %6166 = vmatpush1.bf16.msra.mxu0 %v5507
    %6167 = vmatprep.subr.bf16.mxu0 %v5512
    %6168 = vmatpush1.bf16.msra.mxu0 %v5511
    %6169 = vmatprep.subr.bf16.mxu0 %v5516
    %6170 = vmatpush1.bf16.msra.mxu0 %v5515
    %6171 = vmatprep.subr.bf16.mxu0 %v5520
    %6172 = vmatpush1.bf16.msra.mxu0 %v5519
    %6173 = vmatprep.mubr.bf16.mxu0 %v4404
    %6174 = vmatmul.mubr.bf16.gmra.mrb[0].mxu0 %v4403
    %v6175 = vpop.f32.mrb[0].mxu0
    %v6176 = vadd.f32 %v4680, %v6175
    %v6177 = vpop.f32.mrb[0].mxu0
    %v6178 = vadd.f32 %v4684, %v6177
    %v6179 = vpop.f32.mrb[0].mxu0
    %v6180 = vadd.f32 %v4680, %v6179
    %v6181 = vpop.f32.mrb[0].mxu0
    %v6182 = vadd.f32 %v4684, %v6181
    %6183 = vdwg.mxu0
    %6184 = vmatprep.subr.bf16.mxu0 %v5524
    %6185 = vmatpush1.bf16.msra.mxu0 %v5523
    %6186 = vmatprep.subr.bf16.mxu0 %v5528
    %6187 = vmatpush1.bf16.msra.mxu0 %v5527
    %6188 = vmatprep.subr.bf16.mxu0 %v5532
    %6189 = vmatpush1.bf16.msra.mxu0 %v5531
    %6190 = vmatprep.subr.bf16.mxu0 %v5536
    %6191 = vmatpush1.bf16.msra.mxu0 %v5535
    %6192 = vmatprep.subr.bf16.mxu0 %v5540
    %6193 = vmatpush1.bf16.msra.mxu0 %v5539
    %6194 = vmatprep.subr.bf16.mxu0 %v5544
    %6195 = vmatpush1.bf16.msra.mxu0 %v5543
    %6196 = vmatprep.subr.bf16.mxu0 %v5548
    %6197 = vmatpush1.bf16.msra.mxu0 %v5547
    %6198 = vmatprep.subr.bf16.mxu0 %v5552
    %6199 = vmatpush1.bf16.msra.mxu0 %v5551
    %6200 = vmatprep.subr.bf16.mxu0 %v5556
    %6201 = vmatpush1.bf16.msra.mxu0 %v5555
    %6202 = vmatprep.subr.bf16.mxu0 %v5560
    %6203 = vmatpush1.bf16.msra.mxu0 %v5559
    %6204 = vmatprep.subr.bf16.mxu0 %v5564
    %6205 = vmatpush1.bf16.msra.mxu0 %v5563
    %6206 = vmatprep.subr.bf16.mxu0 %v5568
    %6207 = vmatpush1.bf16.msra.mxu0 %v5567
    %6208 = vmatprep.subr.bf16.mxu0 %v5572
    %6209 = vmatpush1.bf16.msra.mxu0 %v5571
    %6210 = vmatprep.subr.bf16.mxu0 %v5576
    %6211 = vmatpush1.bf16.msra.mxu0 %v5575
    %6212 = vmatprep.subr.bf16.mxu0 %v5580
    %6213 = vmatpush1.bf16.msra.mxu0 %v5579
    %6214 = vmatprep.subr.bf16.mxu0 %v5584
    %6215 = vmatpush1.bf16.msra.mxu0 %v5583
    %6216 = vmatprep.mubr.bf16.mxu0 %v4406
    %6217 = vmatmul.mubr.bf16.gmra.mrb[0].mxu0 %v4405
    %v6218 = vpop.f32.mrb[0].mxu0
    %v6219 = vadd.f32 %v6176, %v6218
    %v6220 = vpop.f32.mrb[0].mxu0
    %v6221 = vadd.f32 %v6178, %v6220
    %v6222 = vpop.f32.mrb[0].mxu0
    %v6223 = vadd.f32 %v6180, %v6222
    %v6224 = vpop.f32.mrb[0].mxu0
    %v6225 = vadd.f32 %v6182, %v6224
    %6226 = vdwg.mxu0
    %6227 = vmatprep.subr.bf16.mxu0 %v5588
    %6228 = vmatpush1.bf16.msra.mxu0 %v5587
    %6229 = vmatprep.subr.bf16.mxu0 %v5592
    %6230 = vmatpush1.bf16.msra.mxu0 %v5591
    %6231 = vmatprep.subr.bf16.mxu0 %v5596
    %6232 = vmatpush1.bf16.msra.mxu0 %v5595
    %6233 = vmatprep.subr.bf16.mxu0 %v5600
    %6234 = vmatpush1.bf16.msra.mxu0 %v5599
    %6235 = vmatprep.subr.bf16.mxu0 %v5604
    %6236 = vmatpush1.bf16.msra.mxu0 %v5603
    %6237 = vmatprep.subr.bf16.mxu0 %v5608
    %6238 = vmatpush1.bf16.msra.mxu0 %v5607
    %6239 = vmatprep.subr.bf16.mxu0 %v5612
    %6240 = vmatpush1.bf16.msra.mxu0 %v5611
    %6241 = vmatprep.subr.bf16.mxu0 %v5616
    %6242 = vmatpush1.bf16.msra.mxu0 %v5615
    %6243 = vmatprep.subr.bf16.mxu0 %v5620
    %6244 = vmatpush1.bf16.msra.mxu0 %v5619
    %6245 = vmatprep.subr.bf16.mxu0 %v5624
    %6246 = vmatpush1.bf16.msra.mxu0 %v5623
    %6247 = vmatprep.subr.bf16.mxu0 %v5628
    %6248 = vmatpush1.bf16.msra.mxu0 %v5627
    %6249 = vmatprep.subr.bf16.mxu0 %v5632
    %6250 = vmatpush1.bf16.msra.mxu0 %v5631
    %6251 = vmatprep.subr.bf16.mxu0 %v5636
    %6252 = vmatpush1.bf16.msra.mxu0 %v5635
    %6253 = vmatprep.subr.bf16.mxu0 %v5640
    %6254 = vmatpush1.bf16.msra.mxu0 %v5639
    %6255 = vmatprep.subr.bf16.mxu0 %v5644
    %6256 = vmatpush1.bf16.msra.mxu0 %v5643
    %6257 = vmatprep.subr.bf16.mxu0 %v5648
    %6258 = vmatpush1.bf16.msra.mxu0 %v5647
    %6259 = vmatprep.mubr.bf16.mxu0 %v4408
    %6260 = vmatmul.mubr.bf16.gmra.mrb[0].mxu0 %v4407
    %v6261 = vpop.f32.mrb[0].mxu0
    %v6262 = vadd.f32 %v6219, %v6261
    %v6263 = vpop.f32.mrb[0].mxu0
    %v6264 = vadd.f32 %v6221, %v6263
    %v6265 = vpop.f32.mrb[0].mxu0
    %v6266 = vadd.f32 %v6223, %v6265
    %v6267 = vpop.f32.mrb[0].mxu0
    %v6268 = vadd.f32 %v6225, %v6267
    %6269 = vdwg.mxu0
    %6270 = vmatprep.subr.bf16.mxu0 %v5652
    %6271 = vmatpush1.bf16.msra.mxu0 %v5651
    %6272 = vmatprep.subr.bf16.mxu0 %v5656
    %6273 = vmatpush1.bf16.msra.mxu0 %v5655
    %6274 = vmatprep.subr.bf16.mxu0 %v5660
    %6275 = vmatpush1.bf16.msra.mxu0 %v5659
    %6276 = vmatprep.subr.bf16.mxu0 %v5664
    %6277 = vmatpush1.bf16.msra.mxu0 %v5663
    %6278 = vmatprep.subr.bf16.mxu0 %v5668
    %6279 = vmatpush1.bf16.msra.mxu0 %v5667
    %6280 = vmatprep.subr.bf16.mxu0 %v5672
    %6281 = vmatpush1.bf16.msra.mxu0 %v5671
    %6282 = vmatprep.subr.bf16.mxu0 %v5676
    %6283 = vmatpush1.bf16.msra.mxu0 %v5675
    %6284 = vmatprep.subr.bf16.mxu0 %v5680
    %6285 = vmatpush1.bf16.msra.mxu0 %v5679
    %6286 = vmatprep.subr.bf16.mxu0 %v5684
    %6287 = vmatpush1.bf16.msra.mxu0 %v5683
    %6288 = vmatprep.subr.bf16.mxu0 %v5688
    %6289 = vmatpush1.bf16.msra.mxu0 %v5687
    %6290 = vmatprep.subr.bf16.mxu0 %v5692
    %6291 = vmatpush1.bf16.msra.mxu0 %v5691
    %6292 = vmatprep.subr.bf16.mxu0 %v5696
    %6293 = vmatpush1.bf16.msra.mxu0 %v5695
    %6294 = vmatprep.subr.bf16.mxu0 %v5700
    %6295 = vmatpush1.bf16.msra.mxu0 %v5699
    %6296 = vmatprep.subr.bf16.mxu0 %v5704
    %6297 = vmatpush1.bf16.msra.mxu0 %v5703
    %6298 = vmatprep.subr.bf16.mxu0 %v5708
    %6299 = vmatpush1.bf16.msra.mxu0 %v5707
    %6300 = vmatprep.subr.bf16.mxu0 %v5712
    %6301 = vmatpush1.bf16.msra.mxu0 %v5711
    %6302 = vmatprep.mubr.bf16.mxu0 %v4410
    %6303 = vmatmul.mubr.bf16.gmra.mrb[0].mxu0 %v4409
    %v6304 = vpop.f32.mrb[0].mxu0
    %v6305 = vadd.f32 %v6262, %v6304
    %v6306 = vpop.f32.mrb[0].mxu0
    %v6307 = vadd.f32 %v6264, %v6306
    %v6308 = vpop.f32.mrb[0].mxu0
    %v6309 = vadd.f32 %v6266, %v6308
    %v6310 = vpop.f32.mrb[0].mxu0
    %v6311 = vadd.f32 %v6268, %v6310
    %6312 = vdwg.mxu0
    %v6313 = vmax.f32 %v6133, 0.0
    %v6314 = vmax.f32 %v6135, 0.0
    %v6315 = vmax.f32 %v6305, 0.0
    %v6316 = vmax.f32 %v6307, 0.0
    %v6317 = vmax.f32 %v6137, 0.0
    %v6318 = vmax.f32 %v6139, 0.0
    %v6319 = vmax.f32 %v6309, 0.0
    %v6320 = vmax.f32 %v6311, 0.0
    %v6321 = vpack.c.bf16 %v6317, %v6313
    %v6322 = vpack.c.bf16 %v6318, %v6314
    %v6323 = vpack.c.bf16 %v6319, %v6315
    %v6324 = vpack.c.bf16 %v6320, %v6316
    %v6325 = vld [vmem:[#allocation14] sm:$0xf]
    %v6326 = vld [vmem:[#allocation14 + $0x4] sm:$0xf]
    %v6327 = vld [vmem:[#allocation14 + $0x8] sm:$0xf]
    %v6328 = vld [vmem:[#allocation14 + $0xc] sm:$0xf]
    %v6329 = vld [vmem:[#allocation14 + $0x10] sm:$0xf]
    %v6330 = vld [vmem:[#allocation14 + $0x14] sm:$0xf]
    %v6331 = vld [vmem:[#allocation14 + $0x18] sm:$0xf]
    %v6332 = vld [vmem:[#allocation14 + $0x1c] sm:$0xf]
    %v6333 = vld [vmem:[#allocation14 + $0x20] sm:$0xf]
    %v6334 = vld [vmem:[#allocation14 + $0x24] sm:$0xf]
    %v6335 = vld [vmem:[#allocation14 + $0x28] sm:$0xf]
    %v6336 = vld [vmem:[#allocation14 + $0x2c] sm:$0xf]
    %v6337 = vld [vmem:[#allocation14 + $0x30] sm:$0xf]
    %v6338 = vld [vmem:[#allocation14 + $0x34] sm:$0xf]
    %v6339 = vld [vmem:[#allocation14 + $0x38] sm:$0xf]
    %v6340 = vld [vmem:[#allocation14 + $0x3c] sm:$0xf]
    %v6341 = vld [vmem:[#allocation14 + $0x40] sm:$0xf]
    %v6342 = vld [vmem:[#allocation14 + $0x44] sm:$0xf]
    %v6343 = vld [vmem:[#allocation14 + $0x48] sm:$0xf]
    %v6344 = vld [vmem:[#allocation14 + $0x4c] sm:$0xf]
    %v6345 = vld [vmem:[#allocation14 + $0x50] sm:$0xf]
    %v6346 = vld [vmem:[#allocation14 + $0x54] sm:$0xf]
    %v6347 = vld [vmem:[#allocation14 + $0x58] sm:$0xf]
    %v6348 = vld [vmem:[#allocation14 + $0x5c] sm:$0xf]
    %v6349 = vld [vmem:[#allocation14 + $0x60] sm:$0xf]
    %v6350 = vld [vmem:[#allocation14 + $0x64] sm:$0xf]
    %v6351 = vld [vmem:[#allocation14 + $0x68] sm:$0xf]
    %v6352 = vld [vmem:[#allocation14 + $0x6c] sm:$0xf]
    %v6353 = vld [vmem:[#allocation14 + $0x70] sm:$0xf]
    %v6354 = vld [vmem:[#allocation14 + $0x74] sm:$0xf]
    %v6355 = vld [vmem:[#allocation14 + $0x78] sm:$0xf]
    %v6356 = vld [vmem:[#allocation14 + $0x7c] sm:$0xf]
    %v6357 = vld [vmem:[#allocation14 + $0x80] sm:$0xf]
    %v6358 = vld [vmem:[#allocation14 + $0x84] sm:$0xf]
    %v6359 = vld [vmem:[#allocation14 + $0x88] sm:$0xf]
    %v6360 = vld [vmem:[#allocation14 + $0x8c] sm:$0xf]
    %v6361 = vld [vmem:[#allocation14 + $0x90] sm:$0xf]
    %v6362 = vld [vmem:[#allocation14 + $0x94] sm:$0xf]
    %v6363 = vld [vmem:[#allocation14 + $0x98] sm:$0xf]
    %v6364 = vld [vmem:[#allocation14 + $0x9c] sm:$0xf]
    %v6365 = vld [vmem:[#allocation14 + $0xa0] sm:$0xf]
    %v6366 = vld [vmem:[#allocation14 + $0xa4] sm:$0xf]
    %v6367 = vld [vmem:[#allocation14 + $0xa8] sm:$0xf]
    %v6368 = vld [vmem:[#allocation14 + $0xac] sm:$0xf]
    %v6369 = vld [vmem:[#allocation14 + $0xb0] sm:$0xf]
    %v6370 = vld [vmem:[#allocation14 + $0xb4] sm:$0xf]
    %v6371 = vld [vmem:[#allocation14 + $0xb8] sm:$0xf]
    %v6372 = vld [vmem:[#allocation14 + $0xbc] sm:$0xf]
    %v6373 = vld [vmem:[#allocation14 + $0xc0] sm:$0xf]
    %v6374 = vld [vmem:[#allocation14 + $0xc4] sm:$0xf]
    %v6375 = vld [vmem:[#allocation14 + $0xc8] sm:$0xf]
    %v6376 = vld [vmem:[#allocation14 + $0xcc] sm:$0xf]
    %v6377 = vld [vmem:[#allocation14 + $0xd0] sm:$0xf]
    %v6378 = vld [vmem:[#allocation14 + $0xd4] sm:$0xf]
    %v6379 = vld [vmem:[#allocation14 + $0xd8] sm:$0xf]
    %v6380 = vld [vmem:[#allocation14 + $0xdc] sm:$0xf]
    %v6381 = vld [vmem:[#allocation14 + $0xe0] sm:$0xf]
    %v6382 = vld [vmem:[#allocation14 + $0xe4] sm:$0xf]
    %v6383 = vld [vmem:[#allocation14 + $0xe8] sm:$0xf]
    %v6384 = vld [vmem:[#allocation14 + $0xec] sm:$0xf]
    %v6385 = vld [vmem:[#allocation14 + $0xf0] sm:$0xf]
    %v6386 = vld [vmem:[#allocation14 + $0xf4] sm:$0xf]
    %v6387 = vld [vmem:[#allocation14 + $0xf8] sm:$0xf]
    %v6388 = vld [vmem:[#allocation14 + $0xfc] sm:$0xf]
    %v6389 = vld [vmem:[#allocation16] sm:$0x1]
    %v6391 = vlaneseq
    %v6392 = vshrl.u32 %v6391, 7
    %v6393 = vsub.s32 0, %v6392
    %v6394 = vrot.slane %v6389, %v6393
    %v6460 = vunpack.c.l.b16 %v6325
    %v6461 = vunpack.c.l.b16 %v6326
    %v6462 = vunpack.c.l.b16 %v6327
    %v6463 = vunpack.c.l.b16 %v6328
    %v6464 = vunpack.c.l.b16 %v6329
    %v6465 = vunpack.c.l.b16 %v6330
    %v6466 = vunpack.c.l.b16 %v6331
    %v6467 = vunpack.c.l.b16 %v6332
    %v6468 = vunpack.c.l.b16 %v6333
    %v6469 = vunpack.c.l.b16 %v6334
    %v6470 = vunpack.c.l.b16 %v6335
    %v6471 = vunpack.c.l.b16 %v6336
    %v6472 = vunpack.c.l.b16 %v6337
    %v6473 = vunpack.c.l.b16 %v6338
    %v6474 = vunpack.c.l.b16 %v6339
    %v6475 = vunpack.c.l.b16 %v6340
    %v6476 = vunpack.c.l.b16 %v6341
    %v6477 = vunpack.c.l.b16 %v6342
    %v6478 = vunpack.c.l.b16 %v6343
    %v6479 = vunpack.c.l.b16 %v6344
    %v6480 = vunpack.c.l.b16 %v6345
    %v6481 = vunpack.c.l.b16 %v6346
    %v6482 = vunpack.c.l.b16 %v6347
    %v6483 = vunpack.c.l.b16 %v6348
    %v6484 = vunpack.c.l.b16 %v6349
    %v6485 = vunpack.c.l.b16 %v6350
    %v6486 = vunpack.c.l.b16 %v6351
    %v6487 = vunpack.c.l.b16 %v6352
    %v6488 = vunpack.c.l.b16 %v6353
    %v6489 = vunpack.c.l.b16 %v6354
    %v6490 = vunpack.c.l.b16 %v6355
    %v6491 = vunpack.c.l.b16 %v6356
    %v6492 = vunpack.c.l.b16 %v6357
    %v6493 = vunpack.c.l.b16 %v6358
    %v6494 = vunpack.c.l.b16 %v6359
    %v6495 = vunpack.c.l.b16 %v6360
    %v6496 = vunpack.c.l.b16 %v6361
    %v6497 = vunpack.c.l.b16 %v6362
    %v6498 = vunpack.c.l.b16 %v6363
    %v6499 = vunpack.c.l.b16 %v6364
    %v6500 = vunpack.c.l.b16 %v6365
    %v6501 = vunpack.c.l.b16 %v6366
    %v6502 = vunpack.c.l.b16 %v6367
    %v6503 = vunpack.c.l.b16 %v6368
    %v6504 = vunpack.c.l.b16 %v6369
    %v6505 = vunpack.c.l.b16 %v6370
    %v6506 = vunpack.c.l.b16 %v6371
    %v6507 = vunpack.c.l.b16 %v6372
    %v6508 = vunpack.c.l.b16 %v6373
    %v6509 = vunpack.c.l.b16 %v6374
    %v6510 = vunpack.c.l.b16 %v6375
    %v6511 = vunpack.c.l.b16 %v6376
    %v6512 = vunpack.c.l.b16 %v6377
    %v6513 = vunpack.c.l.b16 %v6378
    %v6514 = vunpack.c.l.b16 %v6379
    %v6515 = vunpack.c.l.b16 %v6380
    %v6516 = vunpack.c.l.b16 %v6381
    %v6517 = vunpack.c.l.b16 %v6382
    %v6518 = vunpack.c.l.b16 %v6383
    %v6519 = vunpack.c.l.b16 %v6384
    %v6520 = vunpack.c.l.b16 %v6385
    %v6521 = vunpack.c.l.b16 %v6386
    %v6522 = vunpack.c.l.b16 %v6387
    %v6523 = vunpack.c.l.b16 %v6388
    %v6524 = vpack.c.b16 %v6461, %v6460
    %v6525 = vpack.c.b16 %v6463, %v6462
    %v6526 = vpack.c.b16 %v6465, %v6464
    %v6527 = vpack.c.b16 %v6467, %v6466
    %v6528 = vpack.c.b16 %v6469, %v6468
    %v6529 = vpack.c.b16 %v6471, %v6470
    %v6530 = vpack.c.b16 %v6473, %v6472
    %v6531 = vpack.c.b16 %v6475, %v6474
    %v6532 = vpack.c.b16 %v6477, %v6476
    %v6533 = vpack.c.b16 %v6479, %v6478
    %v6534 = vpack.c.b16 %v6481, %v6480
    %v6535 = vpack.c.b16 %v6483, %v6482
    %v6536 = vpack.c.b16 %v6485, %v6484
    %v6537 = vpack.c.b16 %v6487, %v6486
    %v6538 = vpack.c.b16 %v6489, %v6488
    %v6539 = vpack.c.b16 %v6491, %v6490
    %v6540 = vpack.c.b16 %v6493, %v6492
    %v6541 = vpack.c.b16 %v6495, %v6494
    %v6542 = vpack.c.b16 %v6497, %v6496
    %v6543 = vpack.c.b16 %v6499, %v6498
    %v6544 = vpack.c.b16 %v6501, %v6500
    %v6545 = vpack.c.b16 %v6503, %v6502
    %v6546 = vpack.c.b16 %v6505, %v6504
    %v6547 = vpack.c.b16 %v6507, %v6506
    %v6548 = vpack.c.b16 %v6509, %v6508
    %v6549 = vpack.c.b16 %v6511, %v6510
    %v6550 = vpack.c.b16 %v6513, %v6512
    %v6551 = vpack.c.b16 %v6515, %v6514
    %v6552 = vpack.c.b16 %v6517, %v6516
    %v6553 = vpack.c.b16 %v6519, %v6518
    %v6554 = vpack.c.b16 %v6521, %v6520
    %v6555 = vpack.c.b16 %v6523, %v6522
    %6588 = vmatprep.subr.bf16.mxu0 0
    %6589 = vmatpush1.bf16.msra.mxu0 %v6524
    %6590 = vmatprep.subr.bf16.mxu0 0
    %6591 = vmatpush1.bf16.msra.mxu0 %v6525
    %6592 = vmatprep.subr.bf16.mxu0 0
    %6593 = vmatpush1.bf16.msra.mxu0 %v6526
    %6594 = vmatprep.subr.bf16.mxu0 0
    %6595 = vmatpush1.bf16.msra.mxu0 %v6527
    %6596 = vmatprep.subr.bf16.mxu0 0
    %6597 = vmatpush1.bf16.msra.mxu0 %v6528
    %6598 = vmatprep.subr.bf16.mxu0 0
    %6599 = vmatpush1.bf16.msra.mxu0 %v6529
    %6600 = vmatprep.subr.bf16.mxu0 0
    %6601 = vmatpush1.bf16.msra.mxu0 %v6530
    %6602 = vmatprep.subr.bf16.mxu0 0
    %6603 = vmatpush1.bf16.msra.mxu0 %v6531
    %6604 = vmatprep.subr.bf16.mxu0 0
    %6605 = vmatpush1.bf16.msra.mxu0 %v6532
    %6606 = vmatprep.subr.bf16.mxu0 0
    %6607 = vmatpush1.bf16.msra.mxu0 %v6533
    %6608 = vmatprep.subr.bf16.mxu0 0
    %6609 = vmatpush1.bf16.msra.mxu0 %v6534
    %6610 = vmatprep.subr.bf16.mxu0 0
    %6611 = vmatpush1.bf16.msra.mxu0 %v6535
    %6612 = vmatprep.subr.bf16.mxu0 0
    %6613 = vmatpush1.bf16.msra.mxu0 %v6536
    %6614 = vmatprep.subr.bf16.mxu0 0
    %6615 = vmatpush1.bf16.msra.mxu0 %v6537
    %6616 = vmatprep.subr.bf16.mxu0 0
    %6617 = vmatpush1.bf16.msra.mxu0 %v6538
    %6618 = vmatprep.subr.bf16.mxu0 0
    %6619 = vmatpush1.bf16.msra.mxu0 %v6539
    %6620 = vmatprep.mubr.bf16.mxu0 %v6322
    %6621 = vmatmul.mubr.bf16.gmra.mrb[0].mxu0 %v6321
    %v6622 = vpop.f32.mrb[0].mxu0
    %v6623 = vadd.f32 %v6394, %v6622
    %v6624 = vpop.f32.mrb[0].mxu0
    %v6625 = vpop.f32.mrb[0].mxu0
    %v6626 = vadd.f32 %v6394, %v6625
    %v6627 = vpop.f32.mrb[0].mxu0
    %6628 = vdwg.mxu0
    %6629 = vmatprep.subr.bf16.mxu0 0
    %6630 = vmatpush1.bf16.msra.mxu0 %v6540
    %6631 = vmatprep.subr.bf16.mxu0 0
    %6632 = vmatpush1.bf16.msra.mxu0 %v6541
    %6633 = vmatprep.subr.bf16.mxu0 0
    %6634 = vmatpush1.bf16.msra.mxu0 %v6542
    %6635 = vmatprep.subr.bf16.mxu0 0
    %6636 = vmatpush1.bf16.msra.mxu0 %v6543
    %6637 = vmatprep.subr.bf16.mxu0 0
    %6638 = vmatpush1.bf16.msra.mxu0 %v6544
    %6639 = vmatprep.subr.bf16.mxu0 0
    %6640 = vmatpush1.bf16.msra.mxu0 %v6545
    %6641 = vmatprep.subr.bf16.mxu0 0
    %6642 = vmatpush1.bf16.msra.mxu0 %v6546
    %6643 = vmatprep.subr.bf16.mxu0 0
    %6644 = vmatpush1.bf16.msra.mxu0 %v6547
    %6645 = vmatprep.subr.bf16.mxu0 0
    %6646 = vmatpush1.bf16.msra.mxu0 %v6548
    %6647 = vmatprep.subr.bf16.mxu0 0
    %6648 = vmatpush1.bf16.msra.mxu0 %v6549
    %6649 = vmatprep.subr.bf16.mxu0 0
    %6650 = vmatpush1.bf16.msra.mxu0 %v6550
    %6651 = vmatprep.subr.bf16.mxu0 0
    %6652 = vmatpush1.bf16.msra.mxu0 %v6551
    %6653 = vmatprep.subr.bf16.mxu0 0
    %6654 = vmatpush1.bf16.msra.mxu0 %v6552
    %6655 = vmatprep.subr.bf16.mxu0 0
    %6656 = vmatpush1.bf16.msra.mxu0 %v6553
    %6657 = vmatprep.subr.bf16.mxu0 0
    %6658 = vmatpush1.bf16.msra.mxu0 %v6554
    %6659 = vmatprep.subr.bf16.mxu0 0
    %6660 = vmatpush1.bf16.msra.mxu0 %v6555
    %6661 = vmatprep.mubr.bf16.mxu0 %v6324
    %6662 = vmatmul.mubr.bf16.gmra.mrb[0].mxu0 %v6323
    %v6663 = vpop.f32.mrb[0].mxu0
    %v6664 = vadd.f32 %v6623, %v6663
    %v6665 = vpop.f32.mrb[0].mxu0
    %v6666 = vpop.f32.mrb[0].mxu0
    %v6667 = vadd.f32 %v6626, %v6666
    %v6668 = vpop.f32.mrb[0].mxu0
    %6669 = vdwg.mxu0
    %6670 = vst [vmem:[#allocation17] sm:$0xff] %v6664
    %6671 = vst [vmem:[#allocation17 + $0x8] sm:$0xff] %v6667
    // Predicated region
    $region74: #{tpu_custom_call.1} parent=1 // pred_check
      _
    $region75: #{tpu_custom_call.1} parent=1 // pred_check_branch
      %6673 = sbr.rel (0) target = $region77
    $region76: #{tpu_custom_call.1} parent=1 // pred_region
      %s6675 = ssub.s32 256, 256
      %6676 = vsyncadd [#allocation4], %s6675
      %s6677 = sshll.u32 [#allocation17], 4
      %s6678 = int_to_ptr.vmem [resolvable:$true] %s6677
      %6683 = dma.vmem_to_hbm [thread:$0]  %s6678, 256, %s9, [#allocation4], 128, 128, 8
    $region77: #{tpu_custom_call.1} parent=1 // pred_fallthru
      _
    // Predicated region
    $region78: #{tpu_custom_call.1} parent=1 // pred_check
      _
    $region79: #{tpu_custom_call.1} parent=1 // pred_check_branch
      %6685 = sbr.rel (0) target = $region81
    $region80: #{tpu_custom_call.1} parent=1 // pred_region
      %6686 = dma.done [#allocation4], 256
    $region81: #{tpu_custom_call.1} parent=1 // pred_fallthru
      _
    %6687 = vsyncpa [#allocation3], 1
    %6688 = vsyncpa [#allocation6], 1
    %6689 = vsyncpa [#allocation9], 1
    %6690 = vsyncpa [#allocation12], 1
    %6691 = vsyncpa [#allocation15], 1
    %6692 = vsyncpa [#allocation4], 1

// kernel: tpu_custom_call.1
$region0: #{tpu_custom_call.1}
  #allocation0 [shape = 'u32[]', space=smem, size = 0x4, offset = 0x4, fixed_abs, tag = 'smem constant byte address 0x4 - core index']
  #allocation1 [shape = 'u32[144,128]{1,0:T(1,128)}', space=vmem, size = 0x12000, scoped, tag = 'internal scratch']
  %s0 = inlined_call_operand.hbm [shape: f32[16,64], index: 0, kind: input, shape index: {}]
  %s1 = inlined_call_operand.hbm [shape: bf16[64,1024], index: 1, kind: input, shape index: {}]
  %s2 = inlined_call_operand.hbm [shape: f32[1,1024], index: 2, kind: input, shape index: {}]
  %s3 = inlined_call_operand.hbm [shape: bf16[1024,1024], index: 3, kind: input, shape index: {}]
  %s4 = inlined_call_operand.hbm [shape: f32[1,1024], index: 4, kind: input, shape index: {}]
  %s5 = inlined_call_operand.hbm [shape: bf16[1024,512], index: 5, kind: input, shape index: {}]
  %s6 = inlined_call_operand.hbm [shape: f32[1,512], index: 6, kind: input, shape index: {}]
  %s7 = inlined_call_operand.hbm [shape: bf16[512,128], index: 7, kind: input, shape index: {}]
  %s8 = inlined_call_operand.hbm [shape: f32[1,128], index: 8, kind: input, shape index: {}]
  %s9 = inlined_call_operand.hbm [shape: f32[16,128], index: 9, kind: output, shape index: {}]
  %s10 = sld [smem:[#allocation0]]
  $region82: #{tpu_custom_call.1} parent=0
    _
  %s12 = ssub.s32 1, %s10
  %s13 = scalar_select 0, %s12, %s10
  $region1: #{tpu_custom_call.1} parent=0
    #allocation2 [shape = 'u8[8192]{0}', space=vmem, size = 0x2000, scoped, tag = 'input window, operand 0, single buffered']
    #allocation3 [shape = 's32[1]{0}', space=sflag, size = 0x4, scoped, tag = 'scoped memory for tpu_custom_call.1']
    #allocation4 [shape = 's32[1]{0}', space=sflag, size = 0x4, scoped, tag = 'scoped memory for tpu_custom_call.1']
    #allocation5 [shape = 'u8[131072]{0}', space=vmem, size = 0x20000, scoped, tag = 'input window, operand 1, single buffered']
    #allocation6 [shape = 's32[1]{0}', space=sflag, size = 0x4, scoped, tag = 'scoped memory for tpu_custom_call.1']
    #allocation7 [shape = 'u8[4096]{0}', space=vmem, size = 0x1000, scoped, tag = 'input window, operand 2, single buffered']
    #allocation8 [shape = 'u8[2097152]{0}', space=vmem, size = 0x200000, scoped, tag = 'input window, operand 3, single buffered']
    #allocation9 [shape = 's32[1]{0}', space=sflag, size = 0x4, scoped, tag = 'scoped memory for tpu_custom_call.1']
    #allocation10 [shape = 'u8[4096]{0}', space=vmem, size = 0x1000, scoped, tag = 'input window, operand 4, single buffered']
    #allocation11 [shape = 'u8[1048576]{0}', space=vmem, size = 0x100000, scoped, tag = 'input window, operand 5, single buffered']
    #allocation12 [shape = 's32[1]{0}', space=sflag, size = 0x4, scoped, tag = 'scoped memory for tpu_custom_call.1']
    #allocation13 [shape = 'u8[2048]{0}', space=vmem, size = 0x800, scoped, tag = 'input window, operand 6, single buffered']
    #allocation14 [shape = 'u8[131072]{0}', space=vmem, size = 0x20000, scoped, tag = 'input window, operand 7, single buffered']
    #allocation15 [shape = 's32[1]{0}', space=sflag, size = 0x4, scoped, tag = 'scoped memory for tpu_custom_call.1']
    #allocation16 [shape = 'u8[512]{0}', space=vmem, size = 0x400, scoped, tag = 'input window, operand 8, single buffered']
    #allocation17 [shape = 'u8[8192]{0}', space=vmem, size = 0x2000, scoped, tag = 'output window, operand 0, single buffered']
    %14 = vsyncpa [#allocation3], 0
    %15 = vsyncpa [#allocation6], 0
    %16 = vsyncpa [#allocation9], 0
    %17 = vsyncpa [#allocation12], 0
    %18 = vsyncpa [#allocation15], 0
    %19 = vsyncpa [#allocation4], 0
    // Predicated region
    $region2: #{tpu_custom_call.1} parent=1 // pred_check
      _
    $region3: #{tpu_custom_call.1} parent=1 // pred_check_branch
      %21 = sbr.rel (0) target = $region5
    $region4: #{tpu_custom_call.1} parent=1 // pred_region
      %s23 = ssub.s32 256, 256
      %24 = vsyncadd [#allocation3], %s23
      %s25 = sshll.u32 [#allocation2], 4
      %s26 = int_to_ptr.vmem [resolvable:$true] %s25
      %31 = dma.hbm_to_vmem [thread:$0]  %s0, 256, %s26, [#allocation3], 128, 128, 8
    $region5: #{tpu_custom_call.1} parent=1 // pred_fallthru
      _
    // Predicated region
    $region6: #{tpu_custom_call.1} parent=1 // pred_check
      _
    $region7: #{tpu_custom_call.1} parent=1 // pred_check_branch
      %33 = sbr.rel (0) target = $region9
    $region8: #{tpu_custom_call.1} parent=1 // pred_region
      %s35 = ssub.s32 4096, 4096
      %36 = vsyncadd [#allocation6], %s35
      %s37 = sshll.u32 [#allocation5], 4
      %s38 = int_to_ptr.vmem [resolvable:$true] %s37
      %43 = dma.hbm_to_vmem [thread:$0]  %s1, 4096, %s38, [#allocation6], 512, 512, 32
    $region9: #{tpu_custom_call.1} parent=1 // pred_fallthru
      _
    // Predicated region
    $region10: #{tpu_custom_call.1} parent=1 // pred_check
      _
    $region11: #{tpu_custom_call.1} parent=1 // pred_check_branch
      %45 = sbr.rel (0) target = $region13
    $region12: #{tpu_custom_call.1} parent=1 // pred_region
      %s47 = ssub.s32 128, 128
      %48 = vsyncadd [#allocation6], %s47
      %s50 = sshll.u32 [#allocation7], 4
      %s51 = int_to_ptr.vmem [resolvable:$true] %s50
      %53 = dma.hbm_to_vmem [thread:$0]  %s2, 128, %s51, [#allocation6]
    $region13: #{tpu_custom_call.1} parent=1 // pred_fallthru
      _
    // Predicated region
    $region14: #{tpu_custom_call.1} parent=1 // pred_check
      _
    $region15: #{tpu_custom_call.1} parent=1 // pred_check_branch
      %55 = sbr.rel (0) target = $region17
    $region16: #{tpu_custom_call.1} parent=1 // pred_region
      %s57 = ssub.s32 65536, 65536
      %58 = vsyncadd [#allocation9], %s57
      %s59 = sshll.u32 [#allocation8], 4
      %s60 = int_to_ptr.vmem [resolvable:$true] %s59
      %65 = dma.hbm_to_vmem [thread:$0]  %s3, 65536, %s60, [#allocation9], 512, 512, 32
    $region17: #{tpu_custom_call.1} parent=1 // pred_fallthru
      _
    // Predicated region
    $region18: #{tpu_custom_call.1} parent=1 // pred_check
      _
    $region19: #{tpu_custom_call.1} parent=1 // pred_check_branch
      %67 = sbr.rel (0) target = $region21
    $region20: #{tpu_custom_call.1} parent=1 // pred_region
      %s69 = ssub.s32 128, 128
      %70 = vsyncadd [#allocation9], %s69
      %s72 = sshll.u32 [#allocation10], 4
      %s73 = int_to_ptr.vmem [resolvable:$true] %s72
      %75 = dma.hbm_to_vmem [thread:$0]  %s4, 128, %s73, [#allocation9]
    $region21: #{tpu_custom_call.1} parent=1 // pred_fallthru
      _
    // Predicated region
    $region22: #{tpu_custom_call.1} parent=1 // pred_check
      _
    $region23: #{tpu_custom_call.1} parent=1 // pred_check_branch
      %77 = sbr.rel (0) target = $region25
    $region24: #{tpu_custom_call.1} parent=1 // pred_region
      %s79 = ssub.s32 32768, 32768
      %80 = vsyncadd [#allocation12], %s79
      %s81 = sshll.u32 [#allocation11], 4
      %s82 = int_to_ptr.vmem [resolvable:$true] %s81
      %87 = dma.hbm_to_vmem [thread:$0]  %s5, 32768, %s82, [#allocation12], 256, 256, 16
    $region25: #{tpu_custom_call.1} parent=1 // pred_fallthru
      _
    // Predicated region
    $region26: #{tpu_custom_call.1} parent=1 // pred_check
      _
    $region27: #{tpu_custom_call.1} parent=1 // pred_check_branch
      %89 = sbr.rel (0) target = $region29
    $region28: #{tpu_custom_call.1} parent=1 // pred_region
      %s91 = ssub.s32 64, 64
      %92 = vsyncadd [#allocation12], %s91
      %s94 = sshll.u32 [#allocation13], 4
      %s95 = int_to_ptr.vmem [resolvable:$true] %s94
      %97 = dma.hbm_to_vmem [thread:$0]  %s6, 64, %s95, [#allocation12]
    $region29: #{tpu_custom_call.1} parent=1 // pred_fallthru
      _
    // Predicated region
    $region30: #{tpu_custom_call.1} parent=1 // pred_check
      _
    $region31: #{tpu_custom_call.1} parent=1 // pred_check_branch
      %99 = sbr.rel (0) target = $region33
    $region32: #{tpu_custom_call.1} parent=1 // pred_region
      %s101 = ssub.s32 4096, 4096
      %102 = vsyncadd [#allocation15], %s101
      %s103 = sshll.u32 [#allocation14], 4
      %s104 = int_to_ptr.vmem [resolvable:$true] %s103
      %109 = dma.hbm_to_vmem [thread:$0]  %s7, 4096, %s104, [#allocation15], 64, 64, 4
    $region33: #{tpu_custom_call.1} parent=1 // pred_fallthru
      _
    // Predicated region
    $region34: #{tpu_custom_call.1} parent=1 // pred_check
      _
    $region35: #{tpu_custom_call.1} parent=1 // pred_check_branch
      %111 = sbr.rel (0) target = $region37
    $region36: #{tpu_custom_call.1} parent=1 // pred_region
      %s113 = ssub.s32 16, 16
      %114 = vsyncadd [#allocation15], %s113
      %s116 = sshll.u32 [#allocation16], 4
      %s117 = int_to_ptr.vmem [resolvable:$true] %s116
      %119 = dma.hbm_to_vmem [thread:$0]  %s8, 16, %s117, [#allocation15]
    $region37: #{tpu_custom_call.1} parent=1 // pred_fallthru
      _
    // Predicated region
    $region38: #{tpu_custom_call.1} parent=1 // pred_check
      _
    $region39: #{tpu_custom_call.1} parent=1 // pred_check_branch
      %121 = sbr.rel (0) target = $region41
    $region40: #{tpu_custom_call.1} parent=1 // pred_region
      %122 = dma.done [#allocation3], 256
    $region41: #{tpu_custom_call.1} parent=1 // pred_fallthru
      _
    // Predicated region
    $region42: #{tpu_custom_call.1} parent=1 // pred_check
      _
    $region43: #{tpu_custom_call.1} parent=1 // pred_check_branch
      %124 = sbr.rel (0) target = $region45
    $region44: #{tpu_custom_call.1} parent=1 // pred_region
      %125 = dma.done [#allocation6], 4096
    $region45: #{tpu_custom_call.1} parent=1 // pred_fallthru
      _
    // Predicated region
    $region46: #{tpu_custom_call.1} parent=1 // pred_check
      _
    $region47: #{tpu_custom_call.1} parent=1 // pred_check_branch
      %127 = sbr.rel (0) target = $region49
    $region48: #{tpu_custom_call.1} parent=1 // pred_region
      %128 = dma.done [#allocation6], 128
    $region49: #{tpu_custom_call.1} parent=1 // pred_fallthru
      _
    // Predicated region
    $region50: #{tpu_custom_call.1} parent=1 // pred_check
      _
    $region51: #{tpu_custom_call.1} parent=1 // pred_check_branch
      %130 = sbr.rel (0) target = $region53
    $region52: #{tpu_custom_call.1} parent=1 // pred_region
      %131 = dma.done [#allocation9], 65536
    $region53: #{tpu_custom_call.1} parent=1 // pred_fallthru
      _
    // Predicated region
    $region54: #{tpu_custom_call.1} parent=1 // pred_check
      _
    $region55: #{tpu_custom_call.1} parent=1 // pred_check_branch
      %133 = sbr.rel (0) target = $region57
    $region56: #{tpu_custom_call.1} parent=1 // pred_region
      %134 = dma.done [#allocation9], 128
    $region57: #{tpu_custom_call.1} parent=1 // pred_fallthru
      _
    // Predicated region
    $region58: #{tpu_custom_call.1} parent=1 // pred_check
      _
    $region59: #{tpu_custom_call.1} parent=1 // pred_check_branch
      %136 = sbr.rel (0) target = $region61
    $region60: #{tpu_custom_call.1} parent=1 // pred_region
      %137 = dma.done [#allocation12], 32768
    $region61: #{tpu_custom_call.1} parent=1 // pred_fallthru
      _
    // Predicated region
    $region62: #{tpu_custom_call.1} parent=1 // pred_check
      _
    $region63: #{tpu_custom_call.1} parent=1 // pred_check_branch
      %139 = sbr.rel (0) target = $region65
    $region64: #{tpu_custom_call.1} parent=1 // pred_region
      %140 = dma.done [#allocation12], 64
    $region65: #{tpu_custom_call.1} parent=1 // pred_fallthru
      _
    // Predicated region
    $region66: #{tpu_custom_call.1} parent=1 // pred_check
      _
    $region67: #{tpu_custom_call.1} parent=1 // pred_check_branch
      %142 = sbr.rel (0) target = $region69
    $region68: #{tpu_custom_call.1} parent=1 // pred_region
      %143 = dma.done [#allocation15], 4096
    $region69: #{tpu_custom_call.1} parent=1 // pred_fallthru
      _
    // Predicated region
    $region70: #{tpu_custom_call.1} parent=1 // pred_check
      _
    $region71: #{tpu_custom_call.1} parent=1 // pred_check_branch
      %145 = sbr.rel (0) target = $region73
    $region72: #{tpu_custom_call.1} parent=1 // pred_region
      %146 = dma.done [#allocation15], 16
    $region73: #{tpu_custom_call.1} parent=1 // pred_fallthru
      _
    %v148 = vld [vmem:[#allocation2] sm:$0xff]
    %v149 = vld [vmem:[#allocation2 + $0x8] sm:$0xff]
    %v150 = vpack.c.bf16 %v149, %v148
    %v151 = vld [vmem:[#allocation5] sm:$0xff]
    %v152 = vld [vmem:[#allocation5 + $0x8] sm:$0xff]
    %v153 = vld [vmem:[#allocation5 + $0x10] sm:$0xff]
    %v154 = vld [vmem:[#allocation5 + $0x18] sm:$0xff]
    %v155 = vld [vmem:[#allocation5 + $0x20] sm:$0xff]
    %v156 = vld [vmem:[#allocation5 + $0x28] sm:$0xff]
    %v157 = vld [vmem:[#allocation5 + $0x30] sm:$0xff]
    %v158 = vld [vmem:[#allocation5 + $0x38] sm:$0xff]
    %v159 = vld [vmem:[#allocation5 + $0x40] sm:$0xff]
    %v160 = vld [vmem:[#allocation5 + $0x48] sm:$0xff]
    %v161 = vld [vmem:[#allocation5 + $0x50] sm:$0xff]
    %v162 = vld [vmem:[#allocation5 + $0x58] sm:$0xff]
    %v163 = vld [vmem:[#allocation5 + $0x60] sm:$0xff]
    %v164 = vld [vmem:[#allocation5 + $0x68] sm:$0xff]
    %v165 = vld [vmem:[#allocation5 + $0x70] sm:$0xff]
    %v166 = vld [vmem:[#allocation5 + $0x78] sm:$0xff]
    %v167 = vld [vmem:[#allocation5 + $0x80] sm:$0xff]
    %v168 = vld [vmem:[#allocation5 + $0x88] sm:$0xff]
    %v169 = vld [vmem:[#allocation5 + $0x90] sm:$0xff]
    %v170 = vld [vmem:[#allocation5 + $0x98] sm:$0xff]
    %v171 = vld [vmem:[#allocation5 + $0xa0] sm:$0xff]
    %v172 = vld [vmem:[#allocation5 + $0xa8] sm:$0xff]
    %v173 = vld [vmem:[#allocation5 + $0xb0] sm:$0xff]
    %v174 = vld [vmem:[#allocation5 + $0xb8] sm:$0xff]
    %v175 = vld [vmem:[#allocation5 + $0xc0] sm:$0xff]
    %v176 = vld [vmem:[#allocation5 + $0xc8] sm:$0xff]
    %v177 = vld [vmem:[#allocation5 + $0xd0] sm:$0xff]
    %v178 = vld [vmem:[#allocation5 + $0xd8] sm:$0xff]
    %v179 = vld [vmem:[#allocation5 + $0xe0] sm:$0xff]
    %v180 = vld [vmem:[#allocation5 + $0xe8] sm:$0xff]
    %v181 = vld [vmem:[#allocation5 + $0xf0] sm:$0xff]
    %v182 = vld [vmem:[#allocation5 + $0xf8] sm:$0xff]
    %v183 = vld [vmem:[#allocation7] sm:$0xff]
    %v185 = vlaneseq
    %v186 = vshrl.u32 %v185, 7
    %v187 = vsub.s32 0, %v186
    %v188 = vrot.slane %v183, %v187
    %v189 = vlaneseq
    %v190 = vshrl.u32 %v189, 7
    %v191 = vsub.s32 1, %v190
    %v192 = vrot.slane %v183, %v191
    %v193 = vlaneseq
    %v194 = vshrl.u32 %v193, 7
    %v195 = vsub.s32 2, %v194
    %v196 = vrot.slane %v183, %v195
    %v197 = vlaneseq
    %v198 = vshrl.u32 %v197, 7
    %v199 = vsub.s32 3, %v198
    %v200 = vrot.slane %v183, %v199
    %v201 = vlaneseq
    %v202 = vshrl.u32 %v201, 7
    %v203 = vsub.s32 4, %v202
    %v204 = vrot.slane %v183, %v203
    %v205 = vlaneseq
    %v206 = vshrl.u32 %v205, 7
    %v207 = vsub.s32 5, %v206
    %v208 = vrot.slane %v183, %v207
    %v209 = vlaneseq
    %v210 = vshrl.u32 %v209, 7
    %v211 = vsub.s32 6, %v210
    %v212 = vrot.slane %v183, %v211
    %v213 = vlaneseq
    %v214 = vshrl.u32 %v213, 7
    %v215 = vsub.s32 7, %v214
    %v216 = vrot.slane %v183, %v215
    %v257 = vunpack.c.l.b16 %v151
    %v258 = vunpack.c.h.b16 %v151
    %v259 = vunpack.c.l.b16 %v152
    %v260 = vunpack.c.h.b16 %v152
    %v261 = vunpack.c.l.b16 %v153
    %v262 = vunpack.c.h.b16 %v153
    %v263 = vunpack.c.l.b16 %v154
    %v264 = vunpack.c.h.b16 %v154
    %v265 = vunpack.c.l.b16 %v155
    %v266 = vunpack.c.h.b16 %v155
    %v267 = vunpack.c.l.b16 %v156
    %v268 = vunpack.c.h.b16 %v156
    %v269 = vunpack.c.l.b16 %v157
    %v270 = vunpack.c.h.b16 %v157
    %v271 = vunpack.c.l.b16 %v158
    %v272 = vunpack.c.h.b16 %v158
    %v273 = vunpack.c.l.b16 %v159
    %v274 = vunpack.c.h.b16 %v159
    %v275 = vunpack.c.l.b16 %v160
    %v276 = vunpack.c.h.b16 %v160
    %v277 = vunpack.c.l.b16 %v161
    %v278 = vunpack.c.h.b16 %v161
    %v279 = vunpack.c.l.b16 %v162
    %v280 = vunpack.c.h.b16 %v162
    %v281 = vunpack.c.l.b16 %v163
    %v282 = vunpack.c.h.b16 %v163
    %v283 = vunpack.c.l.b16 %v164
    %v284 = vunpack.c.h.b16 %v164
    %v285 = vunpack.c.l.b16 %v165
    %v286 = vunpack.c.h.b16 %v165
    %v287 = vunpack.c.l.b16 %v166
    %v288 = vunpack.c.h.b16 %v166
    %v289 = vunpack.c.l.b16 %v167
    %v290 = vunpack.c.h.b16 %v167
    %v291 = vunpack.c.l.b16 %v168
    %v292 = vunpack.c.h.b16 %v168
    %v293 = vunpack.c.l.b16 %v169
    %v294 = vunpack.c.h.b16 %v169
    %v295 = vunpack.c.l.b16 %v170
    %v296 = vunpack.c.h.b16 %v170
    %v297 = vunpack.c.l.b16 %v171
    %v298 = vunpack.c.h.b16 %v171
    %v299 = vunpack.c.l.b16 %v172
    %v300 = vunpack.c.h.b16 %v172
    %v301 = vunpack.c.l.b16 %v173
    %v302 = vunpack.c.h.b16 %v173
    %v303 = vunpack.c.l.b16 %v174
    %v304 = vunpack.c.h.b16 %v174
    %v305 = vunpack.c.l.b16 %v175
    %v306 = vunpack.c.h.b16 %v175
    %v307 = vunpack.c.l.b16 %v176
    %v308 = vunpack.c.h.b16 %v176
    %v309 = vunpack.c.l.b16 %v177
    %v310 = vunpack.c.h.b16 %v177
    %v311 = vunpack.c.l.b16 %v178
    %v312 = vunpack.c.h.b16 %v178
    %v313 = vunpack.c.l.b16 %v179
    %v314 = vunpack.c.h.b16 %v179
    %v315 = vunpack.c.l.b16 %v180
    %v316 = vunpack.c.h.b16 %v180
    %v317 = vunpack.c.l.b16 %v181
    %v318 = vunpack.c.h.b16 %v181
    %v319 = vunpack.c.l.b16 %v182
    %v320 = vunpack.c.h.b16 %v182
    %v321 = vpack.c.b16 %v265, %v257
    %v322 = vpack.c.b16 %v266, %v258
    %v323 = vpack.c.b16 %v267, %v259
    %v324 = vpack.c.b16 %v268, %v260
    %v325 = vpack.c.b16 %v269, %v261
    %v326 = vpack.c.b16 %v270, %v262
    %v327 = vpack.c.b16 %v271, %v263
    %v328 = vpack.c.b16 %v272, %v264
    %v329 = vpack.c.b16 %v281, %v273
    %v330 = vpack.c.b16 %v282, %v274
    %v331 = vpack.c.b16 %v283, %v275
    %v332 = vpack.c.b16 %v284, %v276
    %v333 = vpack.c.b16 %v285, %v277
    %v334 = vpack.c.b16 %v286, %v278
    %v335 = vpack.c.b16 %v287, %v279
    %v336 = vpack.c.b16 %v288, %v280
    %v337 = vpack.c.b16 %v297, %v289
    %v338 = vpack.c.b16 %v298, %v290
    %v339 = vpack.c.b16 %v299, %v291
    %v340 = vpack.c.b16 %v300, %v292
    %v341 = vpack.c.b16 %v301, %v293
    %v342 = vpack.c.b16 %v302, %v294
    %v343 = vpack.c.b16 %v303, %v295
    %v344 = vpack.c.b16 %v304, %v296
    %v345 = vpack.c.b16 %v313, %v305
    %v346 = vpack.c.b16 %v314, %v306
    %v347 = vpack.c.b16 %v315, %v307
    %v348 = vpack.c.b16 %v316, %v308
    %v349 = vpack.c.b16 %v317, %v309
    %v350 = vpack.c.b16 %v318, %v310
    %v351 = vpack.c.b16 %v319, %v311
    %v352 = vpack.c.b16 %v320, %v312
    %vm385 = vcmask 523264
    %v387 = vsel %vm385, %v150, 0
    %389 = vmatprep.subr.bf16.mxu0 %v322
    %390 = vmatpush1.bf16.msra.mxu0 %v321
    %391 = vmatprep.subr.bf16.mxu0 %v330
    %392 = vmatpush1.bf16.msra.mxu0 %v329
    %393 = vmatprep.subr.bf16.mxu0 %v338
    %394 = vmatpush1.bf16.msra.mxu0 %v337
    %395 = vmatprep.subr.bf16.mxu0 %v346
    %396 = vmatpush1.bf16.msra.mxu0 %v345
    %397 = vmatprep.subr.bf16.mxu0 0
    %398 = vmatpush1.bf16.msra.mxu0 0
    %399 = vmatprep.subr.bf16.mxu0 0
    %400 = vmatpush1.bf16.msra.mxu0 0
    %401 = vmatprep.subr.bf16.mxu0 0
    %402 = vmatpush1.bf16.msra.mxu0 0
    %403 = vmatprep.subr.bf16.mxu0 0
    %404 = vmatpush1.bf16.msra.mxu0 0
    %405 = vmatprep.subr.bf16.mxu0 0
    %406 = vmatpush1.bf16.msra.mxu0 0
    %407 = vmatprep.subr.bf16.mxu0 0
    %408 = vmatpush1.bf16.msra.mxu0 0
    %409 = vmatprep.subr.bf16.mxu0 0
    %410 = vmatpush1.bf16.msra.mxu0 0
    %411 = vmatprep.subr.bf16.mxu0 0
    %412 = vmatpush1.bf16.msra.mxu0 0
    %413 = vmatprep.subr.bf16.mxu0 0
    %414 = vmatpush1.bf16.msra.mxu0 0
    %415 = vmatprep.subr.bf16.mxu0 0
    %416 = vmatpush1.bf16.msra.mxu0 0
    %417 = vmatprep.subr.bf16.mxu0 0
    %418 = vmatpush1.bf16.msra.mxu0 0
    %419 = vmatprep.subr.bf16.mxu0 0
    %420 = vmatpush1.bf16.msra.mxu0 0
    %421 = vmatprep.mubr.bf16.mxu0 0
    %422 = vmatmul.mubr.bf16.gmra.mrb[0].mxu0 %v387
    %v423 = vpop.f32.mrb[0].mxu0
    %v424 = vadd.f32 %v188, %v423
    %v425 = vpop.f32.mrb[0].mxu0
    %v426 = vadd.f32 %v192, %v425
    %v427 = vpop.f32.mrb[0].mxu0
    %v428 = vadd.f32 %v188, %v427
    %v429 = vpop.f32.mrb[0].mxu0
    %v430 = vadd.f32 %v192, %v429
    %431 = vdwg.mxu0
    %432 = vmatprep.subr.bf16.mxu0 %v324
    %433 = vmatpush1.bf16.msra.mxu0 %v323
    %434 = vmatprep.subr.bf16.mxu0 %v332
    %435 = vmatpush1.bf16.msra.mxu0 %v331
    %436 = vmatprep.subr.bf16.mxu0 %v340
    %437 = vmatpush1.bf16.msra.mxu0 %v339
    %438 = vmatprep.subr.bf16.mxu0 %v348
    %439 = vmatpush1.bf16.msra.mxu0 %v347
    %440 = vmatprep.subr.bf16.mxu0 0
    %441 = vmatpush1.bf16.msra.mxu0 0
    %442 = vmatprep.subr.bf16.mxu0 0
    %443 = vmatpush1.bf16.msra.mxu0 0
    %444 = vmatprep.subr.bf16.mxu0 0
    %445 = vmatpush1.bf16.msra.mxu0 0
    %446 = vmatprep.subr.bf16.mxu0 0
    %447 = vmatpush1.bf16.msra.mxu0 0
    %448 = vmatprep.subr.bf16.mxu0 0
    %449 = vmatpush1.bf16.msra.mxu0 0
    %450 = vmatprep.subr.bf16.mxu0 0
    %451 = vmatpush1.bf16.msra.mxu0 0
    %452 = vmatprep.subr.bf16.mxu0 0
    %453 = vmatpush1.bf16.msra.mxu0 0
    %454 = vmatprep.subr.bf16.mxu0 0
    %455 = vmatpush1.bf16.msra.mxu0 0
    %456 = vmatprep.subr.bf16.mxu0 0
    %457 = vmatpush1.bf16.msra.mxu0 0
    %458 = vmatprep.subr.bf16.mxu0 0
    %459 = vmatpush1.bf16.msra.mxu0 0
    %460 = vmatprep.subr.bf16.mxu0 0
    %461 = vmatpush1.bf16.msra.mxu0 0
    %462 = vmatprep.subr.bf16.mxu0 0
    %463 = vmatpush1.bf16.msra.mxu0 0
    %464 = vmatprep.mubr.bf16.mxu0 0
    %465 = vmatmul.mubr.bf16.gmra.mrb[0].mxu0 %v387
    %v466 = vpop.f32.mrb[0].mxu0
    %v467 = vadd.f32 %v196, %v466
    %v468 = vpop.f32.mrb[0].mxu0
    %v469 = vadd.f32 %v200, %v468
    %v470 = vpop.f32.mrb[0].mxu0
    %v471 = vadd.f32 %v196, %v470
    %v472 = vpop.f32.mrb[0].mxu0
    %v473 = vadd.f32 %v200, %v472
    %474 = vdwg.mxu0
    %475 = vmatprep.subr.bf16.mxu0 %v326
    %476 = vmatpush1.bf16.msra.mxu0 %v325
    %477 = vmatprep.subr.bf16.mxu0 %v334
    %478 = vmatpush1.bf16.msra.mxu0 %v333
    %479 = vmatprep.subr.bf16.mxu0 %v342
    %480 = vmatpush1.bf16.msra.mxu0 %v341
    %481 = vmatprep.subr.bf16.mxu0 %v350
    %482 = vmatpush1.bf16.msra.mxu0 %v349
    %483 = vmatprep.subr.bf16.mxu0 0
    %484 = vmatpush1.bf16.msra.mxu0 0
    %485 = vmatprep.subr.bf16.mxu0 0
    %486 = vmatpush1.bf16.msra.mxu0 0
    %487 = vmatprep.subr.bf16.mxu0 0
    %488 = vmatpush1.bf16.msra.mxu0 0
    %489 = vmatprep.subr.bf16.mxu0 0
    %490 = vmatpush1.bf16.msra.mxu0 0
    %491 = vmatprep.subr.bf16.mxu0 0
    %492 = vmatpush1.bf16.msra.mxu0 0
    %493 = vmatprep.subr.bf16.mxu0 0
    %494 = vmatpush1.bf16.msra.mxu0 0
    %495 = vmatprep.subr.bf16.mxu0 0
    %496 = vmatpush1.bf16.msra.mxu0 0
    %497 = vmatprep.subr.bf16.mxu0 0
    %498 = vmatpush1.bf16.msra.mxu0 0
    %499 = vmatprep.subr.bf16.mxu0 0
    %500 = vmatpush1.bf16.msra.mxu0 0
    %501 = vmatprep.subr.bf16.mxu0 0
    %502 = vmatpush1.bf16.msra.mxu0 0
    %503 = vmatprep.subr.bf16.mxu0 0
    %504 = vmatpush1.bf16.msra.mxu0 0
    %505 = vmatprep.subr.bf16.mxu0 0
    %506 = vmatpush1.bf16.msra.mxu0 0
    %507 = vmatprep.mubr.bf16.mxu0 0
    %508 = vmatmul.mubr.bf16.gmra.mrb[0].mxu0 %v387
    %v509 = vpop.f32.mrb[0].mxu0
    %v510 = vadd.f32 %v204, %v509
    %v511 = vpop.f32.mrb[0].mxu0
    %v512 = vadd.f32 %v208, %v511
    %v513 = vpop.f32.mrb[0].mxu0
    %v514 = vadd.f32 %v204, %v513
    %v515 = vpop.f32.mrb[0].mxu0
    %v516 = vadd.f32 %v208, %v515
    %517 = vdwg.mxu0
    %518 = vmatprep.subr.bf16.mxu0 %v328
    %519 = vmatpush1.bf16.msra.mxu0 %v327
    %520 = vmatprep.subr.bf16.mxu0 %v336
    %521 = vmatpush1.bf16.msra.mxu0 %v335
    %522 = vmatprep.subr.bf16.mxu0 %v344
    %523 = vmatpush1.bf16.msra.mxu0 %v343
    %524 = vmatprep.subr.bf16.mxu0 %v352
    %525 = vmatpush1.bf16.msra.mxu0 %v351
    %526 = vmatprep.subr.bf16.mxu0 0
    %527 = vmatpush1.bf16.msra.mxu0 0
    %528 = vmatprep.subr.bf16.mxu0 0
    %529 = vmatpush1.bf16.msra.mxu0 0
    %530 = vmatprep.subr.bf16.mxu0 0
    %531 = vmatpush1.bf16.msra.mxu0 0
    %532 = vmatprep.subr.bf16.mxu0 0
    %533 = vmatpush1.bf16.msra.mxu0 0
    %534 = vmatprep.subr.bf16.mxu0 0
    %535 = vmatpush1.bf16.msra.mxu0 0
    %536 = vmatprep.subr.bf16.mxu0 0
    %537 = vmatpush1.bf16.msra.mxu0 0
    %538 = vmatprep.subr.bf16.mxu0 0
    %539 = vmatpush1.bf16.msra.mxu0 0
    %540 = vmatprep.subr.bf16.mxu0 0
    %541 = vmatpush1.bf16.msra.mxu0 0
    %542 = vmatprep.subr.bf16.mxu0 0
    %543 = vmatpush1.bf16.msra.mxu0 0
    %544 = vmatprep.subr.bf16.mxu0 0
    %545 = vmatpush1.bf16.msra.mxu0 0
    %546 = vmatprep.subr.bf16.mxu0 0
    %547 = vmatpush1.bf16.msra.mxu0 0
    %548 = vmatprep.subr.bf16.mxu0 0
    %549 = vmatpush1.bf16.msra.mxu0 0
    %550 = vmatprep.mubr.bf16.mxu0 0
    %551 = vmatmul.mubr.bf16.gmra.mrb[0].mxu0 %v387
    %v552 = vpop.f32.mrb[0].mxu0
    %v553 = vadd.f32 %v212, %v552
    %v554 = vpop.f32.mrb[0].mxu0
    %v555 = vadd.f32 %v216, %v554
    %v556 = vpop.f32.mrb[0].mxu0
    %v557 = vadd.f32 %v212, %v556
    %v558 = vpop.f32.mrb[0].mxu0
    %v559 = vadd.f32 %v216, %v558
    %560 = vdwg.mxu0
    %v561 = vmax.f32 %v424, 0.0
    %v562 = vmax.f32 %v426, 0.0
    %v563 = vmax.f32 %v467, 0.0
    %v564 = vmax.f32 %v469, 0.0
    %v565 = vmax.f32 %v510, 0.0
    %v566 = vmax.f32 %v512, 0.0
    %v567 = vmax.f32 %v553, 0.0
    %v568 = vmax.f32 %v555, 0.0
    %v569 = vmax.f32 %v428, 0.0
    %v570 = vmax.f32 %v430, 0.0
    %v571 = vmax.f32 %v471, 0.0
    %v572 = vmax.f32 %v473, 0.0
    %v573 = vmax.f32 %v514, 0.0
    %v574 = vmax.f32 %v516, 0.0
    %v575 = vmax.f32 %v557, 0.0
    %v576 = vmax.f32 %v559, 0.0
    %v577 = vpack.c.bf16 %v569, %v561
    %v578 = vpack.c.bf16 %v570, %v562
    %v579 = vpack.c.bf16 %v571, %v563
    %v580 = vpack.c.bf16 %v572, %v564
    %v581 = vpack.c.bf16 %v573, %v565
    %v582 = vpack.c.bf16 %v574, %v566
    %v583 = vpack.c.bf16 %v575, %v567
    %v584 = vpack.c.bf16 %v576, %v568
    %v585 = vld [vmem:[#allocation8] sm:$0xff]
    %v586 = vld [vmem:[#allocation8 + $0x8] sm:$0xff]
    %v587 = vld [vmem:[#allocation8 + $0x10] sm:$0xff]
    %v588 = vld [vmem:[#allocation8 + $0x18] sm:$0xff]
    %v589 = vld [vmem:[#allocation8 + $0x20] sm:$0xff]
    %v590 = vld [vmem:[#allocation8 + $0x28] sm:$0xff]
    %v591 = vld [vmem:[#allocation8 + $0x30] sm:$0xff]
    %v592 = vld [vmem:[#allocation8 + $0x38] sm:$0xff]
    %v593 = vld [vmem:[#allocation8 + $0x40] sm:$0xff]
    %v594 = vld [vmem:[#allocation8 + $0x48] sm:$0xff]
    %v595 = vld [vmem:[#allocation8 + $0x50] sm:$0xff]
    %v596 = vld [vmem:[#allocation8 + $0x58] sm:$0xff]
    %v597 = vld [vmem:[#allocation8 + $0x60] sm:$0xff]
    %v598 = vld [vmem:[#allocation8 + $0x68] sm:$0xff]
    %v599 = vld [vmem:[#allocation8 + $0x70] sm:$0xff]
    %v600 = vld [vmem:[#allocation8 + $0x78] sm:$0xff]
    %v601 = vld [vmem:[#allocation8 + $0x80] sm:$0xff]
    %v602 = vld [vmem:[#allocation8 + $0x88] sm:$0xff]
    %v603 = vld [vmem:[#allocation8 + $0x90] sm:$0xff]
    %v604 = vld [vmem:[#allocation8 + $0x98] sm:$0xff]
    %v605 = vld [vmem:[#allocation8 + $0xa0] sm:$0xff]
    %v606 = vld [vmem:[#allocation8 + $0xa8] sm:$0xff]
    %v607 = vld [vmem:[#allocation8 + $0xb0] sm:$0xff]
    %v608 = vld [vmem:[#allocation8 + $0xb8] sm:$0xff]
    %v609 = vld [vmem:[#allocation8 + $0xc0] sm:$0xff]
    %v610 = vld [vmem:[#allocation8 + $0xc8] sm:$0xff]
    %v611 = vld [vmem:[#allocation8 + $0xd0] sm:$0xff]
    %v612 = vld [vmem:[#allocation8 + $0xd8] sm:$0xff]
    %v613 = vld [vmem:[#allocation8 + $0xe0] sm:$0xff]
    %v614 = vld [vmem:[#allocation8 + $0xe8] sm:$0xff]
    %v615 = vld [vmem:[#allocation8 + $0xf0] sm:$0xff]
    %v616 = vld [vmem:[#allocation8 + $0xf8] sm:$0xff]
    %v617 = vld [vmem:[#allocation8 + $0x100] sm:$0xff]
    %v618 = vld [vmem:[#allocation8 + $0x108] sm:$0xff]
    %v619 = vld [vmem:[#allocation8 + $0x110] sm:$0xff]
    %v620 = vld [vmem:[#allocation8 + $0x118] sm:$0xff]
    %v621 = vld [vmem:[#allocation8 + $0x120] sm:$0xff]
    %v622 = vld [vmem:[#allocation8 + $0x128] sm:$0xff]
    %v623 = vld [vmem:[#allocation8 + $0x130] sm:$0xff]
    %v624 = vld [vmem:[#allocation8 + $0x138] sm:$0xff]
    %v625 = vld [vmem:[#allocation8 + $0x140] sm:$0xff]
    %v626 = vld [vmem:[#allocation8 + $0x148] sm:$0xff]
    %v627 = vld [vmem:[#allocation8 + $0x150] sm:$0xff]
    %v628 = vld [vmem:[#allocation8 + $0x158] sm:$0xff]
    %v629 = vld [vmem:[#allocation8 + $0x160] sm:$0xff]
    %v630 = vld [vmem:[#allocation8 + $0x168] sm:$0xff]
    %v631 = vld [vmem:[#allocation8 + $0x170] sm:$0xff]
    %v632 = vld [vmem:[#allocation8 + $0x178] sm:$0xff]
    %v633 = vld [vmem:[#allocation8 + $0x180] sm:$0xff]
    %v634 = vld [vmem:[#allocation8 + $0x188] sm:$0xff]
    %v635 = vld [vmem:[#allocation8 + $0x190] sm:$0xff]
    %v636 = vld [vmem:[#allocation8 + $0x198] sm:$0xff]
    %v637 = vld [vmem:[#allocation8 + $0x1a0] sm:$0xff]
    %v638 = vld [vmem:[#allocation8 + $0x1a8] sm:$0xff]
    %v639 = vld [vmem:[#allocation8 + $0x1b0] sm:$0xff]
    %v640 = vld [vmem:[#allocation8 + $0x1b8] sm:$0xff]
    %v641 = vld [vmem:[#allocation8 + $0x1c0] sm:$0xff]
    %v642 = vld [vmem:[#allocation8 + $0x1c8] sm:$0xff]
    %v643 = vld [vmem:[#allocation8 + $0x1d0] sm:$0xff]
    %v644 = vld [vmem:[#allocation8 + $0x1d8] sm:$0xff]
    %v645 = vld [vmem:[#allocation8 + $0x1e0] sm:$0xff]
    %v646 = vld [vmem:[#allocation8 + $0x1e8] sm:$0xff]
    %v647 = vld [vmem:[#allocation8 + $0x1f0] sm:$0xff]
    %v648 = vld [vmem:[#allocation8 + $0x1f8] sm:$0xff]
    %v649 = vld [vmem:[#allocation8 + $0x200] sm:$0xff]
    %v650 = vld [vmem:[#allocation8 + $0x208] sm:$0xff]
    %v651 = vld [vmem:[#allocation8 + $0x210] sm:$0xff]
    %v652 = vld [vmem:[#allocation8 + $0x218] sm:$0xff]
    %v653 = vld [vmem:[#allocation8 + $0x220] sm:$0xff]
    %v654 = vld [vmem:[#allocation8 + $0x228] sm:$0xff]
    %v655 = vld [vmem:[#allocation8 + $0x230] sm:$0xff]
    %v656 = vld [vmem:[#allocation8 + $0x238] sm:$0xff]
    %v657 = vld [vmem:[#allocation8 + $0x240] sm:$0xff]
    %v658 = vld [vmem:[#allocation8 + $0x248] sm:$0xff]
    %v659 = vld [vmem:[#allocation8 + $0x250] sm:$0xff]
    %v660 = vld [vmem:[#allocation8 + $0x258] sm:$0xff]
    %v661 = vld [vmem:[#allocation8 + $0x260] sm:$0xff]
    %v662 = vld [vmem:[#allocation8 + $0x268] sm:$0xff]
    %v663 = vld [vmem:[#allocation8 + $0x270] sm:$0xff]
    %v664 = vld [vmem:[#allocation8 + $0x278] sm:$0xff]
    %v665 = vld [vmem:[#allocation8 + $0x280] sm:$0xff]
    %v666 = vld [vmem:[#allocation8 + $0x288] sm:$0xff]
    %v667 = vld [vmem:[#allocation8 + $0x290] sm:$0xff]
    %v668 = vld [vmem:[#allocation8 + $0x298] sm:$0xff]
    %v669 = vld [vmem:[#allocation8 + $0x2a0] sm:$0xff]
    %v670 = vld [vmem:[#allocation8 + $0x2a8] sm:$0xff]
    %v671 = vld [vmem:[#allocation8 + $0x2b0] sm:$0xff]
    %v672 = vld [vmem:[#allocation8 + $0x2b8] sm:$0xff]
    %v673 = vld [vmem:[#allocation8 + $0x2c0] sm:$0xff]
    %v674 = vld [vmem:[#allocation8 + $0x2c8] sm:$0xff]
    %v675 = vld [vmem:[#allocation8 + $0x2d0] sm:$0xff]
    %v676 = vld [vmem:[#allocation8 + $0x2d8] sm:$0xff]
    %v677 = vld [vmem:[#allocation8 + $0x2e0] sm:$0xff]
    %v678 = vld [vmem:[#allocation8 + $0x2e8] sm:$0xff]
    %v679 = vld [vmem:[#allocation8 + $0x2f0] sm:$0xff]
    %v680 = vld [vmem:[#allocation8 + $0x2f8] sm:$0xff]
    %v681 = vld [vmem:[#allocation8 + $0x300] sm:$0xff]
    %v682 = vld [vmem:[#allocation8 + $0x308] sm:$0xff]
    %v683 = vld [vmem:[#allocation8 + $0x310] sm:$0xff]
    %v684 = vld [vmem:[#allocation8 + $0x318] sm:$0xff]
    %v685 = vld [vmem:[#allocation8 + $0x320] sm:$0xff]
    %v686 = vld [vmem:[#allocation8 + $0x328] sm:$0xff]
    %v687 = vld [vmem:[#allocation8 + $0x330] sm:$0xff]
    %v688 = vld [vmem:[#allocation8 + $0x338] sm:$0xff]
    %v689 = vld [vmem:[#allocation8 + $0x340] sm:$0xff]
    %v690 = vld [vmem:[#allocation8 + $0x348] sm:$0xff]
    %v691 = vld [vmem:[#allocation8 + $0x350] sm:$0xff]
    %v692 = vld [vmem:[#allocation8 + $0x358] sm:$0xff]
    %v693 = vld [vmem:[#allocation8 + $0x360] sm:$0xff]
    %v694 = vld [vmem:[#allocation8 + $0x368] sm:$0xff]
    %v695 = vld [vmem:[#allocation8 + $0x370] sm:$0xff]
    %v696 = vld [vmem:[#allocation8 + $0x378] sm:$0xff]
    %v697 = vld [vmem:[#allocation8 + $0x380] sm:$0xff]
    %v698 = vld [vmem:[#allocation8 + $0x388] sm:$0xff]
    %v699 = vld [vmem:[#allocation8 + $0x390] sm:$0xff]
    %v700 = vld [vmem:[#allocation8 + $0x398] sm:$0xff]
    %v701 = vld [vmem:[#allocation8 + $0x3a0] sm:$0xff]
    %v702 = vld [vmem:[#allocation8 + $0x3a8] sm:$0xff]
    %v703 = vld [vmem:[#allocation8 + $0x3b0] sm:$0xff]
    %v704 = vld [vmem:[#allocation8 + $0x3b8] sm:$0xff]
    %v705 = vld [vmem:[#allocation8 + $0x3c0] sm:$0xff]
    %v706 = vld [vmem:[#allocation8 + $0x3c8] sm:$0xff]
    %v707 = vld [vmem:[#allocation8 + $0x3d0] sm:$0xff]
    %v708 = vld [vmem:[#allocation8 + $0x3d8] sm:$0xff]
    %v709 = vld [vmem:[#allocation8 + $0x3e0] sm:$0xff]
    %v710 = vld [vmem:[#allocation8 + $0x3e8] sm:$0xff]
    %v711 = vld [vmem:[#allocation8 + $0x3f0] sm:$0xff]
    %v712 = vld [vmem:[#allocation8 + $0x3f8] sm:$0xff]
    %v713 = vld [vmem:[#allocation8 + $0x400] sm:$0xff]
    %v714 = vld [vmem:[#allocation8 + $0x408] sm:$0xff]
    %v715 = vld [vmem:[#allocation8 + $0x410] sm:$0xff]
    %v716 = vld [vmem:[#allocation8 + $0x418] sm:$0xff]
    %v717 = vld [vmem:[#allocation8 + $0x420] sm:$0xff]
    %v718 = vld [vmem:[#allocation8 + $0x428] sm:$0xff]
    %v719 = vld [vmem:[#allocation8 + $0x430] sm:$0xff]
    %v720 = vld [vmem:[#allocation8 + $0x438] sm:$0xff]
    %v721 = vld [vmem:[#allocation8 + $0x440] sm:$0xff]
    %v722 = vld [vmem:[#allocation8 + $0x448] sm:$0xff]
    %v723 = vld [vmem:[#allocation8 + $0x450] sm:$0xff]
    %v724 = vld [vmem:[#allocation8 + $0x458] sm:$0xff]
    %v725 = vld [vmem:[#allocation8 + $0x460] sm:$0xff]
    %v726 = vld [vmem:[#allocation8 + $0x468] sm:$0xff]
    %v727 = vld [vmem:[#allocation8 + $0x470] sm:$0xff]
    %v728 = vld [vmem:[#allocation8 + $0x478] sm:$0xff]
    %v729 = vld [vmem:[#allocation8 + $0x480] sm:$0xff]
    %v730 = vld [vmem:[#allocation8 + $0x488] sm:$0xff]
    %v731 = vld [vmem:[#allocation8 + $0x490] sm:$0xff]
    %v732 = vld [vmem:[#allocation8 + $0x498] sm:$0xff]
    %v733 = vld [vmem:[#allocation8 + $0x4a0] sm:$0xff]
    %v734 = vld [vmem:[#allocation8 + $0x4a8] sm:$0xff]
    %v735 = vld [vmem:[#allocation8 + $0x4b0] sm:$0xff]
    %v736 = vld [vmem:[#allocation8 + $0x4b8] sm:$0xff]
    %v737 = vld [vmem:[#allocation8 + $0x4c0] sm:$0xff]
    %v738 = vld [vmem:[#allocation8 + $0x4c8] sm:$0xff]
    %v739 = vld [vmem:[#allocation8 + $0x4d0] sm:$0xff]
    %v740 = vld [vmem:[#allocation8 + $0x4d8] sm:$0xff]
    %v741 = vld [vmem:[#allocation8 + $0x4e0] sm:$0xff]
    %v742 = vld [vmem:[#allocation8 + $0x4e8] sm:$0xff]
    %v743 = vld [vmem:[#allocation8 + $0x4f0] sm:$0xff]
    %v744 = vld [vmem:[#allocation8 + $0x4f8] sm:$0xff]
    %v745 = vld [vmem:[#allocation8 + $0x500] sm:$0xff]
    %v746 = vld [vmem:[#allocation8 + $0x508] sm:$0xff]
    %v747 = vld [vmem:[#allocation8 + $0x510] sm:$0xff]
    %v748 = vld [vmem:[#allocation8 + $0x518] sm:$0xff]
    %v749 = vld [vmem:[#allocation8 + $0x520] sm:$0xff]
    %v750 = vld [vmem:[#allocation8 + $0x528] sm:$0xff]
    %v751 = vld [vmem:[#allocation8 + $0x530] sm:$0xff]
    %v752 = vld [vmem:[#allocation8 + $0x538] sm:$0xff]
    %v753 = vld [vmem:[#allocation8 + $0x540] sm:$0xff]
    %v754 = vld [vmem:[#allocation8 + $0x548] sm:$0xff]
    %v755 = vld [vmem:[#allocation8 + $0x550] sm:$0xff]
    %v756 = vld [vmem:[#allocation8 + $0x558] sm:$0xff]
    %v757 = vld [vmem:[#allocation8 + $0x560] sm:$0xff]
    %v758 = vld [vmem:[#allocation8 + $0x568] sm:$0xff]
    %v759 = vld [vmem:[#allocation8 + $0x570] sm:$0xff]
    %v760 = vld [vmem:[#allocation8 + $0x578] sm:$0xff]
    %v761 = vld [vmem:[#allocation8 + $0x580] sm:$0xff]
    %v762 = vld [vmem:[#allocation8 + $0x588] sm:$0xff]
    %v763 = vld [vmem:[#allocation8 + $0x590] sm:$0xff]
    %v764 = vld [vmem:[#allocation8 + $0x598] sm:$0xff]
    %v765 = vld [vmem:[#allocation8 + $0x5a0] sm:$0xff]
    %v766 = vld [vmem:[#allocation8 + $0x5a8] sm:$0xff]
    %v767 = vld [vmem:[#allocation8 + $0x5b0] sm:$0xff]
    %v768 = vld [vmem:[#allocation8 + $0x5b8] sm:$0xff]
    %v769 = vld [vmem:[#allocation8 + $0x5c0] sm:$0xff]
    %v770 = vld [vmem:[#allocation8 + $0x5c8] sm:$0xff]
    %v771 = vld [vmem:[#allocation8 + $0x5d0] sm:$0xff]
    %v772 = vld [vmem:[#allocation8 + $0x5d8] sm:$0xff]
    %v773 = vld [vmem:[#allocation8 + $0x5e0] sm:$0xff]
    %v774 = vld [vmem:[#allocation8 + $0x5e8] sm:$0xff]
    %v775 = vld [vmem:[#allocation8 + $0x5f0] sm:$0xff]
    %v776 = vld [vmem:[#allocation8 + $0x5f8] sm:$0xff]
    %v777 = vld [vmem:[#allocation8 + $0x600] sm:$0xff]
    %v778 = vld [vmem:[#allocation8 + $0x608] sm:$0xff]
    %v779 = vld [vmem:[#allocation8 + $0x610] sm:$0xff]
    %v780 = vld [vmem:[#allocation8 + $0x618] sm:$0xff]
    %v781 = vld [vmem:[#allocation8 + $0x620] sm:$0xff]
    %v782 = vld [vmem:[#allocation8 + $0x628] sm:$0xff]
    %v783 = vld [vmem:[#allocation8 + $0x630] sm:$0xff]
    %v784 = vld [vmem:[#allocation8 + $0x638] sm:$0xff]
    %v785 = vld [vmem:[#allocation8 + $0x640] sm:$0xff]
    %v786 = vld [vmem:[#allocation8 + $0x648] sm:$0xff]
    %v787 = vld [vmem:[#allocation8 + $0x650] sm:$0xff]
    %v788 = vld [vmem:[#allocation8 + $0x658] sm:$0xff]
    %v789 = vld [vmem:[#allocation8 + $0x660] sm:$0xff]
    %v790 = vld [vmem:[#allocation8 + $0x668] sm:$0xff]
    %v791 = vld [vmem:[#allocation8 + $0x670] sm:$0xff]
    %v792 = vld [vmem:[#allocation8 + $0x678] sm:$0xff]
    %v793 = vld [vmem:[#allocation8 + $0x680] sm:$0xff]
    %v794 = vld [vmem:[#allocation8 + $0x688] sm:$0xff]
    %v795 = vld [vmem:[#allocation8 + $0x690] sm:$0xff]
    %v796 = vld [vmem:[#allocation8 + $0x698] sm:$0xff]
    %v797 = vld [vmem:[#allocation8 + $0x6a0] sm:$0xff]
    %v798 = vld [vmem:[#allocation8 + $0x6a8] sm:$0xff]
    %v799 = vld [vmem:[#allocation8 + $0x6b0] sm:$0xff]
    %v800 = vld [vmem:[#allocation8 + $0x6b8] sm:$0xff]
    %v801 = vld [vmem:[#allocation8 + $0x6c0] sm:$0xff]
    %v802 = vld [vmem:[#allocation8 + $0x6c8] sm:$0xff]
    %v803 = vld [vmem:[#allocation8 + $0x6d0] sm:$0xff]
    %v804 = vld [vmem:[#allocation8 + $0x6d8] sm:$0xff]
    %v805 = vld [vmem:[#allocation8 + $0x6e0] sm:$0xff]
    %v806 = vld [vmem:[#allocation8 + $0x6e8] sm:$0xff]
    %v807 = vld [vmem:[#allocation8 + $0x6f0] sm:$0xff]
    %v808 = vld [vmem:[#allocation8 + $0x6f8] sm:$0xff]
    %v809 = vld [vmem:[#allocation8 + $0x700] sm:$0xff]
    %v810 = vld [vmem:[#allocation8 + $0x708] sm:$0xff]
    %v811 = vld [vmem:[#allocation8 + $0x710] sm:$0xff]
    %v812 = vld [vmem:[#allocation8 + $0x718] sm:$0xff]
    %v813 = vld [vmem:[#allocation8 + $0x720] sm:$0xff]
    %v814 = vld [vmem:[#allocation8 + $0x728] sm:$0xff]
    %v815 = vld [vmem:[#allocation8 + $0x730] sm:$0xff]
    %v816 = vld [vmem:[#allocation8 + $0x738] sm:$0xff]
    %v817 = vld [vmem:[#allocation8 + $0x740] sm:$0xff]
    %v818 = vld [vmem:[#allocation8 + $0x748] sm:$0xff]
    %v819 = vld [vmem:[#allocation8 + $0x750] sm:$0xff]
    %v820 = vld [vmem:[#allocation8 + $0x758] sm:$0xff]
    %v821 = vld [vmem:[#allocation8 + $0x760] sm:$0xff]
    %v822 = vld [vmem:[#allocation8 + $0x768] sm:$0xff]
    %v823 = vld [vmem:[#allocation8 + $0x770] sm:$0xff]
    %v824 = vld [vmem:[#allocation8 + $0x778] sm:$0xff]
    %v825 = vld [vmem:[#allocation8 + $0x780] sm:$0xff]
    %v826 = vld [vmem:[#allocation8 + $0x788] sm:$0xff]
    %v827 = vld [vmem:[#allocation8 + $0x790] sm:$0xff]
    %v828 = vld [vmem:[#allocation8 + $0x798] sm:$0xff]
    %v829 = vld [vmem:[#allocation8 + $0x7a0] sm:$0xff]
    %v830 = vld [vmem:[#allocation8 + $0x7a8] sm:$0xff]
    %v831 = vld [vmem:[#allocation8 + $0x7b0] sm:$0xff]
    %v832 = vld [vmem:[#allocation8 + $0x7b8] sm:$0xff]
    %v833 = vld [vmem:[#allocation8 + $0x7c0] sm:$0xff]
    %v834 = vld [vmem:[#allocation8 + $0x7c8] sm:$0xff]
    %v835 = vld [vmem:[#allocation8 + $0x7d0] sm:$0xff]
    %v836 = vld [vmem:[#allocation8 + $0x7d8] sm:$0xff]
    %v837 = vld [vmem:[#allocation8 + $0x7e0] sm:$0xff]
    %v838 = vld [vmem:[#allocation8 + $0x7e8] sm:$0xff]
    %v839 = vld [vmem:[#allocation8 + $0x7f0] sm:$0xff]
    %v840 = vld [vmem:[#allocation8 + $0x7f8] sm:$0xff]
    %v841 = vld [vmem:[#allocation8 + $0x800] sm:$0xff]
    %v842 = vld [vmem:[#allocation8 + $0x808] sm:$0xff]
    %v843 = vld [vmem:[#allocation8 + $0x810] sm:$0xff]
    %v844 = vld [vmem:[#allocation8 + $0x818] sm:$0xff]
    %v845 = vld [vmem:[#allocation8 + $0x820] sm:$0xff]
    %v846 = vld [vmem:[#allocation8 + $0x828] sm:$0xff]
    %v847 = vld [vmem:[#allocation8 + $0x830] sm:$0xff]
    %v848 = vld [vmem:[#allocation8 + $0x838] sm:$0xff]
    %v849 = vld [vmem:[#allocation8 + $0x840] sm:$0xff]
    %v850 = vld [vmem:[#allocation8 + $0x848] sm:$0xff]
    %v851 = vld [vmem:[#allocation8 + $0x850] sm:$0xff]
    %v852 = vld [vmem:[#allocation8 + $0x858] sm:$0xff]
    %v853 = vld [vmem:[#allocation8 + $0x860] sm:$0xff]
    %v854 = vld [vmem:[#allocation8 + $0x868] sm:$0xff]
    %v855 = vld [vmem:[#allocation8 + $0x870] sm:$0xff]
    %v856 = vld [vmem:[#allocation8 + $0x878] sm:$0xff]
    %v857 = vld [vmem:[#allocation8 + $0x880] sm:$0xff]
    %v858 = vld [vmem:[#allocation8 + $0x888] sm:$0xff]
    %v859 = vld [vmem:[#allocation8 + $0x890] sm:$0xff]
    %v860 = vld [vmem:[#allocation8 + $0x898] sm:$0xff]
    %v861 = vld [vmem:[#allocation8 + $0x8a0] sm:$0xff]
    %v862 = vld [vmem:[#allocation8 + $0x8a8] sm:$0xff]
    %v863 = vld [vmem:[#allocation8 + $0x8b0] sm:$0xff]
    %v864 = vld [vmem:[#allocation8 + $0x8b8] sm:$0xff]
    %v865 = vld [vmem:[#allocation8 + $0x8c0] sm:$0xff]
    %v866 = vld [vmem:[#allocation8 + $0x8c8] sm:$0xff]
    %v867 = vld [vmem:[#allocation8 + $0x8d0] sm:$0xff]
    %v868 = vld [vmem:[#allocation8 + $0x8d8] sm:$0xff]
    %v869 = vld [vmem:[#allocation8 + $0x8e0] sm:$0xff]
    %v870 = vld [vmem:[#allocation8 + $0x8e8] sm:$0xff]
    %v871 = vld [vmem:[#allocation8 + $0x8f0] sm:$0xff]
    %v872 = vld [vmem:[#allocation8 + $0x8f8] sm:$0xff]
    %v873 = vld [vmem:[#allocation8 + $0x900] sm:$0xff]
    %v874 = vld [vmem:[#allocation8 + $0x908] sm:$0xff]
    %v875 = vld [vmem:[#allocation8 + $0x910] sm:$0xff]
    %v876 = vld [vmem:[#allocation8 + $0x918] sm:$0xff]
    %v877 = vld [vmem:[#allocation8 + $0x920] sm:$0xff]
    %v878 = vld [vmem:[#allocation8 + $0x928] sm:$0xff]
    %v879 = vld [vmem:[#allocation8 + $0x930] sm:$0xff]
    %v880 = vld [vmem:[#allocation8 + $0x938] sm:$0xff]
    %v881 = vld [vmem:[#allocation8 + $0x940] sm:$0xff]
    %v882 = vld [vmem:[#allocation8 + $0x948] sm:$0xff]
    %v883 = vld [vmem:[#allocation8 + $0x950] sm:$0xff]
    %v884 = vld [vmem:[#allocation8 + $0x958] sm:$0xff]
    %v885 = vld [vmem:[#allocation8 + $0x960] sm:$0xff]
    %v886 = vld [vmem:[#allocation8 + $0x968] sm:$0xff]
    %v887 = vld [vmem:[#allocation8 + $0x970] sm:$0xff]
    %v888 = vld [vmem:[#allocation8 + $0x978] sm:$0xff]
    %v889 = vld [vmem:[#allocation8 + $0x980] sm:$0xff]
    %v890 = vld [vmem:[#allocation8 + $0x988] sm:$0xff]
    %v891 = vld [vmem:[#allocation8 + $0x990] sm:$0xff]
    %v892 = vld [vmem:[#allocation8 + $0x998] sm:$0xff]
    %v893 = vld [vmem:[#allocation8 + $0x9a0] sm:$0xff]
    %v894 = vld [vmem:[#allocation8 + $0x9a8] sm:$0xff]
    %v895 = vld [vmem:[#allocation8 + $0x9b0] sm:$0xff]
    %v896 = vld [vmem:[#allocation8 + $0x9b8] sm:$0xff]
    %v897 = vld [vmem:[#allocation8 + $0x9c0] sm:$0xff]
    %v898 = vld [vmem:[#allocation8 + $0x9c8] sm:$0xff]
    %v899 = vld [vmem:[#allocation8 + $0x9d0] sm:$0xff]
    %v900 = vld [vmem:[#allocation8 + $0x9d8] sm:$0xff]
    %v901 = vld [vmem:[#allocation8 + $0x9e0] sm:$0xff]
    %v902 = vld [vmem:[#allocation8 + $0x9e8] sm:$0xff]
    %v903 = vld [vmem:[#allocation8 + $0x9f0] sm:$0xff]
    %v904 = vld [vmem:[#allocation8 + $0x9f8] sm:$0xff]
    %v905 = vld [vmem:[#allocation8 + $0xa00] sm:$0xff]
    %v906 = vld [vmem:[#allocation8 + $0xa08] sm:$0xff]
    %v907 = vld [vmem:[#allocation8 + $0xa10] sm:$0xff]
    %v908 = vld [vmem:[#allocation8 + $0xa18] sm:$0xff]
    %v909 = vld [vmem:[#allocation8 + $0xa20] sm:$0xff]
    %v910 = vld [vmem:[#allocation8 + $0xa28] sm:$0xff]
    %v911 = vld [vmem:[#allocation8 + $0xa30] sm:$0xff]
    %v912 = vld [vmem:[#allocation8 + $0xa38] sm:$0xff]
    %v913 = vld [vmem:[#allocation8 + $0xa40] sm:$0xff]
    %v914 = vld [vmem:[#allocation8 + $0xa48] sm:$0xff]
    %v915 = vld [vmem:[#allocation8 + $0xa50] sm:$0xff]
    %v916 = vld [vmem:[#allocation8 + $0xa58] sm:$0xff]
    %v917 = vld [vmem:[#allocation8 + $0xa60] sm:$0xff]
    %v918 = vld [vmem:[#allocation8 + $0xa68] sm:$0xff]
    %v919 = vld [vmem:[#allocation8 + $0xa70] sm:$0xff]
    %v920 = vld [vmem:[#allocation8 + $0xa78] sm:$0xff]
    %v921 = vld [vmem:[#allocation8 + $0xa80] sm:$0xff]
    %v922 = vld [vmem:[#allocation8 + $0xa88] sm:$0xff]
    %v923 = vld [vmem:[#allocation8 + $0xa90] sm:$0xff]
    %v924 = vld [vmem:[#allocation8 + $0xa98] sm:$0xff]
    %v925 = vld [vmem:[#allocation8 + $0xaa0] sm:$0xff]
    %v926 = vld [vmem:[#allocation8 + $0xaa8] sm:$0xff]
    %v927 = vld [vmem:[#allocation8 + $0xab0] sm:$0xff]
    %v928 = vld [vmem:[#allocation8 + $0xab8] sm:$0xff]
    %v929 = vld [vmem:[#allocation8 + $0xac0] sm:$0xff]
    %v930 = vld [vmem:[#allocation8 + $0xac8] sm:$0xff]
    %v931 = vld [vmem:[#allocation8 + $0xad0] sm:$0xff]
    %v932 = vld [vmem:[#allocation8 + $0xad8] sm:$0xff]
    %v933 = vld [vmem:[#allocation8 + $0xae0] sm:$0xff]
    %v934 = vld [vmem:[#allocation8 + $0xae8] sm:$0xff]
    %v935 = vld [vmem:[#allocation8 + $0xaf0] sm:$0xff]
    %v936 = vld [vmem:[#allocation8 + $0xaf8] sm:$0xff]
    %v937 = vld [vmem:[#allocation8 + $0xb00] sm:$0xff]
    %v938 = vld [vmem:[#allocation8 + $0xb08] sm:$0xff]
    %v939 = vld [vmem:[#allocation8 + $0xb10] sm:$0xff]
    %v940 = vld [vmem:[#allocation8 + $0xb18] sm:$0xff]
    %v941 = vld [vmem:[#allocation8 + $0xb20] sm:$0xff]
    %v942 = vld [vmem:[#allocation8 + $0xb28] sm:$0xff]
    %v943 = vld [vmem:[#allocation8 + $0xb30] sm:$0xff]
    %v944 = vld [vmem:[#allocation8 + $0xb38] sm:$0xff]
    %v945 = vld [vmem:[#allocation8 + $0xb40] sm:$0xff]
    %v946 = vld [vmem:[#allocation8 + $0xb48] sm:$0xff]
    %v947 = vld [vmem:[#allocation8 + $0xb50] sm:$0xff]
    %v948 = vld [vmem:[#allocation8 + $0xb58] sm:$0xff]
    %v949 = vld [vmem:[#allocation8 + $0xb60] sm:$0xff]
    %v950 = vld [vmem:[#allocation8 + $0xb68] sm:$0xff]
    %v951 = vld [vmem:[#allocation8 + $0xb70] sm:$0xff]
    %v952 = vld [vmem:[#allocation8 + $0xb78] sm:$0xff]
    %v953 = vld [vmem:[#allocation8 + $0xb80] sm:$0xff]
    %v954 = vld [vmem:[#allocation8 + $0xb88] sm:$0xff]
    %v955 = vld [vmem:[#allocation8 + $0xb90] sm:$0xff]
    %v956 = vld [vmem:[#allocation8 + $0xb98] sm:$0xff]
    %v957 = vld [vmem:[#allocation8 + $0xba0] sm:$0xff]
    %v958 = vld [vmem:[#allocation8 + $0xba8] sm:$0xff]
    %v959 = vld [vmem:[#allocation8 + $0xbb0] sm:$0xff]
    %v960 = vld [vmem:[#allocation8 + $0xbb8] sm:$0xff]
    %v961 = vld [vmem:[#allocation8 + $0xbc0] sm:$0xff]
    %v962 = vld [vmem:[#allocation8 + $0xbc8] sm:$0xff]
    %v963 = vld [vmem:[#allocation8 + $0xbd0] sm:$0xff]
    %v964 = vld [vmem:[#allocation8 + $0xbd8] sm:$0xff]
    %v965 = vld [vmem:[#allocation8 + $0xbe0] sm:$0xff]
    %v966 = vld [vmem:[#allocation8 + $0xbe8] sm:$0xff]
    %v967 = vld [vmem:[#allocation8 + $0xbf0] sm:$0xff]
    %v968 = vld [vmem:[#allocation8 + $0xbf8] sm:$0xff]
    %v969 = vld [vmem:[#allocation8 + $0xc00] sm:$0xff]
    %v970 = vld [vmem:[#allocation8 + $0xc08] sm:$0xff]
    %v971 = vld [vmem:[#allocation8 + $0xc10] sm:$0xff]
    %v972 = vld [vmem:[#allocation8 + $0xc18] sm:$0xff]
    %v973 = vld [vmem:[#allocation8 + $0xc20] sm:$0xff]
    %v974 = vld [vmem:[#allocation8 + $0xc28] sm:$0xff]
    %v975 = vld [vmem:[#allocation8 + $0xc30] sm:$0xff]
    %v976 = vld [vmem:[#allocation8 + $0xc38] sm:$0xff]
    %v977 = vld [vmem:[#allocation8 + $0xc40] sm:$0xff]
    %v978 = vld [vmem:[#allocation8 + $0xc48] sm:$0xff]
    %v979 = vld [vmem:[#allocation8 + $0xc50] sm:$0xff]
    %v980 = vld [vmem:[#allocation8 + $0xc58] sm:$0xff]
    %v981 = vld [vmem:[#allocation8 + $0xc60] sm:$0xff]
    %v982 = vld [vmem:[#allocation8 + $0xc68] sm:$0xff]
    %v983 = vld [vmem:[#allocation8 + $0xc70] sm:$0xff]
    %v984 = vld [vmem:[#allocation8 + $0xc78] sm:$0xff]
    %v985 = vld [vmem:[#allocation8 + $0xc80] sm:$0xff]
    %v986 = vld [vmem:[#allocation8 + $0xc88] sm:$0xff]
    %v987 = vld [vmem:[#allocation8 + $0xc90] sm:$0xff]
    %v988 = vld [vmem:[#allocation8 + $0xc98] sm:$0xff]
    %v989 = vld [vmem:[#allocation8 + $0xca0] sm:$0xff]
    %v990 = vld [vmem:[#allocation8 + $0xca8] sm:$0xff]
    %v991 = vld [vmem:[#allocation8 + $0xcb0] sm:$0xff]
    %v992 = vld [vmem:[#allocation8 + $0xcb8] sm:$0xff]
    %v993 = vld [vmem:[#allocation8 + $0xcc0] sm:$0xff]
    %v994 = vld [vmem:[#allocation8 + $0xcc8] sm:$0xff]
    %v995 = vld [vmem:[#allocation8 + $0xcd0] sm:$0xff]
    %v996 = vld [vmem:[#allocation8 + $0xcd8] sm:$0xff]
    %v997 = vld [vmem:[#allocation8 + $0xce0] sm:$0xff]
    %v998 = vld [vmem:[#allocation8 + $0xce8] sm:$0xff]
    %v999 = vld [vmem:[#allocation8 + $0xcf0] sm:$0xff]
    %v1000 = vld [vmem:[#allocation8 + $0xcf8] sm:$0xff]
    %v1001 = vld [vmem:[#allocation8 + $0xd00] sm:$0xff]
    %v1002 = vld [vmem:[#allocation8 + $0xd08] sm:$0xff]
    %v1003 = vld [vmem:[#allocation8 + $0xd10] sm:$0xff]
    %v1004 = vld [vmem:[#allocation8 + $0xd18] sm:$0xff]
    %v1005 = vld [vmem:[#allocation8 + $0xd20] sm:$0xff]
    %v1006 = vld [vmem:[#allocation8 + $0xd28] sm:$0xff]
    %v1007 = vld [vmem:[#allocation8 + $0xd30] sm:$0xff]
    %v1008 = vld [vmem:[#allocation8 + $0xd38] sm:$0xff]
    %v1009 = vld [vmem:[#allocation8 + $0xd40] sm:$0xff]
    %v1010 = vld [vmem:[#allocation8 + $0xd48] sm:$0xff]
    %v1011 = vld [vmem:[#allocation8 + $0xd50] sm:$0xff]
    %v1012 = vld [vmem:[#allocation8 + $0xd58] sm:$0xff]
    %v1013 = vld [vmem:[#allocation8 + $0xd60] sm:$0xff]
    %v1014 = vld [vmem:[#allocation8 + $0xd68] sm:$0xff]
    %v1015 = vld [vmem:[#allocation8 + $0xd70] sm:$0xff]
    %v1016 = vld [vmem:[#allocation8 + $0xd78] sm:$0xff]
    %v1017 = vld [vmem:[#allocation8 + $0xd80] sm:$0xff]
    %v1018 = vld [vmem:[#allocation8 + $0xd88] sm:$0xff]
    %v1019 = vld [vmem:[#allocation8 + $0xd90] sm:$0xff]
    %v1020 = vld [vmem:[#allocation8 + $0xd98] sm:$0xff]
    %v1021 = vld [vmem:[#allocation8 + $0xda0] sm:$0xff]
    %v1022 = vld [vmem:[#allocation8 + $0xda8] sm:$0xff]
    %v1023 = vld [vmem:[#allocation8 + $0xdb0] sm:$0xff]
    %v1024 = vld [vmem:[#allocation8 + $0xdb8] sm:$0xff]
    %v1025 = vld [vmem:[#allocation8 + $0xdc0] sm:$0xff]
    %v1026 = vld [vmem:[#allocation8 + $0xdc8] sm:$0xff]
    %v1027 = vld [vmem:[#allocation8 + $0xdd0] sm:$0xff]
    %v1028 = vld [vmem:[#allocation8 + $0xdd8] sm:$0xff]
    %v1029 = vld [vmem:[#allocation8 + $0xde0] sm:$0xff]
    %v1030 = vld [vmem:[#allocation8 + $0xde8] sm:$0xff]
    %v1031 = vld [vmem:[#allocation8 + $0xdf0] sm:$0xff]
    %v1032 = vld [vmem:[#allocation8 + $0xdf8] sm:$0xff]
    %v1033 = vld [vmem:[#allocation8 + $0xe00] sm:$0xff]
    %v1034 = vld [vmem:[#allocation8 + $0xe08] sm:$0xff]
    %v1035 = vld [vmem:[#allocation8 + $0xe10] sm:$0xff]
    %v1036 = vld [vmem:[#allocation8 + $0xe18] sm:$0xff]
    %v1037 = vld [vmem:[#allocation8 + $0xe20] sm:$0xff]
    %v1038 = vld [vmem:[#allocation8 + $0xe28] sm:$0xff]
    %v1039 = vld [vmem:[#allocation8 + $0xe30] sm:$0xff]
    %v1040 = vld [vmem:[#allocation8 + $0xe38] sm:$0xff]
    %v1041 = vld [vmem:[#allocation8 + $0xe40] sm:$0xff]
    %v1042 = vld [vmem:[#allocation8 + $0xe48] sm:$0xff]
    %v1043 = vld [vmem:[#allocation8 + $0xe50] sm:$0xff]
    %v1044 = vld [vmem:[#allocation8 + $0xe58] sm:$0xff]
    %v1045 = vld [vmem:[#allocation8 + $0xe60] sm:$0xff]
    %v1046 = vld [vmem:[#allocation8 + $0xe68] sm:$0xff]
    %v1047 = vld [vmem:[#allocation8 + $0xe70] sm:$0xff]
    %v1048 = vld [vmem:[#allocation8 + $0xe78] sm:$0xff]
    %v1049 = vld [vmem:[#allocation8 + $0xe80] sm:$0xff]
    %v1050 = vld [vmem:[#allocation8 + $0xe88] sm:$0xff]
    %v1051 = vld [vmem:[#allocation8 + $0xe90] sm:$0xff]
    %v1052 = vld [vmem:[#allocation8 + $0xe98] sm:$0xff]
    %v1053 = vld [vmem:[#allocation8 + $0xea0] sm:$0xff]
    %v1054 = vld [vmem:[#allocation8 + $0xea8] sm:$0xff]
    %v1055 = vld [vmem:[#allocation8 + $0xeb0] sm:$0xff]
    %v1056 = vld [vmem:[#allocation8 + $0xeb8] sm:$0xff]
    %v1057 = vld [vmem:[#allocation8 + $0xec0] sm:$0xff]
    %v1058 = vld [vmem:[#allocation8 + $0xec8] sm:$0xff]
    %v1059 = vld [vmem:[#allocation8 + $0xed0] sm:$0xff]
    %v1060 = vld [vmem:[#allocation8 + $0xed8] sm:$0xff]
    %v1061 = vld [vmem:[#allocation8 + $0xee0] sm:$0xff]
    %v1062 = vld [vmem:[#allocation8 + $0xee8] sm:$0xff]
    %v1063 = vld [vmem:[#allocation8 + $0xef0] sm:$0xff]
    %v1064 = vld [vmem:[#allocation8 + $0xef8] sm:$0xff]
    %v1065 = vld [vmem:[#allocation8 + $0xf00] sm:$0xff]
    %v1066 = vld [vmem:[#allocation8 + $0xf08] sm:$0xff]
    %v1067 = vld [vmem:[#allocation8 + $0xf10] sm:$0xff]
    %v1068 = vld [vmem:[#allocation8 + $0xf18] sm:$0xff]
    %v1069 = vld [vmem:[#allocation8 + $0xf20] sm:$0xff]
    %v1070 = vld [vmem:[#allocation8 + $0xf28] sm:$0xff]
    %v1071 = vld [vmem:[#allocation8 + $0xf30] sm:$0xff]
    %v1072 = vld [vmem:[#allocation8 + $0xf38] sm:$0xff]
    %v1073 = vld [vmem:[#allocation8 + $0xf40] sm:$0xff]
    %v1074 = vld [vmem:[#allocation8 + $0xf48] sm:$0xff]
    %v1075 = vld [vmem:[#allocation8 + $0xf50] sm:$0xff]
    %v1076 = vld [vmem:[#allocation8 + $0xf58] sm:$0xff]
    %v1077 = vld [vmem:[#allocation8 + $0xf60] sm:$0xff]
    %v1078 = vld [vmem:[#allocation8 + $0xf68] sm:$0xff]
    %v1079 = vld [vmem:[#allocation8 + $0xf70] sm:$0xff]
    %v1080 = vld [vmem:[#allocation8 + $0xf78] sm:$0xff]
    %v1081 = vld [vmem:[#allocation8 + $0xf80] sm:$0xff]
    %v1082 = vld [vmem:[#allocation8 + $0xf88] sm:$0xff]
    %v1083 = vld [vmem:[#allocation8 + $0xf90] sm:$0xff]
    %v1084 = vld [vmem:[#allocation8 + $0xf98] sm:$0xff]
    %v1085 = vld [vmem:[#allocation8 + $0xfa0] sm:$0xff]
    %v1086 = vld [vmem:[#allocation8 + $0xfa8] sm:$0xff]
    %v1087 = vld [vmem:[#allocation8 + $0xfb0] sm:$0xff]
    %v1088 = vld [vmem:[#allocation8 + $0xfb8] sm:$0xff]
    %v1089 = vld [vmem:[#allocation8 + $0xfc0] sm:$0xff]
    %v1090 = vld [vmem:[#allocation8 + $0xfc8] sm:$0xff]
    %v1091 = vld [vmem:[#allocation8 + $0xfd0] sm:$0xff]
    %v1092 = vld [vmem:[#allocation8 + $0xfd8] sm:$0xff]
    %v1093 = vld [vmem:[#allocation8 + $0xfe0] sm:$0xff]
    %v1094 = vld [vmem:[#allocation8 + $0xfe8] sm:$0xff]
    %v1095 = vld [vmem:[#allocation8 + $0xff0] sm:$0xff]
    %v1096 = vld [vmem:[#allocation8 + $0xff8] sm:$0xff]
    %v1097 = vld [vmem:[#allocation10] sm:$0xff]
    %v1099 = vlaneseq
    %v1100 = vshrl.u32 %v1099, 7
    %v1101 = vsub.s32 0, %v1100
    %v1102 = vrot.slane %v1097, %v1101
    %v1103 = vlaneseq
    %v1104 = vshrl.u32 %v1103, 7
    %v1105 = vsub.s32 1, %v1104
    %v1106 = vrot.slane %v1097, %v1105
    %v1107 = vlaneseq
    %v1108 = vshrl.u32 %v1107, 7
    %v1109 = vsub.s32 2, %v1108
    %v1110 = vrot.slane %v1097, %v1109
    %v1111 = vlaneseq
    %v1112 = vshrl.u32 %v1111, 7
    %v1113 = vsub.s32 3, %v1112
    %v1114 = vrot.slane %v1097, %v1113
    %v1115 = vlaneseq
    %v1116 = vshrl.u32 %v1115, 7
    %v1117 = vsub.s32 4, %v1116
    %v1118 = vrot.slane %v1097, %v1117
    %v1119 = vlaneseq
    %v1120 = vshrl.u32 %v1119, 7
    %v1121 = vsub.s32 5, %v1120
    %v1122 = vrot.slane %v1097, %v1121
    %v1123 = vlaneseq
    %v1124 = vshrl.u32 %v1123, 7
    %v1125 = vsub.s32 6, %v1124
    %v1126 = vrot.slane %v1097, %v1125
    %v1127 = vlaneseq
    %v1128 = vshrl.u32 %v1127, 7
    %v1129 = vsub.s32 7, %v1128
    %v1130 = vrot.slane %v1097, %v1129
    %v1651 = vunpack.c.l.b16 %v585
    %v1652 = vunpack.c.h.b16 %v585
    %v1653 = vunpack.c.l.b16 %v586
    %v1654 = vunpack.c.h.b16 %v586
    %v1655 = vunpack.c.l.b16 %v587
    %v1656 = vunpack.c.h.b16 %v587
    %v1657 = vunpack.c.l.b16 %v588
    %v1658 = vunpack.c.h.b16 %v588
    %v1659 = vunpack.c.l.b16 %v589
    %v1660 = vunpack.c.h.b16 %v589
    %v1661 = vunpack.c.l.b16 %v590
    %v1662 = vunpack.c.h.b16 %v590
    %v1663 = vunpack.c.l.b16 %v591
    %v1664 = vunpack.c.h.b16 %v591
    %v1665 = vunpack.c.l.b16 %v592
    %v1666 = vunpack.c.h.b16 %v592
    %v1667 = vunpack.c.l.b16 %v593
    %v1668 = vunpack.c.h.b16 %v593
    %v1669 = vunpack.c.l.b16 %v594
    %v1670 = vunpack.c.h.b16 %v594
    %v1671 = vunpack.c.l.b16 %v595
    %v1672 = vunpack.c.h.b16 %v595
    %v1673 = vunpack.c.l.b16 %v596
    %v1674 = vunpack.c.h.b16 %v596
    %v1675 = vunpack.c.l.b16 %v597
    %v1676 = vunpack.c.h.b16 %v597
    %v1677 = vunpack.c.l.b16 %v598
    %v1678 = vunpack.c.h.b16 %v598
    %v1679 = vunpack.c.l.b16 %v599
    %v1680 = vunpack.c.h.b16 %v599
    %v1681 = vunpack.c.l.b16 %v600
    %v1682 = vunpack.c.h.b16 %v600
    %v1683 = vunpack.c.l.b16 %v601
    %v1684 = vunpack.c.h.b16 %v601
    %v1685 = vunpack.c.l.b16 %v602
    %v1686 = vunpack.c.h.b16 %v602
    %v1687 = vunpack.c.l.b16 %v603
    %v1688 = vunpack.c.h.b16 %v603
    %v1689 = vunpack.c.l.b16 %v604
    %v1690 = vunpack.c.h.b16 %v604
    %v1691 = vunpack.c.l.b16 %v605
    %v1692 = vunpack.c.h.b16 %v605
    %v1693 = vunpack.c.l.b16 %v606
    %v1694 = vunpack.c.h.b16 %v606
    %v1695 = vunpack.c.l.b16 %v607
    %v1696 = vunpack.c.h.b16 %v607
    %v1697 = vunpack.c.l.b16 %v608
    %v1698 = vunpack.c.h.b16 %v608
    %v1699 = vunpack.c.l.b16 %v609
    %v1700 = vunpack.c.h.b16 %v609
    %v1701 = vunpack.c.l.b16 %v610
    %v1702 = vunpack.c.h.b16 %v610
    %v1703 = vunpack.c.l.b16 %v611
    %v1704 = vunpack.c.h.b16 %v611
    %v1705 = vunpack.c.l.b16 %v612
    %v1706 = vunpack.c.h.b16 %v612
    %v1707 = vunpack.c.l.b16 %v613
    %v1708 = vunpack.c.h.b16 %v613
    %v1709 = vunpack.c.l.b16 %v614
    %v1710 = vunpack.c.h.b16 %v614
    %v1711 = vunpack.c.l.b16 %v615
    %v1712 = vunpack.c.h.b16 %v615
    %v1713 = vunpack.c.l.b16 %v616
    %v1714 = vunpack.c.h.b16 %v616
    %v1715 = vunpack.c.l.b16 %v617
    %v1716 = vunpack.c.h.b16 %v617
    %v1717 = vunpack.c.l.b16 %v618
    %v1718 = vunpack.c.h.b16 %v618
    %v1719 = vunpack.c.l.b16 %v619
    %v1720 = vunpack.c.h.b16 %v619
    %v1721 = vunpack.c.l.b16 %v620
    %v1722 = vunpack.c.h.b16 %v620
    %v1723 = vunpack.c.l.b16 %v621
    %v1724 = vunpack.c.h.b16 %v621
    %v1725 = vunpack.c.l.b16 %v622
    %v1726 = vunpack.c.h.b16 %v622
    %v1727 = vunpack.c.l.b16 %v623
    %v1728 = vunpack.c.h.b16 %v623
    %v1729 = vunpack.c.l.b16 %v624
    %v1730 = vunpack.c.h.b16 %v624
    %v1731 = vunpack.c.l.b16 %v625
    %v1732 = vunpack.c.h.b16 %v625
    %v1733 = vunpack.c.l.b16 %v626
    %v1734 = vunpack.c.h.b16 %v626
    %v1735 = vunpack.c.l.b16 %v627
    %v1736 = vunpack.c.h.b16 %v627
    %v1737 = vunpack.c.l.b16 %v628
    %v1738 = vunpack.c.h.b16 %v628
    %v1739 = vunpack.c.l.b16 %v629
    %v1740 = vunpack.c.h.b16 %v629
    %v1741 = vunpack.c.l.b16 %v630
    %v1742 = vunpack.c.h.b16 %v630
    %v1743 = vunpack.c.l.b16 %v631
    %v1744 = vunpack.c.h.b16 %v631
    %v1745 = vunpack.c.l.b16 %v632
    %v1746 = vunpack.c.h.b16 %v632
    %v1747 = vunpack.c.l.b16 %v633
    %v1748 = vunpack.c.h.b16 %v633
    %v1749 = vunpack.c.l.b16 %v634
    %v1750 = vunpack.c.h.b16 %v634
    %v1751 = vunpack.c.l.b16 %v635
    %v1752 = vunpack.c.h.b16 %v635
    %v1753 = vunpack.c.l.b16 %v636
    %v1754 = vunpack.c.h.b16 %v636
    %v1755 = vunpack.c.l.b16 %v637
    %v1756 = vunpack.c.h.b16 %v637
    %v1757 = vunpack.c.l.b16 %v638
    %v1758 = vunpack.c.h.b16 %v638
    %v1759 = vunpack.c.l.b16 %v639
    %v1760 = vunpack.c.h.b16 %v639
    %v1761 = vunpack.c.l.b16 %v640
    %v1762 = vunpack.c.h.b16 %v640
    %v1763 = vunpack.c.l.b16 %v641
    %v1764 = vunpack.c.h.b16 %v641
    %v1765 = vunpack.c.l.b16 %v642
    %v1766 = vunpack.c.h.b16 %v642
    %v1767 = vunpack.c.l.b16 %v643
    %v1768 = vunpack.c.h.b16 %v643
    %v1769 = vunpack.c.l.b16 %v644
    %v1770 = vunpack.c.h.b16 %v644
    %v1771 = vunpack.c.l.b16 %v645
    %v1772 = vunpack.c.h.b16 %v645
    %v1773 = vunpack.c.l.b16 %v646
    %v1774 = vunpack.c.h.b16 %v646
    %v1775 = vunpack.c.l.b16 %v647
    %v1776 = vunpack.c.h.b16 %v647
    %v1777 = vunpack.c.l.b16 %v648
    %v1778 = vunpack.c.h.b16 %v648
    %v1779 = vunpack.c.l.b16 %v649
    %v1780 = vunpack.c.h.b16 %v649
    %v1781 = vunpack.c.l.b16 %v650
    %v1782 = vunpack.c.h.b16 %v650
    %v1783 = vunpack.c.l.b16 %v651
    %v1784 = vunpack.c.h.b16 %v651
    %v1785 = vunpack.c.l.b16 %v652
    %v1786 = vunpack.c.h.b16 %v652
    %v1787 = vunpack.c.l.b16 %v653
    %v1788 = vunpack.c.h.b16 %v653
    %v1789 = vunpack.c.l.b16 %v654
    %v1790 = vunpack.c.h.b16 %v654
    %v1791 = vunpack.c.l.b16 %v655
    %v1792 = vunpack.c.h.b16 %v655
    %v1793 = vunpack.c.l.b16 %v656
    %v1794 = vunpack.c.h.b16 %v656
    %v1795 = vunpack.c.l.b16 %v657
    %v1796 = vunpack.c.h.b16 %v657
    %v1797 = vunpack.c.l.b16 %v658
    %v1798 = vunpack.c.h.b16 %v658
    %v1799 = vunpack.c.l.b16 %v659
    %v1800 = vunpack.c.h.b16 %v659
    %v1801 = vunpack.c.l.b16 %v660
    %v1802 = vunpack.c.h.b16 %v660
    %v1803 = vunpack.c.l.b16 %v661
    %v1804 = vunpack.c.h.b16 %v661
    %v1805 = vunpack.c.l.b16 %v662
    %v1806 = vunpack.c.h.b16 %v662
    %v1807 = vunpack.c.l.b16 %v663
    %v1808 = vunpack.c.h.b16 %v663
    %v1809 = vunpack.c.l.b16 %v664
    %v1810 = vunpack.c.h.b16 %v664
    %v1811 = vunpack.c.l.b16 %v665
    %v1812 = vunpack.c.h.b16 %v665
    %v1813 = vunpack.c.l.b16 %v666
    %v1814 = vunpack.c.h.b16 %v666
    %v1815 = vunpack.c.l.b16 %v667
    %v1816 = vunpack.c.h.b16 %v667
    %v1817 = vunpack.c.l.b16 %v668
    %v1818 = vunpack.c.h.b16 %v668
    %v1819 = vunpack.c.l.b16 %v669
    %v1820 = vunpack.c.h.b16 %v669
    %v1821 = vunpack.c.l.b16 %v670
    %v1822 = vunpack.c.h.b16 %v670
    %v1823 = vunpack.c.l.b16 %v671
    %v1824 = vunpack.c.h.b16 %v671
    %v1825 = vunpack.c.l.b16 %v672
    %v1826 = vunpack.c.h.b16 %v672
    %v1827 = vunpack.c.l.b16 %v673
    %v1828 = vunpack.c.h.b16 %v673
    %v1829 = vunpack.c.l.b16 %v674
    %v1830 = vunpack.c.h.b16 %v674
    %v1831 = vunpack.c.l.b16 %v675
    %v1832 = vunpack.c.h.b16 %v675
    %v1833 = vunpack.c.l.b16 %v676
    %v1834 = vunpack.c.h.b16 %v676
    %v1835 = vunpack.c.l.b16 %v677
    %v1836 = vunpack.c.h.b16 %v677
    %v1837 = vunpack.c.l.b16 %v678
    %v1838 = vunpack.c.h.b16 %v678
    %v1839 = vunpack.c.l.b16 %v679
    %v1840 = vunpack.c.h.b16 %v679
    %v1841 = vunpack.c.l.b16 %v680
    %v1842 = vunpack.c.h.b16 %v680
    %v1843 = vunpack.c.l.b16 %v681
    %v1844 = vunpack.c.h.b16 %v681
    %v1845 = vunpack.c.l.b16 %v682
    %v1846 = vunpack.c.h.b16 %v682
    %v1847 = vunpack.c.l.b16 %v683
    %v1848 = vunpack.c.h.b16 %v683
    %v1849 = vunpack.c.l.b16 %v684
    %v1850 = vunpack.c.h.b16 %v684
    %v1851 = vunpack.c.l.b16 %v685
    %v1852 = vunpack.c.h.b16 %v685
    %v1853 = vunpack.c.l.b16 %v686
    %v1854 = vunpack.c.h.b16 %v686
    %v1855 = vunpack.c.l.b16 %v687
    %v1856 = vunpack.c.h.b16 %v687
    %v1857 = vunpack.c.l.b16 %v688
    %v1858 = vunpack.c.h.b16 %v688
    %v1859 = vunpack.c.l.b16 %v689
    %v1860 = vunpack.c.h.b16 %v689
    %v1861 = vunpack.c.l.b16 %v690
    %v1862 = vunpack.c.h.b16 %v690
    %v1863 = vunpack.c.l.b16 %v691
    %v1864 = vunpack.c.h.b16 %v691
    %v1865 = vunpack.c.l.b16 %v692
    %v1866 = vunpack.c.h.b16 %v692
    %v1867 = vunpack.c.l.b16 %v693
    %v1868 = vunpack.c.h.b16 %v693
    %v1869 = vunpack.c.l.b16 %v694
    %v1870 = vunpack.c.h.b16 %v694
    %v1871 = vunpack.c.l.b16 %v695
    %v1872 = vunpack.c.h.b16 %v695
    %v1873 = vunpack.c.l.b16 %v696
    %v1874 = vunpack.c.h.b16 %v696
    %v1875 = vunpack.c.l.b16 %v697
    %v1876 = vunpack.c.h.b16 %v697
    %v1877 = vunpack.c.l.b16 %v698
    %v1878 = vunpack.c.h.b16 %v698
    %v1879 = vunpack.c.l.b16 %v699
    %v1880 = vunpack.c.h.b16 %v699
    %v1881 = vunpack.c.l.b16 %v700
    %v1882 = vunpack.c.h.b16 %v700
    %v1883 = vunpack.c.l.b16 %v701
    %v1884 = vunpack.c.h.b16 %v701
    %v1885 = vunpack.c.l.b16 %v702
    %v1886 = vunpack.c.h.b16 %v702
    %v1887 = vunpack.c.l.b16 %v703
    %v1888 = vunpack.c.h.b16 %v703
    %v1889 = vunpack.c.l.b16 %v704
    %v1890 = vunpack.c.h.b16 %v704
    %v1891 = vunpack.c.l.b16 %v705
    %v1892 = vunpack.c.h.b16 %v705
    %v1893 = vunpack.c.l.b16 %v706
    %v1894 = vunpack.c.h.b16 %v706
    %v1895 = vunpack.c.l.b16 %v707
    %v1896 = vunpack.c.h.b16 %v707
    %v1897 = vunpack.c.l.b16 %v708
    %v1898 = vunpack.c.h.b16 %v708
    %v1899 = vunpack.c.l.b16 %v709
    %v1900 = vunpack.c.h.b16 %v709
    %v1901 = vunpack.c.l.b16 %v710
    %v1902 = vunpack.c.h.b16 %v710
    %v1903 = vunpack.c.l.b16 %v711
    %v1904 = vunpack.c.h.b16 %v711
    %v1905 = vunpack.c.l.b16 %v712
    %v1906 = vunpack.c.h.b16 %v712
    %v1907 = vunpack.c.l.b16 %v713
    %v1908 = vunpack.c.h.b16 %v713
    %v1909 = vunpack.c.l.b16 %v714
    %v1910 = vunpack.c.h.b16 %v714
    %v1911 = vunpack.c.l.b16 %v715
    %v1912 = vunpack.c.h.b16 %v715
    %v1913 = vunpack.c.l.b16 %v716
    %v1914 = vunpack.c.h.b16 %v716
    %v1915 = vunpack.c.l.b16 %v717
    %v1916 = vunpack.c.h.b16 %v717
    %v1917 = vunpack.c.l.b16 %v718
    %v1918 = vunpack.c.h.b16 %v718
    %v1919 = vunpack.c.l.b16 %v719
    %v1920 = vunpack.c.h.b16 %v719
    %v1921 = vunpack.c.l.b16 %v720
    %v1922 = vunpack.c.h.b16 %v720
    %v1923 = vunpack.c.l.b16 %v721
    %v1924 = vunpack.c.h.b16 %v721
    %v1925 = vunpack.c.l.b16 %v722
    %v1926 = vunpack.c.h.b16 %v722
    %v1927 = vunpack.c.l.b16 %v723
    %v1928 = vunpack.c.h.b16 %v723
    %v1929 = vunpack.c.l.b16 %v724
    %v1930 = vunpack.c.h.b16 %v724
    %v1931 = vunpack.c.l.b16 %v725
    %v1932 = vunpack.c.h.b16 %v725
    %v1933 = vunpack.c.l.b16 %v726
    %v1934 = vunpack.c.h.b16 %v726
    %v1935 = vunpack.c.l.b16 %v727
    %v1936 = vunpack.c.h.b16 %v727
    %v1937 = vunpack.c.l.b16 %v728
    %v1938 = vunpack.c.h.b16 %v728
    %v1939 = vunpack.c.l.b16 %v729
    %v1940 = vunpack.c.h.b16 %v729
    %v1941 = vunpack.c.l.b16 %v730
    %v1942 = vunpack.c.h.b16 %v730
    %v1943 = vunpack.c.l.b16 %v731
    %v1944 = vunpack.c.h.b16 %v731
    %v1945 = vunpack.c.l.b16 %v732
    %v1946 = vunpack.c.h.b16 %v732
    %v1947 = vunpack.c.l.b16 %v733
    %v1948 = vunpack.c.h.b16 %v733
    %v1949 = vunpack.c.l.b16 %v734
    %v1950 = vunpack.c.h.b16 %v734
    %v1951 = vunpack.c.l.b16 %v735
    %v1952 = vunpack.c.h.b16 %v735
    %v1953 = vunpack.c.l.b16 %v736
    %v1954 = vunpack.c.h.b16 %v736
    %v1955 = vunpack.c.l.b16 %v737
    %v1956 = vunpack.c.h.b16 %v737
    %v1957 = vunpack.c.l.b16 %v738
    %v1958 = vunpack.c.h.b16 %v738
    %v1959 = vunpack.c.l.b16 %v739
    %v1960 = vunpack.c.h.b16 %v739
    %v1961 = vunpack.c.l.b16 %v740
    %v1962 = vunpack.c.h.b16 %v740
    %v1963 = vunpack.c.l.b16 %v741
    %v1964 = vunpack.c.h.b16 %v741
    %v1965 = vunpack.c.l.b16 %v742
    %v1966 = vunpack.c.h.b16 %v742
    %v1967 = vunpack.c.l.b16 %v743
    %v1968 = vunpack.c.h.b16 %v743
    %v1969 = vunpack.c.l.b16 %v744
    %v1970 = vunpack.c.h.b16 %v744
    %v1971 = vunpack.c.l.b16 %v745
    %v1972 = vunpack.c.h.b16 %v745
    %v1973 = vunpack.c.l.b16 %v746
    %v1974 = vunpack.c.h.b16 %v746
    %v1975 = vunpack.c.l.b16 %v747
    %v1976 = vunpack.c.h.b16 %v747
    %v1977 = vunpack.c.l.b16 %v748
    %v1978 = vunpack.c.h.b16 %v748
    %v1979 = vunpack.c.l.b16 %v749
    %v1980 = vunpack.c.h.b16 %v749
    %v1981 = vunpack.c.l.b16 %v750
    %v1982 = vunpack.c.h.b16 %v750
    %v1983 = vunpack.c.l.b16 %v751
    %v1984 = vunpack.c.h.b16 %v751
    %v1985 = vunpack.c.l.b16 %v752
    %v1986 = vunpack.c.h.b16 %v752
    %v1987 = vunpack.c.l.b16 %v753
    %v1988 = vunpack.c.h.b16 %v753
    %v1989 = vunpack.c.l.b16 %v754
    %v1990 = vunpack.c.h.b16 %v754
    %v1991 = vunpack.c.l.b16 %v755
    %v1992 = vunpack.c.h.b16 %v755
    %v1993 = vunpack.c.l.b16 %v756
    %v1994 = vunpack.c.h.b16 %v756
    %v1995 = vunpack.c.l.b16 %v757
    %v1996 = vunpack.c.h.b16 %v757
    %v1997 = vunpack.c.l.b16 %v758
    %v1998 = vunpack.c.h.b16 %v758
    %v1999 = vunpack.c.l.b16 %v759
    %v2000 = vunpack.c.h.b16 %v759
    %v2001 = vunpack.c.l.b16 %v760
    %v2002 = vunpack.c.h.b16 %v760
    %v2003 = vunpack.c.l.b16 %v761
    %v2004 = vunpack.c.h.b16 %v761
    %v2005 = vunpack.c.l.b16 %v762
    %v2006 = vunpack.c.h.b16 %v762
    %v2007 = vunpack.c.l.b16 %v763
    %v2008 = vunpack.c.h.b16 %v763
    %v2009 = vunpack.c.l.b16 %v764
    %v2010 = vunpack.c.h.b16 %v764
    %v2011 = vunpack.c.l.b16 %v765
    %v2012 = vunpack.c.h.b16 %v765
    %v2013 = vunpack.c.l.b16 %v766
    %v2014 = vunpack.c.h.b16 %v766
    %v2015 = vunpack.c.l.b16 %v767
    %v2016 = vunpack.c.h.b16 %v767
    %v2017 = vunpack.c.l.b16 %v768
    %v2018 = vunpack.c.h.b16 %v768
    %v2019 = vunpack.c.l.b16 %v769
    %v2020 = vunpack.c.h.b16 %v769
    %v2021 = vunpack.c.l.b16 %v770
    %v2022 = vunpack.c.h.b16 %v770
    %v2023 = vunpack.c.l.b16 %v771
    %v2024 = vunpack.c.h.b16 %v771
    %v2025 = vunpack.c.l.b16 %v772
    %v2026 = vunpack.c.h.b16 %v772
    %v2027 = vunpack.c.l.b16 %v773
    %v2028 = vunpack.c.h.b16 %v773
    %v2029 = vunpack.c.l.b16 %v774
    %v2030 = vunpack.c.h.b16 %v774
    %v2031 = vunpack.c.l.b16 %v775
    %v2032 = vunpack.c.h.b16 %v775
    %v2033 = vunpack.c.l.b16 %v776
    %v2034 = vunpack.c.h.b16 %v776
    %v2035 = vunpack.c.l.b16 %v777
    %v2036 = vunpack.c.h.b16 %v777
    %v2037 = vunpack.c.l.b16 %v778
    %v2038 = vunpack.c.h.b16 %v778
    %v2039 = vunpack.c.l.b16 %v779
    %v2040 = vunpack.c.h.b16 %v779
    %v2041 = vunpack.c.l.b16 %v780
    %v2042 = vunpack.c.h.b16 %v780
    %v2043 = vunpack.c.l.b16 %v781
    %v2044 = vunpack.c.h.b16 %v781
    %v2045 = vunpack.c.l.b16 %v782
    %v2046 = vunpack.c.h.b16 %v782
    %v2047 = vunpack.c.l.b16 %v783
    %v2048 = vunpack.c.h.b16 %v783
    %v2049 = vunpack.c.l.b16 %v784
    %v2050 = vunpack.c.h.b16 %v784
    %v2051 = vunpack.c.l.b16 %v785
    %v2052 = vunpack.c.h.b16 %v785
    %v2053 = vunpack.c.l.b16 %v786
    %v2054 = vunpack.c.h.b16 %v786
    %v2055 = vunpack.c.l.b16 %v787
    %v2056 = vunpack.c.h.b16 %v787
    %v2057 = vunpack.c.l.b16 %v788
    %v2058 = vunpack.c.h.b16 %v788
    %v2059 = vunpack.c.l.b16 %v789
    %v2060 = vunpack.c.h.b16 %v789
    %v2061 = vunpack.c.l.b16 %v790
    %v2062 = vunpack.c.h.b16 %v790
    %v2063 = vunpack.c.l.b16 %v791
    %v2064 = vunpack.c.h.b16 %v791
    %v2065 = vunpack.c.l.b16 %v792
    %v2066 = vunpack.c.h.b16 %v792
    %v2067 = vunpack.c.l.b16 %v793
    %v2068 = vunpack.c.h.b16 %v793
    %v2069 = vunpack.c.l.b16 %v794
    %v2070 = vunpack.c.h.b16 %v794
    %v2071 = vunpack.c.l.b16 %v795
    %v2072 = vunpack.c.h.b16 %v795
    %v2073 = vunpack.c.l.b16 %v796
    %v2074 = vunpack.c.h.b16 %v796
    %v2075 = vunpack.c.l.b16 %v797
    %v2076 = vunpack.c.h.b16 %v797
    %v2077 = vunpack.c.l.b16 %v798
    %v2078 = vunpack.c.h.b16 %v798
    %v2079 = vunpack.c.l.b16 %v799
    %v2080 = vunpack.c.h.b16 %v799
    %v2081 = vunpack.c.l.b16 %v800
    %v2082 = vunpack.c.h.b16 %v800
    %v2083 = vunpack.c.l.b16 %v801
    %v2084 = vunpack.c.h.b16 %v801
    %v2085 = vunpack.c.l.b16 %v802
    %v2086 = vunpack.c.h.b16 %v802
    %v2087 = vunpack.c.l.b16 %v803
    %v2088 = vunpack.c.h.b16 %v803
    %v2089 = vunpack.c.l.b16 %v804
    %v2090 = vunpack.c.h.b16 %v804
    %v2091 = vunpack.c.l.b16 %v805
    %v2092 = vunpack.c.h.b16 %v805
    %v2093 = vunpack.c.l.b16 %v806
    %v2094 = vunpack.c.h.b16 %v806
    %v2095 = vunpack.c.l.b16 %v807
    %v2096 = vunpack.c.h.b16 %v807
    %v2097 = vunpack.c.l.b16 %v808
    %v2098 = vunpack.c.h.b16 %v808
    %v2099 = vunpack.c.l.b16 %v809
    %v2100 = vunpack.c.h.b16 %v809
    %v2101 = vunpack.c.l.b16 %v810
    %v2102 = vunpack.c.h.b16 %v810
    %v2103 = vunpack.c.l.b16 %v811
    %v2104 = vunpack.c.h.b16 %v811
    %v2105 = vunpack.c.l.b16 %v812
    %v2106 = vunpack.c.h.b16 %v812
    %v2107 = vunpack.c.l.b16 %v813
    %v2108 = vunpack.c.h.b16 %v813
    %v2109 = vunpack.c.l.b16 %v814
    %v2110 = vunpack.c.h.b16 %v814
    %v2111 = vunpack.c.l.b16 %v815
    %v2112 = vunpack.c.h.b16 %v815
    %v2113 = vunpack.c.l.b16 %v816
    %v2114 = vunpack.c.h.b16 %v816
    %v2115 = vunpack.c.l.b16 %v817
    %v2116 = vunpack.c.h.b16 %v817
    %v2117 = vunpack.c.l.b16 %v818
    %v2118 = vunpack.c.h.b16 %v818
    %v2119 = vunpack.c.l.b16 %v819
    %v2120 = vunpack.c.h.b16 %v819
    %v2121 = vunpack.c.l.b16 %v820
    %v2122 = vunpack.c.h.b16 %v820
    %v2123 = vunpack.c.l.b16 %v821
    %v2124 = vunpack.c.h.b16 %v821
    %v2125 = vunpack.c.l.b16 %v822
    %v2126 = vunpack.c.h.b16 %v822
    %v2127 = vunpack.c.l.b16 %v823
    %v2128 = vunpack.c.h.b16 %v823
    %v2129 = vunpack.c.l.b16 %v824
    %v2130 = vunpack.c.h.b16 %v824
    %v2131 = vunpack.c.l.b16 %v825
    %v2132 = vunpack.c.h.b16 %v825
    %v2133 = vunpack.c.l.b16 %v826
    %v2134 = vunpack.c.h.b16 %v826
    %v2135 = vunpack.c.l.b16 %v827
    %v2136 = vunpack.c.h.b16 %v827
    %v2137 = vunpack.c.l.b16 %v828
    %v2138 = vunpack.c.h.b16 %v828
    %v2139 = vunpack.c.l.b16 %v829
    %v2140 = vunpack.c.h.b16 %v829
    %v2141 = vunpack.c.l.b16 %v830
    %v2142 = vunpack.c.h.b16 %v830
    %v2143 = vunpack.c.l.b16 %v831
    %v2144 = vunpack.c.h.b16 %v831
    %v2145 = vunpack.c.l.b16 %v832
    %v2146 = vunpack.c.h.b16 %v832
    %v2147 = vunpack.c.l.b16 %v833
    %v2148 = vunpack.c.h.b16 %v833
    %v2149 = vunpack.c.l.b16 %v834
    %v2150 = vunpack.c.h.b16 %v834
    %v2151 = vunpack.c.l.b16 %v835
    %v2152 = vunpack.c.h.b16 %v835
    %v2153 = vunpack.c.l.b16 %v836
    %v2154 = vunpack.c.h.b16 %v836
    %v2155 = vunpack.c.l.b16 %v837
    %v2156 = vunpack.c.h.b16 %v837
    %v2157 = vunpack.c.l.b16 %v838
    %v2158 = vunpack.c.h.b16 %v838
    %v2159 = vunpack.c.l.b16 %v839
    %v2160 = vunpack.c.h.b16 %v839
    %v2161 = vunpack.c.l.b16 %v840
    %v2162 = vunpack.c.h.b16 %v840
    %v2163 = vunpack.c.l.b16 %v841
    %v2164 = vunpack.c.h.b16 %v841
    %v2165 = vunpack.c.l.b16 %v842
    %v2166 = vunpack.c.h.b16 %v842
    %v2167 = vunpack.c.l.b16 %v843
    %v2168 = vunpack.c.h.b16 %v843
    %v2169 = vunpack.c.l.b16 %v844
    %v2170 = vunpack.c.h.b16 %v844
    %v2171 = vunpack.c.l.b16 %v845
    %v2172 = vunpack.c.h.b16 %v845
    %v2173 = vunpack.c.l.b16 %v846
    %v2174 = vunpack.c.h.b16 %v846
    %v2175 = vunpack.c.l.b16 %v847
    %v2176 = vunpack.c.h.b16 %v847
    %v2177 = vunpack.c.l.b16 %v848
    %v2178 = vunpack.c.h.b16 %v848
    %v2179 = vunpack.c.l.b16 %v849
    %v2180 = vunpack.c.h.b16 %v849
    %v2181 = vunpack.c.l.b16 %v850
    %v2182 = vunpack.c.h.b16 %v850
    %v2183 = vunpack.c.l.b16 %v851
    %v2184 = vunpack.c.h.b16 %v851
    %v2185 = vunpack.c.l.b16 %v852
    %v2186 = vunpack.c.h.b16 %v852
    %v2187 = vunpack.c.l.b16 %v853
    %v2188 = vunpack.c.h.b16 %v853
    %v2189 = vunpack.c.l.b16 %v854
    %v2190 = vunpack.c.h.b16 %v854
    %v2191 = vunpack.c.l.b16 %v855
    %v2192 = vunpack.c.h.b16 %v855
    %v2193 = vunpack.c.l.b16 %v856
    %v2194 = vunpack.c.h.b16 %v856
    %v2195 = vunpack.c.l.b16 %v857
    %v2196 = vunpack.c.h.b16 %v857
    %v2197 = vunpack.c.l.b16 %v858
    %v2198 = vunpack.c.h.b16 %v858
    %v2199 = vunpack.c.l.b16 %v859
    %v2200 = vunpack.c.h.b16 %v859
    %v2201 = vunpack.c.l.b16 %v860
    %v2202 = vunpack.c.h.b16 %v860
    %v2203 = vunpack.c.l.b16 %v861
    %v2204 = vunpack.c.h.b16 %v861
    %v2205 = vunpack.c.l.b16 %v862
    %v2206 = vunpack.c.h.b16 %v862
    %v2207 = vunpack.c.l.b16 %v863
    %v2208 = vunpack.c.h.b16 %v863
    %v2209 = vunpack.c.l.b16 %v864
    %v2210 = vunpack.c.h.b16 %v864
    %v2211 = vunpack.c.l.b16 %v865
    %v2212 = vunpack.c.h.b16 %v865
    %v2213 = vunpack.c.l.b16 %v866
    %v2214 = vunpack.c.h.b16 %v866
    %v2215 = vunpack.c.l.b16 %v867
    %v2216 = vunpack.c.h.b16 %v867
    %v2217 = vunpack.c.l.b16 %v868
    %v2218 = vunpack.c.h.b16 %v868
    %v2219 = vunpack.c.l.b16 %v869
    %v2220 = vunpack.c.h.b16 %v869
    %v2221 = vunpack.c.l.b16 %v870
    %v2222 = vunpack.c.h.b16 %v870
    %v2223 = vunpack.c.l.b16 %v871
    %v2224 = vunpack.c.h.b16 %v871
    %v2225 = vunpack.c.l.b16 %v872
    %v2226 = vunpack.c.h.b16 %v872
    %v2227 = vunpack.c.l.b16 %v873
    %v2228 = vunpack.c.h.b16 %v873
    %v2229 = vunpack.c.l.b16 %v874
    %v2230 = vunpack.c.h.b16 %v874
    %v2231 = vunpack.c.l.b16 %v875
    %v2232 = vunpack.c.h.b16 %v875
    %v2233 = vunpack.c.l.b16 %v876
    %v2234 = vunpack.c.h.b16 %v876
    %v2235 = vunpack.c.l.b16 %v877
    %v2236 = vunpack.c.h.b16 %v877
    %v2237 = vunpack.c.l.b16 %v878
    %v2238 = vunpack.c.h.b16 %v878
    %v2239 = vunpack.c.l.b16 %v879
    %v2240 = vunpack.c.h.b16 %v879
    %v2241 = vunpack.c.l.b16 %v880
    %v2242 = vunpack.c.h.b16 %v880
    %v2243 = vunpack.c.l.b16 %v881
    %v2244 = vunpack.c.h.b16 %v881
    %v2245 = vunpack.c.l.b16 %v882
    %v2246 = vunpack.c.h.b16 %v882
    %v2247 = vunpack.c.l.b16 %v883
    %v2248 = vunpack.c.h.b16 %v883
    %v2249 = vunpack.c.l.b16 %v884
    %v2250 = vunpack.c.h.b16 %v884
    %v2251 = vunpack.c.l.b16 %v885
    %v2252 = vunpack.c.h.b16 %v885
    %v2253 = vunpack.c.l.b16 %v886
    %v2254 = vunpack.c.h.b16 %v886
    %v2255 = vunpack.c.l.b16 %v887
    %v2256 = vunpack.c.h.b16 %v887
    %v2257 = vunpack.c.l.b16 %v888
    %v2258 = vunpack.c.h.b16 %v888
    %v2259 = vunpack.c.l.b16 %v889
    %v2260 = vunpack.c.h.b16 %v889
    %v2261 = vunpack.c.l.b16 %v890
    %v2262 = vunpack.c.h.b16 %v890
    %v2263 = vunpack.c.l.b16 %v891
    %v2264 = vunpack.c.h.b16 %v891
    %v2265 = vunpack.c.l.b16 %v892
    %v2266 = vunpack.c.h.b16 %v892
    %v2267 = vunpack.c.l.b16 %v893
    %v2268 = vunpack.c.h.b16 %v893
    %v2269 = vunpack.c.l.b16 %v894
    %v2270 = vunpack.c.h.b16 %v894
    %v2271 = vunpack.c.l.b16 %v895
    %v2272 = vunpack.c.h.b16 %v895
    %v2273 = vunpack.c.l.b16 %v896
    %v2274 = vunpack.c.h.b16 %v896
    %v2275 = vunpack.c.l.b16 %v897
    %v2276 = vunpack.c.h.b16 %v897
    %v2277 = vunpack.c.l.b16 %v898
    %v2278 = vunpack.c.h.b16 %v898
    %v2279 = vunpack.c.l.b16 %v899
    %v2280 = vunpack.c.h.b16 %v899
    %v2281 = vunpack.c.l.b16 %v900
    %v2282 = vunpack.c.h.b16 %v900
    %v2283 = vunpack.c.l.b16 %v901
    %v2284 = vunpack.c.h.b16 %v901
    %v2285 = vunpack.c.l.b16 %v902
    %v2286 = vunpack.c.h.b16 %v902
    %v2287 = vunpack.c.l.b16 %v903
    %v2288 = vunpack.c.h.b16 %v903
    %v2289 = vunpack.c.l.b16 %v904
    %v2290 = vunpack.c.h.b16 %v904
    %v2291 = vunpack.c.l.b16 %v905
    %v2292 = vunpack.c.h.b16 %v905
    %v2293 = vunpack.c.l.b16 %v906
    %v2294 = vunpack.c.h.b16 %v906
    %v2295 = vunpack.c.l.b16 %v907
    %v2296 = vunpack.c.h.b16 %v907
    %v2297 = vunpack.c.l.b16 %v908
    %v2298 = vunpack.c.h.b16 %v908
    %v2299 = vunpack.c.l.b16 %v909
    %v2300 = vunpack.c.h.b16 %v909
    %v2301 = vunpack.c.l.b16 %v910
    %v2302 = vunpack.c.h.b16 %v910
    %v2303 = vunpack.c.l.b16 %v911
    %v2304 = vunpack.c.h.b16 %v911
    %v2305 = vunpack.c.l.b16 %v912
    %v2306 = vunpack.c.h.b16 %v912
    %v2307 = vunpack.c.l.b16 %v913
    %v2308 = vunpack.c.h.b16 %v913
    %v2309 = vunpack.c.l.b16 %v914
    %v2310 = vunpack.c.h.b16 %v914
    %v2311 = vunpack.c.l.b16 %v915
    %v2312 = vunpack.c.h.b16 %v915
    %v2313 = vunpack.c.l.b16 %v916
    %v2314 = vunpack.c.h.b16 %v916
    %v2315 = vunpack.c.l.b16 %v917
    %v2316 = vunpack.c.h.b16 %v917
    %v2317 = vunpack.c.l.b16 %v918
    %v2318 = vunpack.c.h.b16 %v918
    %v2319 = vunpack.c.l.b16 %v919
    %v2320 = vunpack.c.h.b16 %v919
    %v2321 = vunpack.c.l.b16 %v920
    %v2322 = vunpack.c.h.b16 %v920
    %v2323 = vunpack.c.l.b16 %v921
    %v2324 = vunpack.c.h.b16 %v921
    %v2325 = vunpack.c.l.b16 %v922
    %v2326 = vunpack.c.h.b16 %v922
    %v2327 = vunpack.c.l.b16 %v923
    %v2328 = vunpack.c.h.b16 %v923
    %v2329 = vunpack.c.l.b16 %v924
    %v2330 = vunpack.c.h.b16 %v924
    %v2331 = vunpack.c.l.b16 %v925
    %v2332 = vunpack.c.h.b16 %v925
    %v2333 = vunpack.c.l.b16 %v926
    %v2334 = vunpack.c.h.b16 %v926
    %v2335 = vunpack.c.l.b16 %v927
    %v2336 = vunpack.c.h.b16 %v927
    %v2337 = vunpack.c.l.b16 %v928
    %v2338 = vunpack.c.h.b16 %v928
    %v2339 = vunpack.c.l.b16 %v929
    %v2340 = vunpack.c.h.b16 %v929
    %v2341 = vunpack.c.l.b16 %v930
    %v2342 = vunpack.c.h.b16 %v930
    %v2343 = vunpack.c.l.b16 %v931
    %v2344 = vunpack.c.h.b16 %v931
    %v2345 = vunpack.c.l.b16 %v932
    %v2346 = vunpack.c.h.b16 %v932
    %v2347 = vunpack.c.l.b16 %v933
    %v2348 = vunpack.c.h.b16 %v933
    %v2349 = vunpack.c.l.b16 %v934
    %v2350 = vunpack.c.h.b16 %v934
    %v2351 = vunpack.c.l.b16 %v935
    %v2352 = vunpack.c.h.b16 %v935
    %v2353 = vunpack.c.l.b16 %v936
    %v2354 = vunpack.c.h.b16 %v936
    %v2355 = vunpack.c.l.b16 %v937
    %v2356 = vunpack.c.h.b16 %v937
    %v2357 = vunpack.c.l.b16 %v938
    %v2358 = vunpack.c.h.b16 %v938
    %v2359 = vunpack.c.l.b16 %v939
    %v2360 = vunpack.c.h.b16 %v939
    %v2361 = vunpack.c.l.b16 %v940
    %v2362 = vunpack.c.h.b16 %v940
    %v2363 = vunpack.c.l.b16 %v941
    %v2364 = vunpack.c.h.b16 %v941
    %v2365 = vunpack.c.l.b16 %v942
    %v2366 = vunpack.c.h.b16 %v942
    %v2367 = vunpack.c.l.b16 %v943
    %v2368 = vunpack.c.h.b16 %v943
    %v2369 = vunpack.c.l.b16 %v944
    %v2370 = vunpack.c.h.b16 %v944
    %v2371 = vunpack.c.l.b16 %v945
    %v2372 = vunpack.c.h.b16 %v945
    %v2373 = vunpack.c.l.b16 %v946
    %v2374 = vunpack.c.h.b16 %v946
    %v2375 = vunpack.c.l.b16 %v947
    %v2376 = vunpack.c.h.b16 %v947
    %v2377 = vunpack.c.l.b16 %v948
    %v2378 = vunpack.c.h.b16 %v948
    %v2379 = vunpack.c.l.b16 %v949
    %v2380 = vunpack.c.h.b16 %v949
    %v2381 = vunpack.c.l.b16 %v950
    %v2382 = vunpack.c.h.b16 %v950
    %v2383 = vunpack.c.l.b16 %v951
    %v2384 = vunpack.c.h.b16 %v951
    %v2385 = vunpack.c.l.b16 %v952
    %v2386 = vunpack.c.h.b16 %v952
    %v2387 = vunpack.c.l.b16 %v953
    %v2388 = vunpack.c.h.b16 %v953
    %v2389 = vunpack.c.l.b16 %v954
    %v2390 = vunpack.c.h.b16 %v954
    %v2391 = vunpack.c.l.b16 %v955
    %v2392 = vunpack.c.h.b16 %v955
    %v2393 = vunpack.c.l.b16 %v956
    %v2394 = vunpack.c.h.b16 %v956
    %v2395 = vunpack.c.l.b16 %v957
    %v2396 = vunpack.c.h.b16 %v957
    %v2397 = vunpack.c.l.b16 %v958
    %v2398 = vunpack.c.h.b16 %v958
    %v2399 = vunpack.c.l.b16 %v959
    %v2400 = vunpack.c.h.b16 %v959
    %v2401 = vunpack.c.l.b16 %v960
    %v2402 = vunpack.c.h.b16 %v960
    %v2403 = vunpack.c.l.b16 %v961
    %v2404 = vunpack.c.h.b16 %v961
    %v2405 = vunpack.c.l.b16 %v962
    %v2406 = vunpack.c.h.b16 %v962
    %v2407 = vunpack.c.l.b16 %v963
    %v2408 = vunpack.c.h.b16 %v963
    %v2409 = vunpack.c.l.b16 %v964
    %v2410 = vunpack.c.h.b16 %v964
    %v2411 = vunpack.c.l.b16 %v965
    %v2412 = vunpack.c.h.b16 %v965
    %v2413 = vunpack.c.l.b16 %v966
    %v2414 = vunpack.c.h.b16 %v966
    %v2415 = vunpack.c.l.b16 %v967
    %v2416 = vunpack.c.h.b16 %v967
    %v2417 = vunpack.c.l.b16 %v968
    %v2418 = vunpack.c.h.b16 %v968
    %v2419 = vunpack.c.l.b16 %v969
    %v2420 = vunpack.c.h.b16 %v969
    %v2421 = vunpack.c.l.b16 %v970
    %v2422 = vunpack.c.h.b16 %v970
    %v2423 = vunpack.c.l.b16 %v971
    %v2424 = vunpack.c.h.b16 %v971
    %v2425 = vunpack.c.l.b16 %v972
    %v2426 = vunpack.c.h.b16 %v972
    %v2427 = vunpack.c.l.b16 %v973
    %v2428 = vunpack.c.h.b16 %v973
    %v2429 = vunpack.c.l.b16 %v974
    %v2430 = vunpack.c.h.b16 %v974
    %v2431 = vunpack.c.l.b16 %v975
    %v2432 = vunpack.c.h.b16 %v975
    %v2433 = vunpack.c.l.b16 %v976
    %v2434 = vunpack.c.h.b16 %v976
    %v2435 = vunpack.c.l.b16 %v977
    %v2436 = vunpack.c.h.b16 %v977
    %v2437 = vunpack.c.l.b16 %v978
    %v2438 = vunpack.c.h.b16 %v978
    %v2439 = vunpack.c.l.b16 %v979
    %v2440 = vunpack.c.h.b16 %v979
    %v2441 = vunpack.c.l.b16 %v980
    %v2442 = vunpack.c.h.b16 %v980
    %v2443 = vunpack.c.l.b16 %v981
    %v2444 = vunpack.c.h.b16 %v981
    %v2445 = vunpack.c.l.b16 %v982
    %v2446 = vunpack.c.h.b16 %v982
    %v2447 = vunpack.c.l.b16 %v983
    %v2448 = vunpack.c.h.b16 %v983
    %v2449 = vunpack.c.l.b16 %v984
    %v2450 = vunpack.c.h.b16 %v984
    %v2451 = vunpack.c.l.b16 %v985
    %v2452 = vunpack.c.h.b16 %v985
    %v2453 = vunpack.c.l.b16 %v986
    %v2454 = vunpack.c.h.b16 %v986
    %v2455 = vunpack.c.l.b16 %v987
    %v2456 = vunpack.c.h.b16 %v987
    %v2457 = vunpack.c.l.b16 %v988
    %v2458 = vunpack.c.h.b16 %v988
    %v2459 = vunpack.c.l.b16 %v989
    %v2460 = vunpack.c.h.b16 %v989
    %v2461 = vunpack.c.l.b16 %v990
    %v2462 = vunpack.c.h.b16 %v990
    %v2463 = vunpack.c.l.b16 %v991
    %v2464 = vunpack.c.h.b16 %v991
    %v2465 = vunpack.c.l.b16 %v992
    %v2466 = vunpack.c.h.b16 %v992
    %v2467 = vunpack.c.l.b16 %v993
    %v2468 = vunpack.c.h.b16 %v993
    %v2469 = vunpack.c.l.b16 %v994
    %v2470 = vunpack.c.h.b16 %v994
    %v2471 = vunpack.c.l.b16 %v995
    %v2472 = vunpack.c.h.b16 %v995
    %v2473 = vunpack.c.l.b16 %v996
    %v2474 = vunpack.c.h.b16 %v996
    %v2475 = vunpack.c.l.b16 %v997
    %v2476 = vunpack.c.h.b16 %v997
    %v2477 = vunpack.c.l.b16 %v998
    %v2478 = vunpack.c.h.b16 %v998
    %v2479 = vunpack.c.l.b16 %v999
    %v2480 = vunpack.c.h.b16 %v999
    %v2481 = vunpack.c.l.b16 %v1000
    %v2482 = vunpack.c.h.b16 %v1000
    %v2483 = vunpack.c.l.b16 %v1001
    %v2484 = vunpack.c.h.b16 %v1001
    %v2485 = vunpack.c.l.b16 %v1002
    %v2486 = vunpack.c.h.b16 %v1002
    %v2487 = vunpack.c.l.b16 %v1003
    %v2488 = vunpack.c.h.b16 %v1003
    %v2489 = vunpack.c.l.b16 %v1004
    %v2490 = vunpack.c.h.b16 %v1004
    %v2491 = vunpack.c.l.b16 %v1005
    %v2492 = vunpack.c.h.b16 %v1005
    %v2493 = vunpack.c.l.b16 %v1006
    %v2494 = vunpack.c.h.b16 %v1006
    %v2495 = vunpack.c.l.b16 %v1007
    %v2496 = vunpack.c.h.b16 %v1007
    %v2497 = vunpack.c.l.b16 %v1008
    %v2498 = vunpack.c.h.b16 %v1008
    %v2499 = vunpack.c.l.b16 %v1009
    %v2500 = vunpack.c.h.b16 %v1009
    %v2501 = vunpack.c.l.b16 %v1010
    %v2502 = vunpack.c.h.b16 %v1010
    %v2503 = vunpack.c.l.b16 %v1011
    %v2504 = vunpack.c.h.b16 %v1011
    %v2505 = vunpack.c.l.b16 %v1012
    %v2506 = vunpack.c.h.b16 %v1012
    %v2507 = vunpack.c.l.b16 %v1013
    %v2508 = vunpack.c.h.b16 %v1013
    %v2509 = vunpack.c.l.b16 %v1014
    %v2510 = vunpack.c.h.b16 %v1014
    %v2511 = vunpack.c.l.b16 %v1015
    %v2512 = vunpack.c.h.b16 %v1015
    %v2513 = vunpack.c.l.b16 %v1016
    %v2514 = vunpack.c.h.b16 %v1016
    %v2515 = vunpack.c.l.b16 %v1017
    %v2516 = vunpack.c.h.b16 %v1017
    %v2517 = vunpack.c.l.b16 %v1018
    %v2518 = vunpack.c.h.b16 %v1018
    %v2519 = vunpack.c.l.b16 %v1019
    %v2520 = vunpack.c.h.b16 %v1019
    %v2521 = vunpack.c.l.b16 %v1020
    %v2522 = vunpack.c.h.b16 %v1020
    %v2523 = vunpack.c.l.b16 %v1021
    %v2524 = vunpack.c.h.b16 %v1021
    %v2525 = vunpack.c.l.b16 %v1022
    %v2526 = vunpack.c.h.b16 %v1022
    %v2527 = vunpack.c.l.b16 %v1023
    %v2528 = vunpack.c.h.b16 %v1023
    %v2529 = vunpack.c.l.b16 %v1024
    %v2530 = vunpack.c.h.b16 %v1024
    %v2531 = vunpack.c.l.b16 %v1025
    %v2532 = vunpack.c.h.b16 %v1025
    %v2533 = vunpack.c.l.b16 %v1026
    %v2534 = vunpack.c.h.b16 %v1026
    %v2535 = vunpack.c.l.b16 %v1027
    %v2536 = vunpack.c.h.b16 %v1027
    %v2537 = vunpack.c.l.b16 %v1028
    %v2538 = vunpack.c.h.b16 %v1028
    %v2539 = vunpack.c.l.b16 %v1029
    %v2540 = vunpack.c.h.b16 %v1029
    %v2541 = vunpack.c.l.b16 %v1030
    %v2542 = vunpack.c.h.b16 %v1030
    %v2543 = vunpack.c.l.b16 %v1031
    %v2544 = vunpack.c.h.b16 %v1031
    %v2545 = vunpack.c.l.b16 %v1032
    %v2546 = vunpack.c.h.b16 %v1032
    %v2547 = vunpack.c.l.b16 %v1033
    %v2548 = vunpack.c.h.b16 %v1033
    %v2549 = vunpack.c.l.b16 %v1034
    %v2550 = vunpack.c.h.b16 %v1034
    %v2551 = vunpack.c.l.b16 %v1035
    %v2552 = vunpack.c.h.b16 %v1035
    %v2553 = vunpack.c.l.b16 %v1036
    %v2554 = vunpack.c.h.b16 %v1036
    %v2555 = vunpack.c.l.b16 %v1037
    %v2556 = vunpack.c.h.b16 %v1037
    %v2557 = vunpack.c.l.b16 %v1038
    %v2558 = vunpack.c.h.b16 %v1038
    %v2559 = vunpack.c.l.b16 %v1039
    %v2560 = vunpack.c.h.b16 %v1039
    %v2561 = vunpack.c.l.b16 %v1040
    %v2562 = vunpack.c.h.b16 %v1040
    %v2563 = vunpack.c.l.b16 %v1041
    %v2564 = vunpack.c.h.b16 %v1041
    %v2565 = vunpack.c.l.b16 %v1042
    %v2566 = vunpack.c.h.b16 %v1042
    %v2567 = vunpack.c.l.b16 %v1043
    %v2568 = vunpack.c.h.b16 %v1043
    %v2569 = vunpack.c.l.b16 %v1044
    %v2570 = vunpack.c.h.b16 %v1044
    %v2571 = vunpack.c.l.b16 %v1045
    %v2572 = vunpack.c.h.b16 %v1045
    %v2573 = vunpack.c.l.b16 %v1046
    %v2574 = vunpack.c.h.b16 %v1046
    %v2575 = vunpack.c.l.b16 %v1047
    %v2576 = vunpack.c.h.b16 %v1047
    %v2577 = vunpack.c.l.b16 %v1048
    %v2578 = vunpack.c.h.b16 %v1048
    %v2579 = vunpack.c.l.b16 %v1049
    %v2580 = vunpack.c.h.b16 %v1049
    %v2581 = vunpack.c.l.b16 %v1050
    %v2582 = vunpack.c.h.b16 %v1050
    %v2583 = vunpack.c.l.b16 %v1051
    %v2584 = vunpack.c.h.b16 %v1051
    %v2585 = vunpack.c.l.b16 %v1052
    %v2586 = vunpack.c.h.b16 %v1052
    %v2587 = vunpack.c.l.b16 %v1053
    %v2588 = vunpack.c.h.b16 %v1053
    %v2589 = vunpack.c.l.b16 %v1054
    %v2590 = vunpack.c.h.b16 %v1054
    %v2591 = vunpack.c.l.b16 %v1055
    %v2592 = vunpack.c.h.b16 %v1055
    %v2593 = vunpack.c.l.b16 %v1056
    %v2594 = vunpack.c.h.b16 %v1056
    %v2595 = vunpack.c.l.b16 %v1057
    %v2596 = vunpack.c.h.b16 %v1057
    %v2597 = vunpack.c.l.b16 %v1058
    %v2598 = vunpack.c.h.b16 %v1058
    %v2599 = vunpack.c.l.b16 %v1059
    %v2600 = vunpack.c.h.b16 %v1059
    %v2601 = vunpack.c.l.b16 %v1060
    %v2602 = vunpack.c.h.b16 %v1060
    %v2603 = vunpack.c.l.b16 %v1061
    %v2604 = vunpack.c.h.b16 %v1061
    %v2605 = vunpack.c.l.b16 %v1062
    %v2606 = vunpack.c.h.b16 %v1062
    %v2607 = vunpack.c.l.b16 %v1063
    %v2608 = vunpack.c.h.b16 %v1063
    %v2609 = vunpack.c.l.b16 %v1064
    %v2610 = vunpack.c.h.b16 %v1064
    %v2611 = vunpack.c.l.b16 %v1065
    %v2612 = vunpack.c.h.b16 %v1065
    %v2613 = vunpack.c.l.b16 %v1066
    %v2614 = vunpack.c.h.b16 %v1066
    %v2615 = vunpack.c.l.b16 %v1067
    %v2616 = vunpack.c.h.b16 %v1067
    %v2617 = vunpack.c.l.b16 %v1068
    %v2618 = vunpack.c.h.b16 %v1068
    %v2619 = vunpack.c.l.b16 %v1069
    %v2620 = vunpack.c.h.b16 %v1069
    %v2621 = vunpack.c.l.b16 %v1070
    %v2622 = vunpack.c.h.b16 %v1070
    %v2623 = vunpack.c.l.b16 %v1071
    %v2624 = vunpack.c.h.b16 %v1071
    %v2625 = vunpack.c.l.b16 %v1072
    %v2626 = vunpack.c.h.b16 %v1072
    %v2627 = vunpack.c.l.b16 %v1073
    %v2628 = vunpack.c.h.b16 %v1073
    %v2629 = vunpack.c.l.b16 %v1074
    %v2630 = vunpack.c.h.b16 %v1074
    %v2631 = vunpack.c.l.b16 %v1075
    %v2632 = vunpack.c.h.b16 %v1075
    %v2633 = vunpack.c.l.b16 %v1076
    %v2634 = vunpack.c.h.b16 %v1076
    %v2635 = vunpack.c.l.b16 %v1077
    %v2636 = vunpack.c.h.b16 %v1077
    %v2637 = vunpack.c.l.b16 %v1078
    %v2638 = vunpack.c.h.b16 %v1078
    %v2639 = vunpack.c.l.b16 %v1079
    %v2640 = vunpack.c.h.b16 %v1079
    %v2641 = vunpack.c.l.b16 %v1080
    %v2642 = vunpack.c.h.b16 %v1080
    %v2643 = vunpack.c.l.b16 %v1081
    %v2644 = vunpack.c.h.b16 %v1081
    %v2645 = vunpack.c.l.b16 %v1082
    %v2646 = vunpack.c.h.b16 %v1082
    %v2647 = vunpack.c.l.b16 %v1083
    %v2648 = vunpack.c.h.b16 %v1083
    %v2649 = vunpack.c.l.b16 %v1084
    %v2650 = vunpack.c.h.b16 %v1084
    %v2651 = vunpack.c.l.b16 %v1085
    %v2652 = vunpack.c.h.b16 %v1085
    %v2653 = vunpack.c.l.b16 %v1086
    %v2654 = vunpack.c.h.b16 %v1086
    %v2655 = vunpack.c.l.b16 %v1087
    %v2656 = vunpack.c.h.b16 %v1087
    %v2657 = vunpack.c.l.b16 %v1088
    %v2658 = vunpack.c.h.b16 %v1088
    %v2659 = vunpack.c.l.b16 %v1089
    %v2660 = vunpack.c.h.b16 %v1089
    %v2661 = vunpack.c.l.b16 %v1090
    %v2662 = vunpack.c.h.b16 %v1090
    %v2663 = vunpack.c.l.b16 %v1091
    %v2664 = vunpack.c.h.b16 %v1091
    %v2665 = vunpack.c.l.b16 %v1092
    %v2666 = vunpack.c.h.b16 %v1092
    %v2667 = vunpack.c.l.b16 %v1093
    %v2668 = vunpack.c.h.b16 %v1093
    %v2669 = vunpack.c.l.b16 %v1094
    %v2670 = vunpack.c.h.b16 %v1094
    %v2671 = vunpack.c.l.b16 %v1095
    %v2672 = vunpack.c.h.b16 %v1095
    %v2673 = vunpack.c.l.b16 %v1096
    %v2674 = vunpack.c.h.b16 %v1096
    %v2675 = vpack.c.b16 %v1659, %v1651
    %v2676 = vpack.c.b16 %v1660, %v1652
    %v2677 = vpack.c.b16 %v1661, %v1653
    %v2678 = vpack.c.b16 %v1662, %v1654
    %v2679 = vpack.c.b16 %v1663, %v1655
    %v2680 = vpack.c.b16 %v1664, %v1656
    %v2681 = vpack.c.b16 %v1665, %v1657
    %v2682 = vpack.c.b16 %v1666, %v1658
    %v2683 = vpack.c.b16 %v1675, %v1667
    %v2684 = vpack.c.b16 %v1676, %v1668
    %v2685 = vpack.c.b16 %v1677, %v1669
    %v2686 = vpack.c.b16 %v1678, %v1670
    %v2687 = vpack.c.b16 %v1679, %v1671
    %v2688 = vpack.c.b16 %v1680, %v1672
    %v2689 = vpack.c.b16 %v1681, %v1673
    %v2690 = vpack.c.b16 %v1682, %v1674
    %v2691 = vpack.c.b16 %v1691, %v1683
    %v2692 = vpack.c.b16 %v1692, %v1684
    %v2693 = vpack.c.b16 %v1693, %v1685
    %v2694 = vpack.c.b16 %v1694, %v1686
    %v2695 = vpack.c.b16 %v1695, %v1687
    %v2696 = vpack.c.b16 %v1696, %v1688
    %v2697 = vpack.c.b16 %v1697, %v1689
    %v2698 = vpack.c.b16 %v1698, %v1690
    %v2699 = vpack.c.b16 %v1707, %v1699
    %v2700 = vpack.c.b16 %v1708, %v1700
    %v2701 = vpack.c.b16 %v1709, %v1701
    %v2702 = vpack.c.b16 %v1710, %v1702
    %v2703 = vpack.c.b16 %v1711, %v1703
    %v2704 = vpack.c.b16 %v1712, %v1704
    %v2705 = vpack.c.b16 %v1713, %v1705
    %v2706 = vpack.c.b16 %v1714, %v1706
    %v2707 = vpack.c.b16 %v1723, %v1715
    %v2708 = vpack.c.b16 %v1724, %v1716
    %v2709 = vpack.c.b16 %v1725, %v1717
    %v2710 = vpack.c.b16 %v1726, %v1718
    %v2711 = vpack.c.b16 %v1727, %v1719
    %v2712 = vpack.c.b16 %v1728, %v1720
    %v2713 = vpack.c.b16 %v1729, %v1721
    %v2714 = vpack.c.b16 %v1730, %v1722
    %v2715 = vpack.c.b16 %v1739, %v1731
    %v2716 = vpack.c.b16 %v1740, %v1732
    %v2717 = vpack.c.b16 %v1741, %v1733
    %v2718 = vpack.c.b16 %v1742, %v1734
    %v2719 = vpack.c.b16 %v1743, %v1735
    %v2720 = vpack.c.b16 %v1744, %v1736
    %v2721 = vpack.c.b16 %v1745, %v1737
    %v2722 = vpack.c.b16 %v1746, %v1738
    %v2723 = vpack.c.b16 %v1755, %v1747
    %v2724 = vpack.c.b16 %v1756, %v1748
    %v2725 = vpack.c.b16 %v1757, %v1749
    %v2726 = vpack.c.b16 %v1758, %v1750
    %v2727 = vpack.c.b16 %v1759, %v1751
    %v2728 = vpack.c.b16 %v1760, %v1752
    %v2729 = vpack.c.b16 %v1761, %v1753
    %v2730 = vpack.c.b16 %v1762, %v1754
    %v2731 = vpack.c.b16 %v1771, %v1763
    %v2732 = vpack.c.b16 %v1772, %v1764
    %v2733 = vpack.c.b16 %v1773, %v1765
    %v2734 = vpack.c.b16 %v1774, %v1766
    %v2735 = vpack.c.b16 %v1775, %v1767
    %v2736 = vpack.c.b16 %v1776, %v1768
    %v2737 = vpack.c.b16 %v1777, %v1769
    %v2738 = vpack.c.b16 %v1778, %v1770
    %v2739 = vpack.c.b16 %v1787, %v1779
    %v2740 = vpack.c.b16 %v1788, %v1780
    %v2741 = vpack.c.b16 %v1789, %v1781
    %v2742 = vpack.c.b16 %v1790, %v1782
    %v2743 = vpack.c.b16 %v1791, %v1783
    %v2744 = vpack.c.b16 %v1792, %v1784
    %v2745 = vpack.c.b16 %v1793, %v1785
    %v2746 = vpack.c.b16 %v1794, %v1786
    %v2747 = vpack.c.b16 %v1803, %v1795
    %v2748 = vpack.c.b16 %v1804, %v1796
    %v2749 = vpack.c.b16 %v1805, %v1797
    %v2750 = vpack.c.b16 %v1806, %v1798
    %v2751 = vpack.c.b16 %v1807, %v1799
    %v2752 = vpack.c.b16 %v1808, %v1800
    %v2753 = vpack.c.b16 %v1809, %v1801
    %v2754 = vpack.c.b16 %v1810, %v1802
    %v2755 = vpack.c.b16 %v1819, %v1811
    %v2756 = vpack.c.b16 %v1820, %v1812
    %v2757 = vpack.c.b16 %v1821, %v1813
    %v2758 = vpack.c.b16 %v1822, %v1814
    %v2759 = vpack.c.b16 %v1823, %v1815
    %v2760 = vpack.c.b16 %v1824, %v1816
    %v2761 = vpack.c.b16 %v1825, %v1817
    %v2762 = vpack.c.b16 %v1826, %v1818
    %v2763 = vpack.c.b16 %v1835, %v1827
    %v2764 = vpack.c.b16 %v1836, %v1828
    %v2765 = vpack.c.b16 %v1837, %v1829
    %v2766 = vpack.c.b16 %v1838, %v1830
    %v2767 = vpack.c.b16 %v1839, %v1831
    %v2768 = vpack.c.b16 %v1840, %v1832
    %v2769 = vpack.c.b16 %v1841, %v1833
    %v2770 = vpack.c.b16 %v1842, %v1834
    %v2771 = vpack.c.b16 %v1851, %v1843
    %v2772 = vpack.c.b16 %v1852, %v1844
    %v2773 = vpack.c.b16 %v1853, %v1845
    %v2774 = vpack.c.b16 %v1854, %v1846
    %v2775 = vpack.c.b16 %v1855, %v1847
    %v2776 = vpack.c.b16 %v1856, %v1848
    %v2777 = vpack.c.b16 %v1857, %v1849
    %v2778 = vpack.c.b16 %v1858, %v1850
    %v2779 = vpack.c.b16 %v1867, %v1859
    %v2780 = vpack.c.b16 %v1868, %v1860
    %v2781 = vpack.c.b16 %v1869, %v1861
    %v2782 = vpack.c.b16 %v1870, %v1862
    %v2783 = vpack.c.b16 %v1871, %v1863
    %v2784 = vpack.c.b16 %v1872, %v1864
    %v2785 = vpack.c.b16 %v1873, %v1865
    %v2786 = vpack.c.b16 %v1874, %v1866
    %v2787 = vpack.c.b16 %v1883, %v1875
    %v2788 = vpack.c.b16 %v1884, %v1876
    %v2789 = vpack.c.b16 %v1885, %v1877
    %v2790 = vpack.c.b16 %v1886, %v1878
    %v2791 = vpack.c.b16 %v1887, %v1879
    %v2792 = vpack.c.b16 %v1888, %v1880
    %v2793 = vpack.c.b16 %v1889, %v1881
    %v2794 = vpack.c.b16 %v1890, %v1882
    %v2795 = vpack.c.b16 %v1899, %v1891
    %v2796 = vpack.c.b16 %v1900, %v1892
    %v2797 = vpack.c.b16 %v1901, %v1893
    %v2798 = vpack.c.b16 %v1902, %v1894
    %v2799 = vpack.c.b16 %v1903, %v1895
    %v2800 = vpack.c.b16 %v1904, %v1896
    %v2801 = vpack.c.b16 %v1905, %v1897
    %v2802 = vpack.c.b16 %v1906, %v1898
    %v2803 = vpack.c.b16 %v1915, %v1907
    %v2804 = vpack.c.b16 %v1916, %v1908
    %v2805 = vpack.c.b16 %v1917, %v1909
    %v2806 = vpack.c.b16 %v1918, %v1910
    %v2807 = vpack.c.b16 %v1919, %v1911
    %v2808 = vpack.c.b16 %v1920, %v1912
    %v2809 = vpack.c.b16 %v1921, %v1913
    %v2810 = vpack.c.b16 %v1922, %v1914
    %v2811 = vpack.c.b16 %v1931, %v1923
    %v2812 = vpack.c.b16 %v1932, %v1924
    %v2813 = vpack.c.b16 %v1933, %v1925
    %v2814 = vpack.c.b16 %v1934, %v1926
    %v2815 = vpack.c.b16 %v1935, %v1927
    %v2816 = vpack.c.b16 %v1936, %v1928
    %v2817 = vpack.c.b16 %v1937, %v1929
    %v2818 = vpack.c.b16 %v1938, %v1930
    %v2819 = vpack.c.b16 %v1947, %v1939
    %v2820 = vpack.c.b16 %v1948, %v1940
    %v2821 = vpack.c.b16 %v1949, %v1941
    %v2822 = vpack.c.b16 %v1950, %v1942
    %v2823 = vpack.c.b16 %v1951, %v1943
    %v2824 = vpack.c.b16 %v1952, %v1944
    %v2825 = vpack.c.b16 %v1953, %v1945
    %v2826 = vpack.c.b16 %v1954, %v1946
    %v2827 = vpack.c.b16 %v1963, %v1955
    %v2828 = vpack.c.b16 %v1964, %v1956
    %v2829 = vpack.c.b16 %v1965, %v1957
    %v2830 = vpack.c.b16 %v1966, %v1958
    %v2831 = vpack.c.b16 %v1967, %v1959
    %v2832 = vpack.c.b16 %v1968, %v1960
    %v2833 = vpack.c.b16 %v1969, %v1961
    %v2834 = vpack.c.b16 %v1970, %v1962
    %v2835 = vpack.c.b16 %v1979, %v1971
    %v2836 = vpack.c.b16 %v1980, %v1972
    %v2837 = vpack.c.b16 %v1981, %v1973
    %v2838 = vpack.c.b16 %v1982, %v1974
    %v2839 = vpack.c.b16 %v1983, %v1975
    %v2840 = vpack.c.b16 %v1984, %v1976
    %v2841 = vpack.c.b16 %v1985, %v1977
    %v2842 = vpack.c.b16 %v1986, %v1978
    %v2843 = vpack.c.b16 %v1995, %v1987
    %v2844 = vpack.c.b16 %v1996, %v1988
    %v2845 = vpack.c.b16 %v1997, %v1989
    %v2846 = vpack.c.b16 %v1998, %v1990
    %v2847 = vpack.c.b16 %v1999, %v1991
    %v2848 = vpack.c.b16 %v2000, %v1992
    %v2849 = vpack.c.b16 %v2001, %v1993
    %v2850 = vpack.c.b16 %v2002, %v1994
    %v2851 = vpack.c.b16 %v2011, %v2003
    %v2852 = vpack.c.b16 %v2012, %v2004
    %v2853 = vpack.c.b16 %v2013, %v2005
    %v2854 = vpack.c.b16 %v2014, %v2006
    %v2855 = vpack.c.b16 %v2015, %v2007
    %v2856 = vpack.c.b16 %v2016, %v2008
    %v2857 = vpack.c.b16 %v2017, %v2009
    %v2858 = vpack.c.b16 %v2018, %v2010
    %v2859 = vpack.c.b16 %v2027, %v2019
    %v2860 = vpack.c.b16 %v2028, %v2020
    %v2861 = vpack.c.b16 %v2029, %v2021
    %v2862 = vpack.c.b16 %v2030, %v2022
    %v2863 = vpack.c.b16 %v2031, %v2023
    %v2864 = vpack.c.b16 %v2032, %v2024
    %v2865 = vpack.c.b16 %v2033, %v2025
    %v2866 = vpack.c.b16 %v2034, %v2026
    %v2867 = vpack.c.b16 %v2043, %v2035
    %v2868 = vpack.c.b16 %v2044, %v2036
    %v2869 = vpack.c.b16 %v2045, %v2037
    %v2870 = vpack.c.b16 %v2046, %v2038
    %v2871 = vpack.c.b16 %v2047, %v2039
    %v2872 = vpack.c.b16 %v2048, %v2040
    %v2873 = vpack.c.b16 %v2049, %v2041
    %v2874 = vpack.c.b16 %v2050, %v2042
    %v2875 = vpack.c.b16 %v2059, %v2051
    %v2876 = vpack.c.b16 %v2060, %v2052
    %v2877 = vpack.c.b16 %v2061, %v2053
    %v2878 = vpack.c.b16 %v2062, %v2054
    %v2879 = vpack.c.b16 %v2063, %v2055
    %v2880 = vpack.c.b16 %v2064, %v2056
    %v2881 = vpack.c.b16 %v2065, %v2057
    %v2882 = vpack.c.b16 %v2066, %v2058
    %v2883 = vpack.c.b16 %v2075, %v2067
    %v2884 = vpack.c.b16 %v2076, %v2068
    %v2885 = vpack.c.b16 %v2077, %v2069
    %v2886 = vpack.c.b16 %v2078, %v2070
    %v2887 = vpack.c.b16 %v2079, %v2071
    %v2888 = vpack.c.b16 %v2080, %v2072
    %v2889 = vpack.c.b16 %v2081, %v2073
    %v2890 = vpack.c.b16 %v2082, %v2074
    %v2891 = vpack.c.b16 %v2091, %v2083
    %v2892 = vpack.c.b16 %v2092, %v2084
    %v2893 = vpack.c.b16 %v2093, %v2085
    %v2894 = vpack.c.b16 %v2094, %v2086
    %v2895 = vpack.c.b16 %v2095, %v2087
    %v2896 = vpack.c.b16 %v2096, %v2088
    %v2897 = vpack.c.b16 %v2097, %v2089
    %v2898 = vpack.c.b16 %v2098, %v2090
    %v2899 = vpack.c.b16 %v2107, %v2099
    %v2900 = vpack.c.b16 %v2108, %v2100
    %v2901 = vpack.c.b16 %v2109, %v2101
    %v2902 = vpack.c.b16 %v2110, %v2102
    %v2903 = vpack.c.b16 %v2111, %v2103
    %v2904 = vpack.c.b16 %v2112, %v2104
    %v2905 = vpack.c.b16 %v2113, %v2105
    %v2906 = vpack.c.b16 %v2114, %v2106
    %v2907 = vpack.c.b16 %v2123, %v2115
    %v2908 = vpack.c.b16 %v2124, %v2116
    %v2909 = vpack.c.b16 %v2125, %v2117
    %v2910 = vpack.c.b16 %v2126, %v2118
    %v2911 = vpack.c.b16 %v2127, %v2119
    %v2912 = vpack.c.b16 %v2128, %v2120
    %v2913 = vpack.c.b16 %v2129, %v2121
    %v2914 = vpack.c.b16 %v2130, %v2122
    %v2915 = vpack.c.b16 %v2139, %v2131
    %v2916 = vpack.c.b16 %v2140, %v2132
    %v2917 = vpack.c.b16 %v2141, %v2133
    %v2918 = vpack.c.b16 %v2142, %v2134
    %v2919 = vpack.c.b16 %v2143, %v2135
    %v2920 = vpack.c.b16 %v2144, %v2136
    %v2921 = vpack.c.b16 %v2145, %v2137
    %v2922 = vpack.c.b16 %v2146, %v2138
    %v2923 = vpack.c.b16 %v2155, %v2147
    %v2924 = vpack.c.b16 %v2156, %v2148
    %v2925 = vpack.c.b16 %v2157, %v2149
    %v2926 = vpack.c.b16 %v2158, %v2150
    %v2927 = vpack.c.b16 %v2159, %v2151
    %v2928 = vpack.c.b16 %v2160, %v2152
    %v2929 = vpack.c.b16 %v2161, %v2153
    %v2930 = vpack.c.b16 %v2162, %v2154
    %v2931 = vpack.c.b16 %v2171, %v2163
    %v2932 = vpack.c.b16 %v2172, %v2164
    %v2933 = vpack.c.b16 %v2173, %v2165
    %v2934 = vpack.c.b16 %v2174, %v2166
    %v2935 = vpack.c.b16 %v2175, %v2167
    %v2936 = vpack.c.b16 %v2176, %v2168
    %v2937 = vpack.c.b16 %v2177, %v2169
    %v2938 = vpack.c.b16 %v2178, %v2170
    %v2939 = vpack.c.b16 %v2187, %v2179
    %v2940 = vpack.c.b16 %v2188, %v2180
    %v2941 = vpack.c.b16 %v2189, %v2181
    %v2942 = vpack.c.b16 %v2190, %v2182
    %v2943 = vpack.c.b16 %v2191, %v2183
    %v2944 = vpack.c.b16 %v2192, %v2184
    %v2945 = vpack.c.b16 %v2193, %v2185
    %v2946 = vpack.c.b16 %v2194, %v2186
    %v2947 = vpack.c.b16 %v2203, %v2195
    %v2948 = vpack.c.b16 %v2204, %v2196
    %v2949 = vpack.c.b16 %v2205, %v2197
    %v2950 = vpack.c.b16 %v2206, %v2198
    %v2951 = vpack.c.b16 %v2207, %v2199
    %v2952 = vpack.c.b16 %v2208, %v2200
    %v2953 = vpack.c.b16 %v2209, %v2201
    %v2954 = vpack.c.b16 %v2210, %v2202
    %v2955 = vpack.c.b16 %v2219, %v2211
    %v2956 = vpack.c.b16 %v2220, %v2212
    %v2957 = vpack.c.b16 %v2221, %v2213
    %v2958 = vpack.c.b16 %v2222, %v2214
    %v2959 = vpack.c.b16 %v2223, %v2215
    %v2960 = vpack.c.b16 %v2224, %v2216
    %v2961 = vpack.c.b16 %v2225, %v2217
    %v2962 = vpack.c.b16 %v2226, %v2218
    %v2963 = vpack.c.b16 %v2235, %v2227
    %v2964 = vpack.c.b16 %v2236, %v2228
    %v2965 = vpack.c.b16 %v2237, %v2229
    %v2966 = vpack.c.b16 %v2238, %v2230
    %v2967 = vpack.c.b16 %v2239, %v2231
    %v2968 = vpack.c.b16 %v2240, %v2232
    %v2969 = vpack.c.b16 %v2241, %v2233
    %v2970 = vpack.c.b16 %v2242, %v2234
    %v2971 = vpack.c.b16 %v2251, %v2243
    %v2972 = vpack.c.b16 %v2252, %v2244
    %v2973 = vpack.c.b16 %v2253, %v2245
    %v2974 = vpack.c.b16 %v2254, %v2246
    %v2975 = vpack.c.b16 %v2255, %v2247
    %v2976 = vpack.c.b16 %v2256, %v2248
    %v2977 = vpack.c.b16 %v2257, %v2249
    %v2978 = vpack.c.b16 %v2258, %v2250
    %v2979 = vpack.c.b16 %v2267, %v2259
    %v2980 = vpack.c.b16 %v2268, %v2260
    %v2981 = vpack.c.b16 %v2269, %v2261
    %v2982 = vpack.c.b16 %v2270, %v2262
    %v2983 = vpack.c.b16 %v2271, %v2263
    %v2984 = vpack.c.b16 %v2272, %v2264
    %v2985 = vpack.c.b16 %v2273, %v2265
    %v2986 = vpack.c.b16 %v2274, %v2266
    %v2987 = vpack.c.b16 %v2283, %v2275
    %v2988 = vpack.c.b16 %v2284, %v2276
    %v2989 = vpack.c.b16 %v2285, %v2277
    %v2990 = vpack.c.b16 %v2286, %v2278
    %v2991 = vpack.c.b16 %v2287, %v2279
    %v2992 = vpack.c.b16 %v2288, %v2280
    %v2993 = vpack.c.b16 %v2289, %v2281
    %v2994 = vpack.c.b16 %v2290, %v2282
    %v2995 = vpack.c.b16 %v2299, %v2291
    %v2996 = vpack.c.b16 %v2300, %v2292
    %v2997 = vpack.c.b16 %v2301, %v2293
    %v2998 = vpack.c.b16 %v2302, %v2294
    %v2999 = vpack.c.b16 %v2303, %v2295
    %v3000 = vpack.c.b16 %v2304, %v2296
    %v3001 = vpack.c.b16 %v2305, %v2297
    %v3002 = vpack.c.b16 %v2306, %v2298
    %v3003 = vpack.c.b16 %v2315, %v2307
    %v3004 = vpack.c.b16 %v2316, %v2308
    %v3005 = vpack.c.b16 %v2317, %v2309
    %v3006 = vpack.c.b16 %v2318, %v2310
    %v3007 = vpack.c.b16 %v2319, %v2311
    %v3008 = vpack.c.b16 %v2320, %v2312
    %v3009 = vpack.c.b16 %v2321, %v2313
    %v3010 = vpack.c.b16 %v2322, %v2314
    %v3011 = vpack.c.b16 %v2331, %v2323
    %v3012 = vpack.c.b16 %v2332, %v2324
    %v3013 = vpack.c.b16 %v2333, %v2325
    %v3014 = vpack.c.b16 %v2334, %v2326
    %v3015 = vpack.c.b16 %v2335, %v2327
    %v3016 = vpack.c.b16 %v2336, %v2328
    %v3017 = vpack.c.b16 %v2337, %v2329
    %v3018 = vpack.c.b16 %v2338, %v2330
    %v3019 = vpack.c.b16 %v2347, %v2339
    %v3020 = vpack.c.b16 %v2348, %v2340
    %v3021 = vpack.c.b16 %v2349, %v2341
    %v3022 = vpack.c.b16 %v2350, %v2342
    %v3023 = vpack.c.b16 %v2351, %v2343
    %v3024 = vpack.c.b16 %v2352, %v2344
    %v3025 = vpack.c.b16 %v2353, %v2345
    %v3026 = vpack.c.b16 %v2354, %v2346
    %v3027 = vpack.c.b16 %v2363, %v2355
    %v3028 = vpack.c.b16 %v2364, %v2356
    %v3029 = vpack.c.b16 %v2365, %v2357
    %v3030 = vpack.c.b16 %v2366, %v2358
    %v3031 = vpack.c.b16 %v2367, %v2359
    %v3032 = vpack.c.b16 %v2368, %v2360
    %v3033 = vpack.c.b16 %v2369, %v2361
    %v3034 = vpack.c.b16 %v2370, %v2362
    %v3035 = vpack.c.b16 %v2379, %v2371
    %v3036 = vpack.c.b16 %v2380, %v2372
    %v3037 = vpack.c.b16 %v2381, %v2373
    %v3038 = vpack.c.b16 %v2382, %v2374
    %v3039 = vpack.c.b16 %v2383, %v2375
    %v3040 = vpack.c.b16 %v2384, %v2376
    %v3041 = vpack.c.b16 %v2385, %v2377
    %v3042 = vpack.c.b16 %v2386, %v2378
    %v3043 = vpack.c.b16 %v2395, %v2387
    %v3044 = vpack.c.b16 %v2396, %v2388
    %v3045 = vpack.c.b16 %v2397, %v2389
    %v3046 = vpack.c.b16 %v2398, %v2390
    %v3047 = vpack.c.b16 %v2399, %v2391
    %v3048 = vpack.c.b16 %v2400, %v2392
    %v3049 = vpack.c.b16 %v2401, %v2393
    %v3050 = vpack.c.b16 %v2402, %v2394
    %v3051 = vpack.c.b16 %v2411, %v2403
    %v3052 = vpack.c.b16 %v2412, %v2404
    %v3053 = vpack.c.b16 %v2413, %v2405
    %v3054 = vpack.c.b16 %v2414, %v2406
    %v3055 = vpack.c.b16 %v2415, %v2407
    %v3056 = vpack.c.b16 %v2416, %v2408
    %v3057 = vpack.c.b16 %v2417, %v2409
    %v3058 = vpack.c.b16 %v2418, %v2410
    %v3059 = vpack.c.b16 %v2427, %v2419
    %v3060 = vpack.c.b16 %v2428, %v2420
    %v3061 = vpack.c.b16 %v2429, %v2421
    %v3062 = vpack.c.b16 %v2430, %v2422
    %v3063 = vpack.c.b16 %v2431, %v2423
    %v3064 = vpack.c.b16 %v2432, %v2424
    %v3065 = vpack.c.b16 %v2433, %v2425
    %v3066 = vpack.c.b16 %v2434, %v2426
    %v3067 = vpack.c.b16 %v2443, %v2435
    %v3068 = vpack.c.b16 %v2444, %v2436
    %v3069 = vpack.c.b16 %v2445, %v2437
    %v3070 = vpack.c.b16 %v2446, %v2438
    %v3071 = vpack.c.b16 %v2447, %v2439
    %v3072 = vpack.c.b16 %v2448, %v2440
    %v3073 = vpack.c.b16 %v2449, %v2441
    %v3074 = vpack.c.b16 %v2450, %v2442
    %v3075 = vpack.c.b16 %v2459, %v2451
    %v3076 = vpack.c.b16 %v2460, %v2452
    %v3077 = vpack.c.b16 %v2461, %v2453
    %v3078 = vpack.c.b16 %v2462, %v2454
    %v3079 = vpack.c.b16 %v2463, %v2455
    %v3080 = vpack.c.b16 %v2464, %v2456
    %v3081 = vpack.c.b16 %v2465, %v2457
    %v3082 = vpack.c.b16 %v2466, %v2458
    %v3083 = vpack.c.b16 %v2475, %v2467
    %v3084 = vpack.c.b16 %v2476, %v2468
    %v3085 = vpack.c.b16 %v2477, %v2469
    %v3086 = vpack.c.b16 %v2478, %v2470
    %v3087 = vpack.c.b16 %v2479, %v2471
    %v3088 = vpack.c.b16 %v2480, %v2472
    %v3089 = vpack.c.b16 %v2481, %v2473
    %v3090 = vpack.c.b16 %v2482, %v2474
    %v3091 = vpack.c.b16 %v2491, %v2483
    %v3092 = vpack.c.b16 %v2492, %v2484
    %v3093 = vpack.c.b16 %v2493, %v2485
    %v3094 = vpack.c.b16 %v2494, %v2486
    %v3095 = vpack.c.b16 %v2495, %v2487
    %v3096 = vpack.c.b16 %v2496, %v2488
    %v3097 = vpack.c.b16 %v2497, %v2489
    %v3098 = vpack.c.b16 %v2498, %v2490
    %v3099 = vpack.c.b16 %v2507, %v2499
    %v3100 = vpack.c.b16 %v2508, %v2500
    %v3101 = vpack.c.b16 %v2509, %v2501
    %v3102 = vpack.c.b16 %v2510, %v2502
    %v3103 = vpack.c.b16 %v2511, %v2503
    %v3104 = vpack.c.b16 %v2512, %v2504
    %v3105 = vpack.c.b16 %v2513, %v2505
    %v3106 = vpack.c.b16 %v2514, %v2506
    %v3107 = vpack.c.b16 %v2523, %v2515
    %v3108 = vpack.c.b16 %v2524, %v2516
    %v3109 = vpack.c.b16 %v2525, %v2517
    %v3110 = vpack.c.b16 %v2526, %v2518
    %v3111 = vpack.c.b16 %v2527, %v2519
    %v3112 = vpack.c.b16 %v2528, %v2520
    %v3113 = vpack.c.b16 %v2529, %v2521
    %v3114 = vpack.c.b16 %v2530, %v2522
    %v3115 = vpack.c.b16 %v2539, %v2531
    %v3116 = vpack.c.b16 %v2540, %v2532
    %v3117 = vpack.c.b16 %v2541, %v2533
    %v3118 = vpack.c.b16 %v2542, %v2534
    %v3119 = vpack.c.b16 %v2543, %v2535
    %v3120 = vpack.c.b16 %v2544, %v2536
    %v3121 = vpack.c.b16 %v2545, %v2537
    %v3122 = vpack.c.b16 %v2546, %v2538
    %v3123 = vpack.c.b16 %v2555, %v2547
    %v3124 = vpack.c.b16 %v2556, %v2548
    %v3125 = vpack.c.b16 %v2557, %v2549
    %v3126 = vpack.c.b16 %v2558, %v2550
    %v3127 = vpack.c.b16 %v2559, %v2551
    %v3128 = vpack.c.b16 %v2560, %v2552
    %v3129 = vpack.c.b16 %v2561, %v2553
    %v3130 = vpack.c.b16 %v2562, %v2554
    %v3131 = vpack.c.b16 %v2571, %v2563
    %v3132 = vpack.c.b16 %v2572, %v2564
    %v3133 = vpack.c.b16 %v2573, %v2565
    %v3134 = vpack.c.b16 %v2574, %v2566
    %v3135 = vpack.c.b16 %v2575, %v2567
    %v3136 = vpack.c.b16 %v2576, %v2568
    %v3137 = vpack.c.b16 %v2577, %v2569
    %v3138 = vpack.c.b16 %v2578, %v2570
    %v3139 = vpack.c.b16 %v2587, %v2579
    %v3140 = vpack.c.b16 %v2588, %v2580
    %v3141 = vpack.c.b16 %v2589, %v2581
    %v3142 = vpack.c.b16 %v2590, %v2582
    %v3143 = vpack.c.b16 %v2591, %v2583
    %v3144 = vpack.c.b16 %v2592, %v2584
    %v3145 = vpack.c.b16 %v2593, %v2585
    %v3146 = vpack.c.b16 %v2594, %v2586
    %v3147 = vpack.c.b16 %v2603, %v2595
    %v3148 = vpack.c.b16 %v2604, %v2596
    %v3149 = vpack.c.b16 %v2605, %v2597
    %v3150 = vpack.c.b16 %v2606, %v2598
    %v3151 = vpack.c.b16 %v2607, %v2599
    %v3152 = vpack.c.b16 %v2608, %v2600
    %v3153 = vpack.c.b16 %v2609, %v2601
    %v3154 = vpack.c.b16 %v2610, %v2602
    %v3155 = vpack.c.b16 %v2619, %v2611
    %v3156 = vpack.c.b16 %v2620, %v2612
    %v3157 = vpack.c.b16 %v2621, %v2613
    %v3158 = vpack.c.b16 %v2622, %v2614
    %v3159 = vpack.c.b16 %v2623, %v2615
    %v3160 = vpack.c.b16 %v2624, %v2616
    %v3161 = vpack.c.b16 %v2625, %v2617
    %v3162 = vpack.c.b16 %v2626, %v2618
    %v3163 = vpack.c.b16 %v2635, %v2627
    %v3164 = vpack.c.b16 %v2636, %v2628
    %v3165 = vpack.c.b16 %v2637, %v2629
    %v3166 = vpack.c.b16 %v2638, %v2630
    %v3167 = vpack.c.b16 %v2639, %v2631
    %v3168 = vpack.c.b16 %v2640, %v2632
    %v3169 = vpack.c.b16 %v2641, %v2633
    %v3170 = vpack.c.b16 %v2642, %v2634
    %v3171 = vpack.c.b16 %v2651, %v2643
    %v3172 = vpack.c.b16 %v2652, %v2644
    %v3173 = vpack.c.b16 %v2653, %v2645
    %v3174 = vpack.c.b16 %v2654, %v2646
    %v3175 = vpack.c.b16 %v2655, %v2647
    %v3176 = vpack.c.b16 %v2656, %v2648
    %v3177 = vpack.c.b16 %v2657, %v2649
    %v3178 = vpack.c.b16 %v2658, %v2650
    %v3179 = vpack.c.b16 %v2667, %v2659
    %v3180 = vpack.c.b16 %v2668, %v2660
    %v3181 = vpack.c.b16 %v2669, %v2661
    %v3182 = vpack.c.b16 %v2670, %v2662
    %v3183 = vpack.c.b16 %v2671, %v2663
    %v3184 = vpack.c.b16 %v2672, %v2664
    %v3185 = vpack.c.b16 %v2673, %v2665
    %v3186 = vpack.c.b16 %v2674, %v2666
    %3699 = vmatprep.subr.bf16.mxu0 %v2676
    %3700 = vmatpush1.bf16.msra.mxu0 %v2675
    %3701 = vmatprep.subr.bf16.mxu0 %v2684
    %3702 = vmatpush1.bf16.msra.mxu0 %v2683
    %3703 = vmatprep.subr.bf16.mxu0 %v2692
    %3704 = vmatpush1.bf16.msra.mxu0 %v2691
    %3705 = vmatprep.subr.bf16.mxu0 %v2700
    %3706 = vmatpush1.bf16.msra.mxu0 %v2699
    %3707 = vmatprep.subr.bf16.mxu0 %v2708
    %3708 = vmatpush1.bf16.msra.mxu0 %v2707
    %3709 = vmatprep.subr.bf16.mxu0 %v2716
    %3710 = vmatpush1.bf16.msra.mxu0 %v2715
    %3711 = vmatprep.subr.bf16.mxu0 %v2724
    %3712 = vmatpush1.bf16.msra.mxu0 %v2723
    %3713 = vmatprep.subr.bf16.mxu0 %v2732
    %3714 = vmatpush1.bf16.msra.mxu0 %v2731
    %3715 = vmatprep.subr.bf16.mxu0 %v2740
    %3716 = vmatpush1.bf16.msra.mxu0 %v2739
    %3717 = vmatprep.subr.bf16.mxu0 %v2748
    %3718 = vmatpush1.bf16.msra.mxu0 %v2747
    %3719 = vmatprep.subr.bf16.mxu0 %v2756
    %3720 = vmatpush1.bf16.msra.mxu0 %v2755
    %3721 = vmatprep.subr.bf16.mxu0 %v2764
    %3722 = vmatpush1.bf16.msra.mxu0 %v2763
    %3723 = vmatprep.subr.bf16.mxu0 %v2772
    %3724 = vmatpush1.bf16.msra.mxu0 %v2771
    %3725 = vmatprep.subr.bf16.mxu0 %v2780
    %3726 = vmatpush1.bf16.msra.mxu0 %v2779
    %3727 = vmatprep.subr.bf16.mxu0 %v2788
    %3728 = vmatpush1.bf16.msra.mxu0 %v2787
    %3729 = vmatprep.subr.bf16.mxu0 %v2796
    %3730 = vmatpush1.bf16.msra.mxu0 %v2795
    %3731 = vmatprep.mubr.bf16.mxu0 %v578
    %3732 = vmatmul.mubr.bf16.gmra.mrb[0].mxu0 %v577
    %v3733 = vpop.f32.mrb[0].mxu0
    %v3734 = vadd.f32 %v1102, %v3733
    %v3735 = vpop.f32.mrb[0].mxu0
    %v3736 = vadd.f32 %v1106, %v3735
    %v3737 = vpop.f32.mrb[0].mxu0
    %v3738 = vadd.f32 %v1102, %v3737
    %v3739 = vpop.f32.mrb[0].mxu0
    %v3740 = vadd.f32 %v1106, %v3739
    %3741 = vdwg.mxu0
    %3742 = vmatprep.subr.bf16.mxu0 %v2804
    %3743 = vmatpush1.bf16.msra.mxu0 %v2803
    %3744 = vmatprep.subr.bf16.mxu0 %v2812
    %3745 = vmatpush1.bf16.msra.mxu0 %v2811
    %3746 = vmatprep.subr.bf16.mxu0 %v2820
    %3747 = vmatpush1.bf16.msra.mxu0 %v2819
    %3748 = vmatprep.subr.bf16.mxu0 %v2828
    %3749 = vmatpush1.bf16.msra.mxu0 %v2827
    %3750 = vmatprep.subr.bf16.mxu0 %v2836
    %3751 = vmatpush1.bf16.msra.mxu0 %v2835
    %3752 = vmatprep.subr.bf16.mxu0 %v2844
    %3753 = vmatpush1.bf16.msra.mxu0 %v2843
    %3754 = vmatprep.subr.bf16.mxu0 %v2852
    %3755 = vmatpush1.bf16.msra.mxu0 %v2851
    %3756 = vmatprep.subr.bf16.mxu0 %v2860
    %3757 = vmatpush1.bf16.msra.mxu0 %v2859
    %3758 = vmatprep.subr.bf16.mxu0 %v2868
    %3759 = vmatpush1.bf16.msra.mxu0 %v2867
    %3760 = vmatprep.subr.bf16.mxu0 %v2876
    %3761 = vmatpush1.bf16.msra.mxu0 %v2875
    %3762 = vmatprep.subr.bf16.mxu0 %v2884
    %3763 = vmatpush1.bf16.msra.mxu0 %v2883
    %3764 = vmatprep.subr.bf16.mxu0 %v2892
    %3765 = vmatpush1.bf16.msra.mxu0 %v2891
    %3766 = vmatprep.subr.bf16.mxu0 %v2900
    %3767 = vmatpush1.bf16.msra.mxu0 %v2899
    %3768 = vmatprep.subr.bf16.mxu0 %v2908
    %3769 = vmatpush1.bf16.msra.mxu0 %v2907
    %3770 = vmatprep.subr.bf16.mxu0 %v2916
    %3771 = vmatpush1.bf16.msra.mxu0 %v2915
    %3772 = vmatprep.subr.bf16.mxu0 %v2924
    %3773 = vmatpush1.bf16.msra.mxu0 %v2923
    %3774 = vmatprep.mubr.bf16.mxu0 %v580
    %3775 = vmatmul.mubr.bf16.gmra.mrb[0].mxu0 %v579
    %v3776 = vpop.f32.mrb[0].mxu0
    %v3777 = vadd.f32 %v3734, %v3776
    %v3778 = vpop.f32.mrb[0].mxu0
    %v3779 = vadd.f32 %v3736, %v3778
    %v3780 = vpop.f32.mrb[0].mxu0
    %v3781 = vadd.f32 %v3738, %v3780
    %v3782 = vpop.f32.mrb[0].mxu0
    %v3783 = vadd.f32 %v3740, %v3782
    %3784 = vdwg.mxu0
    %3785 = vmatprep.subr.bf16.mxu0 %v2932
    %3786 = vmatpush1.bf16.msra.mxu0 %v2931
    %3787 = vmatprep.subr.bf16.mxu0 %v2940
    %3788 = vmatpush1.bf16.msra.mxu0 %v2939
    %3789 = vmatprep.subr.bf16.mxu0 %v2948
    %3790 = vmatpush1.bf16.msra.mxu0 %v2947
    %3791 = vmatprep.subr.bf16.mxu0 %v2956
    %3792 = vmatpush1.bf16.msra.mxu0 %v2955
    %3793 = vmatprep.subr.bf16.mxu0 %v2964
    %3794 = vmatpush1.bf16.msra.mxu0 %v2963
    %3795 = vmatprep.subr.bf16.mxu0 %v2972
    %3796 = vmatpush1.bf16.msra.mxu0 %v2971
    %3797 = vmatprep.subr.bf16.mxu0 %v2980
    %3798 = vmatpush1.bf16.msra.mxu0 %v2979
    %3799 = vmatprep.subr.bf16.mxu0 %v2988
    %3800 = vmatpush1.bf16.msra.mxu0 %v2987
    %3801 = vmatprep.subr.bf16.mxu0 %v2996
    %3802 = vmatpush1.bf16.msra.mxu0 %v2995
    %3803 = vmatprep.subr.bf16.mxu0 %v3004
    %3804 = vmatpush1.bf16.msra.mxu0 %v3003
    %3805 = vmatprep.subr.bf16.mxu0 %v3012
    %3806 = vmatpush1.bf16.msra.mxu0 %v3011
    %3807 = vmatprep.subr.bf16.mxu0 %v3020
    %3808 = vmatpush1.bf16.msra.mxu0 %v3019
    %3809 = vmatprep.subr.bf16.mxu0 %v3028
    %3810 = vmatpush1.bf16.msra.mxu0 %v3027
    %3811 = vmatprep.subr.bf16.mxu0 %v3036
    %3812 = vmatpush1.bf16.msra.mxu0 %v3035
    %3813 = vmatprep.subr.bf16.mxu0 %v3044
    %3814 = vmatpush1.bf16.msra.mxu0 %v3043
    %3815 = vmatprep.subr.bf16.mxu0 %v3052
    %3816 = vmatpush1.bf16.msra.mxu0 %v3051
    %3817 = vmatprep.mubr.bf16.mxu0 %v582
    %3818 = vmatmul.mubr.bf16.gmra.mrb[0].mxu0 %v581
    %v3819 = vpop.f32.mrb[0].mxu0
    %v3820 = vadd.f32 %v3777, %v3819
    %v3821 = vpop.f32.mrb[0].mxu0
    %v3822 = vadd.f32 %v3779, %v3821
    %v3823 = vpop.f32.mrb[0].mxu0
    %v3824 = vadd.f32 %v3781, %v3823
    %v3825 = vpop.f32.mrb[0].mxu0
    %v3826 = vadd.f32 %v3783, %v3825
    %3827 = vdwg.mxu0
    %3828 = vmatprep.subr.bf16.mxu0 %v3060
    %3829 = vmatpush1.bf16.msra.mxu0 %v3059
    %3830 = vmatprep.subr.bf16.mxu0 %v3068
    %3831 = vmatpush1.bf16.msra.mxu0 %v3067
    %3832 = vmatprep.subr.bf16.mxu0 %v3076
    %3833 = vmatpush1.bf16.msra.mxu0 %v3075
    %3834 = vmatprep.subr.bf16.mxu0 %v3084
    %3835 = vmatpush1.bf16.msra.mxu0 %v3083
    %3836 = vmatprep.subr.bf16.mxu0 %v3092
    %3837 = vmatpush1.bf16.msra.mxu0 %v3091
    %3838 = vmatprep.subr.bf16.mxu0 %v3100
    %3839 = vmatpush1.bf16.msra.mxu0 %v3099
    %3840 = vmatprep.subr.bf16.mxu0 %v3108
    %3841 = vmatpush1.bf16.msra.mxu0 %v3107
    %3842 = vmatprep.subr.bf16.mxu0 %v3116
    %3843 = vmatpush1.bf16.msra.mxu0 %v3115
    %3844 = vmatprep.subr.bf16.mxu0 %v3124
    %3845 = vmatpush1.bf16.msra.mxu0 %v3123
    %3846 = vmatprep.subr.bf16.mxu0 %v3132
    %3847 = vmatpush1.bf16.msra.mxu0 %v3131
    %3848 = vmatprep.subr.bf16.mxu0 %v3140
    %3849 = vmatpush1.bf16.msra.mxu0 %v3139
    %3850 = vmatprep.subr.bf16.mxu0 %v3148
    %3851 = vmatpush1.bf16.msra.mxu0 %v3147
    %3852 = vmatprep.subr.bf16.mxu0 %v3156
    %3853 = vmatpush1.bf16.msra.mxu0 %v3155
    %3854 = vmatprep.subr.bf16.mxu0 %v3164
    %3855 = vmatpush1.bf16.msra.mxu0 %v3163
    %3856 = vmatprep.subr.bf16.mxu0 %v3172
    %3857 = vmatpush1.bf16.msra.mxu0 %v3171
    %3858 = vmatprep.subr.bf16.mxu0 %v3180
    %3859 = vmatpush1.bf16.msra.mxu0 %v3179
    %3860 = vmatprep.mubr.bf16.mxu0 %v584
    %3861 = vmatmul.mubr.bf16.gmra.mrb[0].mxu0 %v583
    %v3862 = vpop.f32.mrb[0].mxu0
    %v3863 = vadd.f32 %v3820, %v3862
    %v3864 = vpop.f32.mrb[0].mxu0
    %v3865 = vadd.f32 %v3822, %v3864
    %v3866 = vpop.f32.mrb[0].mxu0
    %v3867 = vadd.f32 %v3824, %v3866
    %v3868 = vpop.f32.mrb[0].mxu0
    %v3869 = vadd.f32 %v3826, %v3868
    %3870 = vdwg.mxu0
    %3871 = vmatprep.subr.bf16.mxu0 %v2678
    %3872 = vmatpush1.bf16.msra.mxu0 %v2677
    %3873 = vmatprep.subr.bf16.mxu0 %v2686
    %3874 = vmatpush1.bf16.msra.mxu0 %v2685
    %3875 = vmatprep.subr.bf16.mxu0 %v2694
    %3876 = vmatpush1.bf16.msra.mxu0 %v2693
    %3877 = vmatprep.subr.bf16.mxu0 %v2702
    %3878 = vmatpush1.bf16.msra.mxu0 %v2701
    %3879 = vmatprep.subr.bf16.mxu0 %v2710
    %3880 = vmatpush1.bf16.msra.mxu0 %v2709
    %3881 = vmatprep.subr.bf16.mxu0 %v2718
    %3882 = vmatpush1.bf16.msra.mxu0 %v2717
    %3883 = vmatprep.subr.bf16.mxu0 %v2726
    %3884 = vmatpush1.bf16.msra.mxu0 %v2725
    %3885 = vmatprep.subr.bf16.mxu0 %v2734
    %3886 = vmatpush1.bf16.msra.mxu0 %v2733
    %3887 = vmatprep.subr.bf16.mxu0 %v2742
    %3888 = vmatpush1.bf16.msra.mxu0 %v2741
    %3889 = vmatprep.subr.bf16.mxu0 %v2750
    %3890 = vmatpush1.bf16.msra.mxu0 %v2749
    %3891 = vmatprep.subr.bf16.mxu0 %v2758
    %3892 = vmatpush1.bf16.msra.mxu0 %v2757
    %3893 = vmatprep.subr.bf16.mxu0 %v2766
    %3894 = vmatpush1.bf16.msra.mxu0 %v2765
    %3895 = vmatprep.subr.bf16.mxu0 %v2774
    %3896 = vmatpush1.bf16.msra.mxu0 %v2773
    %3897 = vmatprep.subr.bf16.mxu0 %v2782
    %3898 = vmatpush1.bf16.msra.mxu0 %v2781
    %3899 = vmatprep.subr.bf16.mxu0 %v2790
    %3900 = vmatpush1.bf16.msra.mxu0 %v2789
    %3901 = vmatprep.subr.bf16.mxu0 %v2798
    %3902 = vmatpush1.bf16.msra.mxu0 %v2797
    %3903 = vmatprep.mubr.bf16.mxu0 %v578
    %3904 = vmatmul.mubr.bf16.gmra.mrb[0].mxu0 %v577
    %v3905 = vpop.f32.mrb[0].mxu0
    %v3906 = vadd.f32 %v1110, %v3905
    %v3907 = vpop.f32.mrb[0].mxu0
    %v3908 = vadd.f32 %v1114, %v3907
    %v3909 = vpop.f32.mrb[0].mxu0
    %v3910 = vadd.f32 %v1110, %v3909
    %v3911 = vpop.f32.mrb[0].mxu0
    %v3912 = vadd.f32 %v1114, %v3911
    %3913 = vdwg.mxu0
    %3914 = vmatprep.subr.bf16.mxu0 %v2806
    %3915 = vmatpush1.bf16.msra.mxu0 %v2805
    %3916 = vmatprep.subr.bf16.mxu0 %v2814
    %3917 = vmatpush1.bf16.msra.mxu0 %v2813
    %3918 = vmatprep.subr.bf16.mxu0 %v2822
    %3919 = vmatpush1.bf16.msra.mxu0 %v2821
    %3920 = vmatprep.subr.bf16.mxu0 %v2830
    %3921 = vmatpush1.bf16.msra.mxu0 %v2829
    %3922 = vmatprep.subr.bf16.mxu0 %v2838
    %3923 = vmatpush1.bf16.msra.mxu0 %v2837
    %3924 = vmatprep.subr.bf16.mxu0 %v2846
    %3925 = vmatpush1.bf16.msra.mxu0 %v2845
    %3926 = vmatprep.subr.bf16.mxu0 %v2854
    %3927 = vmatpush1.bf16.msra.mxu0 %v2853
    %3928 = vmatprep.subr.bf16.mxu0 %v2862
    %3929 = vmatpush1.bf16.msra.mxu0 %v2861
    %3930 = vmatprep.subr.bf16.mxu0 %v2870
    %3931 = vmatpush1.bf16.msra.mxu0 %v2869
    %3932 = vmatprep.subr.bf16.mxu0 %v2878
    %3933 = vmatpush1.bf16.msra.mxu0 %v2877
    %3934 = vmatprep.subr.bf16.mxu0 %v2886
    %3935 = vmatpush1.bf16.msra.mxu0 %v2885
    %3936 = vmatprep.subr.bf16.mxu0 %v2894
    %3937 = vmatpush1.bf16.msra.mxu0 %v2893
    %3938 = vmatprep.subr.bf16.mxu0 %v2902
    %3939 = vmatpush1.bf16.msra.mxu0 %v2901
    %3940 = vmatprep.subr.bf16.mxu0 %v2910
    %3941 = vmatpush1.bf16.msra.mxu0 %v2909
    %3942 = vmatprep.subr.bf16.mxu0 %v2918
    %3943 = vmatpush1.bf16.msra.mxu0 %v2917
    %3944 = vmatprep.subr.bf16.mxu0 %v2926
    %3945 = vmatpush1.bf16.msra.mxu0 %v2925
    %3946 = vmatprep.mubr.bf16.mxu0 %v580
    %3947 = vmatmul.mubr.bf16.gmra.mrb[0].mxu0 %v579
    %v3948 = vpop.f32.mrb[0].mxu0
    %v3949 = vadd.f32 %v3906, %v3948
    %v3950 = vpop.f32.mrb[0].mxu0
    %v3951 = vadd.f32 %v3908, %v3950
    %v3952 = vpop.f32.mrb[0].mxu0
    %v3953 = vadd.f32 %v3910, %v3952
    %v3954 = vpop.f32.mrb[0].mxu0
    %v3955 = vadd.f32 %v3912, %v3954
    %3956 = vdwg.mxu0
    %3957 = vmatprep.subr.bf16.mxu0 %v2934
    %3958 = vmatpush1.bf16.msra.mxu0 %v2933
    %3959 = vmatprep.subr.bf16.mxu0 %v2942
    %3960 = vmatpush1.bf16.msra.mxu0 %v2941
    %3961 = vmatprep.subr.bf16.mxu0 %v2950
    %3962 = vmatpush1.bf16.msra.mxu0 %v2949
    %3963 = vmatprep.subr.bf16.mxu0 %v2958
    %3964 = vmatpush1.bf16.msra.mxu0 %v2957
    %3965 = vmatprep.subr.bf16.mxu0 %v2966
    %3966 = vmatpush1.bf16.msra.mxu0 %v2965
    %3967 = vmatprep.subr.bf16.mxu0 %v2974
    %3968 = vmatpush1.bf16.msra.mxu0 %v2973
    %3969 = vmatprep.subr.bf16.mxu0 %v2982
    %3970 = vmatpush1.bf16.msra.mxu0 %v2981
    %3971 = vmatprep.subr.bf16.mxu0 %v2990
    %3972 = vmatpush1.bf16.msra.mxu0 %v2989
    %3973 = vmatprep.subr.bf16.mxu0 %v2998
    %3974 = vmatpush1.bf16.msra.mxu0 %v2997
    %3975 = vmatprep.subr.bf16.mxu0 %v3006
    %3976 = vmatpush1.bf16.msra.mxu0 %v3005
    %3977 = vmatprep.subr.bf16.mxu0 %v3014
    %3978 = vmatpush1.bf16.msra.mxu0 %v3013
    %3979 = vmatprep.subr.bf16.mxu0 %v3022
    %3980 = vmatpush1.bf16.msra.mxu0 %v3021
    %3981 = vmatprep.subr.bf16.mxu0 %v3030
    %3982 = vmatpush1.bf16.msra.mxu0 %v3029
    %3983 = vmatprep.subr.bf16.mxu0 %v3038
    %3984 = vmatpush1.bf16.msra.mxu0 %v3037
    %3985 = vmatprep.subr.bf16.mxu0 %v3046
    %3986 = vmatpush1.bf16.msra.mxu0 %v3045
    %3987 = vmatprep.subr.bf16.mxu0 %v3054
    %3988 = vmatpush1.bf16.msra.mxu0 %v3053
    %3989 = vmatprep.mubr.bf16.mxu0 %v582
    %3990 = vmatmul.mubr.bf16.gmra.mrb[0].mxu0 %v581
    %v3991 = vpop.f32.mrb[0].mxu0
    %v3992 = vadd.f32 %v3949, %v3991
    %v3993 = vpop.f32.mrb[0].mxu0
    %v3994 = vadd.f32 %v3951, %v3993
    %v3995 = vpop.f32.mrb[0].mxu0
    %v3996 = vadd.f32 %v3953, %v3995
    %v3997 = vpop.f32.mrb[0].mxu0
    %v3998 = vadd.f32 %v3955, %v3997
    %3999 = vdwg.mxu0
    %4000 = vmatprep.subr.bf16.mxu0 %v3062
    %4001 = vmatpush1.bf16.msra.mxu0 %v3061
    %4002 = vmatprep.subr.bf16.mxu0 %v3070
    %4003 = vmatpush1.bf16.msra.mxu0 %v3069
    %4004 = vmatprep.subr.bf16.mxu0 %v3078
    %4005 = vmatpush1.bf16.msra.mxu0 %v3077
    %4006 = vmatprep.subr.bf16.mxu0 %v3086
    %4007 = vmatpush1.bf16.msra.mxu0 %v3085
    %4008 = vmatprep.subr.bf16.mxu0 %v3094
    %4009 = vmatpush1.bf16.msra.mxu0 %v3093
    %4010 = vmatprep.subr.bf16.mxu0 %v3102
    %4011 = vmatpush1.bf16.msra.mxu0 %v3101
    %4012 = vmatprep.subr.bf16.mxu0 %v3110
    %4013 = vmatpush1.bf16.msra.mxu0 %v3109
    %4014 = vmatprep.subr.bf16.mxu0 %v3118
    %4015 = vmatpush1.bf16.msra.mxu0 %v3117
    %4016 = vmatprep.subr.bf16.mxu0 %v3126
    %4017 = vmatpush1.bf16.msra.mxu0 %v3125
    %4018 = vmatprep.subr.bf16.mxu0 %v3134
    %4019 = vmatpush1.bf16.msra.mxu0 %v3133
    %4020 = vmatprep.subr.bf16.mxu0 %v3142
    %4021 = vmatpush1.bf16.msra.mxu0 %v3141
    %4022 = vmatprep.subr.bf16.mxu0 %v3150
    %4023 = vmatpush1.bf16.msra.mxu0 %v3149
    %4024 = vmatprep.subr.bf16.mxu0 %v3158
    %4025 = vmatpush1.bf16.msra.mxu0 %v3157
    %4026 = vmatprep.subr.bf16.mxu0 %v3166
    %4027 = vmatpush1.bf16.msra.mxu0 %v3165
    %4028 = vmatprep.subr.bf16.mxu0 %v3174
    %4029 = vmatpush1.bf16.msra.mxu0 %v3173
    %4030 = vmatprep.subr.bf16.mxu0 %v3182
    %4031 = vmatpush1.bf16.msra.mxu0 %v3181
    %4032 = vmatprep.mubr.bf16.mxu0 %v584
    %4033 = vmatmul.mubr.bf16.gmra.mrb[0].mxu0 %v583
    %v4034 = vpop.f32.mrb[0].mxu0
    %v4035 = vadd.f32 %v3992, %v4034
    %v4036 = vpop.f32.mrb[0].mxu0
    %v4037 = vadd.f32 %v3994, %v4036
    %v4038 = vpop.f32.mrb[0].mxu0
    %v4039 = vadd.f32 %v3996, %v4038
    %v4040 = vpop.f32.mrb[0].mxu0
    %v4041 = vadd.f32 %v3998, %v4040
    %4042 = vdwg.mxu0
    %4043 = vmatprep.subr.bf16.mxu0 %v2680
    %4044 = vmatpush1.bf16.msra.mxu0 %v2679
    %4045 = vmatprep.subr.bf16.mxu0 %v2688
    %4046 = vmatpush1.bf16.msra.mxu0 %v2687
    %4047 = vmatprep.subr.bf16.mxu0 %v2696
    %4048 = vmatpush1.bf16.msra.mxu0 %v2695
    %4049 = vmatprep.subr.bf16.mxu0 %v2704
    %4050 = vmatpush1.bf16.msra.mxu0 %v2703
    %4051 = vmatprep.subr.bf16.mxu0 %v2712
    %4052 = vmatpush1.bf16.msra.mxu0 %v2711
    %4053 = vmatprep.subr.bf16.mxu0 %v2720
    %4054 = vmatpush1.bf16.msra.mxu0 %v2719
    %4055 = vmatprep.subr.bf16.mxu0 %v2728
    %4056 = vmatpush1.bf16.msra.mxu0 %v2727
    %4057 = vmatprep.subr.bf16.mxu0 %v2736
    %4058 = vmatpush1.bf16.msra.mxu0 %v2735
    %4059 = vmatprep.subr.bf16.mxu0 %v2744
    %4060 = vmatpush1.bf16.msra.mxu0 %v2743
    %4061 = vmatprep.subr.bf16.mxu0 %v2752
    %4062 = vmatpush1.bf16.msra.mxu0 %v2751
    %4063 = vmatprep.subr.bf16.mxu0 %v2760
    %4064 = vmatpush1.bf16.msra.mxu0 %v2759
    %4065 = vmatprep.subr.bf16.mxu0 %v2768
    %4066 = vmatpush1.bf16.msra.mxu0 %v2767
    %4067 = vmatprep.subr.bf16.mxu0 %v2776
    %4068 = vmatpush1.bf16.msra.mxu0 %v2775
    %4069 = vmatprep.subr.bf16.mxu0 %v2784
    %4070 = vmatpush1.bf16.msra.mxu0 %v2783
    %4071 = vmatprep.subr.bf16.mxu0 %v2792
    %4072 = vmatpush1.bf16.msra.mxu0 %v2791
    %4073 = vmatprep.subr.bf16.mxu0 %v2800
    %4074 = vmatpush1.bf16.msra.mxu0 %v2799
    %4075 = vmatprep.mubr.bf16.mxu0 %v578
    %4076 = vmatmul.mubr.bf16.gmra.mrb[0].mxu0 %v577
    %v4077 = vpop.f32.mrb[0].mxu0
    %v4078 = vadd.f32 %v1118, %v4077
    %v4079 = vpop.f32.mrb[0].mxu0
    %v4080 = vadd.f32 %v1122, %v4079
    %v4081 = vpop.f32.mrb[0].mxu0
    %v4082 = vadd.f32 %v1118, %v4081
    %v4083 = vpop.f32.mrb[0].mxu0
    %v4084 = vadd.f32 %v1122, %v4083
    %4085 = vdwg.mxu0
    %4086 = vmatprep.subr.bf16.mxu0 %v2808
    %4087 = vmatpush1.bf16.msra.mxu0 %v2807
    %4088 = vmatprep.subr.bf16.mxu0 %v2816
    %4089 = vmatpush1.bf16.msra.mxu0 %v2815
    %4090 = vmatprep.subr.bf16.mxu0 %v2824
    %4091 = vmatpush1.bf16.msra.mxu0 %v2823
    %4092 = vmatprep.subr.bf16.mxu0 %v2832
    %4093 = vmatpush1.bf16.msra.mxu0 %v2831
    %4094 = vmatprep.subr.bf16.mxu0 %v2840
    %4095 = vmatpush1.bf16.msra.mxu0 %v2839
    %4096 = vmatprep.subr.bf16.mxu0 %v2848
    %4097 = vmatpush1.bf16.msra.mxu0 %v2847
    %4098 = vmatprep.subr.bf16.mxu0 %v2856
    %4099 = vmatpush1.bf16.msra.mxu0 %v2855
    %4100 = vmatprep.subr.bf16.mxu0 %v2864
    %4101 = vmatpush1.bf16.msra.mxu0 %v2863
    %4102 = vmatprep.subr.bf16.mxu0 %v2872
    %4103 = vmatpush1.bf16.msra.mxu0 %v2871
    %4104 = vmatprep.subr.bf16.mxu0 %v2880
    %4105 = vmatpush1.bf16.msra.mxu0 %v2879
    %4106 = vmatprep.subr.bf16.mxu0 %v2888
    %4107 = vmatpush1.bf16.msra.mxu0 %v2887
    %4108 = vmatprep.subr.bf16.mxu0 %v2896
    %4109 = vmatpush1.bf16.msra.mxu0 %v2895
    %4110 = vmatprep.subr.bf16.mxu0 %v2904
    %4111 = vmatpush1.bf16.msra.mxu0 %v2903
    %4112 = vmatprep.subr.bf16.mxu0 %v2912
    %4113 = vmatpush1.bf16.msra.mxu0 %v2911
    %4114 = vmatprep.subr.bf16.mxu0 %v2920
    %4115 = vmatpush1.bf16.msra.mxu0 %v2919
    %4116 = vmatprep.subr.bf16.mxu0 %v2928
    %4117 = vmatpush1.bf16.msra.mxu0 %v2927
    %4118 = vmatprep.mubr.bf16.mxu0 %v580
    %4119 = vmatmul.mubr.bf16.gmra.mrb[0].mxu0 %v579
    %v4120 = vpop.f32.mrb[0].mxu0
    %v4121 = vadd.f32 %v4078, %v4120
    %v4122 = vpop.f32.mrb[0].mxu0
    %v4123 = vadd.f32 %v4080, %v4122
    %v4124 = vpop.f32.mrb[0].mxu0
    %v4125 = vadd.f32 %v4082, %v4124
    %v4126 = vpop.f32.mrb[0].mxu0
    %v4127 = vadd.f32 %v4084, %v4126
    %4128 = vdwg.mxu0
    %4129 = vmatprep.subr.bf16.mxu0 %v2936
    %4130 = vmatpush1.bf16.msra.mxu0 %v2935
    %4131 = vmatprep.subr.bf16.mxu0 %v2944
    %4132 = vmatpush1.bf16.msra.mxu0 %v2943
    %4133 = vmatprep.subr.bf16.mxu0 %v2952
    %4134 = vmatpush1.bf16.msra.mxu0 %v2951
    %4135 = vmatprep.subr.bf16.mxu0 %v2960
    %4136 = vmatpush1.bf16.msra.mxu0 %v2959
    %4137 = vmatprep.subr.bf16.mxu0 %v2968
    %4138 = vmatpush1.bf16.msra.mxu0 %v2967
    %4139 = vmatprep.subr.bf16.mxu0 %v2976
    %4140 = vmatpush1.bf16.msra.mxu0 %v2975
    %4141 = vmatprep.subr.bf16.mxu0 %v2984
    %4142 = vmatpush1.bf16.msra.mxu0 %v2983
    %4143 = vmatprep.subr.bf16.mxu0 %v2992
    %4144 = vmatpush1.bf16.msra.mxu0 %v2991
    %4145 = vmatprep.subr.bf16.mxu0 %v3000
    %4146 = vmatpush1.bf16.msra.mxu0 %v2999
    %4147 = vmatprep.subr.bf16.mxu0 %v3008
    %4148 = vmatpush1.bf16.msra.mxu0 %v3007
    %4149 = vmatprep.subr.bf16.mxu0 %v3016
    %4150 = vmatpush1.bf16.msra.mxu0 %v3015
    %4151 = vmatprep.subr.bf16.mxu0 %v3024
    %4152 = vmatpush1.bf16.msra.mxu0 %v3023
    %4153 = vmatprep.subr.bf16.mxu0 %v3032
    %4154 = vmatpush1.bf16.msra.mxu0 %v3031
    %4155 = vmatprep.subr.bf16.mxu0 %v3040
    %4156 = vmatpush1.bf16.msra.mxu0 %v3039
    %4157 = vmatprep.subr.bf16.mxu0 %v3048
    %4158 = vmatpush1.bf16.msra.mxu0 %v3047
    %4159 = vmatprep.subr.bf16.mxu0 %v3056
    %4160 = vmatpush1.bf16.msra.mxu0 %v3055
    %4161 = vmatprep.mubr.bf16.mxu0 %v582
    %4162 = vmatmul.mubr.bf16.gmra.mrb[0].mxu0 %v581
    %v4163 = vpop.f32.mrb[0].mxu0
    %v4164 = vadd.f32 %v4121, %v4163
    %v4165 = vpop.f32.mrb[0].mxu0
    %v4166 = vadd.f32 %v4123, %v4165
    %v4167 = vpop.f32.mrb[0].mxu0
    %v4168 = vadd.f32 %v4125, %v4167
    %v4169 = vpop.f32.mrb[0].mxu0
    %v4170 = vadd.f32 %v4127, %v4169
    %4171 = vdwg.mxu0
    %4172 = vmatprep.subr.bf16.mxu0 %v3064
    %4173 = vmatpush1.bf16.msra.mxu0 %v3063
    %4174 = vmatprep.subr.bf16.mxu0 %v3072
    %4175 = vmatpush1.bf16.msra.mxu0 %v3071
    %4176 = vmatprep.subr.bf16.mxu0 %v3080
    %4177 = vmatpush1.bf16.msra.mxu0 %v3079
    %4178 = vmatprep.subr.bf16.mxu0 %v3088
    %4179 = vmatpush1.bf16.msra.mxu0 %v3087
    %4180 = vmatprep.subr.bf16.mxu0 %v3096
    %4181 = vmatpush1.bf16.msra.mxu0 %v3095
    %4182 = vmatprep.subr.bf16.mxu0 %v3104
    %4183 = vmatpush1.bf16.msra.mxu0 %v3103
    %4184 = vmatprep.subr.bf16.mxu0 %v3112
    %4185 = vmatpush1.bf16.msra.mxu0 %v3111
    %4186 = vmatprep.subr.bf16.mxu0 %v3120
    %4187 = vmatpush1.bf16.msra.mxu0 %v3119
    %4188 = vmatprep.subr.bf16.mxu0 %v3128
    %4189 = vmatpush1.bf16.msra.mxu0 %v3127
    %4190 = vmatprep.subr.bf16.mxu0 %v3136
    %4191 = vmatpush1.bf16.msra.mxu0 %v3135
    %4192 = vmatprep.subr.bf16.mxu0 %v3144
    %4193 = vmatpush1.bf16.msra.mxu0 %v3143
    %4194 = vmatprep.subr.bf16.mxu0 %v3152
    %4195 = vmatpush1.bf16.msra.mxu0 %v3151
    %4196 = vmatprep.subr.bf16.mxu0 %v3160
    %4197 = vmatpush1.bf16.msra.mxu0 %v3159
    %4198 = vmatprep.subr.bf16.mxu0 %v3168
    %4199 = vmatpush1.bf16.msra.mxu0 %v3167
    %4200 = vmatprep.subr.bf16.mxu0 %v3176
    %4201 = vmatpush1.bf16.msra.mxu0 %v3175
    %4202 = vmatprep.subr.bf16.mxu0 %v3184
    %4203 = vmatpush1.bf16.msra.mxu0 %v3183
    %4204 = vmatprep.mubr.bf16.mxu0 %v584
    %4205 = vmatmul.mubr.bf16.gmra.mrb[0].mxu0 %v583
    %v4206 = vpop.f32.mrb[0].mxu0
    %v4207 = vadd.f32 %v4164, %v4206
    %v4208 = vpop.f32.mrb[0].mxu0
    %v4209 = vadd.f32 %v4166, %v4208
    %v4210 = vpop.f32.mrb[0].mxu0
    %v4211 = vadd.f32 %v4168, %v4210
    %v4212 = vpop.f32.mrb[0].mxu0
    %v4213 = vadd.f32 %v4170, %v4212
    %4214 = vdwg.mxu0
    %4215 = vmatprep.subr.bf16.mxu0 %v2682
    %4216 = vmatpush1.bf16.msra.mxu0 %v2681
    %4217 = vmatprep.subr.bf16.mxu0 %v2690
    %4218 = vmatpush1.bf16.msra.mxu0 %v2689
    %4219 = vmatprep.subr.bf16.mxu0 %v2698
    %4220 = vmatpush1.bf16.msra.mxu0 %v2697
    %4221 = vmatprep.subr.bf16.mxu0 %v2706
    %4222 = vmatpush1.bf16.msra.mxu0 %v2705
    %4223 = vmatprep.subr.bf16.mxu0 %v2714
    %4224 = vmatpush1.bf16.msra.mxu0 %v2713
    %4225 = vmatprep.subr.bf16.mxu0 %v2722
    %4226 = vmatpush1.bf16.msra.mxu0 %v2721
    %4227 = vmatprep.subr.bf16.mxu0 %v2730
    %4228 = vmatpush1.bf16.msra.mxu0 %v2729
    %4229 = vmatprep.subr.bf16.mxu0 %v2738
    %4230 = vmatpush1.bf16.msra.mxu0 %v2737
    %4231 = vmatprep.subr.bf16.mxu0 %v2746
    %4232 = vmatpush1.bf16.msra.mxu0 %v2745
    %4233 = vmatprep.subr.bf16.mxu0 %v2754
    %4234 = vmatpush1.bf16.msra.mxu0 %v2753
    %4235 = vmatprep.subr.bf16.mxu0 %v2762
    %4236 = vmatpush1.bf16.msra.mxu0 %v2761
    %4237 = vmatprep.subr.bf16.mxu0 %v2770
    %4238 = vmatpush1.bf16.msra.mxu0 %v2769
    %4239 = vmatprep.subr.bf16.mxu0 %v2778
    %4240 = vmatpush1.bf16.msra.mxu0 %v2777
    %4241 = vmatprep.subr.bf16.mxu0 %v2786
    %4242 = vmatpush1.bf16.msra.mxu0 %v2785
    %4243 = vmatprep.subr.bf16.mxu0 %v2794
    %4244 = vmatpush1.bf16.msra.mxu0 %v2793
    %4245 = vmatprep.subr.bf16.mxu0 %v2802
    %4246 = vmatpush1.bf16.msra.mxu0 %v2801
    %4247 = vmatprep.mubr.bf16.mxu0 %v578
    %4248 = vmatmul.mubr.bf16.gmra.mrb[0].mxu0 %v577
    %v4249 = vpop.f32.mrb[0].mxu0
    %v4250 = vadd.f32 %v1126, %v4249
    %v4251 = vpop.f32.mrb[0].mxu0
    %v4252 = vadd.f32 %v1130, %v4251
    %v4253 = vpop.f32.mrb[0].mxu0
    %v4254 = vadd.f32 %v1126, %v4253
    %v4255 = vpop.f32.mrb[0].mxu0
    %v4256 = vadd.f32 %v1130, %v4255
    %4257 = vdwg.mxu0
    %4258 = vmatprep.subr.bf16.mxu0 %v2810
    %4259 = vmatpush1.bf16.msra.mxu0 %v2809
    %4260 = vmatprep.subr.bf16.mxu0 %v2818
    %4261 = vmatpush1.bf16.msra.mxu0 %v2817
    %4262 = vmatprep.subr.bf16.mxu0 %v2826
    %4263 = vmatpush1.bf16.msra.mxu0 %v2825
    %4264 = vmatprep.subr.bf16.mxu0 %v2834
    %4265 = vmatpush1.bf16.msra.mxu0 %v2833
    %4266 = vmatprep.subr.bf16.mxu0 %v2842
    %4267 = vmatpush1.bf16.msra.mxu0 %v2841
    %4268 = vmatprep.subr.bf16.mxu0 %v2850
    %4269 = vmatpush1.bf16.msra.mxu0 %v2849
    %4270 = vmatprep.subr.bf16.mxu0 %v2858
    %4271 = vmatpush1.bf16.msra.mxu0 %v2857
    %4272 = vmatprep.subr.bf16.mxu0 %v2866
    %4273 = vmatpush1.bf16.msra.mxu0 %v2865
    %4274 = vmatprep.subr.bf16.mxu0 %v2874
    %4275 = vmatpush1.bf16.msra.mxu0 %v2873
    %4276 = vmatprep.subr.bf16.mxu0 %v2882
    %4277 = vmatpush1.bf16.msra.mxu0 %v2881
    %4278 = vmatprep.subr.bf16.mxu0 %v2890
    %4279 = vmatpush1.bf16.msra.mxu0 %v2889
    %4280 = vmatprep.subr.bf16.mxu0 %v2898
    %4281 = vmatpush1.bf16.msra.mxu0 %v2897
    %4282 = vmatprep.subr.bf16.mxu0 %v2906
    %4283 = vmatpush1.bf16.msra.mxu0 %v2905
    %4284 = vmatprep.subr.bf16.mxu0 %v2914
    %4285 = vmatpush1.bf16.msra.mxu0 %v2913
    %4286 = vmatprep.subr.bf16.mxu0 %v2922
    %4287 = vmatpush1.bf16.msra.mxu0 %v2921
    %4288 = vmatprep.subr.bf16.mxu0 %v2930
    %4289 = vmatpush1.bf16.msra.mxu0 %v2929
    %4290 = vmatprep.mubr.bf16.mxu0 %v580
    %4291 = vmatmul.mubr.bf16.gmra.mrb[0].mxu0 %v579
    %v4292 = vpop.f32.mrb[0].mxu0
    %v4293 = vadd.f32 %v4250, %v4292
    %v4294 = vpop.f32.mrb[0].mxu0
    %v4295 = vadd.f32 %v4252, %v4294
    %v4296 = vpop.f32.mrb[0].mxu0
    %v4297 = vadd.f32 %v4254, %v4296
    %v4298 = vpop.f32.mrb[0].mxu0
    %v4299 = vadd.f32 %v4256, %v4298
    %4300 = vdwg.mxu0
    %4301 = vmatprep.subr.bf16.mxu0 %v2938
    %4302 = vmatpush1.bf16.msra.mxu0 %v2937
    %4303 = vmatprep.subr.bf16.mxu0 %v2946
    %4304 = vmatpush1.bf16.msra.mxu0 %v2945
    %4305 = vmatprep.subr.bf16.mxu0 %v2954
    %4306 = vmatpush1.bf16.msra.mxu0 %v2953
    %4307 = vmatprep.subr.bf16.mxu0 %v2962
    %4308 = vmatpush1.bf16.msra.mxu0 %v2961
    %4309 = vmatprep.subr.bf16.mxu0 %v2970
    %4310 = vmatpush1.bf16.msra.mxu0 %v2969
    %4311 = vmatprep.subr.bf16.mxu0 %v2978
    %4312 = vmatpush1.bf16.msra.mxu0 %v2977
    %4313 = vmatprep.subr.bf16.mxu0 %v2986
    %4314 = vmatpush1.bf16.msra.mxu0 %v2985
    %4315 = vmatprep.subr.bf16.mxu0 %v2994
    %4316 = vmatpush1.bf16.msra.mxu0 %v2993
    %4317 = vmatprep.subr.bf16.mxu0 %v3002
    %4318 = vmatpush1.bf16.msra.mxu0 %v3001
    %4319 = vmatprep.subr.bf16.mxu0 %v3010
    %4320 = vmatpush1.bf16.msra.mxu0 %v3009
    %4321 = vmatprep.subr.bf16.mxu0 %v3018
    %4322 = vmatpush1.bf16.msra.mxu0 %v3017
    %4323 = vmatprep.subr.bf16.mxu0 %v3026
    %4324 = vmatpush1.bf16.msra.mxu0 %v3025
    %4325 = vmatprep.subr.bf16.mxu0 %v3034
    %4326 = vmatpush1.bf16.msra.mxu0 %v3033
    %4327 = vmatprep.subr.bf16.mxu0 %v3042
    %4328 = vmatpush1.bf16.msra.mxu0 %v3041
    %4329 = vmatprep.subr.bf16.mxu0 %v3050
    %4330 = vmatpush1.bf16.msra.mxu0 %v3049
    %4331 = vmatprep.subr.bf16.mxu0 %v3058
    %4332 = vmatpush1.bf16.msra.mxu0 %v3057
    %4333 = vmatprep.mubr.bf16.mxu0 %v582
    %4334 = vmatmul.mubr.bf16.gmra.mrb[0].mxu0 %v581
    %v4335 = vpop.f32.mrb[0].mxu0
    %v4336 = vadd.f32 %v4293, %v4335
    %v4337 = vpop.f32.mrb[0].mxu0
    %v4338 = vadd.f32 %v4295, %v4337
    %v4339 = vpop.f32.mrb[0].mxu0
    %v4340 = vadd.f32 %v4297, %v4339
    %v4341 = vpop.f32.mrb[0].mxu0
    %v4342 = vadd.f32 %v4299, %v4341
    %4343 = vdwg.mxu0
    %4344 = vmatprep.subr.bf16.mxu0 %v3066
    %4345 = vmatpush1.bf16.msra.mxu0 %v3065
    %4346 = vmatprep.subr.bf16.mxu0 %v3074
    %4347 = vmatpush1.bf16.msra.mxu0 %v3073
    %4348 = vmatprep.subr.bf16.mxu0 %v3082
    %4349 = vmatpush1.bf16.msra.mxu0 %v3081
    %4350 = vmatprep.subr.bf16.mxu0 %v3090
    %4351 = vmatpush1.bf16.msra.mxu0 %v3089
    %4352 = vmatprep.subr.bf16.mxu0 %v3098
    %4353 = vmatpush1.bf16.msra.mxu0 %v3097
    %4354 = vmatprep.subr.bf16.mxu0 %v3106
    %4355 = vmatpush1.bf16.msra.mxu0 %v3105
    %4356 = vmatprep.subr.bf16.mxu0 %v3114
    %4357 = vmatpush1.bf16.msra.mxu0 %v3113
    %4358 = vmatprep.subr.bf16.mxu0 %v3122
    %4359 = vmatpush1.bf16.msra.mxu0 %v3121
    %4360 = vmatprep.subr.bf16.mxu0 %v3130
    %4361 = vmatpush1.bf16.msra.mxu0 %v3129
    %4362 = vmatprep.subr.bf16.mxu0 %v3138
    %4363 = vmatpush1.bf16.msra.mxu0 %v3137
    %4364 = vmatprep.subr.bf16.mxu0 %v3146
    %4365 = vmatpush1.bf16.msra.mxu0 %v3145
    %4366 = vmatprep.subr.bf16.mxu0 %v3154
    %4367 = vmatpush1.bf16.msra.mxu0 %v3153
    %4368 = vmatprep.subr.bf16.mxu0 %v3162
    %4369 = vmatpush1.bf16.msra.mxu0 %v3161
    %4370 = vmatprep.subr.bf16.mxu0 %v3170
    %4371 = vmatpush1.bf16.msra.mxu0 %v3169
    %4372 = vmatprep.subr.bf16.mxu0 %v3178
    %4373 = vmatpush1.bf16.msra.mxu0 %v3177
    %4374 = vmatprep.subr.bf16.mxu0 %v3186
    %4375 = vmatpush1.bf16.msra.mxu0 %v3185
    %4376 = vmatprep.mubr.bf16.mxu0 %v584
    %4377 = vmatmul.mubr.bf16.gmra.mrb[0].mxu0 %v583
    %v4378 = vpop.f32.mrb[0].mxu0
    %v4379 = vadd.f32 %v4336, %v4378
    %v4380 = vpop.f32.mrb[0].mxu0
    %v4381 = vadd.f32 %v4338, %v4380
    %v4382 = vpop.f32.mrb[0].mxu0
    %v4383 = vadd.f32 %v4340, %v4382
    %v4384 = vpop.f32.mrb[0].mxu0
    %v4385 = vadd.f32 %v4342, %v4384
    %4386 = vdwg.mxu0
    %v4387 = vmax.f32 %v3863, 0.0
    %v4388 = vmax.f32 %v3865, 0.0
    %v4389 = vmax.f32 %v4035, 0.0
    %v4390 = vmax.f32 %v4037, 0.0
    %v4391 = vmax.f32 %v4207, 0.0
    %v4392 = vmax.f32 %v4209, 0.0
    %v4393 = vmax.f32 %v4379, 0.0
    %v4394 = vmax.f32 %v4381, 0.0
    %v4395 = vmax.f32 %v3867, 0.0
    %v4396 = vmax.f32 %v3869, 0.0
    %v4397 = vmax.f32 %v4039, 0.0
    %v4398 = vmax.f32 %v4041, 0.0
    %v4399 = vmax.f32 %v4211, 0.0
    %v4400 = vmax.f32 %v4213, 0.0
    %v4401 = vmax.f32 %v4383, 0.0
    %v4402 = vmax.f32 %v4385, 0.0
    %v4403 = vpack.c.bf16 %v4395, %v4387
    %v4404 = vpack.c.bf16 %v4396, %v4388
    %v4405 = vpack.c.bf16 %v4397, %v4389
    %v4406 = vpack.c.bf16 %v4398, %v4390
    %v4407 = vpack.c.bf16 %v4399, %v4391
    %v4408 = vpack.c.bf16 %v4400, %v4392
    %v4409 = vpack.c.bf16 %v4401, %v4393
    %v4410 = vpack.c.bf16 %v4402, %v4394
    %v4411 = vld [vmem:[#allocation11] sm:$0xff]
    %v4412 = vld [vmem:[#allocation11 + $0x8] sm:$0xff]
    %v4413 = vld [vmem:[#allocation11 + $0x10] sm:$0xff]
    %v4414 = vld [vmem:[#allocation11 + $0x18] sm:$0xff]
    %v4415 = vld [vmem:[#allocation11 + $0x20] sm:$0xff]
    %v4416 = vld [vmem:[#allocation11 + $0x28] sm:$0xff]
    %v4417 = vld [vmem:[#allocation11 + $0x30] sm:$0xff]
    %v4418 = vld [vmem:[#allocation11 + $0x38] sm:$0xff]
    %v4419 = vld [vmem:[#allocation11 + $0x40] sm:$0xff]
    %v4420 = vld [vmem:[#allocation11 + $0x48] sm:$0xff]
    %v4421 = vld [vmem:[#allocation11 + $0x50] sm:$0xff]
    %v4422 = vld [vmem:[#allocation11 + $0x58] sm:$0xff]
    %v4423 = vld [vmem:[#allocation11 + $0x60] sm:$0xff]
    %v4424 = vld [vmem:[#allocation11 + $0x68] sm:$0xff]
    %v4425 = vld [vmem:[#allocation11 + $0x70] sm:$0xff]
    %v4426 = vld [vmem:[#allocation11 + $0x78] sm:$0xff]
    %v4427 = vld [vmem:[#allocation11 + $0x80] sm:$0xff]
    %v4428 = vld [vmem:[#allocation11 + $0x88] sm:$0xff]
    %v4429 = vld [vmem:[#allocation11 + $0x90] sm:$0xff]
    %v4430 = vld [vmem:[#allocation11 + $0x98] sm:$0xff]
    %v4431 = vld [vmem:[#allocation11 + $0xa0] sm:$0xff]
    %v4432 = vld [vmem:[#allocation11 + $0xa8] sm:$0xff]
    %v4433 = vld [vmem:[#allocation11 + $0xb0] sm:$0xff]
    %v4434 = vld [vmem:[#allocation11 + $0xb8] sm:$0xff]
    %v4435 = vld [vmem:[#allocation11 + $0xc0] sm:$0xff]
    %v4436 = vld [vmem:[#allocation11 + $0xc8] sm:$0xff]
    %v4437 = vld [vmem:[#allocation11 + $0xd0] sm:$0xff]
    %v4438 = vld [vmem:[#allocation11 + $0xd8] sm:$0xff]
    %v4439 = vld [vmem:[#allocation11 + $0xe0] sm:$0xff]
    %v4440 = vld [vmem:[#allocation11 + $0xe8] sm:$0xff]
    %v4441 = vld [vmem:[#allocation11 + $0xf0] sm:$0xff]
    %v4442 = vld [vmem:[#allocation11 + $0xf8] sm:$0xff]
    %v4443 = vld [vmem:[#allocation11 + $0x100] sm:$0xff]
    %v4444 = vld [vmem:[#allocation11 + $0x108] sm:$0xff]
    %v4445 = vld [vmem:[#allocation11 + $0x110] sm:$0xff]
    %v4446 = vld [vmem:[#allocation11 + $0x118] sm:$0xff]
    %v4447 = vld [vmem:[#allocation11 + $0x120] sm:$0xff]
    %v4448 = vld [vmem:[#allocation11 + $0x128] sm:$0xff]
    %v4449 = vld [vmem:[#allocation11 + $0x130] sm:$0xff]
    %v4450 = vld [vmem:[#allocation11 + $0x138] sm:$0xff]
    %v4451 = vld [vmem:[#allocation11 + $0x140] sm:$0xff]
    %v4452 = vld [vmem:[#allocation11 + $0x148] sm:$0xff]
    %v4453 = vld [vmem:[#allocation11 + $0x150] sm:$0xff]
    %v4454 = vld [vmem:[#allocation11 + $0x158] sm:$0xff]
    %v4455 = vld [vmem:[#allocation11 + $0x160] sm:$0xff]
    %v4456 = vld [vmem:[#allocation11 + $0x168] sm:$0xff]
    %v4457 = vld [vmem:[#allocation11 + $0x170] sm:$0xff]
    %v4458 = vld [vmem:[#allocation11 + $0x178] sm:$0xff]
    %v4459 = vld [vmem:[#allocation11 + $0x180] sm:$0xff]
    %v4460 = vld [vmem:[#allocation11 + $0x188] sm:$0xff]
    %v4461 = vld [vmem:[#allocation11 + $0x190] sm:$0xff]
    %v4462 = vld [vmem:[#allocation11 + $0x198] sm:$0xff]
    %v4463 = vld [vmem:[#allocation11 + $0x1a0] sm:$0xff]
    %v4464 = vld [vmem:[#allocation11 + $0x1a8] sm:$0xff]
    %v4465 = vld [vmem:[#allocation11 + $0x1b0] sm:$0xff]
    %v4466 = vld [vmem:[#allocation11 + $0x1b8] sm:$0xff]
    %v4467 = vld [vmem:[#allocation11 + $0x1c0] sm:$0xff]
    %v4468 = vld [vmem:[#allocation11 + $0x1c8] sm:$0xff]
    %v4469 = vld [vmem:[#allocation11 + $0x1d0] sm:$0xff]
    %v4470 = vld [vmem:[#allocation11 + $0x1d8] sm:$0xff]
    %v4471 = vld [vmem:[#allocation11 + $0x1e0] sm:$0xff]
    %v4472 = vld [vmem:[#allocation11 + $0x1e8] sm:$0xff]
    %v4473 = vld [vmem:[#allocation11 + $0x1f0] sm:$0xff]
    %v4474 = vld [vmem:[#allocation11 + $0x1f8] sm:$0xff]
    %v4475 = vld [vmem:[#allocation11 + $0x200] sm:$0xff]
    %v4476 = vld [vmem:[#allocation11 + $0x208] sm:$0xff]
    %v4477 = vld [vmem:[#allocation11 + $0x210] sm:$0xff]
    %v4478 = vld [vmem:[#allocation11 + $0x218] sm:$0xff]
    %v4479 = vld [vmem:[#allocation11 + $0x220] sm:$0xff]
    %v4480 = vld [vmem:[#allocation11 + $0x228] sm:$0xff]
    %v4481 = vld [vmem:[#allocation11 + $0x230] sm:$0xff]
    %v4482 = vld [vmem:[#allocation11 + $0x238] sm:$0xff]
    %v4483 = vld [vmem:[#allocation11 + $0x240] sm:$0xff]
    %v4484 = vld [vmem:[#allocation11 + $0x248] sm:$0xff]
    %v4485 = vld [vmem:[#allocation11 + $0x250] sm:$0xff]
    %v4486 = vld [vmem:[#allocation11 + $0x258] sm:$0xff]
    %v4487 = vld [vmem:[#allocation11 + $0x260] sm:$0xff]
    %v4488 = vld [vmem:[#allocation11 + $0x268] sm:$0xff]
    %v4489 = vld [vmem:[#allocation11 + $0x270] sm:$0xff]
    %v4490 = vld [vmem:[#allocation11 + $0x278] sm:$0xff]
    %v4491 = vld [vmem:[#allocation11 + $0x280] sm:$0xff]
    %v4492 = vld [vmem:[#allocation11 + $0x288] sm:$0xff]
    %v4493 = vld [vmem:[#allocation11 + $0x290] sm:$0xff]
    %v4494 = vld [vmem:[#allocation11 + $0x298] sm:$0xff]
    %v4495 = vld [vmem:[#allocation11 + $0x2a0] sm:$0xff]
    %v4496 = vld [vmem:[#allocation11 + $0x2a8] sm:$0xff]
    %v4497 = vld [vmem:[#allocation11 + $0x2b0] sm:$0xff]
    %v4498 = vld [vmem:[#allocation11 + $0x2b8] sm:$0xff]
    %v4499 = vld [vmem:[#allocation11 + $0x2c0] sm:$0xff]
    %v4500 = vld [vmem:[#allocation11 + $0x2c8] sm:$0xff]
    %v4501 = vld [vmem:[#allocation11 + $0x2d0] sm:$0xff]
    %v4502 = vld [vmem:[#allocation11 + $0x2d8] sm:$0xff]
    %v4503 = vld [vmem:[#allocation11 + $0x2e0] sm:$0xff]
    %v4504 = vld [vmem:[#allocation11 + $0x2e8] sm:$0xff]
    %v4505 = vld [vmem:[#allocation11 + $0x2f0] sm:$0xff]
    %v4506 = vld [vmem:[#allocation11 + $0x2f8] sm:$0xff]
    %v4507 = vld [vmem:[#allocation11 + $0x300] sm:$0xff]
    %v4508 = vld [vmem:[#allocation11 + $0x308] sm:$0xff]
    %v4509 = vld [vmem:[#allocation11 + $0x310] sm:$0xff]
    %v4510 = vld [vmem:[#allocation11 + $0x318] sm:$0xff]
    %v4511 = vld [vmem:[#allocation11 + $0x320] sm:$0xff]
    %v4512 = vld [vmem:[#allocation11 + $0x328] sm:$0xff]
    %v4513 = vld [vmem:[#allocation11 + $0x330] sm:$0xff]
    %v4514 = vld [vmem:[#allocation11 + $0x338] sm:$0xff]
    %v4515 = vld [vmem:[#allocation11 + $0x340] sm:$0xff]
    %v4516 = vld [vmem:[#allocation11 + $0x348] sm:$0xff]
    %v4517 = vld [vmem:[#allocation11 + $0x350] sm:$0xff]
    %v4518 = vld [vmem:[#allocation11 + $0x358] sm:$0xff]
    %v4519 = vld [vmem:[#allocation11 + $0x360] sm:$0xff]
    %v4520 = vld [vmem:[#allocation11 + $0x368] sm:$0xff]
    %v4521 = vld [vmem:[#allocation11 + $0x370] sm:$0xff]
    %v4522 = vld [vmem:[#allocation11 + $0x378] sm:$0xff]
    %v4523 = vld [vmem:[#allocation11 + $0x380] sm:$0xff]
    %v4524 = vld [vmem:[#allocation11 + $0x388] sm:$0xff]
    %v4525 = vld [vmem:[#allocation11 + $0x390] sm:$0xff]
    %v4526 = vld [vmem:[#allocation11 + $0x398] sm:$0xff]
    %v4527 = vld [vmem:[#allocation11 + $0x3a0] sm:$0xff]
    %v4528 = vld [vmem:[#allocation11 + $0x3a8] sm:$0xff]
    %v4529 = vld [vmem:[#allocation11 + $0x3b0] sm:$0xff]
    %v4530 = vld [vmem:[#allocation11 + $0x3b8] sm:$0xff]
    %v4531 = vld [vmem:[#allocation11 + $0x3c0] sm:$0xff]
    %v4532 = vld [vmem:[#allocation11 + $0x3c8] sm:$0xff]
    %v4533 = vld [vmem:[#allocation11 + $0x3d0] sm:$0xff]
    %v4534 = vld [vmem:[#allocation11 + $0x3d8] sm:$0xff]
    %v4535 = vld [vmem:[#allocation11 + $0x3e0] sm:$0xff]
    %v4536 = vld [vmem:[#allocation11 + $0x3e8] sm:$0xff]
    %v4537 = vld [vmem:[#allocation11 + $0x3f0] sm:$0xff]
    %v4538 = vld [vmem:[#allocation11 + $0x3f8] sm:$0xff]
    %v4539 = vld [vmem:[#allocation11 + $0x400] sm:$0xff]
    %v4540 = vld [vmem:[#allocation11 + $0x408] sm:$0xff]
    %v4541 = vld [vmem:[#allocation11 + $0x410] sm:$0xff]
    %v4542 = vld [vmem:[#allocation11 + $0x418] sm:$0xff]
    %v4543 = vld [vmem:[#allocation11 + $0x420] sm:$0xff]
    %v4544 = vld [vmem:[#allocation11 + $0x428] sm:$0xff]
    %v4545 = vld [vmem:[#allocation11 + $0x430] sm:$0xff]
    %v4546 = vld [vmem:[#allocation11 + $0x438] sm:$0xff]
    %v4547 = vld [vmem:[#allocation11 + $0x440] sm:$0xff]
    %v4548 = vld [vmem:[#allocation11 + $0x448] sm:$0xff]
    %v4549 = vld [vmem:[#allocation11 + $0x450] sm:$0xff]
    %v4550 = vld [vmem:[#allocation11 + $0x458] sm:$0xff]
    %v4551 = vld [vmem:[#allocation11 + $0x460] sm:$0xff]
    %v4552 = vld [vmem:[#allocation11 + $0x468] sm:$0xff]
    %v4553 = vld [vmem:[#allocation11 + $0x470] sm:$0xff]
    %v4554 = vld [vmem:[#allocation11 + $0x478] sm:$0xff]
    %v4555 = vld [vmem:[#allocation11 + $0x480] sm:$0xff]
    %v4556 = vld [vmem:[#allocation11 + $0x488] sm:$0xff]
    %v4557 = vld [vmem:[#allocation11 + $0x490] sm:$0xff]
    %v4558 = vld [vmem:[#allocation11 + $0x498] sm:$0xff]
    %v4559 = vld [vmem:[#allocation11 + $0x4a0] sm:$0xff]
    %v4560 = vld [vmem:[#allocation11 + $0x4a8] sm:$0xff]
    %v4561 = vld [vmem:[#allocation11 + $0x4b0] sm:$0xff]
    %v4562 = vld [vmem:[#allocation11 + $0x4b8] sm:$0xff]
    %v4563 = vld [vmem:[#allocation11 + $0x4c0] sm:$0xff]
    %v4564 = vld [vmem:[#allocation11 + $0x4c8] sm:$0xff]
    %v4565 = vld [vmem:[#allocation11 + $0x4d0] sm:$0xff]
    %v4566 = vld [vmem:[#allocation11 + $0x4d8] sm:$0xff]
    %v4567 = vld [vmem:[#allocation11 + $0x4e0] sm:$0xff]
    %v4568 = vld [vmem:[#allocation11 + $0x4e8] sm:$0xff]
    %v4569 = vld [vmem:[#allocation11 + $0x4f0] sm:$0xff]
    %v4570 = vld [vmem:[#allocation11 + $0x4f8] sm:$0xff]
    %v4571 = vld [vmem:[#allocation11 + $0x500] sm:$0xff]
    %v4572 = vld [vmem:[#allocation11 + $0x508] sm:$0xff]
    %v4573 = vld [vmem:[#allocation11 + $0x510] sm:$0xff]
    %v4574 = vld [vmem:[#allocation11 + $0x518] sm:$0xff]
    %v4575 = vld [vmem:[#allocation11 + $0x520] sm:$0xff]
    %v4576 = vld [vmem:[#allocation11 + $0x528] sm:$0xff]
    %v4577 = vld [vmem:[#allocation11 + $0x530] sm:$0xff]
    %v4578 = vld [vmem:[#allocation11 + $0x538] sm:$0xff]
    %v4579 = vld [vmem:[#allocation11 + $0x540] sm:$0xff]
    %v4580 = vld [vmem:[#allocation11 + $0x548] sm:$0xff]
    %v4581 = vld [vmem:[#allocation11 + $0x550] sm:$0xff]
    %v4582 = vld [vmem:[#allocation11 + $0x558] sm:$0xff]
    %v4583 = vld [vmem:[#allocation11 + $0x560] sm:$0xff]
    %v4584 = vld [vmem:[#allocation11 + $0x568] sm:$0xff]
    %v4585 = vld [vmem:[#allocation11 + $0x570] sm:$0xff]
    %v4586 = vld [vmem:[#allocation11 + $0x578] sm:$0xff]
    %v4587 = vld [vmem:[#allocation11 + $0x580] sm:$0xff]
    %v4588 = vld [vmem:[#allocation11 + $0x588] sm:$0xff]
    %v4589 = vld [vmem:[#allocation11 + $0x590] sm:$0xff]
    %v4590 = vld [vmem:[#allocation11 + $0x598] sm:$0xff]
    %v4591 = vld [vmem:[#allocation11 + $0x5a0] sm:$0xff]
    %v4592 = vld [vmem:[#allocation11 + $0x5a8] sm:$0xff]
    %v4593 = vld [vmem:[#allocation11 + $0x5b0] sm:$0xff]
    %v4594 = vld [vmem:[#allocation11 + $0x5b8] sm:$0xff]
    %v4595 = vld [vmem:[#allocation11 + $0x5c0] sm:$0xff]
    %v4596 = vld [vmem:[#allocation11 + $0x5c8] sm:$0xff]
    %v4597 = vld [vmem:[#allocation11 + $0x5d0] sm:$0xff]
    %v4598 = vld [vmem:[#allocation11 + $0x5d8] sm:$0xff]
    %v4599 = vld [vmem:[#allocation11 + $0x5e0] sm:$0xff]
    %v4600 = vld [vmem:[#allocation11 + $0x5e8] sm:$0xff]
    %v4601 = vld [vmem:[#allocation11 + $0x5f0] sm:$0xff]
    %v4602 = vld [vmem:[#allocation11 + $0x5f8] sm:$0xff]
    %v4603 = vld [vmem:[#allocation11 + $0x600] sm:$0xff]
    %v4604 = vld [vmem:[#allocation11 + $0x608] sm:$0xff]
    %v4605 = vld [vmem:[#allocation11 + $0x610] sm:$0xff]
    %v4606 = vld [vmem:[#allocation11 + $0x618] sm:$0xff]
    %v4607 = vld [vmem:[#allocation11 + $0x620] sm:$0xff]
    %v4608 = vld [vmem:[#allocation11 + $0x628] sm:$0xff]
    %v4609 = vld [vmem:[#allocation11 + $0x630] sm:$0xff]
    %v4610 = vld [vmem:[#allocation11 + $0x638] sm:$0xff]
    %v4611 = vld [vmem:[#allocation11 + $0x640] sm:$0xff]
    %v4612 = vld [vmem:[#allocation11 + $0x648] sm:$0xff]
    %v4613 = vld [vmem:[#allocation11 + $0x650] sm:$0xff]
    %v4614 = vld [vmem:[#allocation11 + $0x658] sm:$0xff]
    %v4615 = vld [vmem:[#allocation11 + $0x660] sm:$0xff]
    %v4616 = vld [vmem:[#allocation11 + $0x668] sm:$0xff]
    %v4617 = vld [vmem:[#allocation11 + $0x670] sm:$0xff]
    %v4618 = vld [vmem:[#allocation11 + $0x678] sm:$0xff]
    %v4619 = vld [vmem:[#allocation11 + $0x680] sm:$0xff]
    %v4620 = vld [vmem:[#allocation11 + $0x688] sm:$0xff]
    %v4621 = vld [vmem:[#allocation11 + $0x690] sm:$0xff]
    %v4622 = vld [vmem:[#allocation11 + $0x698] sm:$0xff]
    %v4623 = vld [vmem:[#allocation11 + $0x6a0] sm:$0xff]
    %v4624 = vld [vmem:[#allocation11 + $0x6a8] sm:$0xff]
    %v4625 = vld [vmem:[#allocation11 + $0x6b0] sm:$0xff]
    %v4626 = vld [vmem:[#allocation11 + $0x6b8] sm:$0xff]
    %v4627 = vld [vmem:[#allocation11 + $0x6c0] sm:$0xff]
    %v4628 = vld [vmem:[#allocation11 + $0x6c8] sm:$0xff]
    %v4629 = vld [vmem:[#allocation11 + $0x6d0] sm:$0xff]
    %v4630 = vld [vmem:[#allocation11 + $0x6d8] sm:$0xff]
    %v4631 = vld [vmem:[#allocation11 + $0x6e0] sm:$0xff]
    %v4632 = vld [vmem:[#allocation11 + $0x6e8] sm:$0xff]
    %v4633 = vld [vmem:[#allocation11 + $0x6f0] sm:$0xff]
    %v4634 = vld [vmem:[#allocation11 + $0x6f8] sm:$0xff]
    %v4635 = vld [vmem:[#allocation11 + $0x700] sm:$0xff]
    %v4636 = vld [vmem:[#allocation11 + $0x708] sm:$0xff]
    %v4637 = vld [vmem:[#allocation11 + $0x710] sm:$0xff]
    %v4638 = vld [vmem:[#allocation11 + $0x718] sm:$0xff]
    %v4639 = vld [vmem:[#allocation11 + $0x720] sm:$0xff]
    %v4640 = vld [vmem:[#allocation11 + $0x728] sm:$0xff]
    %v4641 = vld [vmem:[#allocation11 + $0x730] sm:$0xff]
    %v4642 = vld [vmem:[#allocation11 + $0x738] sm:$0xff]
    %v4643 = vld [vmem:[#allocation11 + $0x740] sm:$0xff]
    %v4644 = vld [vmem:[#allocation11 + $0x748] sm:$0xff]
    %v4645 = vld [vmem:[#allocation11 + $0x750] sm:$0xff]
    %v4646 = vld [vmem:[#allocation11 + $0x758] sm:$0xff]
    %v4647 = vld [vmem:[#allocation11 + $0x760] sm:$0xff]
    %v4648 = vld [vmem:[#allocation11 + $0x768] sm:$0xff]
    %v4649 = vld [vmem:[#allocation11 + $0x770] sm:$0xff]
    %v4650 = vld [vmem:[#allocation11 + $0x778] sm:$0xff]
    %v4651 = vld [vmem:[#allocation11 + $0x780] sm:$0xff]
    %v4652 = vld [vmem:[#allocation11 + $0x788] sm:$0xff]
    %v4653 = vld [vmem:[#allocation11 + $0x790] sm:$0xff]
    %v4654 = vld [vmem:[#allocation11 + $0x798] sm:$0xff]
    %v4655 = vld [vmem:[#allocation11 + $0x7a0] sm:$0xff]
    %v4656 = vld [vmem:[#allocation11 + $0x7a8] sm:$0xff]
    %v4657 = vld [vmem:[#allocation11 + $0x7b0] sm:$0xff]
    %v4658 = vld [vmem:[#allocation11 + $0x7b8] sm:$0xff]
    %v4659 = vld [vmem:[#allocation11 + $0x7c0] sm:$0xff]
    %v4660 = vld [vmem:[#allocation11 + $0x7c8] sm:$0xff]
    %v4661 = vld [vmem:[#allocation11 + $0x7d0] sm:$0xff]
    %v4662 = vld [vmem:[#allocation11 + $0x7d8] sm:$0xff]
    %v4663 = vld [vmem:[#allocation11 + $0x7e0] sm:$0xff]
    %v4664 = vld [vmem:[#allocation11 + $0x7e8] sm:$0xff]
    %v4665 = vld [vmem:[#allocation11 + $0x7f0] sm:$0xff]
    %v4666 = vld [vmem:[#allocation11 + $0x7f8] sm:$0xff]
    %v4667 = vld [vmem:[#allocation13] sm:$0xf]
    %v4669 = vlaneseq
    %v4670 = vshrl.u32 %v4669, 7
    %v4671 = vsub.s32 0, %v4670
    %v4672 = vrot.slane %v4667, %v4671
    %v4673 = vlaneseq
    %v4674 = vshrl.u32 %v4673, 7
    %v4675 = vsub.s32 1, %v4674
    %v4676 = vrot.slane %v4667, %v4675
    %v4677 = vlaneseq
    %v4678 = vshrl.u32 %v4677, 7
    %v4679 = vsub.s32 2, %v4678
    %v4680 = vrot.slane %v4667, %v4679
    %v4681 = vlaneseq
    %v4682 = vshrl.u32 %v4681, 7
    %v4683 = vsub.s32 3, %v4682
    %v4684 = vrot.slane %v4667, %v4683
    %v4945 = vunpack.c.l.b16 %v4411
    %v4946 = vunpack.c.h.b16 %v4411
    %v4947 = vunpack.c.l.b16 %v4412
    %v4948 = vunpack.c.h.b16 %v4412
    %v4949 = vunpack.c.l.b16 %v4413
    %v4950 = vunpack.c.h.b16 %v4413
    %v4951 = vunpack.c.l.b16 %v4414
    %v4952 = vunpack.c.h.b16 %v4414
    %v4953 = vunpack.c.l.b16 %v4415
    %v4954 = vunpack.c.h.b16 %v4415
    %v4955 = vunpack.c.l.b16 %v4416
    %v4956 = vunpack.c.h.b16 %v4416
    %v4957 = vunpack.c.l.b16 %v4417
    %v4958 = vunpack.c.h.b16 %v4417
    %v4959 = vunpack.c.l.b16 %v4418
    %v4960 = vunpack.c.h.b16 %v4418
    %v4961 = vunpack.c.l.b16 %v4419
    %v4962 = vunpack.c.h.b16 %v4419
    %v4963 = vunpack.c.l.b16 %v4420
    %v4964 = vunpack.c.h.b16 %v4420
    %v4965 = vunpack.c.l.b16 %v4421
    %v4966 = vunpack.c.h.b16 %v4421
    %v4967 = vunpack.c.l.b16 %v4422
    %v4968 = vunpack.c.h.b16 %v4422
    %v4969 = vunpack.c.l.b16 %v4423
    %v4970 = vunpack.c.h.b16 %v4423
    %v4971 = vunpack.c.l.b16 %v4424
    %v4972 = vunpack.c.h.b16 %v4424
    %v4973 = vunpack.c.l.b16 %v4425
    %v4974 = vunpack.c.h.b16 %v4425
    %v4975 = vunpack.c.l.b16 %v4426
    %v4976 = vunpack.c.h.b16 %v4426
    %v4977 = vunpack.c.l.b16 %v4427
    %v4978 = vunpack.c.h.b16 %v4427
    %v4979 = vunpack.c.l.b16 %v4428
    %v4980 = vunpack.c.h.b16 %v4428
    %v4981 = vunpack.c.l.b16 %v4429
    %v4982 = vunpack.c.h.b16 %v4429
    %v4983 = vunpack.c.l.b16 %v4430
    %v4984 = vunpack.c.h.b16 %v4430
    %v4985 = vunpack.c.l.b16 %v4431
    %v4986 = vunpack.c.h.b16 %v4431
    %v4987 = vunpack.c.l.b16 %v4432
    %v4988 = vunpack.c.h.b16 %v4432
    %v4989 = vunpack.c.l.b16 %v4433
    %v4990 = vunpack.c.h.b16 %v4433
    %v4991 = vunpack.c.l.b16 %v4434
    %v4992 = vunpack.c.h.b16 %v4434
    %v4993 = vunpack.c.l.b16 %v4435
    %v4994 = vunpack.c.h.b16 %v4435
    %v4995 = vunpack.c.l.b16 %v4436
    %v4996 = vunpack.c.h.b16 %v4436
    %v4997 = vunpack.c.l.b16 %v4437
    %v4998 = vunpack.c.h.b16 %v4437
    %v4999 = vunpack.c.l.b16 %v4438
    %v5000 = vunpack.c.h.b16 %v4438
    %v5001 = vunpack.c.l.b16 %v4439
    %v5002 = vunpack.c.h.b16 %v4439
    %v5003 = vunpack.c.l.b16 %v4440
    %v5004 = vunpack.c.h.b16 %v4440
    %v5005 = vunpack.c.l.b16 %v4441
    %v5006 = vunpack.c.h.b16 %v4441
    %v5007 = vunpack.c.l.b16 %v4442
    %v5008 = vunpack.c.h.b16 %v4442
    %v5009 = vunpack.c.l.b16 %v4443
    %v5010 = vunpack.c.h.b16 %v4443
    %v5011 = vunpack.c.l.b16 %v4444
    %v5012 = vunpack.c.h.b16 %v4444
    %v5013 = vunpack.c.l.b16 %v4445
    %v5014 = vunpack.c.h.b16 %v4445
    %v5015 = vunpack.c.l.b16 %v4446
    %v5016 = vunpack.c.h.b16 %v4446
    %v5017 = vunpack.c.l.b16 %v4447
    %v5018 = vunpack.c.h.b16 %v4447
    %v5019 = vunpack.c.l.b16 %v4448
    %v5020 = vunpack.c.h.b16 %v4448
    %v5021 = vunpack.c.l.b16 %v4449
    %v5022 = vunpack.c.h.b16 %v4449
    %v5023 = vunpack.c.l.b16 %v4450
    %v5024 = vunpack.c.h.b16 %v4450
    %v5025 = vunpack.c.l.b16 %v4451
    %v5026 = vunpack.c.h.b16 %v4451
    %v5027 = vunpack.c.l.b16 %v4452
    %v5028 = vunpack.c.h.b16 %v4452
    %v5029 = vunpack.c.l.b16 %v4453
    %v5030 = vunpack.c.h.b16 %v4453
    %v5031 = vunpack.c.l.b16 %v4454
    %v5032 = vunpack.c.h.b16 %v4454
    %v5033 = vunpack.c.l.b16 %v4455
    %v5034 = vunpack.c.h.b16 %v4455
    %v5035 = vunpack.c.l.b16 %v4456
    %v5036 = vunpack.c.h.b16 %v4456
    %v5037 = vunpack.c.l.b16 %v4457
    %v5038 = vunpack.c.h.b16 %v4457
    %v5039 = vunpack.c.l.b16 %v4458
    %v5040 = vunpack.c.h.b16 %v4458
    %v5041 = vunpack.c.l.b16 %v4459
    %v5042 = vunpack.c.h.b16 %v4459
    %v5043 = vunpack.c.l.b16 %v4460
    %v5044 = vunpack.c.h.b16 %v4460
    %v5045 = vunpack.c.l.b16 %v4461
    %v5046 = vunpack.c.h.b16 %v4461
    %v5047 = vunpack.c.l.b16 %v4462
    %v5048 = vunpack.c.h.b16 %v4462
    %v5049 = vunpack.c.l.b16 %v4463
    %v5050 = vunpack.c.h.b16 %v4463
    %v5051 = vunpack.c.l.b16 %v4464
    %v5052 = vunpack.c.h.b16 %v4464
    %v5053 = vunpack.c.l.b16 %v4465
    %v5054 = vunpack.c.h.b16 %v4465
    %v5055 = vunpack.c.l.b16 %v4466
    %v5056 = vunpack.c.h.b16 %v4466
    %v5057 = vunpack.c.l.b16 %v4467
    %v5058 = vunpack.c.h.b16 %v4467
    %v5059 = vunpack.c.l.b16 %v4468
    %v5060 = vunpack.c.h.b16 %v4468
    %v5061 = vunpack.c.l.b16 %v4469
    %v5062 = vunpack.c.h.b16 %v4469
    %v5063 = vunpack.c.l.b16 %v4470
    %v5064 = vunpack.c.h.b16 %v4470
    %v5065 = vunpack.c.l.b16 %v4471
    %v5066 = vunpack.c.h.b16 %v4471
    %v5067 = vunpack.c.l.b16 %v4472
    %v5068 = vunpack.c.h.b16 %v4472
    %v5069 = vunpack.c.l.b16 %v4473
    %v5070 = vunpack.c.h.b16 %v4473
    %v5071 = vunpack.c.l.b16 %v4474
    %v5072 = vunpack.c.h.b16 %v4474
    %v5073 = vunpack.c.l.b16 %v4475
    %v5074 = vunpack.c.h.b16 %v4475
    %v5075 = vunpack.c.l.b16 %v4476
    %v5076 = vunpack.c.h.b16 %v4476
    %v5077 = vunpack.c.l.b16 %v4477
    %v5078 = vunpack.c.h.b16 %v4477
    %v5079 = vunpack.c.l.b16 %v4478
    %v5080 = vunpack.c.h.b16 %v4478
    %v5081 = vunpack.c.l.b16 %v4479
    %v5082 = vunpack.c.h.b16 %v4479
    %v5083 = vunpack.c.l.b16 %v4480
    %v5084 = vunpack.c.h.b16 %v4480
    %v5085 = vunpack.c.l.b16 %v4481
    %v5086 = vunpack.c.h.b16 %v4481
    %v5087 = vunpack.c.l.b16 %v4482
    %v5088 = vunpack.c.h.b16 %v4482
    %v5089 = vunpack.c.l.b16 %v4483
    %v5090 = vunpack.c.h.b16 %v4483
    %v5091 = vunpack.c.l.b16 %v4484
    %v5092 = vunpack.c.h.b16 %v4484
    %v5093 = vunpack.c.l.b16 %v4485
    %v5094 = vunpack.c.h.b16 %v4485
    %v5095 = vunpack.c.l.b16 %v4486
    %v5096 = vunpack.c.h.b16 %v4486
    %v5097 = vunpack.c.l.b16 %v4487
    %v5098 = vunpack.c.h.b16 %v4487
    %v5099 = vunpack.c.l.b16 %v4488
    %v5100 = vunpack.c.h.b16 %v4488
    %v5101 = vunpack.c.l.b16 %v4489
    %v5102 = vunpack.c.h.b16 %v4489
    %v5103 = vunpack.c.l.b16 %v4490
    %v5104 = vunpack.c.h.b16 %v4490
    %v5105 = vunpack.c.l.b16 %v4491
    %v5106 = vunpack.c.h.b16 %v4491
    %v5107 = vunpack.c.l.b16 %v4492
    %v5108 = vunpack.c.h.b16 %v4492
    %v5109 = vunpack.c.l.b16 %v4493
    %v5110 = vunpack.c.h.b16 %v4493
    %v5111 = vunpack.c.l.b16 %v4494
    %v5112 = vunpack.c.h.b16 %v4494
    %v5113 = vunpack.c.l.b16 %v4495
    %v5114 = vunpack.c.h.b16 %v4495
    %v5115 = vunpack.c.l.b16 %v4496
    %v5116 = vunpack.c.h.b16 %v4496
    %v5117 = vunpack.c.l.b16 %v4497
    %v5118 = vunpack.c.h.b16 %v4497
    %v5119 = vunpack.c.l.b16 %v4498
    %v5120 = vunpack.c.h.b16 %v4498
    %v5121 = vunpack.c.l.b16 %v4499
    %v5122 = vunpack.c.h.b16 %v4499
    %v5123 = vunpack.c.l.b16 %v4500
    %v5124 = vunpack.c.h.b16 %v4500
    %v5125 = vunpack.c.l.b16 %v4501
    %v5126 = vunpack.c.h.b16 %v4501
    %v5127 = vunpack.c.l.b16 %v4502
    %v5128 = vunpack.c.h.b16 %v4502
    %v5129 = vunpack.c.l.b16 %v4503
    %v5130 = vunpack.c.h.b16 %v4503
    %v5131 = vunpack.c.l.b16 %v4504
    %v5132 = vunpack.c.h.b16 %v4504
    %v5133 = vunpack.c.l.b16 %v4505
    %v5134 = vunpack.c.h.b16 %v4505
    %v5135 = vunpack.c.l.b16 %v4506
    %v5136 = vunpack.c.h.b16 %v4506
    %v5137 = vunpack.c.l.b16 %v4507
    %v5138 = vunpack.c.h.b16 %v4507
    %v5139 = vunpack.c.l.b16 %v4508
    %v5140 = vunpack.c.h.b16 %v4508
    %v5141 = vunpack.c.l.b16 %v4509
    %v5142 = vunpack.c.h.b16 %v4509
    %v5143 = vunpack.c.l.b16 %v4510
    %v5144 = vunpack.c.h.b16 %v4510
    %v5145 = vunpack.c.l.b16 %v4511
    %v5146 = vunpack.c.h.b16 %v4511
    %v5147 = vunpack.c.l.b16 %v4512
    %v5148 = vunpack.c.h.b16 %v4512
    %v5149 = vunpack.c.l.b16 %v4513
    %v5150 = vunpack.c.h.b16 %v4513
    %v5151 = vunpack.c.l.b16 %v4514
    %v5152 = vunpack.c.h.b16 %v4514
    %v5153 = vunpack.c.l.b16 %v4515
    %v5154 = vunpack.c.h.b16 %v4515
    %v5155 = vunpack.c.l.b16 %v4516
    %v5156 = vunpack.c.h.b16 %v4516
    %v5157 = vunpack.c.l.b16 %v4517
    %v5158 = vunpack.c.h.b16 %v4517
    %v5159 = vunpack.c.l.b16 %v4518
    %v5160 = vunpack.c.h.b16 %v4518
    %v5161 = vunpack.c.l.b16 %v4519
    %v5162 = vunpack.c.h.b16 %v4519
    %v5163 = vunpack.c.l.b16 %v4520
    %v5164 = vunpack.c.h.b16 %v4520
    %v5165 = vunpack.c.l.b16 %v4521
    %v5166 = vunpack.c.h.b16 %v4521
    %v5167 = vunpack.c.l.b16 %v4522
    %v5168 = vunpack.c.h.b16 %v4522
    %v5169 = vunpack.c.l.b16 %v4523
    %v5170 = vunpack.c.h.b16 %v4523
    %v5171 = vunpack.c.l.b16 %v4524
    %v5172 = vunpack.c.h.b16 %v4524
    %v5173 = vunpack.c.l.b16 %v4525
    %v5174 = vunpack.c.h.b16 %v4525
    %v5175 = vunpack.c.l.b16 %v4526
    %v5176 = vunpack.c.h.b16 %v4526
    %v5177 = vunpack.c.l.b16 %v4527
    %v5178 = vunpack.c.h.b16 %v4527
    %v5179 = vunpack.c.l.b16 %v4528
    %v5180 = vunpack.c.h.b16 %v4528
    %v5181 = vunpack.c.l.b16 %v4529
    %v5182 = vunpack.c.h.b16 %v4529
    %v5183 = vunpack.c.l.b16 %v4530
    %v5184 = vunpack.c.h.b16 %v4530
    %v5185 = vunpack.c.l.b16 %v4531
    %v5186 = vunpack.c.h.b16 %v4531
    %v5187 = vunpack.c.l.b16 %v4532
    %v5188 = vunpack.c.h.b16 %v4532
    %v5189 = vunpack.c.l.b16 %v4533
    %v5190 = vunpack.c.h.b16 %v4533
    %v5191 = vunpack.c.l.b16 %v4534
    %v5192 = vunpack.c.h.b16 %v4534
    %v5193 = vunpack.c.l.b16 %v4535
    %v5194 = vunpack.c.h.b16 %v4535
    %v5195 = vunpack.c.l.b16 %v4536
    %v5196 = vunpack.c.h.b16 %v4536
    %v5197 = vunpack.c.l.b16 %v4537
    %v5198 = vunpack.c.h.b16 %v4537
    %v5199 = vunpack.c.l.b16 %v4538
    %v5200 = vunpack.c.h.b16 %v4538
    %v5201 = vunpack.c.l.b16 %v4539
    %v5202 = vunpack.c.h.b16 %v4539
    %v5203 = vunpack.c.l.b16 %v4540
    %v5204 = vunpack.c.h.b16 %v4540
    %v5205 = vunpack.c.l.b16 %v4541
    %v5206 = vunpack.c.h.b16 %v4541
    %v5207 = vunpack.c.l.b16 %v4542
    %v5208 = vunpack.c.h.b16 %v4542
    %v5209 = vunpack.c.l.b16 %v4543
    %v5210 = vunpack.c.h.b16 %v4543
    %v5211 = vunpack.c.l.b16 %v4544
    %v5212 = vunpack.c.h.b16 %v4544
    %v5213 = vunpack.c.l.b16 %v4545
    %v5214 = vunpack.c.h.b16 %v4545
    %v5215 = vunpack.c.l.b16 %v4546
    %v5216 = vunpack.c.h.b16 %v4546
    %v5217 = vunpack.c.l.b16 %v4547
    %v5218 = vunpack.c.h.b16 %v4547
    %v5219 = vunpack.c.l.b16 %v4548
    %v5220 = vunpack.c.h.b16 %v4548
    %v5221 = vunpack.c.l.b16 %v4549
    %v5222 = vunpack.c.h.b16 %v4549
    %v5223 = vunpack.c.l.b16 %v4550
    %v5224 = vunpack.c.h.b16 %v4550
    %v5225 = vunpack.c.l.b16 %v4551
    %v5226 = vunpack.c.h.b16 %v4551
    %v5227 = vunpack.c.l.b16 %v4552
    %v5228 = vunpack.c.h.b16 %v4552
    %v5229 = vunpack.c.l.b16 %v4553
    %v5230 = vunpack.c.h.b16 %v4553
    %v5231 = vunpack.c.l.b16 %v4554
    %v5232 = vunpack.c.h.b16 %v4554
    %v5233 = vunpack.c.l.b16 %v4555
    %v5234 = vunpack.c.h.b16 %v4555
    %v5235 = vunpack.c.l.b16 %v4556
    %v5236 = vunpack.c.h.b16 %v4556
    %v5237 = vunpack.c.l.b16 %v4557
    %v5238 = vunpack.c.h.b16 %v4557
    %v5239 = vunpack.c.l.b16 %v4558
    %v5240 = vunpack.c.h.b16 %v4558
    %v5241 = vunpack.c.l.b16 %v4559
    %v5242 = vunpack.c.h.b16 %v4559
    %v5243 = vunpack.c.l.b16 %v4560
    %v5244 = vunpack.c.h.b16 %v4560
    %v5245 = vunpack.c.l.b16 %v4561
    %v5246 = vunpack.c.h.b16 %v4561
    %v5247 = vunpack.c.l.b16 %v4562
    %v5248 = vunpack.c.h.b16 %v4562
    %v5249 = vunpack.c.l.b16 %v4563
    %v5250 = vunpack.c.h.b16 %v4563
    %v5251 = vunpack.c.l.b16 %v4564
    %v5252 = vunpack.c.h.b16 %v4564
    %v5253 = vunpack.c.l.b16 %v4565
    %v5254 = vunpack.c.h.b16 %v4565
    %v5255 = vunpack.c.l.b16 %v4566
    %v5256 = vunpack.c.h.b16 %v4566
    %v5257 = vunpack.c.l.b16 %v4567
    %v5258 = vunpack.c.h.b16 %v4567
    %v5259 = vunpack.c.l.b16 %v4568
    %v5260 = vunpack.c.h.b16 %v4568
    %v5261 = vunpack.c.l.b16 %v4569
    %v5262 = vunpack.c.h.b16 %v4569
    %v5263 = vunpack.c.l.b16 %v4570
    %v5264 = vunpack.c.h.b16 %v4570
    %v5265 = vunpack.c.l.b16 %v4571
    %v5266 = vunpack.c.h.b16 %v4571
    %v5267 = vunpack.c.l.b16 %v4572
    %v5268 = vunpack.c.h.b16 %v4572
    %v5269 = vunpack.c.l.b16 %v4573
    %v5270 = vunpack.c.h.b16 %v4573
    %v5271 = vunpack.c.l.b16 %v4574
    %v5272 = vunpack.c.h.b16 %v4574
    %v5273 = vunpack.c.l.b16 %v4575
    %v5274 = vunpack.c.h.b16 %v4575
    %v5275 = vunpack.c.l.b16 %v4576
    %v5276 = vunpack.c.h.b16 %v4576
    %v5277 = vunpack.c.l.b16 %v4577
    %v5278 = vunpack.c.h.b16 %v4577
    %v5279 = vunpack.c.l.b16 %v4578
    %v5280 = vunpack.c.h.b16 %v4578
    %v5281 = vunpack.c.l.b16 %v4579
    %v5282 = vunpack.c.h.b16 %v4579
    %v5283 = vunpack.c.l.b16 %v4580
    %v5284 = vunpack.c.h.b16 %v4580
    %v5285 = vunpack.c.l.b16 %v4581
    %v5286 = vunpack.c.h.b16 %v4581
    %v5287 = vunpack.c.l.b16 %v4582
    %v5288 = vunpack.c.h.b16 %v4582
    %v5289 = vunpack.c.l.b16 %v4583
    %v5290 = vunpack.c.h.b16 %v4583
    %v5291 = vunpack.c.l.b16 %v4584
    %v5292 = vunpack.c.h.b16 %v4584
    %v5293 = vunpack.c.l.b16 %v4585
    %v5294 = vunpack.c.h.b16 %v4585
    %v5295 = vunpack.c.l.b16 %v4586
    %v5296 = vunpack.c.h.b16 %v4586
    %v5297 = vunpack.c.l.b16 %v4587
    %v5298 = vunpack.c.h.b16 %v4587
    %v5299 = vunpack.c.l.b16 %v4588
    %v5300 = vunpack.c.h.b16 %v4588
    %v5301 = vunpack.c.l.b16 %v4589
    %v5302 = vunpack.c.h.b16 %v4589
    %v5303 = vunpack.c.l.b16 %v4590
    %v5304 = vunpack.c.h.b16 %v4590
    %v5305 = vunpack.c.l.b16 %v4591
    %v5306 = vunpack.c.h.b16 %v4591
    %v5307 = vunpack.c.l.b16 %v4592
    %v5308 = vunpack.c.h.b16 %v4592
    %v5309 = vunpack.c.l.b16 %v4593
    %v5310 = vunpack.c.h.b16 %v4593
    %v5311 = vunpack.c.l.b16 %v4594
    %v5312 = vunpack.c.h.b16 %v4594
    %v5313 = vunpack.c.l.b16 %v4595
    %v5314 = vunpack.c.h.b16 %v4595
    %v5315 = vunpack.c.l.b16 %v4596
    %v5316 = vunpack.c.h.b16 %v4596
    %v5317 = vunpack.c.l.b16 %v4597
    %v5318 = vunpack.c.h.b16 %v4597
    %v5319 = vunpack.c.l.b16 %v4598
    %v5320 = vunpack.c.h.b16 %v4598
    %v5321 = vunpack.c.l.b16 %v4599
    %v5322 = vunpack.c.h.b16 %v4599
    %v5323 = vunpack.c.l.b16 %v4600
    %v5324 = vunpack.c.h.b16 %v4600
    %v5325 = vunpack.c.l.b16 %v4601
    %v5326 = vunpack.c.h.b16 %v4601
    %v5327 = vunpack.c.l.b16 %v4602
    %v5328 = vunpack.c.h.b16 %v4602
    %v5329 = vunpack.c.l.b16 %v4603
    %v5330 = vunpack.c.h.b16 %v4603
    %v5331 = vunpack.c.l.b16 %v4604
    %v5332 = vunpack.c.h.b16 %v4604
    %v5333 = vunpack.c.l.b16 %v4605
    %v5334 = vunpack.c.h.b16 %v4605
    %v5335 = vunpack.c.l.b16 %v4606
    %v5336 = vunpack.c.h.b16 %v4606
    %v5337 = vunpack.c.l.b16 %v4607
    %v5338 = vunpack.c.h.b16 %v4607
    %v5339 = vunpack.c.l.b16 %v4608
    %v5340 = vunpack.c.h.b16 %v4608
    %v5341 = vunpack.c.l.b16 %v4609
    %v5342 = vunpack.c.h.b16 %v4609
    %v5343 = vunpack.c.l.b16 %v4610
    %v5344 = vunpack.c.h.b16 %v4610
    %v5345 = vunpack.c.l.b16 %v4611
    %v5346 = vunpack.c.h.b16 %v4611
    %v5347 = vunpack.c.l.b16 %v4612
    %v5348 = vunpack.c.h.b16 %v4612
    %v5349 = vunpack.c.l.b16 %v4613
    %v5350 = vunpack.c.h.b16 %v4613
    %v5351 = vunpack.c.l.b16 %v4614
    %v5352 = vunpack.c.h.b16 %v4614
    %v5353 = vunpack.c.l.b16 %v4615
    %v5354 = vunpack.c.h.b16 %v4615
    %v5355 = vunpack.c.l.b16 %v4616
    %v5356 = vunpack.c.h.b16 %v4616
    %v5357 = vunpack.c.l.b16 %v4617
    %v5358 = vunpack.c.h.b16 %v4617
    %v5359 = vunpack.c.l.b16 %v4618
    %v5360 = vunpack.c.h.b16 %v4618
    %v5361 = vunpack.c.l.b16 %v4619
    %v5362 = vunpack.c.h.b16 %v4619
    %v5363 = vunpack.c.l.b16 %v4620
    %v5364 = vunpack.c.h.b16 %v4620
    %v5365 = vunpack.c.l.b16 %v4621
    %v5366 = vunpack.c.h.b16 %v4621
    %v5367 = vunpack.c.l.b16 %v4622
    %v5368 = vunpack.c.h.b16 %v4622
    %v5369 = vunpack.c.l.b16 %v4623
    %v5370 = vunpack.c.h.b16 %v4623
    %v5371 = vunpack.c.l.b16 %v4624
    %v5372 = vunpack.c.h.b16 %v4624
    %v5373 = vunpack.c.l.b16 %v4625
    %v5374 = vunpack.c.h.b16 %v4625
    %v5375 = vunpack.c.l.b16 %v4626
    %v5376 = vunpack.c.h.b16 %v4626
    %v5377 = vunpack.c.l.b16 %v4627
    %v5378 = vunpack.c.h.b16 %v4627
    %v5379 = vunpack.c.l.b16 %v4628
    %v5380 = vunpack.c.h.b16 %v4628
    %v5381 = vunpack.c.l.b16 %v4629
    %v5382 = vunpack.c.h.b16 %v4629
    %v5383 = vunpack.c.l.b16 %v4630
    %v5384 = vunpack.c.h.b16 %v4630
    %v5385 = vunpack.c.l.b16 %v4631
    %v5386 = vunpack.c.h.b16 %v4631
    %v5387 = vunpack.c.l.b16 %v4632
    %v5388 = vunpack.c.h.b16 %v4632
    %v5389 = vunpack.c.l.b16 %v4633
    %v5390 = vunpack.c.h.b16 %v4633
    %v5391 = vunpack.c.l.b16 %v4634
    %v5392 = vunpack.c.h.b16 %v4634
    %v5393 = vunpack.c.l.b16 %v4635
    %v5394 = vunpack.c.h.b16 %v4635
    %v5395 = vunpack.c.l.b16 %v4636
    %v5396 = vunpack.c.h.b16 %v4636
    %v5397 = vunpack.c.l.b16 %v4637
    %v5398 = vunpack.c.h.b16 %v4637
    %v5399 = vunpack.c.l.b16 %v4638
    %v5400 = vunpack.c.h.b16 %v4638
    %v5401 = vunpack.c.l.b16 %v4639
    %v5402 = vunpack.c.h.b16 %v4639
    %v5403 = vunpack.c.l.b16 %v4640
    %v5404 = vunpack.c.h.b16 %v4640
    %v5405 = vunpack.c.l.b16 %v4641
    %v5406 = vunpack.c.h.b16 %v4641
    %v5407 = vunpack.c.l.b16 %v4642
    %v5408 = vunpack.c.h.b16 %v4642
    %v5409 = vunpack.c.l.b16 %v4643
    %v5410 = vunpack.c.h.b16 %v4643
    %v5411 = vunpack.c.l.b16 %v4644
    %v5412 = vunpack.c.h.b16 %v4644
    %v5413 = vunpack.c.l.b16 %v4645
    %v5414 = vunpack.c.h.b16 %v4645
    %v5415 = vunpack.c.l.b16 %v4646
    %v5416 = vunpack.c.h.b16 %v4646
    %v5417 = vunpack.c.l.b16 %v4647
    %v5418 = vunpack.c.h.b16 %v4647
    %v5419 = vunpack.c.l.b16 %v4648
    %v5420 = vunpack.c.h.b16 %v4648
    %v5421 = vunpack.c.l.b16 %v4649
    %v5422 = vunpack.c.h.b16 %v4649
    %v5423 = vunpack.c.l.b16 %v4650
    %v5424 = vunpack.c.h.b16 %v4650
    %v5425 = vunpack.c.l.b16 %v4651
    %v5426 = vunpack.c.h.b16 %v4651
    %v5427 = vunpack.c.l.b16 %v4652
    %v5428 = vunpack.c.h.b16 %v4652
    %v5429 = vunpack.c.l.b16 %v4653
    %v5430 = vunpack.c.h.b16 %v4653
    %v5431 = vunpack.c.l.b16 %v4654
    %v5432 = vunpack.c.h.b16 %v4654
    %v5433 = vunpack.c.l.b16 %v4655
    %v5434 = vunpack.c.h.b16 %v4655
    %v5435 = vunpack.c.l.b16 %v4656
    %v5436 = vunpack.c.h.b16 %v4656
    %v5437 = vunpack.c.l.b16 %v4657
    %v5438 = vunpack.c.h.b16 %v4657
    %v5439 = vunpack.c.l.b16 %v4658
    %v5440 = vunpack.c.h.b16 %v4658
    %v5441 = vunpack.c.l.b16 %v4659
    %v5442 = vunpack.c.h.b16 %v4659
    %v5443 = vunpack.c.l.b16 %v4660
    %v5444 = vunpack.c.h.b16 %v4660
    %v5445 = vunpack.c.l.b16 %v4661
    %v5446 = vunpack.c.h.b16 %v4661
    %v5447 = vunpack.c.l.b16 %v4662
    %v5448 = vunpack.c.h.b16 %v4662
    %v5449 = vunpack.c.l.b16 %v4663
    %v5450 = vunpack.c.h.b16 %v4663
    %v5451 = vunpack.c.l.b16 %v4664
    %v5452 = vunpack.c.h.b16 %v4664
    %v5453 = vunpack.c.l.b16 %v4665
    %v5454 = vunpack.c.h.b16 %v4665
    %v5455 = vunpack.c.l.b16 %v4666
    %v5456 = vunpack.c.h.b16 %v4666
    %v5457 = vpack.c.b16 %v4949, %v4945
    %v5458 = vpack.c.b16 %v4950, %v4946
    %v5459 = vpack.c.b16 %v4951, %v4947
    %v5460 = vpack.c.b16 %v4952, %v4948
    %v5461 = vpack.c.b16 %v4957, %v4953
    %v5462 = vpack.c.b16 %v4958, %v4954
    %v5463 = vpack.c.b16 %v4959, %v4955
    %v5464 = vpack.c.b16 %v4960, %v4956
    %v5465 = vpack.c.b16 %v4965, %v4961
    %v5466 = vpack.c.b16 %v4966, %v4962
    %v5467 = vpack.c.b16 %v4967, %v4963
    %v5468 = vpack.c.b16 %v4968, %v4964
    %v5469 = vpack.c.b16 %v4973, %v4969
    %v5470 = vpack.c.b16 %v4974, %v4970
    %v5471 = vpack.c.b16 %v4975, %v4971
    %v5472 = vpack.c.b16 %v4976, %v4972
    %v5473 = vpack.c.b16 %v4981, %v4977
    %v5474 = vpack.c.b16 %v4982, %v4978
    %v5475 = vpack.c.b16 %v4983, %v4979
    %v5476 = vpack.c.b16 %v4984, %v4980
    %v5477 = vpack.c.b16 %v4989, %v4985
    %v5478 = vpack.c.b16 %v4990, %v4986
    %v5479 = vpack.c.b16 %v4991, %v4987
    %v5480 = vpack.c.b16 %v4992, %v4988
    %v5481 = vpack.c.b16 %v4997, %v4993
    %v5482 = vpack.c.b16 %v4998, %v4994
    %v5483 = vpack.c.b16 %v4999, %v4995
    %v5484 = vpack.c.b16 %v5000, %v4996
    %v5485 = vpack.c.b16 %v5005, %v5001
    %v5486 = vpack.c.b16 %v5006, %v5002
    %v5487 = vpack.c.b16 %v5007, %v5003
    %v5488 = vpack.c.b16 %v5008, %v5004
    %v5489 = vpack.c.b16 %v5013, %v5009
    %v5490 = vpack.c.b16 %v5014, %v5010
    %v5491 = vpack.c.b16 %v5015, %v5011
    %v5492 = vpack.c.b16 %v5016, %v5012
    %v5493 = vpack.c.b16 %v5021, %v5017
    %v5494 = vpack.c.b16 %v5022, %v5018
    %v5495 = vpack.c.b16 %v5023, %v5019
    %v5496 = vpack.c.b16 %v5024, %v5020
    %v5497 = vpack.c.b16 %v5029, %v5025
    %v5498 = vpack.c.b16 %v5030, %v5026
    %v5499 = vpack.c.b16 %v5031, %v5027
    %v5500 = vpack.c.b16 %v5032, %v5028
    %v5501 = vpack.c.b16 %v5037, %v5033
    %v5502 = vpack.c.b16 %v5038, %v5034
    %v5503 = vpack.c.b16 %v5039, %v5035
    %v5504 = vpack.c.b16 %v5040, %v5036
    %v5505 = vpack.c.b16 %v5045, %v5041
    %v5506 = vpack.c.b16 %v5046, %v5042
    %v5507 = vpack.c.b16 %v5047, %v5043
    %v5508 = vpack.c.b16 %v5048, %v5044
    %v5509 = vpack.c.b16 %v5053, %v5049
    %v5510 = vpack.c.b16 %v5054, %v5050
    %v5511 = vpack.c.b16 %v5055, %v5051
    %v5512 = vpack.c.b16 %v5056, %v5052
    %v5513 = vpack.c.b16 %v5061, %v5057
    %v5514 = vpack.c.b16 %v5062, %v5058
    %v5515 = vpack.c.b16 %v5063, %v5059
    %v5516 = vpack.c.b16 %v5064, %v5060
    %v5517 = vpack.c.b16 %v5069, %v5065
    %v5518 = vpack.c.b16 %v5070, %v5066
    %v5519 = vpack.c.b16 %v5071, %v5067
    %v5520 = vpack.c.b16 %v5072, %v5068
    %v5521 = vpack.c.b16 %v5077, %v5073
    %v5522 = vpack.c.b16 %v5078, %v5074
    %v5523 = vpack.c.b16 %v5079, %v5075
    %v5524 = vpack.c.b16 %v5080, %v5076
    %v5525 = vpack.c.b16 %v5085, %v5081
    %v5526 = vpack.c.b16 %v5086, %v5082
    %v5527 = vpack.c.b16 %v5087, %v5083
    %v5528 = vpack.c.b16 %v5088, %v5084
    %v5529 = vpack.c.b16 %v5093, %v5089
    %v5530 = vpack.c.b16 %v5094, %v5090
    %v5531 = vpack.c.b16 %v5095, %v5091
    %v5532 = vpack.c.b16 %v5096, %v5092
    %v5533 = vpack.c.b16 %v5101, %v5097
    %v5534 = vpack.c.b16 %v5102, %v5098
    %v5535 = vpack.c.b16 %v5103, %v5099
    %v5536 = vpack.c.b16 %v5104, %v5100
    %v5537 = vpack.c.b16 %v5109, %v5105
    %v5538 = vpack.c.b16 %v5110, %v5106
    %v5539 = vpack.c.b16 %v5111, %v5107
    %v5540 = vpack.c.b16 %v5112, %v5108
    %v5541 = vpack.c.b16 %v5117, %v5113
    %v5542 = vpack.c.b16 %v5118, %v5114
    %v5543 = vpack.c.b16 %v5119, %v5115
    %v5544 = vpack.c.b16 %v5120, %v5116
    %v5545 = vpack.c.b16 %v5125, %v5121
    %v5546 = vpack.c.b16 %v5126, %v5122
    %v5547 = vpack.c.b16 %v5127, %v5123
    %v5548 = vpack.c.b16 %v5128, %v5124
    %v5549 = vpack.c.b16 %v5133, %v5129
    %v5550 = vpack.c.b16 %v5134, %v5130
    %v5551 = vpack.c.b16 %v5135, %v5131
    %v5552 = vpack.c.b16 %v5136, %v5132
    %v5553 = vpack.c.b16 %v5141, %v5137
    %v5554 = vpack.c.b16 %v5142, %v5138
    %v5555 = vpack.c.b16 %v5143, %v5139
    %v5556 = vpack.c.b16 %v5144, %v5140
    %v5557 = vpack.c.b16 %v5149, %v5145
    %v5558 = vpack.c.b16 %v5150, %v5146
    %v5559 = vpack.c.b16 %v5151, %v5147
    %v5560 = vpack.c.b16 %v5152, %v5148
    %v5561 = vpack.c.b16 %v5157, %v5153
    %v5562 = vpack.c.b16 %v5158, %v5154
    %v5563 = vpack.c.b16 %v5159, %v5155
    %v5564 = vpack.c.b16 %v5160, %v5156
    %v5565 = vpack.c.b16 %v5165, %v5161
    %v5566 = vpack.c.b16 %v5166, %v5162
    %v5567 = vpack.c.b16 %v5167, %v5163
    %v5568 = vpack.c.b16 %v5168, %v5164
    %v5569 = vpack.c.b16 %v5173, %v5169
    %v5570 = vpack.c.b16 %v5174, %v5170
    %v5571 = vpack.c.b16 %v5175, %v5171
    %v5572 = vpack.c.b16 %v5176, %v5172
    %v5573 = vpack.c.b16 %v5181, %v5177
    %v5574 = vpack.c.b16 %v5182, %v5178
    %v5575 = vpack.c.b16 %v5183, %v5179
    %v5576 = vpack.c.b16 %v5184, %v5180
    %v5577 = vpack.c.b16 %v5189, %v5185
    %v5578 = vpack.c.b16 %v5190, %v5186
    %v5579 = vpack.c.b16 %v5191, %v5187
    %v5580 = vpack.c.b16 %v5192, %v5188
    %v5581 = vpack.c.b16 %v5197, %v5193
    %v5582 = vpack.c.b16 %v5198, %v5194
    %v5583 = vpack.c.b16 %v5199, %v5195
    %v5584 = vpack.c.b16 %v5200, %v5196
    %v5585 = vpack.c.b16 %v5205, %v5201
    %v5586 = vpack.c.b16 %v5206, %v5202
    %v5587 = vpack.c.b16 %v5207, %v5203
    %v5588 = vpack.c.b16 %v5208, %v5204
    %v5589 = vpack.c.b16 %v5213, %v5209
    %v5590 = vpack.c.b16 %v5214, %v5210
    %v5591 = vpack.c.b16 %v5215, %v5211
    %v5592 = vpack.c.b16 %v5216, %v5212
    %v5593 = vpack.c.b16 %v5221, %v5217
    %v5594 = vpack.c.b16 %v5222, %v5218
    %v5595 = vpack.c.b16 %v5223, %v5219
    %v5596 = vpack.c.b16 %v5224, %v5220
    %v5597 = vpack.c.b16 %v5229, %v5225
    %v5598 = vpack.c.b16 %v5230, %v5226
    %v5599 = vpack.c.b16 %v5231, %v5227
    %v5600 = vpack.c.b16 %v5232, %v5228
    %v5601 = vpack.c.b16 %v5237, %v5233
    %v5602 = vpack.c.b16 %v5238, %v5234
    %v5603 = vpack.c.b16 %v5239, %v5235
    %v5604 = vpack.c.b16 %v5240, %v5236
    %v5605 = vpack.c.b16 %v5245, %v5241
    %v5606 = vpack.c.b16 %v5246, %v5242
    %v5607 = vpack.c.b16 %v5247, %v5243
    %v5608 = vpack.c.b16 %v5248, %v5244
    %v5609 = vpack.c.b16 %v5253, %v5249
    %v5610 = vpack.c.b16 %v5254, %v5250
    %v5611 = vpack.c.b16 %v5255, %v5251
    %v5612 = vpack.c.b16 %v5256, %v5252
    %v5613 = vpack.c.b16 %v5261, %v5257
    %v5614 = vpack.c.b16 %v5262, %v5258
    %v5615 = vpack.c.b16 %v5263, %v5259
    %v5616 = vpack.c.b16 %v5264, %v5260
    %v5617 = vpack.c.b16 %v5269, %v5265
    %v5618 = vpack.c.b16 %v5270, %v5266
    %v5619 = vpack.c.b16 %v5271, %v5267
    %v5620 = vpack.c.b16 %v5272, %v5268
    %v5621 = vpack.c.b16 %v5277, %v5273
    %v5622 = vpack.c.b16 %v5278, %v5274
    %v5623 = vpack.c.b16 %v5279, %v5275
    %v5624 = vpack.c.b16 %v5280, %v5276
    %v5625 = vpack.c.b16 %v5285, %v5281
    %v5626 = vpack.c.b16 %v5286, %v5282
    %v5627 = vpack.c.b16 %v5287, %v5283
    %v5628 = vpack.c.b16 %v5288, %v5284
    %v5629 = vpack.c.b16 %v5293, %v5289
    %v5630 = vpack.c.b16 %v5294, %v5290
    %v5631 = vpack.c.b16 %v5295, %v5291
    %v5632 = vpack.c.b16 %v5296, %v5292
    %v5633 = vpack.c.b16 %v5301, %v5297
    %v5634 = vpack.c.b16 %v5302, %v5298
    %v5635 = vpack.c.b16 %v5303, %v5299
    %v5636 = vpack.c.b16 %v5304, %v5300
    %v5637 = vpack.c.b16 %v5309, %v5305
    %v5638 = vpack.c.b16 %v5310, %v5306
    %v5639 = vpack.c.b16 %v5311, %v5307
    %v5640 = vpack.c.b16 %v5312, %v5308
    %v5641 = vpack.c.b16 %v5317, %v5313
    %v5642 = vpack.c.b16 %v5318, %v5314
    %v5643 = vpack.c.b16 %v5319, %v5315
    %v5644 = vpack.c.b16 %v5320, %v5316
    %v5645 = vpack.c.b16 %v5325, %v5321
    %v5646 = vpack.c.b16 %v5326, %v5322
    %v5647 = vpack.c.b16 %v5327, %v5323
    %v5648 = vpack.c.b16 %v5328, %v5324
    %v5649 = vpack.c.b16 %v5333, %v5329
    %v5650 = vpack.c.b16 %v5334, %v5330
    %v5651 = vpack.c.b16 %v5335, %v5331
    %v5652 = vpack.c.b16 %v5336, %v5332
    %v5653 = vpack.c.b16 %v5341, %v5337
    %v5654 = vpack.c.b16 %v5342, %v5338
    %v5655 = vpack.c.b16 %v5343, %v5339
    %v5656 = vpack.c.b16 %v5344, %v5340
    %v5657 = vpack.c.b16 %v5349, %v5345
    %v5658 = vpack.c.b16 %v5350, %v5346
    %v5659 = vpack.c.b16 %v5351, %v5347
    %v5660 = vpack.c.b16 %v5352, %v5348
    %v5661 = vpack.c.b16 %v5357, %v5353
    %v5662 = vpack.c.b16 %v5358, %v5354
    %v5663 = vpack.c.b16 %v5359, %v5355
    %v5664 = vpack.c.b16 %v5360, %v5356
    %v5665 = vpack.c.b16 %v5365, %v5361
    %v5666 = vpack.c.b16 %v5366, %v5362
    %v5667 = vpack.c.b16 %v5367, %v5363
    %v5668 = vpack.c.b16 %v5368, %v5364
    %v5669 = vpack.c.b16 %v5373, %v5369
    %v5670 = vpack.c.b16 %v5374, %v5370
    %v5671 = vpack.c.b16 %v5375, %v5371
    %v5672 = vpack.c.b16 %v5376, %v5372
    %v5673 = vpack.c.b16 %v5381, %v5377
    %v5674 = vpack.c.b16 %v5382, %v5378
    %v5675 = vpack.c.b16 %v5383, %v5379
    %v5676 = vpack.c.b16 %v5384, %v5380
    %v5677 = vpack.c.b16 %v5389, %v5385
    %v5678 = vpack.c.b16 %v5390, %v5386
    %v5679 = vpack.c.b16 %v5391, %v5387
    %v5680 = vpack.c.b16 %v5392, %v5388
    %v5681 = vpack.c.b16 %v5397, %v5393
    %v5682 = vpack.c.b16 %v5398, %v5394
    %v5683 = vpack.c.b16 %v5399, %v5395
    %v5684 = vpack.c.b16 %v5400, %v5396
    %v5685 = vpack.c.b16 %v5405, %v5401
    %v5686 = vpack.c.b16 %v5406, %v5402
    %v5687 = vpack.c.b16 %v5407, %v5403
    %v5688 = vpack.c.b16 %v5408, %v5404
    %v5689 = vpack.c.b16 %v5413, %v5409
    %v5690 = vpack.c.b16 %v5414, %v5410
    %v5691 = vpack.c.b16 %v5415, %v5411
    %v5692 = vpack.c.b16 %v5416, %v5412
    %v5693 = vpack.c.b16 %v5421, %v5417
    %v5694 = vpack.c.b16 %v5422, %v5418
    %v5695 = vpack.c.b16 %v5423, %v5419
    %v5696 = vpack.c.b16 %v5424, %v5420
    %v5697 = vpack.c.b16 %v5429, %v5425
    %v5698 = vpack.c.b16 %v5430, %v5426
    %v5699 = vpack.c.b16 %v5431, %v5427
    %v5700 = vpack.c.b16 %v5432, %v5428
    %v5701 = vpack.c.b16 %v5437, %v5433
    %v5702 = vpack.c.b16 %v5438, %v5434
    %v5703 = vpack.c.b16 %v5439, %v5435
    %v5704 = vpack.c.b16 %v5440, %v5436
    %v5705 = vpack.c.b16 %v5445, %v5441
    %v5706 = vpack.c.b16 %v5446, %v5442
    %v5707 = vpack.c.b16 %v5447, %v5443
    %v5708 = vpack.c.b16 %v5448, %v5444
    %v5709 = vpack.c.b16 %v5453, %v5449
    %v5710 = vpack.c.b16 %v5454, %v5450
    %v5711 = vpack.c.b16 %v5455, %v5451
    %v5712 = vpack.c.b16 %v5456, %v5452
    %5969 = vmatprep.subr.bf16.mxu0 %v5458
    %5970 = vmatpush1.bf16.msra.mxu0 %v5457
    %5971 = vmatprep.subr.bf16.mxu0 %v5462
    %5972 = vmatpush1.bf16.msra.mxu0 %v5461
    %5973 = vmatprep.subr.bf16.mxu0 %v5466
    %5974 = vmatpush1.bf16.msra.mxu0 %v5465
    %5975 = vmatprep.subr.bf16.mxu0 %v5470
    %5976 = vmatpush1.bf16.msra.mxu0 %v5469
    %5977 = vmatprep.subr.bf16.mxu0 %v5474
    %5978 = vmatpush1.bf16.msra.mxu0 %v5473
    %5979 = vmatprep.subr.bf16.mxu0 %v5478
    %5980 = vmatpush1.bf16.msra.mxu0 %v5477
    %5981 = vmatprep.subr.bf16.mxu0 %v5482
    %5982 = vmatpush1.bf16.msra.mxu0 %v5481
    %5983 = vmatprep.subr.bf16.mxu0 %v5486
    %5984 = vmatpush1.bf16.msra.mxu0 %v5485
    %5985 = vmatprep.subr.bf16.mxu0 %v5490
    %5986 = vmatpush1.bf16.msra.mxu0 %v5489
    %5987 = vmatprep.subr.bf16.mxu0 %v5494
    %5988 = vmatpush1.bf16.msra.mxu0 %v5493
    %5989 = vmatprep.subr.bf16.mxu0 %v5498
    %5990 = vmatpush1.bf16.msra.mxu0 %v5497
    %5991 = vmatprep.subr.bf16.mxu0 %v5502
    %5992 = vmatpush1.bf16.msra.mxu0 %v5501
    %5993 = vmatprep.subr.bf16.mxu0 %v5506
    %5994 = vmatpush1.bf16.msra.mxu0 %v5505
    %5995 = vmatprep.subr.bf16.mxu0 %v5510
    %5996 = vmatpush1.bf16.msra.mxu0 %v5509
    %5997 = vmatprep.subr.bf16.mxu0 %v5514
    %5998 = vmatpush1.bf16.msra.mxu0 %v5513
    %5999 = vmatprep.subr.bf16.mxu0 %v5518
    %6000 = vmatpush1.bf16.msra.mxu0 %v5517
    %6001 = vmatprep.mubr.bf16.mxu0 %v4404
    %6002 = vmatmul.mubr.bf16.gmra.mrb[0].mxu0 %v4403
    %v6003 = vpop.f32.mrb[0].mxu0
    %v6004 = vadd.f32 %v4672, %v6003
    %v6005 = vpop.f32.mrb[0].mxu0
    %v6006 = vadd.f32 %v4676, %v6005
    %v6007 = vpop.f32.mrb[0].mxu0
    %v6008 = vadd.f32 %v4672, %v6007
    %v6009 = vpop.f32.mrb[0].mxu0
    %v6010 = vadd.f32 %v4676, %v6009
    %6011 = vdwg.mxu0
    %6012 = vmatprep.subr.bf16.mxu0 %v5522
    %6013 = vmatpush1.bf16.msra.mxu0 %v5521
    %6014 = vmatprep.subr.bf16.mxu0 %v5526
    %6015 = vmatpush1.bf16.msra.mxu0 %v5525
    %6016 = vmatprep.subr.bf16.mxu0 %v5530
    %6017 = vmatpush1.bf16.msra.mxu0 %v5529
    %6018 = vmatprep.subr.bf16.mxu0 %v5534
    %6019 = vmatpush1.bf16.msra.mxu0 %v5533
    %6020 = vmatprep.subr.bf16.mxu0 %v5538
    %6021 = vmatpush1.bf16.msra.mxu0 %v5537
    %6022 = vmatprep.subr.bf16.mxu0 %v5542
    %6023 = vmatpush1.bf16.msra.mxu0 %v5541
    %6024 = vmatprep.subr.bf16.mxu0 %v5546
    %6025 = vmatpush1.bf16.msra.mxu0 %v5545
    %6026 = vmatprep.subr.bf16.mxu0 %v5550
    %6027 = vmatpush1.bf16.msra.mxu0 %v5549
    %6028 = vmatprep.subr.bf16.mxu0 %v5554
    %6029 = vmatpush1.bf16.msra.mxu0 %v5553
    %6030 = vmatprep.subr.bf16.mxu0 %v5558
    %6031 = vmatpush1.bf16.msra.mxu0 %v5557
    %6032 = vmatprep.subr.bf16.mxu0 %v5562
    %6033 = vmatpush1.bf16.msra.mxu0 %v5561
    %6034 = vmatprep.subr.bf16.mxu0 %v5566
    %6035 = vmatpush1.bf16.msra.mxu0 %v5565
    %6036 = vmatprep.subr.bf16.mxu0 %v5570
    %6037 = vmatpush1.bf16.msra.mxu0 %v5569
    %6038 = vmatprep.subr.bf16.mxu0 %v5574
    %6039 = vmatpush1.bf16.msra.mxu0 %v5573
    %6040 = vmatprep.subr.bf16.mxu0 %v5578
    %6041 = vmatpush1.bf16.msra.mxu0 %v5577
    %6042 = vmatprep.subr.bf16.mxu0 %v5582
    %6043 = vmatpush1.bf16.msra.mxu0 %v5581
    %6044 = vmatprep.mubr.bf16.mxu0 %v4406
    %6045 = vmatmul.mubr.bf16.gmra.mrb[0].mxu0 %v4405
    %v6046 = vpop.f32.mrb[0].mxu0
    %v6047 = vadd.f32 %v6004, %v6046
    %v6048 = vpop.f32.mrb[0].mxu0
    %v6049 = vadd.f32 %v6006, %v6048
    %v6050 = vpop.f32.mrb[0].mxu0
    %v6051 = vadd.f32 %v6008, %v6050
    %v6052 = vpop.f32.mrb[0].mxu0
    %v6053 = vadd.f32 %v6010, %v6052
    %6054 = vdwg.mxu0
    %6055 = vmatprep.subr.bf16.mxu0 %v5586
    %6056 = vmatpush1.bf16.msra.mxu0 %v5585
    %6057 = vmatprep.subr.bf16.mxu0 %v5590
    %6058 = vmatpush1.bf16.msra.mxu0 %v5589
    %6059 = vmatprep.subr.bf16.mxu0 %v5594
    %6060 = vmatpush1.bf16.msra.mxu0 %v5593
    %6061 = vmatprep.subr.bf16.mxu0 %v5598
    %6062 = vmatpush1.bf16.msra.mxu0 %v5597
    %6063 = vmatprep.subr.bf16.mxu0 %v5602
    %6064 = vmatpush1.bf16.msra.mxu0 %v5601
    %6065 = vmatprep.subr.bf16.mxu0 %v5606
    %6066 = vmatpush1.bf16.msra.mxu0 %v5605
    %6067 = vmatprep.subr.bf16.mxu0 %v5610
    %6068 = vmatpush1.bf16.msra.mxu0 %v5609
    %6069 = vmatprep.subr.bf16.mxu0 %v5614
    %6070 = vmatpush1.bf16.msra.mxu0 %v5613
    %6071 = vmatprep.subr.bf16.mxu0 %v5618
    %6072 = vmatpush1.bf16.msra.mxu0 %v5617
    %6073 = vmatprep.subr.bf16.mxu0 %v5622
    %6074 = vmatpush1.bf16.msra.mxu0 %v5621
    %6075 = vmatprep.subr.bf16.mxu0 %v5626
    %6076 = vmatpush1.bf16.msra.mxu0 %v5625
    %6077 = vmatprep.subr.bf16.mxu0 %v5630
    %6078 = vmatpush1.bf16.msra.mxu0 %v5629
    %6079 = vmatprep.subr.bf16.mxu0 %v5634
    %6080 = vmatpush1.bf16.msra.mxu0 %v5633
    %6081 = vmatprep.subr.bf16.mxu0 %v5638
    %6082 = vmatpush1.bf16.msra.mxu0 %v5637
    %6083 = vmatprep.subr.bf16.mxu0 %v5642
    %6084 = vmatpush1.bf16.msra.mxu0 %v5641
    %6085 = vmatprep.subr.bf16.mxu0 %v5646
    %6086 = vmatpush1.bf16.msra.mxu0 %v5645
    %6087 = vmatprep.mubr.bf16.mxu0 %v4408
    %6088 = vmatmul.mubr.bf16.gmra.mrb[0].mxu0 %v4407
    %v6089 = vpop.f32.mrb[0].mxu0
    %v6090 = vadd.f32 %v6047, %v6089
    %v6091 = vpop.f32.mrb[0].mxu0
    %v6092 = vadd.f32 %v6049, %v6091
    %v6093 = vpop.f32.mrb[0].mxu0
    %v6094 = vadd.f32 %v6051, %v6093
    %v6095 = vpop.f32.mrb[0].mxu0
    %v6096 = vadd.f32 %v6053, %v6095
    %6097 = vdwg.mxu0
    %6098 = vmatprep.subr.bf16.mxu0 %v5650
    %6099 = vmatpush1.bf16.msra.mxu0 %v5649
    %6100 = vmatprep.subr.bf16.mxu0 %v5654
    %6101 = vmatpush1.bf16.msra.mxu0 %v5653
    %6102 = vmatprep.subr.bf16.mxu0 %v5658
    %6103 = vmatpush1.bf16.msra.mxu0 %v5657
    %6104 = vmatprep.subr.bf16.mxu0 %v5662
    %6105 = vmatpush1.bf16.msra.mxu0 %v5661
    %6106 = vmatprep.subr.bf16.mxu0 %v5666
    %6107 = vmatpush1.bf16.msra.mxu0 %v5665
    %6108 = vmatprep.subr.bf16.mxu0 %v5670
    %6109 = vmatpush1.bf16.msra.mxu0 %v5669
    %6110 = vmatprep.subr.bf16.mxu0 %v5674
    %6111 = vmatpush1.bf16.msra.mxu0 %v5673
    %6112 = vmatprep.subr.bf16.mxu0 %v5678
    %6113 = vmatpush1.bf16.msra.mxu0 %v5677
    %6114 = vmatprep.subr.bf16.mxu0 %v5682
    %6115 = vmatpush1.bf16.msra.mxu0 %v5681
    %6116 = vmatprep.subr.bf16.mxu0 %v5686
    %6117 = vmatpush1.bf16.msra.mxu0 %v5685
    %6118 = vmatprep.subr.bf16.mxu0 %v5690
    %6119 = vmatpush1.bf16.msra.mxu0 %v5689
    %6120 = vmatprep.subr.bf16.mxu0 %v5694
    %6121 = vmatpush1.bf16.msra.mxu0 %v5693
    %6122 = vmatprep.subr.bf16.mxu0 %v5698
    %6123 = vmatpush1.bf16.msra.mxu0 %v5697
    %6124 = vmatprep.subr.bf16.mxu0 %v5702
    %6125 = vmatpush1.bf16.msra.mxu0 %v5701
    %6126 = vmatprep.subr.bf16.mxu0 %v5706
    %6127 = vmatpush1.bf16.msra.mxu0 %v5705
    %6128 = vmatprep.subr.bf16.mxu0 %v5710
    %6129 = vmatpush1.bf16.msra.mxu0 %v5709
    %6130 = vmatprep.mubr.bf16.mxu0 %v4410
    %6131 = vmatmul.mubr.bf16.gmra.mrb[0].mxu0 %v4409
    %v6132 = vpop.f32.mrb[0].mxu0
    %v6133 = vadd.f32 %v6090, %v6132
    %v6134 = vpop.f32.mrb[0].mxu0
    %v6135 = vadd.f32 %v6092, %v6134
    %v6136 = vpop.f32.mrb[0].mxu0
    %v6137 = vadd.f32 %v6094, %v6136
    %v6138 = vpop.f32.mrb[0].mxu0
    %v6139 = vadd.f32 %v6096, %v6138
    %6140 = vdwg.mxu0
    %6141 = vmatprep.subr.bf16.mxu0 %v5460
    %6142 = vmatpush1.bf16.msra.mxu0 %v5459
    %6143 = vmatprep.subr.bf16.mxu0 %v5464
    %6144 = vmatpush1.bf16.msra.mxu0 %v5463
    %6145 = vmatprep.subr.bf16.mxu0 %v5468
    %6146 = vmatpush1.bf16.msra.mxu0 %v5467
    %6147 = vmatprep.subr.bf16.mxu0 %v5472
    %6148 = vmatpush1.bf16.msra.mxu0 %v5471
    %6149 = vmatprep.subr.bf16.mxu0 %v5476
    %6150 = vmatpush1.bf16.msra.mxu0 %v5475
    %6151 = vmatprep.subr.bf16.mxu0 %v5480
    %6152 = vmatpush1.bf16.msra.mxu0 %v5479
    %6153 = vmatprep.subr.bf16.mxu0 %v5484
    %6154 = vmatpush1.bf16.msra.mxu0 %v5483
    %6155 = vmatprep.subr.bf16.mxu0 %v5488
    %6156 = vmatpush1.bf16.msra.mxu0 %v5487
    %6157 = vmatprep.subr.bf16.mxu0 %v5492
    %6158 = vmatpush1.bf16.msra.mxu0 %v5491
    %6159 = vmatprep.subr.bf16.mxu0 %v5496
    %6160 = vmatpush1.bf16.msra.mxu0 %v5495
    %6161 = vmatprep.subr.bf16.mxu0 %v5500
    %6162 = vmatpush1.bf16.msra.mxu0 %v5499
    %6163 = vmatprep.subr.bf16.mxu0 %v5504
    %6164 = vmatpush1.bf16.msra.mxu0 %v5503
    %6165 = vmatprep.subr.bf16.mxu0 %v5508
    %6166 = vmatpush1.bf16.msra.mxu0 %v5507
    %6167 = vmatprep.subr.bf16.mxu0 %v5512
    %6168 = vmatpush1.bf16.msra.mxu0 %v5511
    %6169 = vmatprep.subr.bf16.mxu0 %v5516
    %6170 = vmatpush1.bf16.msra.mxu0 %v5515
    %6171 = vmatprep.subr.bf16.mxu0 %v5520
    %6172 = vmatpush1.bf16.msra.mxu0 %v5519
    %6173 = vmatprep.mubr.bf16.mxu0 %v4404
    %6174 = vmatmul.mubr.bf16.gmra.mrb[0].mxu0 %v4403
    %v6175 = vpop.f32.mrb[0].mxu0
    %v6176 = vadd.f32 %v4680, %v6175
    %v6177 = vpop.f32.mrb[0].mxu0
    %v6178 = vadd.f32 %v4684, %v6177
    %v6179 = vpop.f32.mrb[0].mxu0
    %v6180 = vadd.f32 %v4680, %v6179
    %v6181 = vpop.f32.mrb[0].mxu0
    %v6182 = vadd.f32 %v4684, %v6181
    %6183 = vdwg.mxu0
    %6184 = vmatprep.subr.bf16.mxu0 %v5524
    %6185 = vmatpush1.bf16.msra.mxu0 %v5523
    %6186 = vmatprep.subr.bf16.mxu0 %v5528
    %6187 = vmatpush1.bf16.msra.mxu0 %v5527
    %6188 = vmatprep.subr.bf16.mxu0 %v5532
    %6189 = vmatpush1.bf16.msra.mxu0 %v5531
    %6190 = vmatprep.subr.bf16.mxu0 %v5536
    %6191 = vmatpush1.bf16.msra.mxu0 %v5535
    %6192 = vmatprep.subr.bf16.mxu0 %v5540
    %6193 = vmatpush1.bf16.msra.mxu0 %v5539
    %6194 = vmatprep.subr.bf16.mxu0 %v5544
    %6195 = vmatpush1.bf16.msra.mxu0 %v5543
    %6196 = vmatprep.subr.bf16.mxu0 %v5548
    %6197 = vmatpush1.bf16.msra.mxu0 %v5547
    %6198 = vmatprep.subr.bf16.mxu0 %v5552
    %6199 = vmatpush1.bf16.msra.mxu0 %v5551
    %6200 = vmatprep.subr.bf16.mxu0 %v5556
    %6201 = vmatpush1.bf16.msra.mxu0 %v5555
    %6202 = vmatprep.subr.bf16.mxu0 %v5560
    %6203 = vmatpush1.bf16.msra.mxu0 %v5559
    %6204 = vmatprep.subr.bf16.mxu0 %v5564
    %6205 = vmatpush1.bf16.msra.mxu0 %v5563
    %6206 = vmatprep.subr.bf16.mxu0 %v5568
    %6207 = vmatpush1.bf16.msra.mxu0 %v5567
    %6208 = vmatprep.subr.bf16.mxu0 %v5572
    %6209 = vmatpush1.bf16.msra.mxu0 %v5571
    %6210 = vmatprep.subr.bf16.mxu0 %v5576
    %6211 = vmatpush1.bf16.msra.mxu0 %v5575
    %6212 = vmatprep.subr.bf16.mxu0 %v5580
    %6213 = vmatpush1.bf16.msra.mxu0 %v5579
    %6214 = vmatprep.subr.bf16.mxu0 %v5584
    %6215 = vmatpush1.bf16.msra.mxu0 %v5583
    %6216 = vmatprep.mubr.bf16.mxu0 %v4406
    %6217 = vmatmul.mubr.bf16.gmra.mrb[0].mxu0 %v4405
    %v6218 = vpop.f32.mrb[0].mxu0
    %v6219 = vadd.f32 %v6176, %v6218
    %v6220 = vpop.f32.mrb[0].mxu0
    %v6221 = vadd.f32 %v6178, %v6220
    %v6222 = vpop.f32.mrb[0].mxu0
    %v6223 = vadd.f32 %v6180, %v6222
    %v6224 = vpop.f32.mrb[0].mxu0
    %v6225 = vadd.f32 %v6182, %v6224
    %6226 = vdwg.mxu0
    %6227 = vmatprep.subr.bf16.mxu0 %v5588
    %6228 = vmatpush1.bf16.msra.mxu0 %v5587
    %6229 = vmatprep.subr.bf16.mxu0 %v5592
    %6230 = vmatpush1.bf16.msra.mxu0 %v5591
    %6231 = vmatprep.subr.bf16.mxu0 %v5596
    %6232 = vmatpush1.bf16.msra.mxu0 %v5595
    %6233 = vmatprep.subr.bf16.mxu0 %v5600
    %6234 = vmatpush1.bf16.msra.mxu0 %v5599
    %6235 = vmatprep.subr.bf16.mxu0 %v5604
    %6236 = vmatpush1.bf16.msra.mxu0 %v5603
    %6237 = vmatprep.subr.bf16.mxu0 %v5608
    %6238 = vmatpush1.bf16.msra.mxu0 %v5607
    %6239 = vmatprep.subr.bf16.mxu0 %v5612
    %6240 = vmatpush1.bf16.msra.mxu0 %v5611
    %6241 = vmatprep.subr.bf16.mxu0 %v5616
    %6242 = vmatpush1.bf16.msra.mxu0 %v5615
    %6243 = vmatprep.subr.bf16.mxu0 %v5620
    %6244 = vmatpush1.bf16.msra.mxu0 %v5619
    %6245 = vmatprep.subr.bf16.mxu0 %v5624
    %6246 = vmatpush1.bf16.msra.mxu0 %v5623
    %6247 = vmatprep.subr.bf16.mxu0 %v5628
    %6248 = vmatpush1.bf16.msra.mxu0 %v5627
    %6249 = vmatprep.subr.bf16.mxu0 %v5632
    %6250 = vmatpush1.bf16.msra.mxu0 %v5631
    %6251 = vmatprep.subr.bf16.mxu0 %v5636
    %6252 = vmatpush1.bf16.msra.mxu0 %v5635
    %6253 = vmatprep.subr.bf16.mxu0 %v5640
    %6254 = vmatpush1.bf16.msra.mxu0 %v5639
    %6255 = vmatprep.subr.bf16.mxu0 %v5644
    %6256 = vmatpush1.bf16.msra.mxu0 %v5643
    %6257 = vmatprep.subr.bf16.mxu0 %v5648
    %6258 = vmatpush1.bf16.msra.mxu0 %v5647
    %6259 = vmatprep.mubr.bf16.mxu0 %v4408
    %6260 = vmatmul.mubr.bf16.gmra.mrb[0].mxu0 %v4407
    %v6261 = vpop.f32.mrb[0].mxu0
    %v6262 = vadd.f32 %v6219, %v6261
    %v6263 = vpop.f32.mrb[0].mxu0
    %v6264 = vadd.f32 %v6221, %v6263
    %v6265 = vpop.f32.mrb[0].mxu0
    %v6266 = vadd.f32 %v6223, %v6265
    %v6267 = vpop.f32.mrb[0].mxu0
    %v6268 = vadd.f32 %v6225, %v6267
    %6269 = vdwg.mxu0
    %6270 = vmatprep.subr.bf16.mxu0 %v5652
    %6271 = vmatpush1.bf16.msra.mxu0 %v5651
    %6272 = vmatprep.subr.bf16.mxu0 %v5656
    %6273 = vmatpush1.bf16.msra.mxu0 %v5655
    %6274 = vmatprep.subr.bf16.mxu0 %v5660
    %6275 = vmatpush1.bf16.msra.mxu0 %v5659
    %6276 = vmatprep.subr.bf16.mxu0 %v5664
    %6277 = vmatpush1.bf16.msra.mxu0 %v5663
    %6278 = vmatprep.subr.bf16.mxu0 %v5668
    %6279 = vmatpush1.bf16.msra.mxu0 %v5667
    %6280 = vmatprep.subr.bf16.mxu0 %v5672
    %6281 = vmatpush1.bf16.msra.mxu0 %v5671
    %6282 = vmatprep.subr.bf16.mxu0 %v5676
    %6283 = vmatpush1.bf16.msra.mxu0 %v5675
    %6284 = vmatprep.subr.bf16.mxu0 %v5680
    %6285 = vmatpush1.bf16.msra.mxu0 %v5679
    %6286 = vmatprep.subr.bf16.mxu0 %v5684
    %6287 = vmatpush1.bf16.msra.mxu0 %v5683
    %6288 = vmatprep.subr.bf16.mxu0 %v5688
    %6289 = vmatpush1.bf16.msra.mxu0 %v5687
    %6290 = vmatprep.subr.bf16.mxu0 %v5692
    %6291 = vmatpush1.bf16.msra.mxu0 %v5691
    %6292 = vmatprep.subr.bf16.mxu0 %v5696
    %6293 = vmatpush1.bf16.msra.mxu0 %v5695
    %6294 = vmatprep.subr.bf16.mxu0 %v5700
    %6295 = vmatpush1.bf16.msra.mxu0 %v5699
    %6296 = vmatprep.subr.bf16.mxu0 %v5704
    %6297 = vmatpush1.bf16.msra.mxu0 %v5703
    %6298 = vmatprep.subr.bf16.mxu0 %v5708
    %6299 = vmatpush1.bf16.msra.mxu0 %v5707
    %6300 = vmatprep.subr.bf16.mxu0 %v5712
    %6301 = vmatpush1.bf16.msra.mxu0 %v5711
    %6302 = vmatprep.mubr.bf16.mxu0 %v4410
    %6303 = vmatmul.mubr.bf16.gmra.mrb[0].mxu0 %v4409
    %v6304 = vpop.f32.mrb[0].mxu0
    %v6305 = vadd.f32 %v6262, %v6304
    %v6306 = vpop.f32.mrb[0].mxu0
    %v6307 = vadd.f32 %v6264, %v6306
    %v6308 = vpop.f32.mrb[0].mxu0
    %v6309 = vadd.f32 %v6266, %v6308
    %v6310 = vpop.f32.mrb[0].mxu0
    %v6311 = vadd.f32 %v6268, %v6310
    %6312 = vdwg.mxu0
    %v6313 = vmax.f32 %v6133, 0.0
    %v6314 = vmax.f32 %v6135, 0.0
    %v6315 = vmax.f32 %v6305, 0.0
    %v6316 = vmax.f32 %v6307, 0.0
    %v6317 = vmax.f32 %v6137, 0.0
    %v6318 = vmax.f32 %v6139, 0.0
    %v6319 = vmax.f32 %v6309, 0.0
    %v6320 = vmax.f32 %v6311, 0.0
    %v6321 = vpack.c.bf16 %v6317, %v6313
    %v6322 = vpack.c.bf16 %v6318, %v6314
    %v6323 = vpack.c.bf16 %v6319, %v6315
    %v6324 = vpack.c.bf16 %v6320, %v6316
    %v6325 = vld [vmem:[#allocation14] sm:$0xf]
    %v6326 = vld [vmem:[#allocation14 + $0x4] sm:$0xf]
    %v6327 = vld [vmem:[#allocation14 + $0x8] sm:$0xf]
    %v6328 = vld [vmem:[#allocation14 + $0xc] sm:$0xf]
    %v6329 = vld [vmem:[#allocation14 + $0x10] sm:$0xf]
    %v6330 = vld [vmem:[#allocation14 + $0x14] sm:$0xf]
    %v6331 = vld [vmem:[#allocation14 + $0x18] sm:$0xf]
    %v6332 = vld [vmem:[#allocation14 + $0x1c] sm:$0xf]
    %v6333 = vld [vmem:[#allocation14 + $0x20] sm:$0xf]
    %v6334 = vld [vmem:[#allocation14 + $0x24] sm:$0xf]
    %v6335 = vld [vmem:[#allocation14 + $0x28] sm:$0xf]
    %v6336 = vld [vmem:[#allocation14 + $0x2c] sm:$0xf]
    %v6337 = vld [vmem:[#allocation14 + $0x30] sm:$0xf]
    %v6338 = vld [vmem:[#allocation14 + $0x34] sm:$0xf]
    %v6339 = vld [vmem:[#allocation14 + $0x38] sm:$0xf]
    %v6340 = vld [vmem:[#allocation14 + $0x3c] sm:$0xf]
    %v6341 = vld [vmem:[#allocation14 + $0x40] sm:$0xf]
    %v6342 = vld [vmem:[#allocation14 + $0x44] sm:$0xf]
    %v6343 = vld [vmem:[#allocation14 + $0x48] sm:$0xf]
    %v6344 = vld [vmem:[#allocation14 + $0x4c] sm:$0xf]
    %v6345 = vld [vmem:[#allocation14 + $0x50] sm:$0xf]
    %v6346 = vld [vmem:[#allocation14 + $0x54] sm:$0xf]
    %v6347 = vld [vmem:[#allocation14 + $0x58] sm:$0xf]
    %v6348 = vld [vmem:[#allocation14 + $0x5c] sm:$0xf]
    %v6349 = vld [vmem:[#allocation14 + $0x60] sm:$0xf]
    %v6350 = vld [vmem:[#allocation14 + $0x64] sm:$0xf]
    %v6351 = vld [vmem:[#allocation14 + $0x68] sm:$0xf]
    %v6352 = vld [vmem:[#allocation14 + $0x6c] sm:$0xf]
    %v6353 = vld [vmem:[#allocation14 + $0x70] sm:$0xf]
    %v6354 = vld [vmem:[#allocation14 + $0x74] sm:$0xf]
    %v6355 = vld [vmem:[#allocation14 + $0x78] sm:$0xf]
    %v6356 = vld [vmem:[#allocation14 + $0x7c] sm:$0xf]
    %v6357 = vld [vmem:[#allocation14 + $0x80] sm:$0xf]
    %v6358 = vld [vmem:[#allocation14 + $0x84] sm:$0xf]
    %v6359 = vld [vmem:[#allocation14 + $0x88] sm:$0xf]
    %v6360 = vld [vmem:[#allocation14 + $0x8c] sm:$0xf]
    %v6361 = vld [vmem:[#allocation14 + $0x90] sm:$0xf]
    %v6362 = vld [vmem:[#allocation14 + $0x94] sm:$0xf]
    %v6363 = vld [vmem:[#allocation14 + $0x98] sm:$0xf]
    %v6364 = vld [vmem:[#allocation14 + $0x9c] sm:$0xf]
    %v6365 = vld [vmem:[#allocation14 + $0xa0] sm:$0xf]
    %v6366 = vld [vmem:[#allocation14 + $0xa4] sm:$0xf]
    %v6367 = vld [vmem:[#allocation14 + $0xa8] sm:$0xf]
    %v6368 = vld [vmem:[#allocation14 + $0xac] sm:$0xf]
    %v6369 = vld [vmem:[#allocation14 + $0xb0] sm:$0xf]
    %v6370 = vld [vmem:[#allocation14 + $0xb4] sm:$0xf]
    %v6371 = vld [vmem:[#allocation14 + $0xb8] sm:$0xf]
    %v6372 = vld [vmem:[#allocation14 + $0xbc] sm:$0xf]
    %v6373 = vld [vmem:[#allocation14 + $0xc0] sm:$0xf]
    %v6374 = vld [vmem:[#allocation14 + $0xc4] sm:$0xf]
    %v6375 = vld [vmem:[#allocation14 + $0xc8] sm:$0xf]
    %v6376 = vld [vmem:[#allocation14 + $0xcc] sm:$0xf]
    %v6377 = vld [vmem:[#allocation14 + $0xd0] sm:$0xf]
    %v6378 = vld [vmem:[#allocation14 + $0xd4] sm:$0xf]
    %v6379 = vld [vmem:[#allocation14 + $0xd8] sm:$0xf]
    %v6380 = vld [vmem:[#allocation14 + $0xdc] sm:$0xf]
    %v6381 = vld [vmem:[#allocation14 + $0xe0] sm:$0xf]
    %v6382 = vld [vmem:[#allocation14 + $0xe4] sm:$0xf]
    %v6383 = vld [vmem:[#allocation14 + $0xe8] sm:$0xf]
    %v6384 = vld [vmem:[#allocation14 + $0xec] sm:$0xf]
    %v6385 = vld [vmem:[#allocation14 + $0xf0] sm:$0xf]
    %v6386 = vld [vmem:[#allocation14 + $0xf4] sm:$0xf]
    %v6387 = vld [vmem:[#allocation14 + $0xf8] sm:$0xf]
    %v6388 = vld [vmem:[#allocation14 + $0xfc] sm:$0xf]
    %v6389 = vld [vmem:[#allocation16] sm:$0x1]
    %v6391 = vlaneseq
    %v6392 = vshrl.u32 %v6391, 7
    %v6393 = vsub.s32 0, %v6392
    %v6394 = vrot.slane %v6389, %v6393
    %v6460 = vunpack.c.l.b16 %v6325
    %v6461 = vunpack.c.l.b16 %v6326
    %v6462 = vunpack.c.l.b16 %v6327
    %v6463 = vunpack.c.l.b16 %v6328
    %v6464 = vunpack.c.l.b16 %v6329
    %v6465 = vunpack.c.l.b16 %v6330
    %v6466 = vunpack.c.l.b16 %v6331
    %v6467 = vunpack.c.l.b16 %v6332
    %v6468 = vunpack.c.l.b16 %v6333
    %v6469 = vunpack.c.l.b16 %v6334
    %v6470 = vunpack.c.l.b16 %v6335
    %v6471 = vunpack.c.l.b16 %v6336
    %v6472 = vunpack.c.l.b16 %v6337
    %v6473 = vunpack.c.l.b16 %v6338
    %v6474 = vunpack.c.l.b16 %v6339
    %v6475 = vunpack.c.l.b16 %v6340
    %v6476 = vunpack.c.l.b16 %v6341
    %v6477 = vunpack.c.l.b16 %v6342
    %v6478 = vunpack.c.l.b16 %v6343
    %v6479 = vunpack.c.l.b16 %v6344
    %v6480 = vunpack.c.l.b16 %v6345
    %v6481 = vunpack.c.l.b16 %v6346
    %v6482 = vunpack.c.l.b16 %v6347
    %v6483 = vunpack.c.l.b16 %v6348
    %v6484 = vunpack.c.l.b16 %v6349
    %v6485 = vunpack.c.l.b16 %v6350
    %v6486 = vunpack.c.l.b16 %v6351
    %v6487 = vunpack.c.l.b16 %v6352
    %v6488 = vunpack.c.l.b16 %v6353
    %v6489 = vunpack.c.l.b16 %v6354
    %v6490 = vunpack.c.l.b16 %v6355
    %v6491 = vunpack.c.l.b16 %v6356
    %v6492 = vunpack.c.l.b16 %v6357
    %v6493 = vunpack.c.l.b16 %v6358
    %v6494 = vunpack.c.l.b16 %v6359
    %v6495 = vunpack.c.l.b16 %v6360
    %v6496 = vunpack.c.l.b16 %v6361
    %v6497 = vunpack.c.l.b16 %v6362
    %v6498 = vunpack.c.l.b16 %v6363
    %v6499 = vunpack.c.l.b16 %v6364
    %v6500 = vunpack.c.l.b16 %v6365
    %v6501 = vunpack.c.l.b16 %v6366
    %v6502 = vunpack.c.l.b16 %v6367
    %v6503 = vunpack.c.l.b16 %v6368
    %v6504 = vunpack.c.l.b16 %v6369
    %v6505 = vunpack.c.l.b16 %v6370
    %v6506 = vunpack.c.l.b16 %v6371
    %v6507 = vunpack.c.l.b16 %v6372
    %v6508 = vunpack.c.l.b16 %v6373
    %v6509 = vunpack.c.l.b16 %v6374
    %v6510 = vunpack.c.l.b16 %v6375
    %v6511 = vunpack.c.l.b16 %v6376
    %v6512 = vunpack.c.l.b16 %v6377
    %v6513 = vunpack.c.l.b16 %v6378
    %v6514 = vunpack.c.l.b16 %v6379
    %v6515 = vunpack.c.l.b16 %v6380
    %v6516 = vunpack.c.l.b16 %v6381
    %v6517 = vunpack.c.l.b16 %v6382
    %v6518 = vunpack.c.l.b16 %v6383
    %v6519 = vunpack.c.l.b16 %v6384
    %v6520 = vunpack.c.l.b16 %v6385
    %v6521 = vunpack.c.l.b16 %v6386
    %v6522 = vunpack.c.l.b16 %v6387
    %v6523 = vunpack.c.l.b16 %v6388
    %v6524 = vpack.c.b16 %v6461, %v6460
    %v6525 = vpack.c.b16 %v6463, %v6462
    %v6526 = vpack.c.b16 %v6465, %v6464
    %v6527 = vpack.c.b16 %v6467, %v6466
    %v6528 = vpack.c.b16 %v6469, %v6468
    %v6529 = vpack.c.b16 %v6471, %v6470
    %v6530 = vpack.c.b16 %v6473, %v6472
    %v6531 = vpack.c.b16 %v6475, %v6474
    %v6532 = vpack.c.b16 %v6477, %v6476
    %v6533 = vpack.c.b16 %v6479, %v6478
    %v6534 = vpack.c.b16 %v6481, %v6480
    %v6535 = vpack.c.b16 %v6483, %v6482
    %v6536 = vpack.c.b16 %v6485, %v6484
    %v6537 = vpack.c.b16 %v6487, %v6486
    %v6538 = vpack.c.b16 %v6489, %v6488
    %v6539 = vpack.c.b16 %v6491, %v6490
    %v6540 = vpack.c.b16 %v6493, %v6492
    %v6541 = vpack.c.b16 %v6495, %v6494
    %v6542 = vpack.c.b16 %v6497, %v6496
    %v6543 = vpack.c.b16 %v6499, %v6498
    %v6544 = vpack.c.b16 %v6501, %v6500
    %v6545 = vpack.c.b16 %v6503, %v6502
    %v6546 = vpack.c.b16 %v6505, %v6504
    %v6547 = vpack.c.b16 %v6507, %v6506
    %v6548 = vpack.c.b16 %v6509, %v6508
    %v6549 = vpack.c.b16 %v6511, %v6510
    %v6550 = vpack.c.b16 %v6513, %v6512
    %v6551 = vpack.c.b16 %v6515, %v6514
    %v6552 = vpack.c.b16 %v6517, %v6516
    %v6553 = vpack.c.b16 %v6519, %v6518
    %v6554 = vpack.c.b16 %v6521, %v6520
    %v6555 = vpack.c.b16 %v6523, %v6522
    %6588 = vmatprep.subr.bf16.mxu0 0
    %6589 = vmatpush1.bf16.msra.mxu0 %v6524
    %6590 = vmatprep.subr.bf16.mxu0 0
    %6591 = vmatpush1.bf16.msra.mxu0 %v6525
    %6592 = vmatprep.subr.bf16.mxu0 0
    %6593 = vmatpush1.bf16.msra.mxu0 %v6526
    %6594 = vmatprep.subr.bf16.mxu0 0
    %6595 = vmatpush1.bf16.msra.mxu0 %v6527
    %6596 = vmatprep.subr.bf16.mxu0 0
    %6597 = vmatpush1.bf16.msra.mxu0 %v6528
    %6598 = vmatprep.subr.bf16.mxu0 0
    %6599 = vmatpush1.bf16.msra.mxu0 %v6529
    %6600 = vmatprep.subr.bf16.mxu0 0
    %6601 = vmatpush1.bf16.msra.mxu0 %v6530
    %6602 = vmatprep.subr.bf16.mxu0 0
    %6603 = vmatpush1.bf16.msra.mxu0 %v6531
    %6604 = vmatprep.subr.bf16.mxu0 0
    %6605 = vmatpush1.bf16.msra.mxu0 %v6532
    %6606 = vmatprep.subr.bf16.mxu0 0
    %6607 = vmatpush1.bf16.msra.mxu0 %v6533
    %6608 = vmatprep.subr.bf16.mxu0 0
    %6609 = vmatpush1.bf16.msra.mxu0 %v6534
    %6610 = vmatprep.subr.bf16.mxu0 0
    %6611 = vmatpush1.bf16.msra.mxu0 %v6535
    %6612 = vmatprep.subr.bf16.mxu0 0
    %6613 = vmatpush1.bf16.msra.mxu0 %v6536
    %6614 = vmatprep.subr.bf16.mxu0 0
    %6615 = vmatpush1.bf16.msra.mxu0 %v6537
    %6616 = vmatprep.subr.bf16.mxu0 0
    %6617 = vmatpush1.bf16.msra.mxu0 %v6538
    %6618 = vmatprep.subr.bf16.mxu0 0
    %6619 = vmatpush1.bf16.msra.mxu0 %v6539
    %6620 = vmatprep.mubr.bf16.mxu0 %v6322
    %6621 = vmatmul.mubr.bf16.gmra.mrb[0].mxu0 %v6321
    %v6622 = vpop.f32.mrb[0].mxu0
    %v6623 = vadd.f32 %v6394, %v6622
    %v6624 = vpop.f32.mrb[0].mxu0
    %v6625 = vpop.f32.mrb[0].mxu0
    %v6626 = vadd.f32 %v6394, %v6625
    %v6627 = vpop.f32.mrb[0].mxu0
    %6628 = vdwg.mxu0
    %6629 = vmatprep.subr.bf16.mxu0 0
    %6630 = vmatpush1.bf16.msra.mxu0 %v6540
    %6631 = vmatprep.subr.bf16.mxu0 0
    %6632 = vmatpush1.bf16.msra.mxu0 %v6541
    %6633 = vmatprep.subr.bf16.mxu0 0
    %6634 = vmatpush1.bf16.msra.mxu0 %v6542
    %6635 = vmatprep.subr.bf16.mxu0 0
    %6636 = vmatpush1.bf16.msra.mxu0 %v6543
    %6637 = vmatprep.subr.bf16.mxu0 0
    %6638 = vmatpush1.bf16.msra.mxu0 %v6544
    %6639 = vmatprep.subr.bf16.mxu0 0
    %6640 = vmatpush1.bf16.msra.mxu0 %v6545
    %6641 = vmatprep.subr.bf16.mxu0 0
    %6642 = vmatpush1.bf16.msra.mxu0 %v6546
    %6643 = vmatprep.subr.bf16.mxu0 0
    %6644 = vmatpush1.bf16.msra.mxu0 %v6547
    %6645 = vmatprep.subr.bf16.mxu0 0
    %6646 = vmatpush1.bf16.msra.mxu0 %v6548
    %6647 = vmatprep.subr.bf16.mxu0 0
    %6648 = vmatpush1.bf16.msra.mxu0 %v6549
    %6649 = vmatprep.subr.bf16.mxu0 0
    %6650 = vmatpush1.bf16.msra.mxu0 %v6550
    %6651 = vmatprep.subr.bf16.mxu0 0
    %6652 = vmatpush1.bf16.msra.mxu0 %v6551
    %6653 = vmatprep.subr.bf16.mxu0 0
    %6654 = vmatpush1.bf16.msra.mxu0 %v6552
    %6655 = vmatprep.subr.bf16.mxu0 0
    %6656 = vmatpush1.bf16.msra.mxu0 %v6553
    %6657 = vmatprep.subr.bf16.mxu0 0
    %6658 = vmatpush1.bf16.msra.mxu0 %v6554
    %6659 = vmatprep.subr.bf16.mxu0 0
    %6660 = vmatpush1.bf16.msra.mxu0 %v6555
    %6661 = vmatprep.mubr.bf16.mxu0 %v6324
    %6662 = vmatmul.mubr.bf16.gmra.mrb[0].mxu0 %v6323
    %v6663 = vpop.f32.mrb[0].mxu0
    %v6664 = vadd.f32 %v6623, %v6663
    %v6665 = vpop.f32.mrb[0].mxu0
    %v6666 = vpop.f32.mrb[0].mxu0
    %v6667 = vadd.f32 %v6626, %v6666
    %v6668 = vpop.f32.mrb[0].mxu0
    %6669 = vdwg.mxu0
    %6670 = vst [vmem:[#allocation17] sm:$0xff] %v6664
    %6671 = vst [vmem:[#allocation17 + $0x8] sm:$0xff] %v6667
    // Predicated region
    $region74: #{tpu_custom_call.1} parent=1 // pred_check
      _
    $region75: #{tpu_custom_call.1} parent=1 // pred_check_branch
      %6673 = sbr.rel (0) target = $region77
    $region76: #{tpu_custom_call.1} parent=1 // pred_region
      %s6675 = ssub.s32 256, 256
      %6676 = vsyncadd [#allocation4], %s6675
      %s6677 = sshll.u32 [#allocation17], 4
      %s6678 = int_to_ptr.vmem [resolvable:$true] %s6677
      %6683 = dma.vmem_to_hbm [thread:$0]  %s6678, 256, %s9, [#allocation4], 128, 128, 8
    $region77: #{tpu_custom_call.1} parent=1 // pred_fallthru
      _
    // Predicated region
    $region78: #{tpu_custom_call.1} parent=1 // pred_check
      _
    $region79: #{tpu_custom_call.1} parent=1 // pred_check_branch
      %6685 = sbr.rel (0) target = $region81
    $region80: #{tpu_custom_call.1} parent=1 // pred_region
      %6686 = dma.done [#allocation4], 256
    $region81: #{tpu_custom_call.1} parent=1 // pred_fallthru
      _
    %6687 = vsyncpa [#allocation3], 1
    %6688 = vsyncpa [#allocation6], 1
    %6689 = vsyncpa [#allocation9], 1
    %6690 = vsyncpa [#allocation12], 1
    %6691 = vsyncpa [#allocation15], 1
    %6692 = vsyncpa [#allocation4], 1

</llo_original>
